<compile_context>
chip_gen: v6e
topology: v6e:2x2x1
jax: 0.10.0
libtpu: 0.0.40
codegen_flags: <defaults>
</compile_context>

<pallas_src>
import functools
import math

import jax
import jax.numpy as jnp
from jax.experimental import pallas as pl
from jax.experimental.pallas import tpu as pltpu

K_TAPS = 15
PAD = K_TAPS // 2            # 7
BN_EPS = 1e-5
LRELU_SLOPE = 0.1
MARGIN = 128                 # lane-aligned halo on each side of the activation buffers
PAD_BLOCK = 128              # aligned zero block written right of each layer's interior
MIN_CIN = 8                  # pad tiny channel counts up to one sublane group


# ---------------------------------------------------------------------------
# Fused kernel: all Conv1d(k=15,'same') + BN + leaky_relu (+ ::2) layers and
# the temporal mean, for one batch element per grid step.
# ---------------------------------------------------------------------------
def _encoder_fused_kernel(*refs, layers):
    # refs = [x, w_0..w_{n-1}, sb_0..sb_{n-1}, sel, out, buf_a, buf_b, u]
    #   x   : (Cin0, L0)          bf16  channel-padded input, one batch element
    #   w_i : (Cout_i, K*Cin_i)   bf16  columns ordered k*Cin_i + ci (resident)
    #   sb_i: (Cout_i, 2)         f32   col 0 = folded BN scale, col 1 = folded bias
    #   sel : (Ls, Ls//2)         bf16  sel[r, c] = 1 iff r == 2c  (::2 decimation)
    #   out : (Cfinal, 1)         f32   temporal mean
    #   buf_a/buf_b: (Cmax, L0+2*MARGIN) bf16 ping-pong activations (zero halos)
    #   u   : (K*Cin_max, L0)     bf16  im2col block
    n = len(layers)
    x_ref = refs[0]
    w_refs = refs[1:1 + n]
    sb_refs = refs[1 + n:1 + 2 * n]
    sel_ref = refs[1 + 2 * n]
    out_ref = refs[2 + 2 * n]
    buf_a, buf_b, u_ref = refs[3 + 2 * n], refs[4 + 2 * n], refs[5 + 2 * n]
    bufs = (buf_a, buf_b)

    # One-time zero of both ping-pong buffers: the halo margins supply the
    # Conv1d 'same' zero padding for every layer (never re-zeroed per layer).
    buf_a[...] = jnp.zeros_like(buf_a)
    buf_b[...] = jnp.zeros_like(buf_b)

    # Stage the input sequence into buffer 0's lane-aligned interior.
    cin0, l0 = x_ref.shape
    buf_a[:cin0, MARGIN:MARGIN + l0] = x_ref[...]

    cur = 0
    for i, (cin, cout, l_in, stride) in enumerate(layers):
        src, dst = bufs[cur], bufs[1 - cur]
        kcin = K_TAPS * cin
        l_out = l_in // stride

        # im2col (bf16, VMEM->VMEM): U[k*cin + ci, j] = x_pad[ci, j + k - PAD].
        for k in range(K_TAPS):
            u_ref[k * cin:(k + 1) * cin, :l_in] = src[
                :cin, MARGIN - PAD + k:MARGIN - PAD + k + l_in]

        # One deep-contraction bf16 MXU matmul (depth K*Cin = 120..240), f32 acc.
        acc = jnp.dot(w_refs[i][...], u_ref[:kcin, :l_in],
                      preferred_element_type=jnp.float32)

        # Folded BatchNorm (conv bias folded in) + leaky_relu(0.1), f32 on VPU.
        sb = sb_refs[i][...]
        y = acc * sb[:, 0:1] + sb[:, 1:2]
        y = jnp.where(y > 0.0, y, LRELU_SLOPE * y).astype(jnp.bfloat16)

        if stride == 2:
            # x[:, :, ::2] as a bf16 MXU matmul against the host-precomputed
            # selection matrix (no in-kernel iota, no vreg spill, no strided
            # minor-dim loads).  Column selection commutes with the epilogue.
            y = jnp.dot(y, sel_ref[:l_in, :l_out],
                        preferred_element_type=jnp.float32).astype(jnp.bfloat16)

        if i + 1 < n:
            dst[:cout, MARGIN:MARGIN + l_out] = y
            # Keep the right halo zero: lengths shrink at stride-2 layers, so a
            # longer stale output previously written to this buffer must not
            # leak into the next layer's 'same' padding.  Aligned 128-lane store.
            dst[:cout, MARGIN + l_out:MARGIN + l_out + PAD_BLOCK] = jnp.zeros(
                (cout, PAD_BLOCK), jnp.bfloat16)
            cur = 1 - cur
        else:
            # Fused temporal mean: torch.sum(x, dim=2) / x.shape[2].
            out_ref[...] = jnp.sum(y.astype(jnp.float32), axis=1,
                                   keepdims=True) * (1.0 / l_out)


# ---------------------------------------------------------------------------
# Parameter init (deterministic, synthetic — mirrors base_encoder.__init__,
# inference-mode BatchNorm folded with the general formula)
# ---------------------------------------------------------------------------
def init_params(key, n_layers, nefilters):
    params = []
    nchan = nefilters
    for i in range(n_layers):
        cin = 1 if i == 0 else nchan
        if (i + 1) % 4 == 0:
            nchan = nchan * 2
        cout = nchan
        cin_pad = max(cin, MIN_CIN)
        key, k1, k2, k3, k4, k5, k6 = jax.random.split(key, 7)
        w = jax.random.normal(k1, (cout, K_TAPS, cin), jnp.float32) / math.sqrt(
            cin * K_TAPS)
        # zero the taps of padded input channels so the channel pad is inert
        w = jnp.pad(w, ((0, 0), (0, 0), (0, cin_pad - cin)))
        w2 = w.reshape(cout, K_TAPS * cin_pad)        # column index = k*cin_pad + ci
        conv_bias = 0.01 * jax.random.normal(k2, (cout,), jnp.float32)
        # BatchNorm1d inference fold: scale = gamma/sqrt(var+eps),
        #                             bias  = beta + scale*(conv_bias - mean)
        gamma = 1.0 + 0.1 * jax.random.normal(k3, (cout,), jnp.float32)
        beta = 0.1 * jax.random.normal(k4, (cout,), jnp.float32)
        r_mean = 0.1 * jax.random.normal(k5, (cout,), jnp.float32)
        r_var = jax.random.uniform(k6, (cout,), minval=0.5, maxval=1.5)
        scale = gamma / jnp.sqrt(r_var + BN_EPS)
        bias = beta + scale * (conv_bias - r_mean)
        sb = jnp.stack([scale, bias], axis=1)         # (cout, 2) f32
        params.append({"w": w2.astype(jnp.bfloat16), "sb": sb,
                       "cin": cin_pad, "cout": cout})
    return params


# ---------------------------------------------------------------------------
# Forward pass (matches base_encoder.forward)
# ---------------------------------------------------------------------------
def base_encoder_forward(x_b1l, params):
    """x_b1l: (B, 1, L) float NCL input. Returns (mean, acoustics, content)."""
    B, cin_raw, L0 = x_b1l.shape
    n = len(params)

    # Static per-layer config: (cin_padded, cout, l_in, stride).
    layers = []
    l_in = L0
    for i, p in enumerate(params):
        stride = 2 if (i + 1) % 4 == 0 else 1
        assert l_in % stride == 0 and l_in > 0
        layers.append((p["cin"], p["cout"], l_in, stride))
        l_in //= stride
    layers = tuple(layers)
    c_final = params[-1]["cout"]

    # Channel-pad the input once (padded channels have zero weights), cast bf16.
    cin0 = layers[0][0]
    x = jnp.pad(x_b1l, ((0, 0), (0, cin0 - cin_raw), (0, 0))).astype(jnp.bfloat16)

    c_max = max(cin0, max(cfg[1] for cfg in layers))
    cin_max = max(cfg[0] for cfg in layers)
    lbuf = L0 + 2 * MARGIN

    # Host-precomputed ::2 selection matrix (bf16); top-left sub-blocks are the
    # correct selection matrices for shorter stride-2 layers.
    s2_lens = [cfg[2] for cfg in layers if cfg[3] == 2]
    l_sel = max(s2_lens) if s2_lens else 2
    sel = (jnp.arange(l_sel)[:, None] == 2 * jnp.arange(l_sel // 2)[None, :]
           ).astype(jnp.bfloat16)

    kernel = functools.partial(_encoder_fused_kernel, layers=layers)

    in_specs = [pl.BlockSpec((pl.Squeezed(), cin0, L0), lambda b: (b, 0, 0))]
    for p in params:                                   # resident weights
        in_specs.append(pl.BlockSpec(p["w"].shape, lambda b: (0, 0)))
    for p in params:                                   # resident folded BN
        in_specs.append(pl.BlockSpec(p["sb"].shape, lambda b: (0, 0)))
    in_specs.append(pl.BlockSpec(sel.shape, lambda b: (0, 0)))

    out = pl.pallas_call(
        kernel,
        out_shape=jax.ShapeDtypeStruct((B, c_final, 1), jnp.float32),
        grid=(B,),
        in_specs=in_specs,
        out_specs=pl.BlockSpec((pl.Squeezed(), c_final, 1), lambda b: (b, 0, 0)),
        scratch_shapes=[
            pltpu.VMEM((c_max, lbuf), jnp.bfloat16),            # ping activations
            pltpu.VMEM((c_max, lbuf), jnp.bfloat16),            # pong activations
            pltpu.VMEM((K_TAPS * cin_max, L0), jnp.bfloat16),   # im2col block
        ],
        compiler_params=pltpu.CompilerParams(
            dimension_semantics=("parallel",),   # batch axis -> megacore / 2 TCs
        ),
    )(x, *[p["w"] for p in params], *[p["sb"] for p in params], sel)

    xm = out.reshape(B, c_final)                       # == sum(dim=2)/shape[2]
    c_half = c_final // 2
    return xm, xm[:, :c_half], xm[:, c_half:]


# ---------------------------------------------------------------------------
if __name__ == "__main__":
    B, L = 2, 512
    n_layers, nefilters = 8, 8   # small config consistent with the module

    key = jax.random.PRNGKey(0)
    k_in, k_par = jax.random.split(key)

    x = jax.random.normal(k_in, (B, 1, L), jnp.float32)   # PyTorch NCL input
    params = init_params(k_par, n_layers, nefilters)

    out, acoustics, content = base_encoder_forward(x, params)
    jax.block_until_ready((out, acoustics, content))

    c_final = params[-1]["cout"]   # channels double at layers 4 and 8 -> 32
    assert out.shape == (B, c_final), out.shape
    assert acoustics.shape == (B, c_final // 2), acoustics.shape
    assert content.shape == (B, c_final // 2), content.shape
    assert bool(jnp.all(jnp.isfinite(out)))

    print("KERNEL_OK")
</pallas_src>

<mosaic_0001>
module attributes {stable_mosaic.version = 11 : i64} {
  func.func @_encoder_fused_kernel(%arg0: i32, %arg1: memref<1x8x512xbf16, #tpu.memory_space<vmem>>, %arg2: memref<8x120xbf16, #tpu.memory_space<vmem>>, %arg3: memref<8x120xbf16, #tpu.memory_space<vmem>>, %arg4: memref<8x120xbf16, #tpu.memory_space<vmem>>, %arg5: memref<16x120xbf16, #tpu.memory_space<vmem>>, %arg6: memref<16x240xbf16, #tpu.memory_space<vmem>>, %arg7: memref<16x240xbf16, #tpu.memory_space<vmem>>, %arg8: memref<16x240xbf16, #tpu.memory_space<vmem>>, %arg9: memref<32x240xbf16, #tpu.memory_space<vmem>>, %arg10: memref<8x2xf32, #tpu.memory_space<vmem>>, %arg11: memref<8x2xf32, #tpu.memory_space<vmem>>, %arg12: memref<8x2xf32, #tpu.memory_space<vmem>>, %arg13: memref<16x2xf32, #tpu.memory_space<vmem>>, %arg14: memref<16x2xf32, #tpu.memory_space<vmem>>, %arg15: memref<16x2xf32, #tpu.memory_space<vmem>>, %arg16: memref<16x2xf32, #tpu.memory_space<vmem>>, %arg17: memref<32x2xf32, #tpu.memory_space<vmem>>, %arg18: memref<512x256xbf16, #tpu.memory_space<vmem>>, %arg19: memref<1x32x1xf32, #tpu.memory_space<vmem>>, %arg20: memref<32x768xbf16, #tpu.memory_space<vmem>>, %arg21: memref<32x768xbf16, #tpu.memory_space<vmem>>, %arg22: memref<240x512xbf16, #tpu.memory_space<vmem>>) attributes {dimension_semantics = [#tpu.dimension_semantics<parallel>], iteration_bounds = array<i64: 2>, scalar_prefetch = 0 : i64, scratch_operands = 3 : i64, tpu.core_type = #tpu.core_type<tc>, window_params = [{transform_indices = @transform_0, window_bounds = array<i64: 1, 8, 512>}, {pipeline_mode = #tpu.pipeline_mode<synchronous>, transform_indices = @transform_1, window_bounds = array<i64: 8, 120>}, {pipeline_mode = #tpu.pipeline_mode<synchronous>, transform_indices = @transform_2, window_bounds = array<i64: 8, 120>}, {pipeline_mode = #tpu.pipeline_mode<synchronous>, transform_indices = @transform_3, window_bounds = array<i64: 8, 120>}, {pipeline_mode = #tpu.pipeline_mode<synchronous>, transform_indices = @transform_4, window_bounds = array<i64: 16, 120>}, {pipeline_mode = #tpu.pipeline_mode<synchronous>, transform_indices = @transform_5, window_bounds = array<i64: 16, 240>}, {pipeline_mode = #tpu.pipeline_mode<synchronous>, transform_indices = @transform_6, window_bounds = array<i64: 16, 240>}, {pipeline_mode = #tpu.pipeline_mode<synchronous>, transform_indices = @transform_7, window_bounds = array<i64: 16, 240>}, {pipeline_mode = #tpu.pipeline_mode<synchronous>, transform_indices = @transform_8, window_bounds = array<i64: 32, 240>}, {pipeline_mode = #tpu.pipeline_mode<synchronous>, transform_indices = @transform_9, window_bounds = array<i64: 8, 2>}, {pipeline_mode = #tpu.pipeline_mode<synchronous>, transform_indices = @transform_10, window_bounds = array<i64: 8, 2>}, {pipeline_mode = #tpu.pipeline_mode<synchronous>, transform_indices = @transform_11, window_bounds = array<i64: 8, 2>}, {pipeline_mode = #tpu.pipeline_mode<synchronous>, transform_indices = @transform_12, window_bounds = array<i64: 16, 2>}, {pipeline_mode = #tpu.pipeline_mode<synchronous>, transform_indices = @transform_13, window_bounds = array<i64: 16, 2>}, {pipeline_mode = #tpu.pipeline_mode<synchronous>, transform_indices = @transform_14, window_bounds = array<i64: 16, 2>}, {pipeline_mode = #tpu.pipeline_mode<synchronous>, transform_indices = @transform_15, window_bounds = array<i64: 16, 2>}, {pipeline_mode = #tpu.pipeline_mode<synchronous>, transform_indices = @transform_16, window_bounds = array<i64: 32, 2>}, {pipeline_mode = #tpu.pipeline_mode<synchronous>, transform_indices = @transform_17, window_bounds = array<i64: 512, 256>}, {transform_indices = @transform_18, window_bounds = array<i64: 1, 32, 1>}]} {
    %cst = arith.constant 0.000000e+00 : bf16
    %0 = vector.broadcast %cst : bf16 to vector<32x768xbf16>
    %c0 = arith.constant 0 : index
    %c0_0 = arith.constant 0 : index
    %1 = vector.load %arg20[%c0, %c0_0] : memref<32x768xbf16, #tpu.memory_space<vmem>>, vector<32x768xbf16>
    tpu.vector_store %arg20[%c0, %c0_0], %0 {strides = array<i32>} : memref<32x768xbf16, #tpu.memory_space<vmem>>, vector<32x768xbf16>,
    %cst_1 = arith.constant 0.000000e+00 : bf16
    %2 = vector.broadcast %cst_1 : bf16 to vector<32x768xbf16>
    %c0_2 = arith.constant 0 : index
    %c0_3 = arith.constant 0 : index
    %3 = vector.load %arg21[%c0_2, %c0_3] : memref<32x768xbf16, #tpu.memory_space<vmem>>, vector<32x768xbf16>
    tpu.vector_store %arg21[%c0_2, %c0_3], %2 {strides = array<i32>} : memref<32x768xbf16, #tpu.memory_space<vmem>>, vector<32x768xbf16>,
    %c0_4 = arith.constant 0 : index
    %c0_5 = arith.constant 0 : index
    %c0_6 = arith.constant 0 : index
    %4 = vector.load %arg1[%c0_4, %c0_5, %c0_6] : memref<1x8x512xbf16, #tpu.memory_space<vmem>>, vector<1x8x512xbf16>
    %5 = vector.shape_cast %4 : vector<1x8x512xbf16> to vector<8x512xbf16>
    %c0_7 = arith.constant 0 : index
    %c128 = arith.constant 128 : index
    %6 = vector.load %arg20[%c0_7, %c128] : memref<32x768xbf16, #tpu.memory_space<vmem>>, vector<8x512xbf16>
    tpu.vector_store %arg20[%c0_7, %c128], %5 {strides = array<i32>} : memref<32x768xbf16, #tpu.memory_space<vmem>>, vector<8x512xbf16>,
    %c0_8 = arith.constant 0 : index
    %c121 = arith.constant 121 : index
    %7 = vector.load %arg20[%c0_8, %c121] : memref<32x768xbf16, #tpu.memory_space<vmem>>, vector<8x512xbf16>
    %c0_9 = arith.constant 0 : index
    %c0_10 = arith.constant 0 : index
    %8 = vector.load %arg22[%c0_9, %c0_10] : memref<240x512xbf16, #tpu.memory_space<vmem>>, vector<8x512xbf16>
    tpu.vector_store %arg22[%c0_9, %c0_10], %7 {strides = array<i32>} : memref<240x512xbf16, #tpu.memory_space<vmem>>, vector<8x512xbf16>,
    %c0_11 = arith.constant 0 : index
    %c122 = arith.constant 122 : index
    %9 = vector.load %arg20[%c0_11, %c122] : memref<32x768xbf16, #tpu.memory_space<vmem>>, vector<8x512xbf16>
    %c8 = arith.constant 8 : index
    %c0_12 = arith.constant 0 : index
    %10 = vector.load %arg22[%c8, %c0_12] : memref<240x512xbf16, #tpu.memory_space<vmem>>, vector<8x512xbf16>
    tpu.vector_store %arg22[%c8, %c0_12], %9 {strides = array<i32>} : memref<240x512xbf16, #tpu.memory_space<vmem>>, vector<8x512xbf16>,
    %c0_13 = arith.constant 0 : index
    %c123 = arith.constant 123 : index
    %11 = vector.load %arg20[%c0_13, %c123] : memref<32x768xbf16, #tpu.memory_space<vmem>>, vector<8x512xbf16>
    %c16 = arith.constant 16 : index
    %c0_14 = arith.constant 0 : index
    %12 = vector.load %arg22[%c16, %c0_14] : memref<240x512xbf16, #tpu.memory_space<vmem>>, vector<8x512xbf16>
    tpu.vector_store %arg22[%c16, %c0_14], %11 {strides = array<i32>} : memref<240x512xbf16, #tpu.memory_space<vmem>>, vector<8x512xbf16>,
    %c0_15 = arith.constant 0 : index
    %c124 = arith.constant 124 : index
    %13 = vector.load %arg20[%c0_15, %c124] : memref<32x768xbf16, #tpu.memory_space<vmem>>, vector<8x512xbf16>
    %c24 = arith.constant 24 : index
    %c0_16 = arith.constant 0 : index
    %14 = vector.load %arg22[%c24, %c0_16] : memref<240x512xbf16, #tpu.memory_space<vmem>>, vector<8x512xbf16>
    tpu.vector_store %arg22[%c24, %c0_16], %13 {strides = array<i32>} : memref<240x512xbf16, #tpu.memory_space<vmem>>, vector<8x512xbf16>,
    %c0_17 = arith.constant 0 : index
    %c125 = arith.constant 125 : index
    %15 = vector.load %arg20[%c0_17, %c125] : memref<32x768xbf16, #tpu.memory_space<vmem>>, vector<8x512xbf16>
    %c32 = arith.constant 32 : index
    %c0_18 = arith.constant 0 : index
    %16 = vector.load %arg22[%c32, %c0_18] : memref<240x512xbf16, #tpu.memory_space<vmem>>, vector<8x512xbf16>
    tpu.vector_store %arg22[%c32, %c0_18], %15 {strides = array<i32>} : memref<240x512xbf16, #tpu.memory_space<vmem>>, vector<8x512xbf16>,
    %c0_19 = arith.constant 0 : index
    %c126 = arith.constant 126 : index
    %17 = vector.load %arg20[%c0_19, %c126] : memref<32x768xbf16, #tpu.memory_space<vmem>>, vector<8x512xbf16>
    %c40 = arith.constant 40 : index
    %c0_20 = arith.constant 0 : index
    %18 = vector.load %arg22[%c40, %c0_20] : memref<240x512xbf16, #tpu.memory_space<vmem>>, vector<8x512xbf16>
    tpu.vector_store %arg22[%c40, %c0_20], %17 {strides = array<i32>} : memref<240x512xbf16, #tpu.memory_space<vmem>>, vector<8x512xbf16>,
    %c0_21 = arith.constant 0 : index
    %c127 = arith.constant 127 : index
    %19 = vector.load %arg20[%c0_21, %c127] : memref<32x768xbf16, #tpu.memory_space<vmem>>, vector<8x512xbf16>
    %c48 = arith.constant 48 : index
    %c0_22 = arith.constant 0 : index
    %20 = vector.load %arg22[%c48, %c0_22] : memref<240x512xbf16, #tpu.memory_space<vmem>>, vector<8x512xbf16>
    tpu.vector_store %arg22[%c48, %c0_22], %19 {strides = array<i32>} : memref<240x512xbf16, #tpu.memory_space<vmem>>, vector<8x512xbf16>,
    %c0_23 = arith.constant 0 : index
    %c128_24 = arith.constant 128 : index
    %21 = vector.load %arg20[%c0_23, %c128_24] : memref<32x768xbf16, #tpu.memory_space<vmem>>, vector<8x512xbf16>
    %c56 = arith.constant 56 : index
    %c0_25 = arith.constant 0 : index
    %22 = vector.load %arg22[%c56, %c0_25] : memref<240x512xbf16, #tpu.memory_space<vmem>>, vector<8x512xbf16>
    tpu.vector_store %arg22[%c56, %c0_25], %21 {strides = array<i32>} : memref<240x512xbf16, #tpu.memory_space<vmem>>, vector<8x512xbf16>,
    %c0_26 = arith.constant 0 : index
    %c129 = arith.constant 129 : index
    %23 = vector.load %arg20[%c0_26, %c129] : memref<32x768xbf16, #tpu.memory_space<vmem>>, vector<8x512xbf16>
    %c64 = arith.constant 64 : index
    %c0_27 = arith.constant 0 : index
    %24 = vector.load %arg22[%c64, %c0_27] : memref<240x512xbf16, #tpu.memory_space<vmem>>, vector<8x512xbf16>
    tpu.vector_store %arg22[%c64, %c0_27], %23 {strides = array<i32>} : memref<240x512xbf16, #tpu.memory_space<vmem>>, vector<8x512xbf16>,
    %c0_28 = arith.constant 0 : index
    %c130 = arith.constant 130 : index
    %25 = vector.load %arg20[%c0_28, %c130] : memref<32x768xbf16, #tpu.memory_space<vmem>>, vector<8x512xbf16>
    %c72 = arith.constant 72 : index
    %c0_29 = arith.constant 0 : index
    %26 = vector.load %arg22[%c72, %c0_29] : memref<240x512xbf16, #tpu.memory_space<vmem>>, vector<8x512xbf16>
    tpu.vector_store %arg22[%c72, %c0_29], %25 {strides = array<i32>} : memref<240x512xbf16, #tpu.memory_space<vmem>>, vector<8x512xbf16>,
    %c0_30 = arith.constant 0 : index
    %c131 = arith.constant 131 : index
    %27 = vector.load %arg20[%c0_30, %c131] : memref<32x768xbf16, #tpu.memory_space<vmem>>, vector<8x512xbf16>
    %c80 = arith.constant 80 : index
    %c0_31 = arith.constant 0 : index
    %28 = vector.load %arg22[%c80, %c0_31] : memref<240x512xbf16, #tpu.memory_space<vmem>>, vector<8x512xbf16>
    tpu.vector_store %arg22[%c80, %c0_31], %27 {strides = array<i32>} : memref<240x512xbf16, #tpu.memory_space<vmem>>, vector<8x512xbf16>,
    %c0_32 = arith.constant 0 : index
    %c132 = arith.constant 132 : index
    %29 = vector.load %arg20[%c0_32, %c132] : memref<32x768xbf16, #tpu.memory_space<vmem>>, vector<8x512xbf16>
    %c88 = arith.constant 88 : index
    %c0_33 = arith.constant 0 : index
    %30 = vector.load %arg22[%c88, %c0_33] : memref<240x512xbf16, #tpu.memory_space<vmem>>, vector<8x512xbf16>
    tpu.vector_store %arg22[%c88, %c0_33], %29 {strides = array<i32>} : memref<240x512xbf16, #tpu.memory_space<vmem>>, vector<8x512xbf16>,
    %c0_34 = arith.constant 0 : index
    %c133 = arith.constant 133 : index
    %31 = vector.load %arg20[%c0_34, %c133] : memref<32x768xbf16, #tpu.memory_space<vmem>>, vector<8x512xbf16>
    %c96 = arith.constant 96 : index
    %c0_35 = arith.constant 0 : index
    %32 = vector.load %arg22[%c96, %c0_35] : memref<240x512xbf16, #tpu.memory_space<vmem>>, vector<8x512xbf16>
    tpu.vector_store %arg22[%c96, %c0_35], %31 {strides = array<i32>} : memref<240x512xbf16, #tpu.memory_space<vmem>>, vector<8x512xbf16>,
    %c0_36 = arith.constant 0 : index
    %c134 = arith.constant 134 : index
    %33 = vector.load %arg20[%c0_36, %c134] : memref<32x768xbf16, #tpu.memory_space<vmem>>, vector<8x512xbf16>
    %c104 = arith.constant 104 : index
    %c0_37 = arith.constant 0 : index
    %34 = vector.load %arg22[%c104, %c0_37] : memref<240x512xbf16, #tpu.memory_space<vmem>>, vector<8x512xbf16>
    tpu.vector_store %arg22[%c104, %c0_37], %33 {strides = array<i32>} : memref<240x512xbf16, #tpu.memory_space<vmem>>, vector<8x512xbf16>,
    %c0_38 = arith.constant 0 : index
    %c135 = arith.constant 135 : index
    %35 = vector.load %arg20[%c0_38, %c135] : memref<32x768xbf16, #tpu.memory_space<vmem>>, vector<8x512xbf16>
    %c112 = arith.constant 112 : index
    %c0_39 = arith.constant 0 : index
    %36 = vector.load %arg22[%c112, %c0_39] : memref<240x512xbf16, #tpu.memory_space<vmem>>, vector<8x512xbf16>
    tpu.vector_store %arg22[%c112, %c0_39], %35 {strides = array<i32>} : memref<240x512xbf16, #tpu.memory_space<vmem>>, vector<8x512xbf16>,
    %c0_40 = arith.constant 0 : index
    %c0_41 = arith.constant 0 : index
    %37 = vector.load %arg2[%c0_40, %c0_41] : memref<8x120xbf16, #tpu.memory_space<vmem>>, vector<8x120xbf16>
    %c0_42 = arith.constant 0 : index
    %c0_43 = arith.constant 0 : index
    %38 = vector.load %arg22[%c0_42, %c0_43] : memref<240x512xbf16, #tpu.memory_space<vmem>>, vector<120x512xbf16>
    %cst_44 = arith.constant dense<0.000000e+00> : vector<8x512xf32>
    %39 = tpu.matmul %37, %38, %cst_44 {dimension_numbers = #tpu.dot_dimension_numbers<[1], [0], [0], [1], [0, 0, 1, 1], [], []>} : vector<8x120xbf16>, vector<120x512xbf16>, vector<8x512xf32> -> vector<8x512xf32>
    %c0_45 = arith.constant 0 : index
    %c0_46 = arith.constant 0 : index
    %40 = vector.load %arg10[%c0_45, %c0_46] : memref<8x2xf32, #tpu.memory_space<vmem>>, vector<8x2xf32>
    %41 = vector.extract_strided_slice %40 {offsets = [0, 0], sizes = [8, 1], strides = [1, 1]} : vector<8x2xf32> to vector<8x1xf32>
    %42 = vector.broadcast %41 : vector<8x1xf32> to vector<8x512xf32>
    %43 = arith.mulf %39, %42 : vector<8x512xf32>
    %44 = vector.extract_strided_slice %40 {offsets = [0, 1], sizes = [8, 1], strides = [1, 1]} : vector<8x2xf32> to vector<8x1xf32>
    %45 = vector.broadcast %44 : vector<8x1xf32> to vector<8x512xf32>
    %46 = arith.addf %43, %45 : vector<8x512xf32>
    %cst_47 = arith.constant 0.000000e+00 : f32
    %47 = vector.broadcast %cst_47 : f32 to vector<8x512xf32>
    %48 = arith.cmpf ogt, %46, %47 : vector<8x512xf32>
    %cst_48 = arith.constant 1.000000e-01 : f32
    %49 = vector.broadcast %cst_48 : f32 to vector<8x512xf32>
    %50 = arith.mulf %49, %46 : vector<8x512xf32>
    %51 = arith.select %48, %46, %50 : vector<8x512xi1>, vector<8x512xf32>
    %52 = arith.truncf %51 : vector<8x512xf32> to vector<8x512xbf16>
    %c0_49 = arith.constant 0 : index
    %c128_50 = arith.constant 128 : index
    %53 = vector.load %arg21[%c0_49, %c128_50] : memref<32x768xbf16, #tpu.memory_space<vmem>>, vector<8x512xbf16>
    tpu.vector_store %arg21[%c0_49, %c128_50], %52 {strides = array<i32>} : memref<32x768xbf16, #tpu.memory_space<vmem>>, vector<8x512xbf16>,
    %cst_51 = arith.constant 0.000000e+00 : bf16
    %54 = vector.broadcast %cst_51 : bf16 to vector<8x128xbf16>
    %c0_52 = arith.constant 0 : index
    %c640 = arith.constant 640 : index
    %55 = vector.load %arg21[%c0_52, %c640] : memref<32x768xbf16, #tpu.memory_space<vmem>>, vector<8x128xbf16>
    tpu.vector_store %arg21[%c0_52, %c640], %54 {strides = array<i32>} : memref<32x768xbf16, #tpu.memory_space<vmem>>, vector<8x128xbf16>,
    %c0_53 = arith.constant 0 : index
    %c121_54 = arith.constant 121 : index
    %56 = vector.load %arg21[%c0_53, %c121_54] : memref<32x768xbf16, #tpu.memory_space<vmem>>, vector<8x512xbf16>
    %c0_55 = arith.constant 0 : index
    %c0_56 = arith.constant 0 : index
    %57 = vector.load %arg22[%c0_55, %c0_56] : memref<240x512xbf16, #tpu.memory_space<vmem>>, vector<8x512xbf16>
    tpu.vector_store %arg22[%c0_55, %c0_56], %56 {strides = array<i32>} : memref<240x512xbf16, #tpu.memory_space<vmem>>, vector<8x512xbf16>,
    %c0_57 = arith.constant 0 : index
    %c122_58 = arith.constant 122 : index
    %58 = vector.load %arg21[%c0_57, %c122_58] : memref<32x768xbf16, #tpu.memory_space<vmem>>, vector<8x512xbf16>
    %c8_59 = arith.constant 8 : index
    %c0_60 = arith.constant 0 : index
    %59 = vector.load %arg22[%c8_59, %c0_60] : memref<240x512xbf16, #tpu.memory_space<vmem>>, vector<8x512xbf16>
    tpu.vector_store %arg22[%c8_59, %c0_60], %58 {strides = array<i32>} : memref<240x512xbf16, #tpu.memory_space<vmem>>, vector<8x512xbf16>,
    %c0_61 = arith.constant 0 : index
    %c123_62 = arith.constant 123 : index
    %60 = vector.load %arg21[%c0_61, %c123_62] : memref<32x768xbf16, #tpu.memory_space<vmem>>, vector<8x512xbf16>
    %c16_63 = arith.constant 16 : index
    %c0_64 = arith.constant 0 : index
    %61 = vector.load %arg22[%c16_63, %c0_64] : memref<240x512xbf16, #tpu.memory_space<vmem>>, vector<8x512xbf16>
    tpu.vector_store %arg22[%c16_63, %c0_64], %60 {strides = array<i32>} : memref<240x512xbf16, #tpu.memory_space<vmem>>, vector<8x512xbf16>,
    %c0_65 = arith.constant 0 : index
    %c124_66 = arith.constant 124 : index
    %62 = vector.load %arg21[%c0_65, %c124_66] : memref<32x768xbf16, #tpu.memory_space<vmem>>, vector<8x512xbf16>
    %c24_67 = arith.constant 24 : index
    %c0_68 = arith.constant 0 : index
    %63 = vector.load %arg22[%c24_67, %c0_68] : memref<240x512xbf16, #tpu.memory_space<vmem>>, vector<8x512xbf16>
    tpu.vector_store %arg22[%c24_67, %c0_68], %62 {strides = array<i32>} : memref<240x512xbf16, #tpu.memory_space<vmem>>, vector<8x512xbf16>,
    %c0_69 = arith.constant 0 : index
    %c125_70 = arith.constant 125 : index
    %64 = vector.load %arg21[%c0_69, %c125_70] : memref<32x768xbf16, #tpu.memory_space<vmem>>, vector<8x512xbf16>
    %c32_71 = arith.constant 32 : index
    %c0_72 = arith.constant 0 : index
    %65 = vector.load %arg22[%c32_71, %c0_72] : memref<240x512xbf16, #tpu.memory_space<vmem>>, vector<8x512xbf16>
    tpu.vector_store %arg22[%c32_71, %c0_72], %64 {strides = array<i32>} : memref<240x512xbf16, #tpu.memory_space<vmem>>, vector<8x512xbf16>,
    %c0_73 = arith.constant 0 : index
    %c126_74 = arith.constant 126 : index
    %66 = vector.load %arg21[%c0_73, %c126_74] : memref<32x768xbf16, #tpu.memory_space<vmem>>, vector<8x512xbf16>
    %c40_75 = arith.constant 40 : index
    %c0_76 = arith.constant 0 : index
    %67 = vector.load %arg22[%c40_75, %c0_76] : memref<240x512xbf16, #tpu.memory_space<vmem>>, vector<8x512xbf16>
    tpu.vector_store %arg22[%c40_75, %c0_76], %66 {strides = array<i32>} : memref<240x512xbf16, #tpu.memory_space<vmem>>, vector<8x512xbf16>,
    %c0_77 = arith.constant 0 : index
    %c127_78 = arith.constant 127 : index
    %68 = vector.load %arg21[%c0_77, %c127_78] : memref<32x768xbf16, #tpu.memory_space<vmem>>, vector<8x512xbf16>
    %c48_79 = arith.constant 48 : index
    %c0_80 = arith.constant 0 : index
    %69 = vector.load %arg22[%c48_79, %c0_80] : memref<240x512xbf16, #tpu.memory_space<vmem>>, vector<8x512xbf16>
    tpu.vector_store %arg22[%c48_79, %c0_80], %68 {strides = array<i32>} : memref<240x512xbf16, #tpu.memory_space<vmem>>, vector<8x512xbf16>,
    %c0_81 = arith.constant 0 : index
    %c128_82 = arith.constant 128 : index
    %70 = vector.load %arg21[%c0_81, %c128_82] : memref<32x768xbf16, #tpu.memory_space<vmem>>, vector<8x512xbf16>
    %c56_83 = arith.constant 56 : index
    %c0_84 = arith.constant 0 : index
    %71 = vector.load %arg22[%c56_83, %c0_84] : memref<240x512xbf16, #tpu.memory_space<vmem>>, vector<8x512xbf16>
    tpu.vector_store %arg22[%c56_83, %c0_84], %70 {strides = array<i32>} : memref<240x512xbf16, #tpu.memory_space<vmem>>, vector<8x512xbf16>,
    %c0_85 = arith.constant 0 : index
    %c129_86 = arith.constant 129 : index
    %72 = vector.load %arg21[%c0_85, %c129_86] : memref<32x768xbf16, #tpu.memory_space<vmem>>, vector<8x512xbf16>
    %c64_87 = arith.constant 64 : index
    %c0_88 = arith.constant 0 : index
    %73 = vector.load %arg22[%c64_87, %c0_88] : memref<240x512xbf16, #tpu.memory_space<vmem>>, vector<8x512xbf16>
    tpu.vector_store %arg22[%c64_87, %c0_88], %72 {strides = array<i32>} : memref<240x512xbf16, #tpu.memory_space<vmem>>, vector<8x512xbf16>,
    %c0_89 = arith.constant 0 : index
    %c130_90 = arith.constant 130 : index
    %74 = vector.load %arg21[%c0_89, %c130_90] : memref<32x768xbf16, #tpu.memory_space<vmem>>, vector<8x512xbf16>
    %c72_91 = arith.constant 72 : index
    %c0_92 = arith.constant 0 : index
    %75 = vector.load %arg22[%c72_91, %c0_92] : memref<240x512xbf16, #tpu.memory_space<vmem>>, vector<8x512xbf16>
    tpu.vector_store %arg22[%c72_91, %c0_92], %74 {strides = array<i32>} : memref<240x512xbf16, #tpu.memory_space<vmem>>, vector<8x512xbf16>,
    %c0_93 = arith.constant 0 : index
    %c131_94 = arith.constant 131 : index
    %76 = vector.load %arg21[%c0_93, %c131_94] : memref<32x768xbf16, #tpu.memory_space<vmem>>, vector<8x512xbf16>
    %c80_95 = arith.constant 80 : index
    %c0_96 = arith.constant 0 : index
    %77 = vector.load %arg22[%c80_95, %c0_96] : memref<240x512xbf16, #tpu.memory_space<vmem>>, vector<8x512xbf16>
    tpu.vector_store %arg22[%c80_95, %c0_96], %76 {strides = array<i32>} : memref<240x512xbf16, #tpu.memory_space<vmem>>, vector<8x512xbf16>,
    %c0_97 = arith.constant 0 : index
    %c132_98 = arith.constant 132 : index
    %78 = vector.load %arg21[%c0_97, %c132_98] : memref<32x768xbf16, #tpu.memory_space<vmem>>, vector<8x512xbf16>
    %c88_99 = arith.constant 88 : index
    %c0_100 = arith.constant 0 : index
    %79 = vector.load %arg22[%c88_99, %c0_100] : memref<240x512xbf16, #tpu.memory_space<vmem>>, vector<8x512xbf16>
    tpu.vector_store %arg22[%c88_99, %c0_100], %78 {strides = array<i32>} : memref<240x512xbf16, #tpu.memory_space<vmem>>, vector<8x512xbf16>,
    %c0_101 = arith.constant 0 : index
    %c133_102 = arith.constant 133 : index
    %80 = vector.load %arg21[%c0_101, %c133_102] : memref<32x768xbf16, #tpu.memory_space<vmem>>, vector<8x512xbf16>
    %c96_103 = arith.constant 96 : index
    %c0_104 = arith.constant 0 : index
    %81 = vector.load %arg22[%c96_103, %c0_104] : memref<240x512xbf16, #tpu.memory_space<vmem>>, vector<8x512xbf16>
    tpu.vector_store %arg22[%c96_103, %c0_104], %80 {strides = array<i32>} : memref<240x512xbf16, #tpu.memory_space<vmem>>, vector<8x512xbf16>,
    %c0_105 = arith.constant 0 : index
    %c134_106 = arith.constant 134 : index
    %82 = vector.load %arg21[%c0_105, %c134_106] : memref<32x768xbf16, #tpu.memory_space<vmem>>, vector<8x512xbf16>
    %c104_107 = arith.constant 104 : index
    %c0_108 = arith.constant 0 : index
    %83 = vector.load %arg22[%c104_107, %c0_108] : memref<240x512xbf16, #tpu.memory_space<vmem>>, vector<8x512xbf16>
    tpu.vector_store %arg22[%c104_107, %c0_108], %82 {strides = array<i32>} : memref<240x512xbf16, #tpu.memory_space<vmem>>, vector<8x512xbf16>,
    %c0_109 = arith.constant 0 : index
    %c135_110 = arith.constant 135 : index
    %84 = vector.load %arg21[%c0_109, %c135_110] : memref<32x768xbf16, #tpu.memory_space<vmem>>, vector<8x512xbf16>
    %c112_111 = arith.constant 112 : index
    %c0_112 = arith.constant 0 : index
    %85 = vector.load %arg22[%c112_111, %c0_112] : memref<240x512xbf16, #tpu.memory_space<vmem>>, vector<8x512xbf16>
    tpu.vector_store %arg22[%c112_111, %c0_112], %84 {strides = array<i32>} : memref<240x512xbf16, #tpu.memory_space<vmem>>, vector<8x512xbf16>,
    %c0_113 = arith.constant 0 : index
    %c0_114 = arith.constant 0 : index
    %86 = vector.load %arg3[%c0_113, %c0_114] : memref<8x120xbf16, #tpu.memory_space<vmem>>, vector<8x120xbf16>
    %c0_115 = arith.constant 0 : index
    %c0_116 = arith.constant 0 : index
    %87 = vector.load %arg22[%c0_115, %c0_116] : memref<240x512xbf16, #tpu.memory_space<vmem>>, vector<120x512xbf16>
    %cst_117 = arith.constant dense<0.000000e+00> : vector<8x512xf32>
    %88 = tpu.matmul %86, %87, %cst_117 {dimension_numbers = #tpu.dot_dimension_numbers<[1], [0], [0], [1], [0, 0, 1, 1], [], []>} : vector<8x120xbf16>, vector<120x512xbf16>, vector<8x512xf32> -> vector<8x512xf32>
    %c0_118 = arith.constant 0 : index
    %c0_119 = arith.constant 0 : index
    %89 = vector.load %arg11[%c0_118, %c0_119] : memref<8x2xf32, #tpu.memory_space<vmem>>, vector<8x2xf32>
    %90 = vector.extract_strided_slice %89 {offsets = [0, 0], sizes = [8, 1], strides = [1, 1]} : vector<8x2xf32> to vector<8x1xf32>
    %91 = vector.broadcast %90 : vector<8x1xf32> to vector<8x512xf32>
    %92 = arith.mulf %88, %91 : vector<8x512xf32>
    %93 = vector.extract_strided_slice %89 {offsets = [0, 1], sizes = [8, 1], strides = [1, 1]} : vector<8x2xf32> to vector<8x1xf32>
    %94 = vector.broadcast %93 : vector<8x1xf32> to vector<8x512xf32>
    %95 = arith.addf %92, %94 : vector<8x512xf32>
    %cst_120 = arith.constant 0.000000e+00 : f32
    %96 = vector.broadcast %cst_120 : f32 to vector<8x512xf32>
    %97 = arith.cmpf ogt, %95, %96 : vector<8x512xf32>
    %cst_121 = arith.constant 1.000000e-01 : f32
    %98 = vector.broadcast %cst_121 : f32 to vector<8x512xf32>
    %99 = arith.mulf %98, %95 : vector<8x512xf32>
    %100 = arith.select %97, %95, %99 : vector<8x512xi1>, vector<8x512xf32>
    %101 = arith.truncf %100 : vector<8x512xf32> to vector<8x512xbf16>
    %c0_122 = arith.constant 0 : index
    %c128_123 = arith.constant 128 : index
    %102 = vector.load %arg20[%c0_122, %c128_123] : memref<32x768xbf16, #tpu.memory_space<vmem>>, vector<8x512xbf16>
    tpu.vector_store %arg20[%c0_122, %c128_123], %101 {strides = array<i32>} : memref<32x768xbf16, #tpu.memory_space<vmem>>, vector<8x512xbf16>,
    %cst_124 = arith.constant 0.000000e+00 : bf16
    %103 = vector.broadcast %cst_124 : bf16 to vector<8x128xbf16>
    %c0_125 = arith.constant 0 : index
    %c640_126 = arith.constant 640 : index
    %104 = vector.load %arg20[%c0_125, %c640_126] : memref<32x768xbf16, #tpu.memory_space<vmem>>, vector<8x128xbf16>
    tpu.vector_store %arg20[%c0_125, %c640_126], %103 {strides = array<i32>} : memref<32x768xbf16, #tpu.memory_space<vmem>>, vector<8x128xbf16>,
    %c0_127 = arith.constant 0 : index
    %c121_128 = arith.constant 121 : index
    %105 = vector.load %arg20[%c0_127, %c121_128] : memref<32x768xbf16, #tpu.memory_space<vmem>>, vector<8x512xbf16>
    %c0_129 = arith.constant 0 : index
    %c0_130 = arith.constant 0 : index
    %106 = vector.load %arg22[%c0_129, %c0_130] : memref<240x512xbf16, #tpu.memory_space<vmem>>, vector<8x512xbf16>
    tpu.vector_store %arg22[%c0_129, %c0_130], %105 {strides = array<i32>} : memref<240x512xbf16, #tpu.memory_space<vmem>>, vector<8x512xbf16>,
    %c0_131 = arith.constant 0 : index
    %c122_132 = arith.constant 122 : index
    %107 = vector.load %arg20[%c0_131, %c122_132] : memref<32x768xbf16, #tpu.memory_space<vmem>>, vector<8x512xbf16>
    %c8_133 = arith.constant 8 : index
    %c0_134 = arith.constant 0 : index
    %108 = vector.load %arg22[%c8_133, %c0_134] : memref<240x512xbf16, #tpu.memory_space<vmem>>, vector<8x512xbf16>
    tpu.vector_store %arg22[%c8_133, %c0_134], %107 {strides = array<i32>} : memref<240x512xbf16, #tpu.memory_space<vmem>>, vector<8x512xbf16>,
    %c0_135 = arith.constant 0 : index
    %c123_136 = arith.constant 123 : index
    %109 = vector.load %arg20[%c0_135, %c123_136] : memref<32x768xbf16, #tpu.memory_space<vmem>>, vector<8x512xbf16>
    %c16_137 = arith.constant 16 : index
    %c0_138 = arith.constant 0 : index
    %110 = vector.load %arg22[%c16_137, %c0_138] : memref<240x512xbf16, #tpu.memory_space<vmem>>, vector<8x512xbf16>
    tpu.vector_store %arg22[%c16_137, %c0_138], %109 {strides = array<i32>} : memref<240x512xbf16, #tpu.memory_space<vmem>>, vector<8x512xbf16>,
    %c0_139 = arith.constant 0 : index
    %c124_140 = arith.constant 124 : index
    %111 = vector.load %arg20[%c0_139, %c124_140] : memref<32x768xbf16, #tpu.memory_space<vmem>>, vector<8x512xbf16>
    %c24_141 = arith.constant 24 : index
    %c0_142 = arith.constant 0 : index
    %112 = vector.load %arg22[%c24_141, %c0_142] : memref<240x512xbf16, #tpu.memory_space<vmem>>, vector<8x512xbf16>
    tpu.vector_store %arg22[%c24_141, %c0_142], %111 {strides = array<i32>} : memref<240x512xbf16, #tpu.memory_space<vmem>>, vector<8x512xbf16>,
    %c0_143 = arith.constant 0 : index
    %c125_144 = arith.constant 125 : index
    %113 = vector.load %arg20[%c0_143, %c125_144] : memref<32x768xbf16, #tpu.memory_space<vmem>>, vector<8x512xbf16>
    %c32_145 = arith.constant 32 : index
    %c0_146 = arith.constant 0 : index
    %114 = vector.load %arg22[%c32_145, %c0_146] : memref<240x512xbf16, #tpu.memory_space<vmem>>, vector<8x512xbf16>
    tpu.vector_store %arg22[%c32_145, %c0_146], %113 {strides = array<i32>} : memref<240x512xbf16, #tpu.memory_space<vmem>>, vector<8x512xbf16>,
    %c0_147 = arith.constant 0 : index
    %c126_148 = arith.constant 126 : index
    %115 = vector.load %arg20[%c0_147, %c126_148] : memref<32x768xbf16, #tpu.memory_space<vmem>>, vector<8x512xbf16>
    %c40_149 = arith.constant 40 : index
    %c0_150 = arith.constant 0 : index
    %116 = vector.load %arg22[%c40_149, %c0_150] : memref<240x512xbf16, #tpu.memory_space<vmem>>, vector<8x512xbf16>
    tpu.vector_store %arg22[%c40_149, %c0_150], %115 {strides = array<i32>} : memref<240x512xbf16, #tpu.memory_space<vmem>>, vector<8x512xbf16>,
    %c0_151 = arith.constant 0 : index
    %c127_152 = arith.constant 127 : index
    %117 = vector.load %arg20[%c0_151, %c127_152] : memref<32x768xbf16, #tpu.memory_space<vmem>>, vector<8x512xbf16>
    %c48_153 = arith.constant 48 : index
    %c0_154 = arith.constant 0 : index
    %118 = vector.load %arg22[%c48_153, %c0_154] : memref<240x512xbf16, #tpu.memory_space<vmem>>, vector<8x512xbf16>
    tpu.vector_store %arg22[%c48_153, %c0_154], %117 {strides = array<i32>} : memref<240x512xbf16, #tpu.memory_space<vmem>>, vector<8x512xbf16>,
    %c0_155 = arith.constant 0 : index
    %c128_156 = arith.constant 128 : index
    %119 = vector.load %arg20[%c0_155, %c128_156] : memref<32x768xbf16, #tpu.memory_space<vmem>>, vector<8x512xbf16>
    %c56_157 = arith.constant 56 : index
    %c0_158 = arith.constant 0 : index
    %120 = vector.load %arg22[%c56_157, %c0_158] : memref<240x512xbf16, #tpu.memory_space<vmem>>, vector<8x512xbf16>
    tpu.vector_store %arg22[%c56_157, %c0_158], %119 {strides = array<i32>} : memref<240x512xbf16, #tpu.memory_space<vmem>>, vector<8x512xbf16>,
    %c0_159 = arith.constant 0 : index
    %c129_160 = arith.constant 129 : index
    %121 = vector.load %arg20[%c0_159, %c129_160] : memref<32x768xbf16, #tpu.memory_space<vmem>>, vector<8x512xbf16>
    %c64_161 = arith.constant 64 : index
    %c0_162 = arith.constant 0 : index
    %122 = vector.load %arg22[%c64_161, %c0_162] : memref<240x512xbf16, #tpu.memory_space<vmem>>, vector<8x512xbf16>
    tpu.vector_store %arg22[%c64_161, %c0_162], %121 {strides = array<i32>} : memref<240x512xbf16, #tpu.memory_space<vmem>>, vector<8x512xbf16>,
    %c0_163 = arith.constant 0 : index
    %c130_164 = arith.constant 130 : index
    %123 = vector.load %arg20[%c0_163, %c130_164] : memref<32x768xbf16, #tpu.memory_space<vmem>>, vector<8x512xbf16>
    %c72_165 = arith.constant 72 : index
    %c0_166 = arith.constant 0 : index
    %124 = vector.load %arg22[%c72_165, %c0_166] : memref<240x512xbf16, #tpu.memory_space<vmem>>, vector<8x512xbf16>
    tpu.vector_store %arg22[%c72_165, %c0_166], %123 {strides = array<i32>} : memref<240x512xbf16, #tpu.memory_space<vmem>>, vector<8x512xbf16>,
    %c0_167 = arith.constant 0 : index
    %c131_168 = arith.constant 131 : index
    %125 = vector.load %arg20[%c0_167, %c131_168] : memref<32x768xbf16, #tpu.memory_space<vmem>>, vector<8x512xbf16>
    %c80_169 = arith.constant 80 : index
    %c0_170 = arith.constant 0 : index
    %126 = vector.load %arg22[%c80_169, %c0_170] : memref<240x512xbf16, #tpu.memory_space<vmem>>, vector<8x512xbf16>
    tpu.vector_store %arg22[%c80_169, %c0_170], %125 {strides = array<i32>} : memref<240x512xbf16, #tpu.memory_space<vmem>>, vector<8x512xbf16>,
    %c0_171 = arith.constant 0 : index
    %c132_172 = arith.constant 132 : index
    %127 = vector.load %arg20[%c0_171, %c132_172] : memref<32x768xbf16, #tpu.memory_space<vmem>>, vector<8x512xbf16>
    %c88_173 = arith.constant 88 : index
    %c0_174 = arith.constant 0 : index
    %128 = vector.load %arg22[%c88_173, %c0_174] : memref<240x512xbf16, #tpu.memory_space<vmem>>, vector<8x512xbf16>
    tpu.vector_store %arg22[%c88_173, %c0_174], %127 {strides = array<i32>} : memref<240x512xbf16, #tpu.memory_space<vmem>>, vector<8x512xbf16>,
    %c0_175 = arith.constant 0 : index
    %c133_176 = arith.constant 133 : index
    %129 = vector.load %arg20[%c0_175, %c133_176] : memref<32x768xbf16, #tpu.memory_space<vmem>>, vector<8x512xbf16>
    %c96_177 = arith.constant 96 : index
    %c0_178 = arith.constant 0 : index
    %130 = vector.load %arg22[%c96_177, %c0_178] : memref<240x512xbf16, #tpu.memory_space<vmem>>, vector<8x512xbf16>
    tpu.vector_store %arg22[%c96_177, %c0_178], %129 {strides = array<i32>} : memref<240x512xbf16, #tpu.memory_space<vmem>>, vector<8x512xbf16>,
    %c0_179 = arith.constant 0 : index
    %c134_180 = arith.constant 134 : index
    %131 = vector.load %arg20[%c0_179, %c134_180] : memref<32x768xbf16, #tpu.memory_space<vmem>>, vector<8x512xbf16>
    %c104_181 = arith.constant 104 : index
    %c0_182 = arith.constant 0 : index
    %132 = vector.load %arg22[%c104_181, %c0_182] : memref<240x512xbf16, #tpu.memory_space<vmem>>, vector<8x512xbf16>
    tpu.vector_store %arg22[%c104_181, %c0_182], %131 {strides = array<i32>} : memref<240x512xbf16, #tpu.memory_space<vmem>>, vector<8x512xbf16>,
    %c0_183 = arith.constant 0 : index
    %c135_184 = arith.constant 135 : index
    %133 = vector.load %arg20[%c0_183, %c135_184] : memref<32x768xbf16, #tpu.memory_space<vmem>>, vector<8x512xbf16>
    %c112_185 = arith.constant 112 : index
    %c0_186 = arith.constant 0 : index
    %134 = vector.load %arg22[%c112_185, %c0_186] : memref<240x512xbf16, #tpu.memory_space<vmem>>, vector<8x512xbf16>
    tpu.vector_store %arg22[%c112_185, %c0_186], %133 {strides = array<i32>} : memref<240x512xbf16, #tpu.memory_space<vmem>>, vector<8x512xbf16>,
    %c0_187 = arith.constant 0 : index
    %c0_188 = arith.constant 0 : index
    %135 = vector.load %arg4[%c0_187, %c0_188] : memref<8x120xbf16, #tpu.memory_space<vmem>>, vector<8x120xbf16>
    %c0_189 = arith.constant 0 : index
    %c0_190 = arith.constant 0 : index
    %136 = vector.load %arg22[%c0_189, %c0_190] : memref<240x512xbf16, #tpu.memory_space<vmem>>, vector<120x512xbf16>
    %cst_191 = arith.constant dense<0.000000e+00> : vector<8x512xf32>
    %137 = tpu.matmul %135, %136, %cst_191 {dimension_numbers = #tpu.dot_dimension_numbers<[1], [0], [0], [1], [0, 0, 1, 1], [], []>} : vector<8x120xbf16>, vector<120x512xbf16>, vector<8x512xf32> -> vector<8x512xf32>
    %c0_192 = arith.constant 0 : index
    %c0_193 = arith.constant 0 : index
    %138 = vector.load %arg12[%c0_192, %c0_193] : memref<8x2xf32, #tpu.memory_space<vmem>>, vector<8x2xf32>
    %139 = vector.extract_strided_slice %138 {offsets = [0, 0], sizes = [8, 1], strides = [1, 1]} : vector<8x2xf32> to vector<8x1xf32>
    %140 = vector.broadcast %139 : vector<8x1xf32> to vector<8x512xf32>
    %141 = arith.mulf %137, %140 : vector<8x512xf32>
    %142 = vector.extract_strided_slice %138 {offsets = [0, 1], sizes = [8, 1], strides = [1, 1]} : vector<8x2xf32> to vector<8x1xf32>
    %143 = vector.broadcast %142 : vector<8x1xf32> to vector<8x512xf32>
    %144 = arith.addf %141, %143 : vector<8x512xf32>
    %cst_194 = arith.constant 0.000000e+00 : f32
    %145 = vector.broadcast %cst_194 : f32 to vector<8x512xf32>
    %146 = arith.cmpf ogt, %144, %145 : vector<8x512xf32>
    %cst_195 = arith.constant 1.000000e-01 : f32
    %147 = vector.broadcast %cst_195 : f32 to vector<8x512xf32>
    %148 = arith.mulf %147, %144 : vector<8x512xf32>
    %149 = arith.select %146, %144, %148 : vector<8x512xi1>, vector<8x512xf32>
    %150 = arith.truncf %149 : vector<8x512xf32> to vector<8x512xbf16>
    %c0_196 = arith.constant 0 : index
    %c128_197 = arith.constant 128 : index
    %151 = vector.load %arg21[%c0_196, %c128_197] : memref<32x768xbf16, #tpu.memory_space<vmem>>, vector<8x512xbf16>
    tpu.vector_store %arg21[%c0_196, %c128_197], %150 {strides = array<i32>} : memref<32x768xbf16, #tpu.memory_space<vmem>>, vector<8x512xbf16>,
    %cst_198 = arith.constant 0.000000e+00 : bf16
    %152 = vector.broadcast %cst_198 : bf16 to vector<8x128xbf16>
    %c0_199 = arith.constant 0 : index
    %c640_200 = arith.constant 640 : index
    %153 = vector.load %arg21[%c0_199, %c640_200] : memref<32x768xbf16, #tpu.memory_space<vmem>>, vector<8x128xbf16>
    tpu.vector_store %arg21[%c0_199, %c640_200], %152 {strides = array<i32>} : memref<32x768xbf16, #tpu.memory_space<vmem>>, vector<8x128xbf16>,
    %c0_201 = arith.constant 0 : index
    %c121_202 = arith.constant 121 : index
    %154 = vector.load %arg21[%c0_201, %c121_202] : memref<32x768xbf16, #tpu.memory_space<vmem>>, vector<8x512xbf16>
    %c0_203 = arith.constant 0 : index
    %c0_204 = arith.constant 0 : index
    %155 = vector.load %arg22[%c0_203, %c0_204] : memref<240x512xbf16, #tpu.memory_space<vmem>>, vector<8x512xbf16>
    tpu.vector_store %arg22[%c0_203, %c0_204], %154 {strides = array<i32>} : memref<240x512xbf16, #tpu.memory_space<vmem>>, vector<8x512xbf16>,
    %c0_205 = arith.constant 0 : index
    %c122_206 = arith.constant 122 : index
    %156 = vector.load %arg21[%c0_205, %c122_206] : memref<32x768xbf16, #tpu.memory_space<vmem>>, vector<8x512xbf16>
    %c8_207 = arith.constant 8 : index
    %c0_208 = arith.constant 0 : index
    %157 = vector.load %arg22[%c8_207, %c0_208] : memref<240x512xbf16, #tpu.memory_space<vmem>>, vector<8x512xbf16>
    tpu.vector_store %arg22[%c8_207, %c0_208], %156 {strides = array<i32>} : memref<240x512xbf16, #tpu.memory_space<vmem>>, vector<8x512xbf16>,
    %c0_209 = arith.constant 0 : index
    %c123_210 = arith.constant 123 : index
    %158 = vector.load %arg21[%c0_209, %c123_210] : memref<32x768xbf16, #tpu.memory_space<vmem>>, vector<8x512xbf16>
    %c16_211 = arith.constant 16 : index
    %c0_212 = arith.constant 0 : index
    %159 = vector.load %arg22[%c16_211, %c0_212] : memref<240x512xbf16, #tpu.memory_space<vmem>>, vector<8x512xbf16>
    tpu.vector_store %arg22[%c16_211, %c0_212], %158 {strides = array<i32>} : memref<240x512xbf16, #tpu.memory_space<vmem>>, vector<8x512xbf16>,
    %c0_213 = arith.constant 0 : index
    %c124_214 = arith.constant 124 : index
    %160 = vector.load %arg21[%c0_213, %c124_214] : memref<32x768xbf16, #tpu.memory_space<vmem>>, vector<8x512xbf16>
    %c24_215 = arith.constant 24 : index
    %c0_216 = arith.constant 0 : index
    %161 = vector.load %arg22[%c24_215, %c0_216] : memref<240x512xbf16, #tpu.memory_space<vmem>>, vector<8x512xbf16>
    tpu.vector_store %arg22[%c24_215, %c0_216], %160 {strides = array<i32>} : memref<240x512xbf16, #tpu.memory_space<vmem>>, vector<8x512xbf16>,
    %c0_217 = arith.constant 0 : index
    %c125_218 = arith.constant 125 : index
    %162 = vector.load %arg21[%c0_217, %c125_218] : memref<32x768xbf16, #tpu.memory_space<vmem>>, vector<8x512xbf16>
    %c32_219 = arith.constant 32 : index
    %c0_220 = arith.constant 0 : index
    %163 = vector.load %arg22[%c32_219, %c0_220] : memref<240x512xbf16, #tpu.memory_space<vmem>>, vector<8x512xbf16>
    tpu.vector_store %arg22[%c32_219, %c0_220], %162 {strides = array<i32>} : memref<240x512xbf16, #tpu.memory_space<vmem>>, vector<8x512xbf16>,
    %c0_221 = arith.constant 0 : index
    %c126_222 = arith.constant 126 : index
    %164 = vector.load %arg21[%c0_221, %c126_222] : memref<32x768xbf16, #tpu.memory_space<vmem>>, vector<8x512xbf16>
    %c40_223 = arith.constant 40 : index
    %c0_224 = arith.constant 0 : index
    %165 = vector.load %arg22[%c40_223, %c0_224] : memref<240x512xbf16, #tpu.memory_space<vmem>>, vector<8x512xbf16>
    tpu.vector_store %arg22[%c40_223, %c0_224], %164 {strides = array<i32>} : memref<240x512xbf16, #tpu.memory_space<vmem>>, vector<8x512xbf16>,
    %c0_225 = arith.constant 0 : index
    %c127_226 = arith.constant 127 : index
    %166 = vector.load %arg21[%c0_225, %c127_226] : memref<32x768xbf16, #tpu.memory_space<vmem>>, vector<8x512xbf16>
    %c48_227 = arith.constant 48 : index
    %c0_228 = arith.constant 0 : index
    %167 = vector.load %arg22[%c48_227, %c0_228] : memref<240x512xbf16, #tpu.memory_space<vmem>>, vector<8x512xbf16>
    tpu.vector_store %arg22[%c48_227, %c0_228], %166 {strides = array<i32>} : memref<240x512xbf16, #tpu.memory_space<vmem>>, vector<8x512xbf16>,
    %c0_229 = arith.constant 0 : index
    %c128_230 = arith.constant 128 : index
    %168 = vector.load %arg21[%c0_229, %c128_230] : memref<32x768xbf16, #tpu.memory_space<vmem>>, vector<8x512xbf16>
    %c56_231 = arith.constant 56 : index
    %c0_232 = arith.constant 0 : index
    %169 = vector.load %arg22[%c56_231, %c0_232] : memref<240x512xbf16, #tpu.memory_space<vmem>>, vector<8x512xbf16>
    tpu.vector_store %arg22[%c56_231, %c0_232], %168 {strides = array<i32>} : memref<240x512xbf16, #tpu.memory_space<vmem>>, vector<8x512xbf16>,
    %c0_233 = arith.constant 0 : index
    %c129_234 = arith.constant 129 : index
    %170 = vector.load %arg21[%c0_233, %c129_234] : memref<32x768xbf16, #tpu.memory_space<vmem>>, vector<8x512xbf16>
    %c64_235 = arith.constant 64 : index
    %c0_236 = arith.constant 0 : index
    %171 = vector.load %arg22[%c64_235, %c0_236] : memref<240x512xbf16, #tpu.memory_space<vmem>>, vector<8x512xbf16>
    tpu.vector_store %arg22[%c64_235, %c0_236], %170 {strides = array<i32>} : memref<240x512xbf16, #tpu.memory_space<vmem>>, vector<8x512xbf16>,
    %c0_237 = arith.constant 0 : index
    %c130_238 = arith.constant 130 : index
    %172 = vector.load %arg21[%c0_237, %c130_238] : memref<32x768xbf16, #tpu.memory_space<vmem>>, vector<8x512xbf16>
    %c72_239 = arith.constant 72 : index
    %c0_240 = arith.constant 0 : index
    %173 = vector.load %arg22[%c72_239, %c0_240] : memref<240x512xbf16, #tpu.memory_space<vmem>>, vector<8x512xbf16>
    tpu.vector_store %arg22[%c72_239, %c0_240], %172 {strides = array<i32>} : memref<240x512xbf16, #tpu.memory_space<vmem>>, vector<8x512xbf16>,
    %c0_241 = arith.constant 0 : index
    %c131_242 = arith.constant 131 : index
    %174 = vector.load %arg21[%c0_241, %c131_242] : memref<32x768xbf16, #tpu.memory_space<vmem>>, vector<8x512xbf16>
    %c80_243 = arith.constant 80 : index
    %c0_244 = arith.constant 0 : index
    %175 = vector.load %arg22[%c80_243, %c0_244] : memref<240x512xbf16, #tpu.memory_space<vmem>>, vector<8x512xbf16>
    tpu.vector_store %arg22[%c80_243, %c0_244], %174 {strides = array<i32>} : memref<240x512xbf16, #tpu.memory_space<vmem>>, vector<8x512xbf16>,
    %c0_245 = arith.constant 0 : index
    %c132_246 = arith.constant 132 : index
    %176 = vector.load %arg21[%c0_245, %c132_246] : memref<32x768xbf16, #tpu.memory_space<vmem>>, vector<8x512xbf16>
    %c88_247 = arith.constant 88 : index
    %c0_248 = arith.constant 0 : index
    %177 = vector.load %arg22[%c88_247, %c0_248] : memref<240x512xbf16, #tpu.memory_space<vmem>>, vector<8x512xbf16>
    tpu.vector_store %arg22[%c88_247, %c0_248], %176 {strides = array<i32>} : memref<240x512xbf16, #tpu.memory_space<vmem>>, vector<8x512xbf16>,
    %c0_249 = arith.constant 0 : index
    %c133_250 = arith.constant 133 : index
    %178 = vector.load %arg21[%c0_249, %c133_250] : memref<32x768xbf16, #tpu.memory_space<vmem>>, vector<8x512xbf16>
    %c96_251 = arith.constant 96 : index
    %c0_252 = arith.constant 0 : index
    %179 = vector.load %arg22[%c96_251, %c0_252] : memref<240x512xbf16, #tpu.memory_space<vmem>>, vector<8x512xbf16>
    tpu.vector_store %arg22[%c96_251, %c0_252], %178 {strides = array<i32>} : memref<240x512xbf16, #tpu.memory_space<vmem>>, vector<8x512xbf16>,
    %c0_253 = arith.constant 0 : index
    %c134_254 = arith.constant 134 : index
    %180 = vector.load %arg21[%c0_253, %c134_254] : memref<32x768xbf16, #tpu.memory_space<vmem>>, vector<8x512xbf16>
    %c104_255 = arith.constant 104 : index
    %c0_256 = arith.constant 0 : index
    %181 = vector.load %arg22[%c104_255, %c0_256] : memref<240x512xbf16, #tpu.memory_space<vmem>>, vector<8x512xbf16>
    tpu.vector_store %arg22[%c104_255, %c0_256], %180 {strides = array<i32>} : memref<240x512xbf16, #tpu.memory_space<vmem>>, vector<8x512xbf16>,
    %c0_257 = arith.constant 0 : index
    %c135_258 = arith.constant 135 : index
    %182 = vector.load %arg21[%c0_257, %c135_258] : memref<32x768xbf16, #tpu.memory_space<vmem>>, vector<8x512xbf16>
    %c112_259 = arith.constant 112 : index
    %c0_260 = arith.constant 0 : index
    %183 = vector.load %arg22[%c112_259, %c0_260] : memref<240x512xbf16, #tpu.memory_space<vmem>>, vector<8x512xbf16>
    tpu.vector_store %arg22[%c112_259, %c0_260], %182 {strides = array<i32>} : memref<240x512xbf16, #tpu.memory_space<vmem>>, vector<8x512xbf16>,
    %c0_261 = arith.constant 0 : index
    %c0_262 = arith.constant 0 : index
    %184 = vector.load %arg5[%c0_261, %c0_262] : memref<16x120xbf16, #tpu.memory_space<vmem>>, vector<16x120xbf16>
    %c0_263 = arith.constant 0 : index
    %c0_264 = arith.constant 0 : index
    %185 = vector.load %arg22[%c0_263, %c0_264] : memref<240x512xbf16, #tpu.memory_space<vmem>>, vector<120x512xbf16>
    %cst_265 = arith.constant dense<0.000000e+00> : vector<16x512xf32>
    %186 = tpu.matmul %184, %185, %cst_265 {dimension_numbers = #tpu.dot_dimension_numbers<[1], [0], [0], [1], [0, 0, 1, 1], [], []>} : vector<16x120xbf16>, vector<120x512xbf16>, vector<16x512xf32> -> vector<16x512xf32>
    %c0_266 = arith.constant 0 : index
    %c0_267 = arith.constant 0 : index
    %187 = vector.load %arg13[%c0_266, %c0_267] : memref<16x2xf32, #tpu.memory_space<vmem>>, vector<16x2xf32>
    %188 = vector.extract_strided_slice %187 {offsets = [0, 0], sizes = [16, 1], strides = [1, 1]} : vector<16x2xf32> to vector<16x1xf32>
    %189 = vector.broadcast %188 : vector<16x1xf32> to vector<16x512xf32>
    %190 = arith.mulf %186, %189 : vector<16x512xf32>
    %191 = vector.extract_strided_slice %187 {offsets = [0, 1], sizes = [16, 1], strides = [1, 1]} : vector<16x2xf32> to vector<16x1xf32>
    %192 = vector.broadcast %191 : vector<16x1xf32> to vector<16x512xf32>
    %193 = arith.addf %190, %192 : vector<16x512xf32>
    %cst_268 = arith.constant 0.000000e+00 : f32
    %194 = vector.broadcast %cst_268 : f32 to vector<16x512xf32>
    %195 = arith.cmpf ogt, %193, %194 : vector<16x512xf32>
    %cst_269 = arith.constant 1.000000e-01 : f32
    %196 = vector.broadcast %cst_269 : f32 to vector<16x512xf32>
    %197 = arith.mulf %196, %193 : vector<16x512xf32>
    %198 = arith.select %195, %193, %197 : vector<16x512xi1>, vector<16x512xf32>
    %199 = arith.truncf %198 : vector<16x512xf32> to vector<16x512xbf16>
    %c0_270 = arith.constant 0 : index
    %c0_271 = arith.constant 0 : index
    %200 = vector.load %arg18[%c0_270, %c0_271] : memref<512x256xbf16, #tpu.memory_space<vmem>>, vector<512x256xbf16>
    %cst_272 = arith.constant dense<0.000000e+00> : vector<16x256xf32>
    %201 = tpu.matmul %199, %200, %cst_272 {dimension_numbers = #tpu.dot_dimension_numbers<[1], [0], [0], [1], [0, 0, 1, 1], [], []>} : vector<16x512xbf16>, vector<512x256xbf16>, vector<16x256xf32> -> vector<16x256xf32>
    %202 = arith.truncf %201 : vector<16x256xf32> to vector<16x256xbf16>
    %c0_273 = arith.constant 0 : index
    %c128_274 = arith.constant 128 : index
    %203 = vector.load %arg20[%c0_273, %c128_274] : memref<32x768xbf16, #tpu.memory_space<vmem>>, vector<16x256xbf16>
    tpu.vector_store %arg20[%c0_273, %c128_274], %202 {strides = array<i32>} : memref<32x768xbf16, #tpu.memory_space<vmem>>, vector<16x256xbf16>,
    %cst_275 = arith.constant 0.000000e+00 : bf16
    %204 = vector.broadcast %cst_275 : bf16 to vector<16x128xbf16>
    %c0_276 = arith.constant 0 : index
    %c384 = arith.constant 384 : index
    %205 = vector.load %arg20[%c0_276, %c384] : memref<32x768xbf16, #tpu.memory_space<vmem>>, vector<16x128xbf16>
    tpu.vector_store %arg20[%c0_276, %c384], %204 {strides = array<i32>} : memref<32x768xbf16, #tpu.memory_space<vmem>>, vector<16x128xbf16>,
    %c0_277 = arith.constant 0 : index
    %c121_278 = arith.constant 121 : index
    %206 = vector.load %arg20[%c0_277, %c121_278] : memref<32x768xbf16, #tpu.memory_space<vmem>>, vector<16x256xbf16>
    %c0_279 = arith.constant 0 : index
    %c0_280 = arith.constant 0 : index
    %207 = vector.load %arg22[%c0_279, %c0_280] : memref<240x512xbf16, #tpu.memory_space<vmem>>, vector<16x256xbf16>
    tpu.vector_store %arg22[%c0_279, %c0_280], %206 {strides = array<i32>} : memref<240x512xbf16, #tpu.memory_space<vmem>>, vector<16x256xbf16>,
    %c0_281 = arith.constant 0 : index
    %c122_282 = arith.constant 122 : index
    %208 = vector.load %arg20[%c0_281, %c122_282] : memref<32x768xbf16, #tpu.memory_space<vmem>>, vector<16x256xbf16>
    %c16_283 = arith.constant 16 : index
    %c0_284 = arith.constant 0 : index
    %209 = vector.load %arg22[%c16_283, %c0_284] : memref<240x512xbf16, #tpu.memory_space<vmem>>, vector<16x256xbf16>
    tpu.vector_store %arg22[%c16_283, %c0_284], %208 {strides = array<i32>} : memref<240x512xbf16, #tpu.memory_space<vmem>>, vector<16x256xbf16>,
    %c0_285 = arith.constant 0 : index
    %c123_286 = arith.constant 123 : index
    %210 = vector.load %arg20[%c0_285, %c123_286] : memref<32x768xbf16, #tpu.memory_space<vmem>>, vector<16x256xbf16>
    %c32_287 = arith.constant 32 : index
    %c0_288 = arith.constant 0 : index
    %211 = vector.load %arg22[%c32_287, %c0_288] : memref<240x512xbf16, #tpu.memory_space<vmem>>, vector<16x256xbf16>
    tpu.vector_store %arg22[%c32_287, %c0_288], %210 {strides = array<i32>} : memref<240x512xbf16, #tpu.memory_space<vmem>>, vector<16x256xbf16>,
    %c0_289 = arith.constant 0 : index
    %c124_290 = arith.constant 124 : index
    %212 = vector.load %arg20[%c0_289, %c124_290] : memref<32x768xbf16, #tpu.memory_space<vmem>>, vector<16x256xbf16>
    %c48_291 = arith.constant 48 : index
    %c0_292 = arith.constant 0 : index
    %213 = vector.load %arg22[%c48_291, %c0_292] : memref<240x512xbf16, #tpu.memory_space<vmem>>, vector<16x256xbf16>
    tpu.vector_store %arg22[%c48_291, %c0_292], %212 {strides = array<i32>} : memref<240x512xbf16, #tpu.memory_space<vmem>>, vector<16x256xbf16>,
    %c0_293 = arith.constant 0 : index
    %c125_294 = arith.constant 125 : index
    %214 = vector.load %arg20[%c0_293, %c125_294] : memref<32x768xbf16, #tpu.memory_space<vmem>>, vector<16x256xbf16>
    %c64_295 = arith.constant 64 : index
    %c0_296 = arith.constant 0 : index
    %215 = vector.load %arg22[%c64_295, %c0_296] : memref<240x512xbf16, #tpu.memory_space<vmem>>, vector<16x256xbf16>
    tpu.vector_store %arg22[%c64_295, %c0_296], %214 {strides = array<i32>} : memref<240x512xbf16, #tpu.memory_space<vmem>>, vector<16x256xbf16>,
    %c0_297 = arith.constant 0 : index
    %c126_298 = arith.constant 126 : index
    %216 = vector.load %arg20[%c0_297, %c126_298] : memref<32x768xbf16, #tpu.memory_space<vmem>>, vector<16x256xbf16>
    %c80_299 = arith.constant 80 : index
    %c0_300 = arith.constant 0 : index
    %217 = vector.load %arg22[%c80_299, %c0_300] : memref<240x512xbf16, #tpu.memory_space<vmem>>, vector<16x256xbf16>
    tpu.vector_store %arg22[%c80_299, %c0_300], %216 {strides = array<i32>} : memref<240x512xbf16, #tpu.memory_space<vmem>>, vector<16x256xbf16>,
    %c0_301 = arith.constant 0 : index
    %c127_302 = arith.constant 127 : index
    %218 = vector.load %arg20[%c0_301, %c127_302] : memref<32x768xbf16, #tpu.memory_space<vmem>>, vector<16x256xbf16>
    %c96_303 = arith.constant 96 : index
    %c0_304 = arith.constant 0 : index
    %219 = vector.load %arg22[%c96_303, %c0_304] : memref<240x512xbf16, #tpu.memory_space<vmem>>, vector<16x256xbf16>
    tpu.vector_store %arg22[%c96_303, %c0_304], %218 {strides = array<i32>} : memref<240x512xbf16, #tpu.memory_space<vmem>>, vector<16x256xbf16>,
    %c0_305 = arith.constant 0 : index
    %c128_306 = arith.constant 128 : index
    %220 = vector.load %arg20[%c0_305, %c128_306] : memref<32x768xbf16, #tpu.memory_space<vmem>>, vector<16x256xbf16>
    %c112_307 = arith.constant 112 : index
    %c0_308 = arith.constant 0 : index
    %221 = vector.load %arg22[%c112_307, %c0_308] : memref<240x512xbf16, #tpu.memory_space<vmem>>, vector<16x256xbf16>
    tpu.vector_store %arg22[%c112_307, %c0_308], %220 {strides = array<i32>} : memref<240x512xbf16, #tpu.memory_space<vmem>>, vector<16x256xbf16>,
    %c0_309 = arith.constant 0 : index
    %c129_310 = arith.constant 129 : index
    %222 = vector.load %arg20[%c0_309, %c129_310] : memref<32x768xbf16, #tpu.memory_space<vmem>>, vector<16x256xbf16>
    %c128_311 = arith.constant 128 : index
    %c0_312 = arith.constant 0 : index
    %223 = vector.load %arg22[%c128_311, %c0_312] : memref<240x512xbf16, #tpu.memory_space<vmem>>, vector<16x256xbf16>
    tpu.vector_store %arg22[%c128_311, %c0_312], %222 {strides = array<i32>} : memref<240x512xbf16, #tpu.memory_space<vmem>>, vector<16x256xbf16>,
    %c0_313 = arith.constant 0 : index
    %c130_314 = arith.constant 130 : index
    %224 = vector.load %arg20[%c0_313, %c130_314] : memref<32x768xbf16, #tpu.memory_space<vmem>>, vector<16x256xbf16>
    %c144 = arith.constant 144 : index
    %c0_315 = arith.constant 0 : index
    %225 = vector.load %arg22[%c144, %c0_315] : memref<240x512xbf16, #tpu.memory_space<vmem>>, vector<16x256xbf16>
    tpu.vector_store %arg22[%c144, %c0_315], %224 {strides = array<i32>} : memref<240x512xbf16, #tpu.memory_space<vmem>>, vector<16x256xbf16>,
    %c0_316 = arith.constant 0 : index
    %c131_317 = arith.constant 131 : index
    %226 = vector.load %arg20[%c0_316, %c131_317] : memref<32x768xbf16, #tpu.memory_space<vmem>>, vector<16x256xbf16>
    %c160 = arith.constant 160 : index
    %c0_318 = arith.constant 0 : index
    %227 = vector.load %arg22[%c160, %c0_318] : memref<240x512xbf16, #tpu.memory_space<vmem>>, vector<16x256xbf16>
    tpu.vector_store %arg22[%c160, %c0_318], %226 {strides = array<i32>} : memref<240x512xbf16, #tpu.memory_space<vmem>>, vector<16x256xbf16>,
    %c0_319 = arith.constant 0 : index
    %c132_320 = arith.constant 132 : index
    %228 = vector.load %arg20[%c0_319, %c132_320] : memref<32x768xbf16, #tpu.memory_space<vmem>>, vector<16x256xbf16>
    %c176 = arith.constant 176 : index
    %c0_321 = arith.constant 0 : index
    %229 = vector.load %arg22[%c176, %c0_321] : memref<240x512xbf16, #tpu.memory_space<vmem>>, vector<16x256xbf16>
    tpu.vector_store %arg22[%c176, %c0_321], %228 {strides = array<i32>} : memref<240x512xbf16, #tpu.memory_space<vmem>>, vector<16x256xbf16>,
    %c0_322 = arith.constant 0 : index
    %c133_323 = arith.constant 133 : index
    %230 = vector.load %arg20[%c0_322, %c133_323] : memref<32x768xbf16, #tpu.memory_space<vmem>>, vector<16x256xbf16>
    %c192 = arith.constant 192 : index
    %c0_324 = arith.constant 0 : index
    %231 = vector.load %arg22[%c192, %c0_324] : memref<240x512xbf16, #tpu.memory_space<vmem>>, vector<16x256xbf16>
    tpu.vector_store %arg22[%c192, %c0_324], %230 {strides = array<i32>} : memref<240x512xbf16, #tpu.memory_space<vmem>>, vector<16x256xbf16>,
    %c0_325 = arith.constant 0 : index
    %c134_326 = arith.constant 134 : index
    %232 = vector.load %arg20[%c0_325, %c134_326] : memref<32x768xbf16, #tpu.memory_space<vmem>>, vector<16x256xbf16>
    %c208 = arith.constant 208 : index
    %c0_327 = arith.constant 0 : index
    %233 = vector.load %arg22[%c208, %c0_327] : memref<240x512xbf16, #tpu.memory_space<vmem>>, vector<16x256xbf16>
    tpu.vector_store %arg22[%c208, %c0_327], %232 {strides = array<i32>} : memref<240x512xbf16, #tpu.memory_space<vmem>>, vector<16x256xbf16>,
    %c0_328 = arith.constant 0 : index
    %c135_329 = arith.constant 135 : index
    %234 = vector.load %arg20[%c0_328, %c135_329] : memref<32x768xbf16, #tpu.memory_space<vmem>>, vector<16x256xbf16>
    %c224 = arith.constant 224 : index
    %c0_330 = arith.constant 0 : index
    %235 = vector.load %arg22[%c224, %c0_330] : memref<240x512xbf16, #tpu.memory_space<vmem>>, vector<16x256xbf16>
    tpu.vector_store %arg22[%c224, %c0_330], %234 {strides = array<i32>} : memref<240x512xbf16, #tpu.memory_space<vmem>>, vector<16x256xbf16>,
    %c0_331 = arith.constant 0 : index
    %c0_332 = arith.constant 0 : index
    %236 = vector.load %arg6[%c0_331, %c0_332] : memref<16x240xbf16, #tpu.memory_space<vmem>>, vector<16x240xbf16>
    %c0_333 = arith.constant 0 : index
    %c0_334 = arith.constant 0 : index
    %237 = vector.load %arg22[%c0_333, %c0_334] : memref<240x512xbf16, #tpu.memory_space<vmem>>, vector<240x256xbf16>
    %cst_335 = arith.constant dense<0.000000e+00> : vector<16x256xf32>
    %238 = tpu.matmul %236, %237, %cst_335 {dimension_numbers = #tpu.dot_dimension_numbers<[1], [0], [0], [1], [0, 0, 1, 1], [], []>} : vector<16x240xbf16>, vector<240x256xbf16>, vector<16x256xf32> -> vector<16x256xf32>
    %c0_336 = arith.constant 0 : index
    %c0_337 = arith.constant 0 : index
    %239 = vector.load %arg14[%c0_336, %c0_337] : memref<16x2xf32, #tpu.memory_space<vmem>>, vector<16x2xf32>
    %240 = vector.extract_strided_slice %239 {offsets = [0, 0], sizes = [16, 1], strides = [1, 1]} : vector<16x2xf32> to vector<16x1xf32>
    %241 = vector.broadcast %240 : vector<16x1xf32> to vector<16x256xf32>
    %242 = arith.mulf %238, %241 : vector<16x256xf32>
    %243 = vector.extract_strided_slice %239 {offsets = [0, 1], sizes = [16, 1], strides = [1, 1]} : vector<16x2xf32> to vector<16x1xf32>
    %244 = vector.broadcast %243 : vector<16x1xf32> to vector<16x256xf32>
    %245 = arith.addf %242, %244 : vector<16x256xf32>
    %cst_338 = arith.constant 0.000000e+00 : f32
    %246 = vector.broadcast %cst_338 : f32 to vector<16x256xf32>
    %247 = arith.cmpf ogt, %245, %246 : vector<16x256xf32>
    %cst_339 = arith.constant 1.000000e-01 : f32
    %248 = vector.broadcast %cst_339 : f32 to vector<16x256xf32>
    %249 = arith.mulf %248, %245 : vector<16x256xf32>
    %250 = arith.select %247, %245, %249 : vector<16x256xi1>, vector<16x256xf32>
    %251 = arith.truncf %250 : vector<16x256xf32> to vector<16x256xbf16>
    %c0_340 = arith.constant 0 : index
    %c128_341 = arith.constant 128 : index
    %252 = vector.load %arg21[%c0_340, %c128_341] : memref<32x768xbf16, #tpu.memory_space<vmem>>, vector<16x256xbf16>
    tpu.vector_store %arg21[%c0_340, %c128_341], %251 {strides = array<i32>} : memref<32x768xbf16, #tpu.memory_space<vmem>>, vector<16x256xbf16>,
    %cst_342 = arith.constant 0.000000e+00 : bf16
    %253 = vector.broadcast %cst_342 : bf16 to vector<16x128xbf16>
    %c0_343 = arith.constant 0 : index
    %c384_344 = arith.constant 384 : index
    %254 = vector.load %arg21[%c0_343, %c384_344] : memref<32x768xbf16, #tpu.memory_space<vmem>>, vector<16x128xbf16>
    tpu.vector_store %arg21[%c0_343, %c384_344], %253 {strides = array<i32>} : memref<32x768xbf16, #tpu.memory_space<vmem>>, vector<16x128xbf16>,
    %c0_345 = arith.constant 0 : index
    %c121_346 = arith.constant 121 : index
    %255 = vector.load %arg21[%c0_345, %c121_346] : memref<32x768xbf16, #tpu.memory_space<vmem>>, vector<16x256xbf16>
    %c0_347 = arith.constant 0 : index
    %c0_348 = arith.constant 0 : index
    %256 = vector.load %arg22[%c0_347, %c0_348] : memref<240x512xbf16, #tpu.memory_space<vmem>>, vector<16x256xbf16>
    tpu.vector_store %arg22[%c0_347, %c0_348], %255 {strides = array<i32>} : memref<240x512xbf16, #tpu.memory_space<vmem>>, vector<16x256xbf16>,
    %c0_349 = arith.constant 0 : index
    %c122_350 = arith.constant 122 : index
    %257 = vector.load %arg21[%c0_349, %c122_350] : memref<32x768xbf16, #tpu.memory_space<vmem>>, vector<16x256xbf16>
    %c16_351 = arith.constant 16 : index
    %c0_352 = arith.constant 0 : index
    %258 = vector.load %arg22[%c16_351, %c0_352] : memref<240x512xbf16, #tpu.memory_space<vmem>>, vector<16x256xbf16>
    tpu.vector_store %arg22[%c16_351, %c0_352], %257 {strides = array<i32>} : memref<240x512xbf16, #tpu.memory_space<vmem>>, vector<16x256xbf16>,
    %c0_353 = arith.constant 0 : index
    %c123_354 = arith.constant 123 : index
    %259 = vector.load %arg21[%c0_353, %c123_354] : memref<32x768xbf16, #tpu.memory_space<vmem>>, vector<16x256xbf16>
    %c32_355 = arith.constant 32 : index
    %c0_356 = arith.constant 0 : index
    %260 = vector.load %arg22[%c32_355, %c0_356] : memref<240x512xbf16, #tpu.memory_space<vmem>>, vector<16x256xbf16>
    tpu.vector_store %arg22[%c32_355, %c0_356], %259 {strides = array<i32>} : memref<240x512xbf16, #tpu.memory_space<vmem>>, vector<16x256xbf16>,
    %c0_357 = arith.constant 0 : index
    %c124_358 = arith.constant 124 : index
    %261 = vector.load %arg21[%c0_357, %c124_358] : memref<32x768xbf16, #tpu.memory_space<vmem>>, vector<16x256xbf16>
    %c48_359 = arith.constant 48 : index
    %c0_360 = arith.constant 0 : index
    %262 = vector.load %arg22[%c48_359, %c0_360] : memref<240x512xbf16, #tpu.memory_space<vmem>>, vector<16x256xbf16>
    tpu.vector_store %arg22[%c48_359, %c0_360], %261 {strides = array<i32>} : memref<240x512xbf16, #tpu.memory_space<vmem>>, vector<16x256xbf16>,
    %c0_361 = arith.constant 0 : index
    %c125_362 = arith.constant 125 : index
    %263 = vector.load %arg21[%c0_361, %c125_362] : memref<32x768xbf16, #tpu.memory_space<vmem>>, vector<16x256xbf16>
    %c64_363 = arith.constant 64 : index
    %c0_364 = arith.constant 0 : index
    %264 = vector.load %arg22[%c64_363, %c0_364] : memref<240x512xbf16, #tpu.memory_space<vmem>>, vector<16x256xbf16>
    tpu.vector_store %arg22[%c64_363, %c0_364], %263 {strides = array<i32>} : memref<240x512xbf16, #tpu.memory_space<vmem>>, vector<16x256xbf16>,
    %c0_365 = arith.constant 0 : index
    %c126_366 = arith.constant 126 : index
    %265 = vector.load %arg21[%c0_365, %c126_366] : memref<32x768xbf16, #tpu.memory_space<vmem>>, vector<16x256xbf16>
    %c80_367 = arith.constant 80 : index
    %c0_368 = arith.constant 0 : index
    %266 = vector.load %arg22[%c80_367, %c0_368] : memref<240x512xbf16, #tpu.memory_space<vmem>>, vector<16x256xbf16>
    tpu.vector_store %arg22[%c80_367, %c0_368], %265 {strides = array<i32>} : memref<240x512xbf16, #tpu.memory_space<vmem>>, vector<16x256xbf16>,
    %c0_369 = arith.constant 0 : index
    %c127_370 = arith.constant 127 : index
    %267 = vector.load %arg21[%c0_369, %c127_370] : memref<32x768xbf16, #tpu.memory_space<vmem>>, vector<16x256xbf16>
    %c96_371 = arith.constant 96 : index
    %c0_372 = arith.constant 0 : index
    %268 = vector.load %arg22[%c96_371, %c0_372] : memref<240x512xbf16, #tpu.memory_space<vmem>>, vector<16x256xbf16>
    tpu.vector_store %arg22[%c96_371, %c0_372], %267 {strides = array<i32>} : memref<240x512xbf16, #tpu.memory_space<vmem>>, vector<16x256xbf16>,
    %c0_373 = arith.constant 0 : index
    %c128_374 = arith.constant 128 : index
    %269 = vector.load %arg21[%c0_373, %c128_374] : memref<32x768xbf16, #tpu.memory_space<vmem>>, vector<16x256xbf16>
    %c112_375 = arith.constant 112 : index
    %c0_376 = arith.constant 0 : index
    %270 = vector.load %arg22[%c112_375, %c0_376] : memref<240x512xbf16, #tpu.memory_space<vmem>>, vector<16x256xbf16>
    tpu.vector_store %arg22[%c112_375, %c0_376], %269 {strides = array<i32>} : memref<240x512xbf16, #tpu.memory_space<vmem>>, vector<16x256xbf16>,
    %c0_377 = arith.constant 0 : index
    %c129_378 = arith.constant 129 : index
    %271 = vector.load %arg21[%c0_377, %c129_378] : memref<32x768xbf16, #tpu.memory_space<vmem>>, vector<16x256xbf16>
    %c128_379 = arith.constant 128 : index
    %c0_380 = arith.constant 0 : index
    %272 = vector.load %arg22[%c128_379, %c0_380] : memref<240x512xbf16, #tpu.memory_space<vmem>>, vector<16x256xbf16>
    tpu.vector_store %arg22[%c128_379, %c0_380], %271 {strides = array<i32>} : memref<240x512xbf16, #tpu.memory_space<vmem>>, vector<16x256xbf16>,
    %c0_381 = arith.constant 0 : index
    %c130_382 = arith.constant 130 : index
    %273 = vector.load %arg21[%c0_381, %c130_382] : memref<32x768xbf16, #tpu.memory_space<vmem>>, vector<16x256xbf16>
    %c144_383 = arith.constant 144 : index
    %c0_384 = arith.constant 0 : index
    %274 = vector.load %arg22[%c144_383, %c0_384] : memref<240x512xbf16, #tpu.memory_space<vmem>>, vector<16x256xbf16>
    tpu.vector_store %arg22[%c144_383, %c0_384], %273 {strides = array<i32>} : memref<240x512xbf16, #tpu.memory_space<vmem>>, vector<16x256xbf16>,
    %c0_385 = arith.constant 0 : index
    %c131_386 = arith.constant 131 : index
    %275 = vector.load %arg21[%c0_385, %c131_386] : memref<32x768xbf16, #tpu.memory_space<vmem>>, vector<16x256xbf16>
    %c160_387 = arith.constant 160 : index
    %c0_388 = arith.constant 0 : index
    %276 = vector.load %arg22[%c160_387, %c0_388] : memref<240x512xbf16, #tpu.memory_space<vmem>>, vector<16x256xbf16>
    tpu.vector_store %arg22[%c160_387, %c0_388], %275 {strides = array<i32>} : memref<240x512xbf16, #tpu.memory_space<vmem>>, vector<16x256xbf16>,
    %c0_389 = arith.constant 0 : index
    %c132_390 = arith.constant 132 : index
    %277 = vector.load %arg21[%c0_389, %c132_390] : memref<32x768xbf16, #tpu.memory_space<vmem>>, vector<16x256xbf16>
    %c176_391 = arith.constant 176 : index
    %c0_392 = arith.constant 0 : index
    %278 = vector.load %arg22[%c176_391, %c0_392] : memref<240x512xbf16, #tpu.memory_space<vmem>>, vector<16x256xbf16>
    tpu.vector_store %arg22[%c176_391, %c0_392], %277 {strides = array<i32>} : memref<240x512xbf16, #tpu.memory_space<vmem>>, vector<16x256xbf16>,
    %c0_393 = arith.constant 0 : index
    %c133_394 = arith.constant 133 : index
    %279 = vector.load %arg21[%c0_393, %c133_394] : memref<32x768xbf16, #tpu.memory_space<vmem>>, vector<16x256xbf16>
    %c192_395 = arith.constant 192 : index
    %c0_396 = arith.constant 0 : index
    %280 = vector.load %arg22[%c192_395, %c0_396] : memref<240x512xbf16, #tpu.memory_space<vmem>>, vector<16x256xbf16>
    tpu.vector_store %arg22[%c192_395, %c0_396], %279 {strides = array<i32>} : memref<240x512xbf16, #tpu.memory_space<vmem>>, vector<16x256xbf16>,
    %c0_397 = arith.constant 0 : index
    %c134_398 = arith.constant 134 : index
    %281 = vector.load %arg21[%c0_397, %c134_398] : memref<32x768xbf16, #tpu.memory_space<vmem>>, vector<16x256xbf16>
    %c208_399 = arith.constant 208 : index
    %c0_400 = arith.constant 0 : index
    %282 = vector.load %arg22[%c208_399, %c0_400] : memref<240x512xbf16, #tpu.memory_space<vmem>>, vector<16x256xbf16>
    tpu.vector_store %arg22[%c208_399, %c0_400], %281 {strides = array<i32>} : memref<240x512xbf16, #tpu.memory_space<vmem>>, vector<16x256xbf16>,
    %c0_401 = arith.constant 0 : index
    %c135_402 = arith.constant 135 : index
    %283 = vector.load %arg21[%c0_401, %c135_402] : memref<32x768xbf16, #tpu.memory_space<vmem>>, vector<16x256xbf16>
    %c224_403 = arith.constant 224 : index
    %c0_404 = arith.constant 0 : index
    %284 = vector.load %arg22[%c224_403, %c0_404] : memref<240x512xbf16, #tpu.memory_space<vmem>>, vector<16x256xbf16>
    tpu.vector_store %arg22[%c224_403, %c0_404], %283 {strides = array<i32>} : memref<240x512xbf16, #tpu.memory_space<vmem>>, vector<16x256xbf16>,
    %c0_405 = arith.constant 0 : index
    %c0_406 = arith.constant 0 : index
    %285 = vector.load %arg7[%c0_405, %c0_406] : memref<16x240xbf16, #tpu.memory_space<vmem>>, vector<16x240xbf16>
    %c0_407 = arith.constant 0 : index
    %c0_408 = arith.constant 0 : index
    %286 = vector.load %arg22[%c0_407, %c0_408] : memref<240x512xbf16, #tpu.memory_space<vmem>>, vector<240x256xbf16>
    %cst_409 = arith.constant dense<0.000000e+00> : vector<16x256xf32>
    %287 = tpu.matmul %285, %286, %cst_409 {dimension_numbers = #tpu.dot_dimension_numbers<[1], [0], [0], [1], [0, 0, 1, 1], [], []>} : vector<16x240xbf16>, vector<240x256xbf16>, vector<16x256xf32> -> vector<16x256xf32>
    %c0_410 = arith.constant 0 : index
    %c0_411 = arith.constant 0 : index
    %288 = vector.load %arg15[%c0_410, %c0_411] : memref<16x2xf32, #tpu.memory_space<vmem>>, vector<16x2xf32>
    %289 = vector.extract_strided_slice %288 {offsets = [0, 0], sizes = [16, 1], strides = [1, 1]} : vector<16x2xf32> to vector<16x1xf32>
    %290 = vector.broadcast %289 : vector<16x1xf32> to vector<16x256xf32>
    %291 = arith.mulf %287, %290 : vector<16x256xf32>
    %292 = vector.extract_strided_slice %288 {offsets = [0, 1], sizes = [16, 1], strides = [1, 1]} : vector<16x2xf32> to vector<16x1xf32>
    %293 = vector.broadcast %292 : vector<16x1xf32> to vector<16x256xf32>
    %294 = arith.addf %291, %293 : vector<16x256xf32>
    %cst_412 = arith.constant 0.000000e+00 : f32
    %295 = vector.broadcast %cst_412 : f32 to vector<16x256xf32>
    %296 = arith.cmpf ogt, %294, %295 : vector<16x256xf32>
    %cst_413 = arith.constant 1.000000e-01 : f32
    %297 = vector.broadcast %cst_413 : f32 to vector<16x256xf32>
    %298 = arith.mulf %297, %294 : vector<16x256xf32>
    %299 = arith.select %296, %294, %298 : vector<16x256xi1>, vector<16x256xf32>
    %300 = arith.truncf %299 : vector<16x256xf32> to vector<16x256xbf16>
    %c0_414 = arith.constant 0 : index
    %c128_415 = arith.constant 128 : index
    %301 = vector.load %arg20[%c0_414, %c128_415] : memref<32x768xbf16, #tpu.memory_space<vmem>>, vector<16x256xbf16>
    tpu.vector_store %arg20[%c0_414, %c128_415], %300 {strides = array<i32>} : memref<32x768xbf16, #tpu.memory_space<vmem>>, vector<16x256xbf16>,
    %cst_416 = arith.constant 0.000000e+00 : bf16
    %302 = vector.broadcast %cst_416 : bf16 to vector<16x128xbf16>
    %c0_417 = arith.constant 0 : index
    %c384_418 = arith.constant 384 : index
    %303 = vector.load %arg20[%c0_417, %c384_418] : memref<32x768xbf16, #tpu.memory_space<vmem>>, vector<16x128xbf16>
    tpu.vector_store %arg20[%c0_417, %c384_418], %302 {strides = array<i32>} : memref<32x768xbf16, #tpu.memory_space<vmem>>, vector<16x128xbf16>,
    %c0_419 = arith.constant 0 : index
    %c121_420 = arith.constant 121 : index
    %304 = vector.load %arg20[%c0_419, %c121_420] : memref<32x768xbf16, #tpu.memory_space<vmem>>, vector<16x256xbf16>
    %c0_421 = arith.constant 0 : index
    %c0_422 = arith.constant 0 : index
    %305 = vector.load %arg22[%c0_421, %c0_422] : memref<240x512xbf16, #tpu.memory_space<vmem>>, vector<16x256xbf16>
    tpu.vector_store %arg22[%c0_421, %c0_422], %304 {strides = array<i32>} : memref<240x512xbf16, #tpu.memory_space<vmem>>, vector<16x256xbf16>,
    %c0_423 = arith.constant 0 : index
    %c122_424 = arith.constant 122 : index
    %306 = vector.load %arg20[%c0_423, %c122_424] : memref<32x768xbf16, #tpu.memory_space<vmem>>, vector<16x256xbf16>
    %c16_425 = arith.constant 16 : index
    %c0_426 = arith.constant 0 : index
    %307 = vector.load %arg22[%c16_425, %c0_426] : memref<240x512xbf16, #tpu.memory_space<vmem>>, vector<16x256xbf16>
    tpu.vector_store %arg22[%c16_425, %c0_426], %306 {strides = array<i32>} : memref<240x512xbf16, #tpu.memory_space<vmem>>, vector<16x256xbf16>,
    %c0_427 = arith.constant 0 : index
    %c123_428 = arith.constant 123 : index
    %308 = vector.load %arg20[%c0_427, %c123_428] : memref<32x768xbf16, #tpu.memory_space<vmem>>, vector<16x256xbf16>
    %c32_429 = arith.constant 32 : index
    %c0_430 = arith.constant 0 : index
    %309 = vector.load %arg22[%c32_429, %c0_430] : memref<240x512xbf16, #tpu.memory_space<vmem>>, vector<16x256xbf16>
    tpu.vector_store %arg22[%c32_429, %c0_430], %308 {strides = array<i32>} : memref<240x512xbf16, #tpu.memory_space<vmem>>, vector<16x256xbf16>,
    %c0_431 = arith.constant 0 : index
    %c124_432 = arith.constant 124 : index
    %310 = vector.load %arg20[%c0_431, %c124_432] : memref<32x768xbf16, #tpu.memory_space<vmem>>, vector<16x256xbf16>
    %c48_433 = arith.constant 48 : index
    %c0_434 = arith.constant 0 : index
    %311 = vector.load %arg22[%c48_433, %c0_434] : memref<240x512xbf16, #tpu.memory_space<vmem>>, vector<16x256xbf16>
    tpu.vector_store %arg22[%c48_433, %c0_434], %310 {strides = array<i32>} : memref<240x512xbf16, #tpu.memory_space<vmem>>, vector<16x256xbf16>,
    %c0_435 = arith.constant 0 : index
    %c125_436 = arith.constant 125 : index
    %312 = vector.load %arg20[%c0_435, %c125_436] : memref<32x768xbf16, #tpu.memory_space<vmem>>, vector<16x256xbf16>
    %c64_437 = arith.constant 64 : index
    %c0_438 = arith.constant 0 : index
    %313 = vector.load %arg22[%c64_437, %c0_438] : memref<240x512xbf16, #tpu.memory_space<vmem>>, vector<16x256xbf16>
    tpu.vector_store %arg22[%c64_437, %c0_438], %312 {strides = array<i32>} : memref<240x512xbf16, #tpu.memory_space<vmem>>, vector<16x256xbf16>,
    %c0_439 = arith.constant 0 : index
    %c126_440 = arith.constant 126 : index
    %314 = vector.load %arg20[%c0_439, %c126_440] : memref<32x768xbf16, #tpu.memory_space<vmem>>, vector<16x256xbf16>
    %c80_441 = arith.constant 80 : index
    %c0_442 = arith.constant 0 : index
    %315 = vector.load %arg22[%c80_441, %c0_442] : memref<240x512xbf16, #tpu.memory_space<vmem>>, vector<16x256xbf16>
    tpu.vector_store %arg22[%c80_441, %c0_442], %314 {strides = array<i32>} : memref<240x512xbf16, #tpu.memory_space<vmem>>, vector<16x256xbf16>,
    %c0_443 = arith.constant 0 : index
    %c127_444 = arith.constant 127 : index
    %316 = vector.load %arg20[%c0_443, %c127_444] : memref<32x768xbf16, #tpu.memory_space<vmem>>, vector<16x256xbf16>
    %c96_445 = arith.constant 96 : index
    %c0_446 = arith.constant 0 : index
    %317 = vector.load %arg22[%c96_445, %c0_446] : memref<240x512xbf16, #tpu.memory_space<vmem>>, vector<16x256xbf16>
    tpu.vector_store %arg22[%c96_445, %c0_446], %316 {strides = array<i32>} : memref<240x512xbf16, #tpu.memory_space<vmem>>, vector<16x256xbf16>,
    %c0_447 = arith.constant 0 : index
    %c128_448 = arith.constant 128 : index
    %318 = vector.load %arg20[%c0_447, %c128_448] : memref<32x768xbf16, #tpu.memory_space<vmem>>, vector<16x256xbf16>
    %c112_449 = arith.constant 112 : index
    %c0_450 = arith.constant 0 : index
    %319 = vector.load %arg22[%c112_449, %c0_450] : memref<240x512xbf16, #tpu.memory_space<vmem>>, vector<16x256xbf16>
    tpu.vector_store %arg22[%c112_449, %c0_450], %318 {strides = array<i32>} : memref<240x512xbf16, #tpu.memory_space<vmem>>, vector<16x256xbf16>,
    %c0_451 = arith.constant 0 : index
    %c129_452 = arith.constant 129 : index
    %320 = vector.load %arg20[%c0_451, %c129_452] : memref<32x768xbf16, #tpu.memory_space<vmem>>, vector<16x256xbf16>
    %c128_453 = arith.constant 128 : index
    %c0_454 = arith.constant 0 : index
    %321 = vector.load %arg22[%c128_453, %c0_454] : memref<240x512xbf16, #tpu.memory_space<vmem>>, vector<16x256xbf16>
    tpu.vector_store %arg22[%c128_453, %c0_454], %320 {strides = array<i32>} : memref<240x512xbf16, #tpu.memory_space<vmem>>, vector<16x256xbf16>,
    %c0_455 = arith.constant 0 : index
    %c130_456 = arith.constant 130 : index
    %322 = vector.load %arg20[%c0_455, %c130_456] : memref<32x768xbf16, #tpu.memory_space<vmem>>, vector<16x256xbf16>
    %c144_457 = arith.constant 144 : index
    %c0_458 = arith.constant 0 : index
    %323 = vector.load %arg22[%c144_457, %c0_458] : memref<240x512xbf16, #tpu.memory_space<vmem>>, vector<16x256xbf16>
    tpu.vector_store %arg22[%c144_457, %c0_458], %322 {strides = array<i32>} : memref<240x512xbf16, #tpu.memory_space<vmem>>, vector<16x256xbf16>,
    %c0_459 = arith.constant 0 : index
    %c131_460 = arith.constant 131 : index
    %324 = vector.load %arg20[%c0_459, %c131_460] : memref<32x768xbf16, #tpu.memory_space<vmem>>, vector<16x256xbf16>
    %c160_461 = arith.constant 160 : index
    %c0_462 = arith.constant 0 : index
    %325 = vector.load %arg22[%c160_461, %c0_462] : memref<240x512xbf16, #tpu.memory_space<vmem>>, vector<16x256xbf16>
    tpu.vector_store %arg22[%c160_461, %c0_462], %324 {strides = array<i32>} : memref<240x512xbf16, #tpu.memory_space<vmem>>, vector<16x256xbf16>,
    %c0_463 = arith.constant 0 : index
    %c132_464 = arith.constant 132 : index
    %326 = vector.load %arg20[%c0_463, %c132_464] : memref<32x768xbf16, #tpu.memory_space<vmem>>, vector<16x256xbf16>
    %c176_465 = arith.constant 176 : index
    %c0_466 = arith.constant 0 : index
    %327 = vector.load %arg22[%c176_465, %c0_466] : memref<240x512xbf16, #tpu.memory_space<vmem>>, vector<16x256xbf16>
    tpu.vector_store %arg22[%c176_465, %c0_466], %326 {strides = array<i32>} : memref<240x512xbf16, #tpu.memory_space<vmem>>, vector<16x256xbf16>,
    %c0_467 = arith.constant 0 : index
    %c133_468 = arith.constant 133 : index
    %328 = vector.load %arg20[%c0_467, %c133_468] : memref<32x768xbf16, #tpu.memory_space<vmem>>, vector<16x256xbf16>
    %c192_469 = arith.constant 192 : index
    %c0_470 = arith.constant 0 : index
    %329 = vector.load %arg22[%c192_469, %c0_470] : memref<240x512xbf16, #tpu.memory_space<vmem>>, vector<16x256xbf16>
    tpu.vector_store %arg22[%c192_469, %c0_470], %328 {strides = array<i32>} : memref<240x512xbf16, #tpu.memory_space<vmem>>, vector<16x256xbf16>,
    %c0_471 = arith.constant 0 : index
    %c134_472 = arith.constant 134 : index
    %330 = vector.load %arg20[%c0_471, %c134_472] : memref<32x768xbf16, #tpu.memory_space<vmem>>, vector<16x256xbf16>
    %c208_473 = arith.constant 208 : index
    %c0_474 = arith.constant 0 : index
    %331 = vector.load %arg22[%c208_473, %c0_474] : memref<240x512xbf16, #tpu.memory_space<vmem>>, vector<16x256xbf16>
    tpu.vector_store %arg22[%c208_473, %c0_474], %330 {strides = array<i32>} : memref<240x512xbf16, #tpu.memory_space<vmem>>, vector<16x256xbf16>,
    %c0_475 = arith.constant 0 : index
    %c135_476 = arith.constant 135 : index
    %332 = vector.load %arg20[%c0_475, %c135_476] : memref<32x768xbf16, #tpu.memory_space<vmem>>, vector<16x256xbf16>
    %c224_477 = arith.constant 224 : index
    %c0_478 = arith.constant 0 : index
    %333 = vector.load %arg22[%c224_477, %c0_478] : memref<240x512xbf16, #tpu.memory_space<vmem>>, vector<16x256xbf16>
    tpu.vector_store %arg22[%c224_477, %c0_478], %332 {strides = array<i32>} : memref<240x512xbf16, #tpu.memory_space<vmem>>, vector<16x256xbf16>,
    %c0_479 = arith.constant 0 : index
    %c0_480 = arith.constant 0 : index
    %334 = vector.load %arg8[%c0_479, %c0_480] : memref<16x240xbf16, #tpu.memory_space<vmem>>, vector<16x240xbf16>
    %c0_481 = arith.constant 0 : index
    %c0_482 = arith.constant 0 : index
    %335 = vector.load %arg22[%c0_481, %c0_482] : memref<240x512xbf16, #tpu.memory_space<vmem>>, vector<240x256xbf16>
    %cst_483 = arith.constant dense<0.000000e+00> : vector<16x256xf32>
    %336 = tpu.matmul %334, %335, %cst_483 {dimension_numbers = #tpu.dot_dimension_numbers<[1], [0], [0], [1], [0, 0, 1, 1], [], []>} : vector<16x240xbf16>, vector<240x256xbf16>, vector<16x256xf32> -> vector<16x256xf32>
    %c0_484 = arith.constant 0 : index
    %c0_485 = arith.constant 0 : index
    %337 = vector.load %arg16[%c0_484, %c0_485] : memref<16x2xf32, #tpu.memory_space<vmem>>, vector<16x2xf32>
    %338 = vector.extract_strided_slice %337 {offsets = [0, 0], sizes = [16, 1], strides = [1, 1]} : vector<16x2xf32> to vector<16x1xf32>
    %339 = vector.broadcast %338 : vector<16x1xf32> to vector<16x256xf32>
    %340 = arith.mulf %336, %339 : vector<16x256xf32>
    %341 = vector.extract_strided_slice %337 {offsets = [0, 1], sizes = [16, 1], strides = [1, 1]} : vector<16x2xf32> to vector<16x1xf32>
    %342 = vector.broadcast %341 : vector<16x1xf32> to vector<16x256xf32>
    %343 = arith.addf %340, %342 : vector<16x256xf32>
    %cst_486 = arith.constant 0.000000e+00 : f32
    %344 = vector.broadcast %cst_486 : f32 to vector<16x256xf32>
    %345 = arith.cmpf ogt, %343, %344 : vector<16x256xf32>
    %cst_487 = arith.constant 1.000000e-01 : f32
    %346 = vector.broadcast %cst_487 : f32 to vector<16x256xf32>
    %347 = arith.mulf %346, %343 : vector<16x256xf32>
    %348 = arith.select %345, %343, %347 : vector<16x256xi1>, vector<16x256xf32>
    %349 = arith.truncf %348 : vector<16x256xf32> to vector<16x256xbf16>
    %c0_488 = arith.constant 0 : index
    %c128_489 = arith.constant 128 : index
    %350 = vector.load %arg21[%c0_488, %c128_489] : memref<32x768xbf16, #tpu.memory_space<vmem>>, vector<16x256xbf16>
    tpu.vector_store %arg21[%c0_488, %c128_489], %349 {strides = array<i32>} : memref<32x768xbf16, #tpu.memory_space<vmem>>, vector<16x256xbf16>,
    %cst_490 = arith.constant 0.000000e+00 : bf16
    %351 = vector.broadcast %cst_490 : bf16 to vector<16x128xbf16>
    %c0_491 = arith.constant 0 : index
    %c384_492 = arith.constant 384 : index
    %352 = vector.load %arg21[%c0_491, %c384_492] : memref<32x768xbf16, #tpu.memory_space<vmem>>, vector<16x128xbf16>
    tpu.vector_store %arg21[%c0_491, %c384_492], %351 {strides = array<i32>} : memref<32x768xbf16, #tpu.memory_space<vmem>>, vector<16x128xbf16>,
    %c0_493 = arith.constant 0 : index
    %c121_494 = arith.constant 121 : index
    %353 = vector.load %arg21[%c0_493, %c121_494] : memref<32x768xbf16, #tpu.memory_space<vmem>>, vector<16x256xbf16>
    %c0_495 = arith.constant 0 : index
    %c0_496 = arith.constant 0 : index
    %354 = vector.load %arg22[%c0_495, %c0_496] : memref<240x512xbf16, #tpu.memory_space<vmem>>, vector<16x256xbf16>
    tpu.vector_store %arg22[%c0_495, %c0_496], %353 {strides = array<i32>} : memref<240x512xbf16, #tpu.memory_space<vmem>>, vector<16x256xbf16>,
    %c0_497 = arith.constant 0 : index
    %c122_498 = arith.constant 122 : index
    %355 = vector.load %arg21[%c0_497, %c122_498] : memref<32x768xbf16, #tpu.memory_space<vmem>>, vector<16x256xbf16>
    %c16_499 = arith.constant 16 : index
    %c0_500 = arith.constant 0 : index
    %356 = vector.load %arg22[%c16_499, %c0_500] : memref<240x512xbf16, #tpu.memory_space<vmem>>, vector<16x256xbf16>
    tpu.vector_store %arg22[%c16_499, %c0_500], %355 {strides = array<i32>} : memref<240x512xbf16, #tpu.memory_space<vmem>>, vector<16x256xbf16>,
    %c0_501 = arith.constant 0 : index
    %c123_502 = arith.constant 123 : index
    %357 = vector.load %arg21[%c0_501, %c123_502] : memref<32x768xbf16, #tpu.memory_space<vmem>>, vector<16x256xbf16>
    %c32_503 = arith.constant 32 : index
    %c0_504 = arith.constant 0 : index
    %358 = vector.load %arg22[%c32_503, %c0_504] : memref<240x512xbf16, #tpu.memory_space<vmem>>, vector<16x256xbf16>
    tpu.vector_store %arg22[%c32_503, %c0_504], %357 {strides = array<i32>} : memref<240x512xbf16, #tpu.memory_space<vmem>>, vector<16x256xbf16>,
    %c0_505 = arith.constant 0 : index
    %c124_506 = arith.constant 124 : index
    %359 = vector.load %arg21[%c0_505, %c124_506] : memref<32x768xbf16, #tpu.memory_space<vmem>>, vector<16x256xbf16>
    %c48_507 = arith.constant 48 : index
    %c0_508 = arith.constant 0 : index
    %360 = vector.load %arg22[%c48_507, %c0_508] : memref<240x512xbf16, #tpu.memory_space<vmem>>, vector<16x256xbf16>
    tpu.vector_store %arg22[%c48_507, %c0_508], %359 {strides = array<i32>} : memref<240x512xbf16, #tpu.memory_space<vmem>>, vector<16x256xbf16>,
    %c0_509 = arith.constant 0 : index
    %c125_510 = arith.constant 125 : index
    %361 = vector.load %arg21[%c0_509, %c125_510] : memref<32x768xbf16, #tpu.memory_space<vmem>>, vector<16x256xbf16>
    %c64_511 = arith.constant 64 : index
    %c0_512 = arith.constant 0 : index
    %362 = vector.load %arg22[%c64_511, %c0_512] : memref<240x512xbf16, #tpu.memory_space<vmem>>, vector<16x256xbf16>
    tpu.vector_store %arg22[%c64_511, %c0_512], %361 {strides = array<i32>} : memref<240x512xbf16, #tpu.memory_space<vmem>>, vector<16x256xbf16>,
    %c0_513 = arith.constant 0 : index
    %c126_514 = arith.constant 126 : index
    %363 = vector.load %arg21[%c0_513, %c126_514] : memref<32x768xbf16, #tpu.memory_space<vmem>>, vector<16x256xbf16>
    %c80_515 = arith.constant 80 : index
    %c0_516 = arith.constant 0 : index
    %364 = vector.load %arg22[%c80_515, %c0_516] : memref<240x512xbf16, #tpu.memory_space<vmem>>, vector<16x256xbf16>
    tpu.vector_store %arg22[%c80_515, %c0_516], %363 {strides = array<i32>} : memref<240x512xbf16, #tpu.memory_space<vmem>>, vector<16x256xbf16>,
    %c0_517 = arith.constant 0 : index
    %c127_518 = arith.constant 127 : index
    %365 = vector.load %arg21[%c0_517, %c127_518] : memref<32x768xbf16, #tpu.memory_space<vmem>>, vector<16x256xbf16>
    %c96_519 = arith.constant 96 : index
    %c0_520 = arith.constant 0 : index
    %366 = vector.load %arg22[%c96_519, %c0_520] : memref<240x512xbf16, #tpu.memory_space<vmem>>, vector<16x256xbf16>
    tpu.vector_store %arg22[%c96_519, %c0_520], %365 {strides = array<i32>} : memref<240x512xbf16, #tpu.memory_space<vmem>>, vector<16x256xbf16>,
    %c0_521 = arith.constant 0 : index
    %c128_522 = arith.constant 128 : index
    %367 = vector.load %arg21[%c0_521, %c128_522] : memref<32x768xbf16, #tpu.memory_space<vmem>>, vector<16x256xbf16>
    %c112_523 = arith.constant 112 : index
    %c0_524 = arith.constant 0 : index
    %368 = vector.load %arg22[%c112_523, %c0_524] : memref<240x512xbf16, #tpu.memory_space<vmem>>, vector<16x256xbf16>
    tpu.vector_store %arg22[%c112_523, %c0_524], %367 {strides = array<i32>} : memref<240x512xbf16, #tpu.memory_space<vmem>>, vector<16x256xbf16>,
    %c0_525 = arith.constant 0 : index
    %c129_526 = arith.constant 129 : index
    %369 = vector.load %arg21[%c0_525, %c129_526] : memref<32x768xbf16, #tpu.memory_space<vmem>>, vector<16x256xbf16>
    %c128_527 = arith.constant 128 : index
    %c0_528 = arith.constant 0 : index
    %370 = vector.load %arg22[%c128_527, %c0_528] : memref<240x512xbf16, #tpu.memory_space<vmem>>, vector<16x256xbf16>
    tpu.vector_store %arg22[%c128_527, %c0_528], %369 {strides = array<i32>} : memref<240x512xbf16, #tpu.memory_space<vmem>>, vector<16x256xbf16>,
    %c0_529 = arith.constant 0 : index
    %c130_530 = arith.constant 130 : index
    %371 = vector.load %arg21[%c0_529, %c130_530] : memref<32x768xbf16, #tpu.memory_space<vmem>>, vector<16x256xbf16>
    %c144_531 = arith.constant 144 : index
    %c0_532 = arith.constant 0 : index
    %372 = vector.load %arg22[%c144_531, %c0_532] : memref<240x512xbf16, #tpu.memory_space<vmem>>, vector<16x256xbf16>
    tpu.vector_store %arg22[%c144_531, %c0_532], %371 {strides = array<i32>} : memref<240x512xbf16, #tpu.memory_space<vmem>>, vector<16x256xbf16>,
    %c0_533 = arith.constant 0 : index
    %c131_534 = arith.constant 131 : index
    %373 = vector.load %arg21[%c0_533, %c131_534] : memref<32x768xbf16, #tpu.memory_space<vmem>>, vector<16x256xbf16>
    %c160_535 = arith.constant 160 : index
    %c0_536 = arith.constant 0 : index
    %374 = vector.load %arg22[%c160_535, %c0_536] : memref<240x512xbf16, #tpu.memory_space<vmem>>, vector<16x256xbf16>
    tpu.vector_store %arg22[%c160_535, %c0_536], %373 {strides = array<i32>} : memref<240x512xbf16, #tpu.memory_space<vmem>>, vector<16x256xbf16>,
    %c0_537 = arith.constant 0 : index
    %c132_538 = arith.constant 132 : index
    %375 = vector.load %arg21[%c0_537, %c132_538] : memref<32x768xbf16, #tpu.memory_space<vmem>>, vector<16x256xbf16>
    %c176_539 = arith.constant 176 : index
    %c0_540 = arith.constant 0 : index
    %376 = vector.load %arg22[%c176_539, %c0_540] : memref<240x512xbf16, #tpu.memory_space<vmem>>, vector<16x256xbf16>
    tpu.vector_store %arg22[%c176_539, %c0_540], %375 {strides = array<i32>} : memref<240x512xbf16, #tpu.memory_space<vmem>>, vector<16x256xbf16>,
    %c0_541 = arith.constant 0 : index
    %c133_542 = arith.constant 133 : index
    %377 = vector.load %arg21[%c0_541, %c133_542] : memref<32x768xbf16, #tpu.memory_space<vmem>>, vector<16x256xbf16>
    %c192_543 = arith.constant 192 : index
    %c0_544 = arith.constant 0 : index
    %378 = vector.load %arg22[%c192_543, %c0_544] : memref<240x512xbf16, #tpu.memory_space<vmem>>, vector<16x256xbf16>
    tpu.vector_store %arg22[%c192_543, %c0_544], %377 {strides = array<i32>} : memref<240x512xbf16, #tpu.memory_space<vmem>>, vector<16x256xbf16>,
    %c0_545 = arith.constant 0 : index
    %c134_546 = arith.constant 134 : index
    %379 = vector.load %arg21[%c0_545, %c134_546] : memref<32x768xbf16, #tpu.memory_space<vmem>>, vector<16x256xbf16>
    %c208_547 = arith.constant 208 : index
    %c0_548 = arith.constant 0 : index
    %380 = vector.load %arg22[%c208_547, %c0_548] : memref<240x512xbf16, #tpu.memory_space<vmem>>, vector<16x256xbf16>
    tpu.vector_store %arg22[%c208_547, %c0_548], %379 {strides = array<i32>} : memref<240x512xbf16, #tpu.memory_space<vmem>>, vector<16x256xbf16>,
    %c0_549 = arith.constant 0 : index
    %c135_550 = arith.constant 135 : index
    %381 = vector.load %arg21[%c0_549, %c135_550] : memref<32x768xbf16, #tpu.memory_space<vmem>>, vector<16x256xbf16>
    %c224_551 = arith.constant 224 : index
    %c0_552 = arith.constant 0 : index
    %382 = vector.load %arg22[%c224_551, %c0_552] : memref<240x512xbf16, #tpu.memory_space<vmem>>, vector<16x256xbf16>
    tpu.vector_store %arg22[%c224_551, %c0_552], %381 {strides = array<i32>} : memref<240x512xbf16, #tpu.memory_space<vmem>>, vector<16x256xbf16>,
    %c0_553 = arith.constant 0 : index
    %c0_554 = arith.constant 0 : index
    %383 = vector.load %arg9[%c0_553, %c0_554] : memref<32x240xbf16, #tpu.memory_space<vmem>>, vector<32x240xbf16>
    %c0_555 = arith.constant 0 : index
    %c0_556 = arith.constant 0 : index
    %384 = vector.load %arg22[%c0_555, %c0_556] : memref<240x512xbf16, #tpu.memory_space<vmem>>, vector<240x256xbf16>
    %cst_557 = arith.constant dense<0.000000e+00> : vector<32x256xf32>
    %385 = tpu.matmul %383, %384, %cst_557 {dimension_numbers = #tpu.dot_dimension_numbers<[1], [0], [0], [1], [0, 0, 1, 1], [], []>} : vector<32x240xbf16>, vector<240x256xbf16>, vector<32x256xf32> -> vector<32x256xf32>
    %c0_558 = arith.constant 0 : index
    %c0_559 = arith.constant 0 : index
    %386 = vector.load %arg17[%c0_558, %c0_559] : memref<32x2xf32, #tpu.memory_space<vmem>>, vector<32x2xf32>
    %387 = vector.extract_strided_slice %386 {offsets = [0, 0], sizes = [32, 1], strides = [1, 1]} : vector<32x2xf32> to vector<32x1xf32>
    %388 = vector.broadcast %387 : vector<32x1xf32> to vector<32x256xf32>
    %389 = arith.mulf %385, %388 : vector<32x256xf32>
    %390 = vector.extract_strided_slice %386 {offsets = [0, 1], sizes = [32, 1], strides = [1, 1]} : vector<32x2xf32> to vector<32x1xf32>
    %391 = vector.broadcast %390 : vector<32x1xf32> to vector<32x256xf32>
    %392 = arith.addf %389, %391 : vector<32x256xf32>
    %cst_560 = arith.constant 0.000000e+00 : f32
    %393 = vector.broadcast %cst_560 : f32 to vector<32x256xf32>
    %394 = arith.cmpf ogt, %392, %393 : vector<32x256xf32>
    %cst_561 = arith.constant 1.000000e-01 : f32
    %395 = vector.broadcast %cst_561 : f32 to vector<32x256xf32>
    %396 = arith.mulf %395, %392 : vector<32x256xf32>
    %397 = arith.select %394, %392, %396 : vector<32x256xi1>, vector<32x256xf32>
    %398 = arith.truncf %397 : vector<32x256xf32> to vector<32x256xbf16>
    %c0_562 = arith.constant 0 : index
    %c0_563 = arith.constant 0 : index
    %399 = vector.load %arg18[%c0_562, %c0_563] : memref<512x256xbf16, #tpu.memory_space<vmem>>, vector<256x128xbf16>
    %cst_564 = arith.constant dense<0.000000e+00> : vector<32x128xf32>
    %400 = tpu.matmul %398, %399, %cst_564 {dimension_numbers = #tpu.dot_dimension_numbers<[1], [0], [0], [1], [0, 0, 1, 1], [], []>} : vector<32x256xbf16>, vector<256x128xbf16>, vector<32x128xf32> -> vector<32x128xf32>
    %401 = arith.truncf %400 : vector<32x128xf32> to vector<32x128xbf16>
    %402 = arith.extf %401 : vector<32x128xbf16> to vector<32x128xf32>
    %cst_565 = arith.constant dense<0.000000e+00> : vector<32xf32>
    %403 = vector.multi_reduction <add>, %402, %cst_565 [1] : vector<32x128xf32> to vector<32xf32>
    %404 = vector.shape_cast %403 : vector<32xf32> to vector<32x1xf32>
    %cst_566 = arith.constant 7.812500e-03 : f32
    %405 = vector.broadcast %cst_566 : f32 to vector<32x1xf32>
    %406 = arith.mulf %404, %405 : vector<32x1xf32>
    %c0_567 = arith.constant 0 : index
    %c0_568 = arith.constant 0 : index
    %c0_569 = arith.constant 0 : index
    %407 = vector.load %arg19[%c0_567, %c0_568, %c0_569] : memref<1x32x1xf32, #tpu.memory_space<vmem>>, vector<1x32x1xf32>
    %408 = vector.shape_cast %407 : vector<1x32x1xf32> to vector<32x1xf32>
    %409 = vector.shape_cast %406 : vector<32x1xf32> to vector<1x32x1xf32>
    tpu.vector_store %arg19[%c0_567, %c0_568, %c0_569], %409 {strides = array<i32>} : memref<1x32x1xf32, #tpu.memory_space<vmem>>, vector<1x32x1xf32>,
    return
  }
  func.func @transform_0(%arg0: i32) -> (i32, i32, i32) {
    %c0_i32 = arith.constant 0 : i32
    %c0_i32_0 = arith.constant 0 : i32
    %c0_i32_1 = arith.constant 0 : i32
    return %arg0, %c0_i32, %c0_i32_0 : i32, i32, i32
  }
  func.func @transform_1(%arg0: i32) -> (i32, i32) {
    %c0_i32 = arith.constant 0 : i32
    %c0_i32_0 = arith.constant 0 : i32
    %c0_i32_1 = arith.constant 0 : i32
    return %c0_i32, %c0_i32_0 : i32, i32
  }
  func.func @transform_2(%arg0: i32) -> (i32, i32) {
    %c0_i32 = arith.constant 0 : i32
    %c0_i32_0 = arith.constant 0 : i32
    %c0_i32_1 = arith.constant 0 : i32
    return %c0_i32, %c0_i32_0 : i32, i32
  }
  func.func @transform_3(%arg0: i32) -> (i32, i32) {
    %c0_i32 = arith.constant 0 : i32
    %c0_i32_0 = arith.constant 0 : i32
    %c0_i32_1 = arith.constant 0 : i32
    return %c0_i32, %c0_i32_0 : i32, i32
  }
  func.func @transform_4(%arg0: i32) -> (i32, i32) {
    %c0_i32 = arith.constant 0 : i32
    %c0_i32_0 = arith.constant 0 : i32
    %c0_i32_1 = arith.constant 0 : i32
    return %c0_i32, %c0_i32_0 : i32, i32
  }
  func.func @transform_5(%arg0: i32) -> (i32, i32) {
    %c0_i32 = arith.constant 0 : i32
    %c0_i32_0 = arith.constant 0 : i32
    %c0_i32_1 = arith.constant 0 : i32
    return %c0_i32, %c0_i32_0 : i32, i32
  }
  func.func @transform_6(%arg0: i32) -> (i32, i32) {
    %c0_i32 = arith.constant 0 : i32
    %c0_i32_0 = arith.constant 0 : i32
    %c0_i32_1 = arith.constant 0 : i32
    return %c0_i32, %c0_i32_0 : i32, i32
  }
  func.func @transform_7(%arg0: i32) -> (i32, i32) {
    %c0_i32 = arith.constant 0 : i32
    %c0_i32_0 = arith.constant 0 : i32
    %c0_i32_1 = arith.constant 0 : i32
    return %c0_i32, %c0_i32_0 : i32, i32
  }
  func.func @transform_8(%arg0: i32) -> (i32, i32) {
    %c0_i32 = arith.constant 0 : i32
    %c0_i32_0 = arith.constant 0 : i32
    %c0_i32_1 = arith.constant 0 : i32
    return %c0_i32, %c0_i32_0 : i32, i32
  }
  func.func @transform_9(%arg0: i32) -> (i32, i32) {
    %c0_i32 = arith.constant 0 : i32
    %c0_i32_0 = arith.constant 0 : i32
    %c0_i32_1 = arith.constant 0 : i32
    return %c0_i32, %c0_i32_0 : i32, i32
  }
  func.func @transform_10(%arg0: i32) -> (i32, i32) {
    %c0_i32 = arith.constant 0 : i32
    %c0_i32_0 = arith.constant 0 : i32
    %c0_i32_1 = arith.constant 0 : i32
    return %c0_i32, %c0_i32_0 : i32, i32
  }
  func.func @transform_11(%arg0: i32) -> (i32, i32) {
    %c0_i32 = arith.constant 0 : i32
    %c0_i32_0 = arith.constant 0 : i32
    %c0_i32_1 = arith.constant 0 : i32
    return %c0_i32, %c0_i32_0 : i32, i32
  }
  func.func @transform_12(%arg0: i32) -> (i32, i32) {
    %c0_i32 = arith.constant 0 : i32
    %c0_i32_0 = arith.constant 0 : i32
    %c0_i32_1 = arith.constant 0 : i32
    return %c0_i32, %c0_i32_0 : i32, i32
  }
  func.func @transform_13(%arg0: i32) -> (i32, i32) {
    %c0_i32 = arith.constant 0 : i32
    %c0_i32_0 = arith.constant 0 : i32
    %c0_i32_1 = arith.constant 0 : i32
    return %c0_i32, %c0_i32_0 : i32, i32
  }
  func.func @transform_14(%arg0: i32) -> (i32, i32) {
    %c0_i32 = arith.constant 0 : i32
    %c0_i32_0 = arith.constant 0 : i32
    %c0_i32_1 = arith.constant 0 : i32
    return %c0_i32, %c0_i32_0 : i32, i32
  }
  func.func @transform_15(%arg0: i32) -> (i32, i32) {
    %c0_i32 = arith.constant 0 : i32
    %c0_i32_0 = arith.constant 0 : i32
    %c0_i32_1 = arith.constant 0 : i32
    return %c0_i32, %c0_i32_0 : i32, i32
  }
  func.func @transform_16(%arg0: i32) -> (i32, i32) {
    %c0_i32 = arith.constant 0 : i32
    %c0_i32_0 = arith.constant 0 : i32
    %c0_i32_1 = arith.constant 0 : i32
    return %c0_i32, %c0_i32_0 : i32, i32
  }
  func.func @transform_17(%arg0: i32) -> (i32, i32) {
    %c0_i32 = arith.constant 0 : i32
    %c0_i32_0 = arith.constant 0 : i32
    %c0_i32_1 = arith.constant 0 : i32
    return %c0_i32, %c0_i32_0 : i32, i32
  }
  func.func @transform_18(%arg0: i32) -> (i32, i32, i32) {
    %c0_i32 = arith.constant 0 : i32
    %c0_i32_0 = arith.constant 0 : i32
    %c0_i32_1 = arith.constant 0 : i32
    return %arg0, %c0_i32, %c0_i32_0 : i32, i32, i32
  }
}

</mosaic_0001>

<llo_original>
// kernel: tpu_custom_call.1
$region0: #{tpu_custom_call.1}
  #allocation0 [shape = 'u32[]', space=smem, size = 0x4, offset = 0x4, fixed_abs, tag = 'smem constant byte address 0x4 - core index']
  #allocation1 [shape = 'u32[144,128]{1,0:T(1,128)}', space=vmem, size = 0x12000, scoped, tag = 'internal scratch']
  #allocation2 [shape = 'bf16[32,768]{1,0:T(8,128)(2,1)}', space=vmem, size = 0xc000, scoped, tag = 'scratch operand']
  #allocation3 [shape = 'bf16[32,768]{1,0:T(8,128)(2,1)}', space=vmem, size = 0xc000, scoped, tag = 'scratch operand']
  #allocation4 [shape = 'bf16[240,512]{1,0:T(8,128)(2,1)}', space=vmem, size = 0x3c000, scoped, tag = 'scratch operand']
  %s0 = inlined_call_operand.vmem [shape: bf16[2,8,512], index: 0, kind: input, shape index: {}]
  %s1 = inlined_call_operand.vmem [shape: bf16[8,120], index: 1, kind: input, shape index: {}]
  %s2 = inlined_call_operand.vmem [shape: bf16[8,120], index: 2, kind: input, shape index: {}]
  %s3 = inlined_call_operand.vmem [shape: bf16[8,120], index: 3, kind: input, shape index: {}]
  %s4 = inlined_call_operand.vmem [shape: bf16[16,120], index: 4, kind: input, shape index: {}]
  %s5 = inlined_call_operand.vmem [shape: bf16[16,240], index: 5, kind: input, shape index: {}]
  %s6 = inlined_call_operand.vmem [shape: bf16[16,240], index: 6, kind: input, shape index: {}]
  %s7 = inlined_call_operand.vmem [shape: bf16[16,240], index: 7, kind: input, shape index: {}]
  %s8 = inlined_call_operand.vmem [shape: bf16[32,240], index: 8, kind: input, shape index: {}]
  %s9 = inlined_call_operand.vmem [shape: f32[8,2], index: 9, kind: input, shape index: {}]
  %s10 = inlined_call_operand.vmem [shape: f32[8,2], index: 10, kind: input, shape index: {}]
  %s11 = inlined_call_operand.vmem [shape: f32[8,2], index: 11, kind: input, shape index: {}]
  %s12 = inlined_call_operand.vmem [shape: f32[16,2], index: 12, kind: input, shape index: {}]
  %s13 = inlined_call_operand.vmem [shape: f32[16,2], index: 13, kind: input, shape index: {}]
  %s14 = inlined_call_operand.vmem [shape: f32[16,2], index: 14, kind: input, shape index: {}]
  %s15 = inlined_call_operand.vmem [shape: f32[16,2], index: 15, kind: input, shape index: {}]
  %s16 = inlined_call_operand.vmem [shape: f32[32,2], index: 16, kind: input, shape index: {}]
  %s17 = inlined_call_operand.hbm [shape: bf16[512,256], index: 17, kind: input, shape index: {}]
  %s18 = inlined_call_operand.vmem [shape: f32[2,32,1], index: 18, kind: output, shape index: {}]
  %s19 = sld [smem:[#allocation0]]
  $region109: #{tpu_custom_call.1} parent=0
    _
  %s21 = ssub.s32 1, %s19
  %s22 = scalar_select 0, %s21, %s19
  $region1: #{tpu_custom_call.1} parent=0
    #allocation5 [shape = 'u8[262144]{0}', space=vmem, size = 0x40000, scoped, tag = 'input window, operand 17, single buffered']
    #allocation6 [shape = 's32[2]{0}', space=sflag, size = 0x8, scoped, tag = 'scoped memory for tpu_custom_call.1']
    %23 = vsyncpa [#allocation6], 0
    loop: start=0, step=1, limit=4
    $region2: #{tpu_custom_call.1} parent=1 // loop_pre_header
      _
    $region3: #{tpu_custom_call.1} parent=1 // loop_header
      %s25 = sphi 0, %s29
      %p26 = scmp.ge.s32.totalorder %s25, 4
      %s35 = sphi 0, %s37
      %s38 = sphi 0, %s35
      %s39 = sphi 0, %s38
      %s55 = sphi 0, %s39
      %s59 = sphi 0, %s59
      %s61 = sphi 0, %s59
      %s62 = sphi 0, %s61
      %s76 = sphi 0, %s62
      %s80 = sphi 0, %s80
      %s82 = sphi 0, %s80
      %s83 = sphi 0, %s82
      %s97 = sphi 0, %s83
      %s101 = sphi 0, %s101
      %s103 = sphi 0, %s101
      %s104 = sphi 0, %s103
      %s118 = sphi 0, %s104
      %s122 = sphi 0, %s122
      %s124 = sphi 0, %s122
      %s125 = sphi 0, %s124
      %s139 = sphi 0, %s125
      %s143 = sphi 0, %s143
      %s145 = sphi 0, %s143
      %s146 = sphi 0, %s145
      %s160 = sphi 0, %s146
      %s164 = sphi 0, %s164
      %s166 = sphi 0, %s164
      %s167 = sphi 0, %s166
      %s181 = sphi 0, %s167
      %s185 = sphi 0, %s185
      %s187 = sphi 0, %s185
      %s188 = sphi 0, %s187
      %s202 = sphi 0, %s188
      %s206 = sphi 0, %s206
      %s208 = sphi 0, %s206
      %s209 = sphi 0, %s208
      %s223 = sphi 0, %s209
      %s227 = sphi 0, %s227
      %s229 = sphi 0, %s227
      %s230 = sphi 0, %s229
      %s244 = sphi 0, %s230
      %s248 = sphi 0, %s248
      %s250 = sphi 0, %s248
      %s251 = sphi 0, %s250
      %s265 = sphi 0, %s251
      %s269 = sphi 0, %s269
      %s271 = sphi 0, %s269
      %s272 = sphi 0, %s271
      %s286 = sphi 0, %s272
      %s290 = sphi 0, %s290
      %s292 = sphi 0, %s290
      %s293 = sphi 0, %s292
      %s307 = sphi 0, %s293
      %s311 = sphi 0, %s311
      %s313 = sphi 0, %s311
      %s314 = sphi 0, %s313
      %s328 = sphi 0, %s314
      %s332 = sphi 0, %s332
      %s334 = sphi 0, %s332
      %s335 = sphi 0, %s334
      %s349 = sphi 0, %s335
      %s353 = sphi 0, %s353
      %s355 = sphi 0, %s353
      %s356 = sphi 0, %s355
      %s370 = sphi 0, %s356
      %s374 = sphi 0, %s374
      %s376 = sphi 0, %s374
      %s377 = sphi 0, %s376
      %s391 = sphi 0, %s377
      %s395 = sphi 0, %s395
      %s397 = sphi 0, %s395
      %s398 = sphi 0, %s397
      %s412 = sphi 0, %s398
      %s418 = sphi 0, %s420
      %s421 = sphi 0, %s418
      %s422 = sphi 0, %s421
      %s438 = sphi 0, %s422
    $region4: #{tpu_custom_call.1} parent=1 // loop_header_branch
      %28 = sbr.rel (%p26) target = $region8
    $region5: #{tpu_custom_call.1} parent=1 // loop_body
      %s30 = ssub.s32 %s25, 1
      %s31 = ssub.s32 %s25, 2
      %s32 = sadd.s32 %s25, 1
      %s33 = ssub.s32 %s25, %s32
      %p34 = scmp.eq.s32.totalorder %s33, 0
      %s36 = sadd.s32 %s35, 1
      %s37 = scalar_select %p34, %s35, %s36
      %p40 = pneg %p34
      %p41 = scmp.eq.s32.totalorder %s25, 1
      %p42 = por %p40, %p41
      %p43 = scmp.ne.s32.totalorder %s35, %s38
      %p44 = scmp.eq.s32.totalorder %s25, 0
      %p45 = por %p43, %p44
      %p46 = scmp.ne.s32.totalorder %s35, %s38
      %p47 = scmp.eq.s32.totalorder %s30, 1
      %p48 = por %p46, %p47
      %p49 = scmp.ne.s32.totalorder %s38, %s39
      %p50 = scmp.eq.s32.totalorder %s30, 0
      %p51 = por %p49, %p50
      %p52 = scmp.ne.s32.totalorder %s38, %s39
      %p53 = scmp.eq.s32.totalorder %s31, 1
      %p54 = por %p52, %p53
      %p56 = scmp.ne.s32.totalorder %s39, %s55
      %p57 = scmp.eq.s32.totalorder %s31, 0
      %p58 = por %p56, %p57
      %s60 = sadd.s32 %s59, 1
      %p63 = scmp.eq.s32.totalorder %s25, 1
      %p64 = scmp.ne.s32.totalorder %s59, %s61
      %p65 = scmp.eq.s32.totalorder %s25, 0
      %p66 = por %p64, %p65
      %p67 = scmp.ne.s32.totalorder %s59, %s61
      %p68 = scmp.eq.s32.totalorder %s30, 1
      %p69 = por %p67, %p68
      %p70 = scmp.ne.s32.totalorder %s61, %s62
      %p71 = scmp.eq.s32.totalorder %s30, 0
      %p72 = por %p70, %p71
      %p73 = scmp.ne.s32.totalorder %s61, %s62
      %p74 = scmp.eq.s32.totalorder %s31, 1
      %p75 = por %p73, %p74
      %p77 = scmp.ne.s32.totalorder %s62, %s76
      %p78 = scmp.eq.s32.totalorder %s31, 0
      %p79 = por %p77, %p78
      %s81 = sadd.s32 %s80, 1
      %p84 = scmp.eq.s32.totalorder %s25, 1
      %p85 = scmp.ne.s32.totalorder %s80, %s82
      %p86 = scmp.eq.s32.totalorder %s25, 0
      %p87 = por %p85, %p86
      %p88 = scmp.ne.s32.totalorder %s80, %s82
      %p89 = scmp.eq.s32.totalorder %s30, 1
      %p90 = por %p88, %p89
      %p91 = scmp.ne.s32.totalorder %s82, %s83
      %p92 = scmp.eq.s32.totalorder %s30, 0
      %p93 = por %p91, %p92
      %p94 = scmp.ne.s32.totalorder %s82, %s83
      %p95 = scmp.eq.s32.totalorder %s31, 1
      %p96 = por %p94, %p95
      %p98 = scmp.ne.s32.totalorder %s83, %s97
      %p99 = scmp.eq.s32.totalorder %s31, 0
      %p100 = por %p98, %p99
      %s102 = sadd.s32 %s101, 1
      %p105 = scmp.eq.s32.totalorder %s25, 1
      %p106 = scmp.ne.s32.totalorder %s101, %s103
      %p107 = scmp.eq.s32.totalorder %s25, 0
      %p108 = por %p106, %p107
      %p109 = scmp.ne.s32.totalorder %s101, %s103
      %p110 = scmp.eq.s32.totalorder %s30, 1
      %p111 = por %p109, %p110
      %p112 = scmp.ne.s32.totalorder %s103, %s104
      %p113 = scmp.eq.s32.totalorder %s30, 0
      %p114 = por %p112, %p113
      %p115 = scmp.ne.s32.totalorder %s103, %s104
      %p116 = scmp.eq.s32.totalorder %s31, 1
      %p117 = por %p115, %p116
      %p119 = scmp.ne.s32.totalorder %s104, %s118
      %p120 = scmp.eq.s32.totalorder %s31, 0
      %p121 = por %p119, %p120
      %s123 = sadd.s32 %s122, 1
      %p126 = scmp.eq.s32.totalorder %s25, 1
      %p127 = scmp.ne.s32.totalorder %s122, %s124
      %p128 = scmp.eq.s32.totalorder %s25, 0
      %p129 = por %p127, %p128
      %p130 = scmp.ne.s32.totalorder %s122, %s124
      %p131 = scmp.eq.s32.totalorder %s30, 1
      %p132 = por %p130, %p131
      %p133 = scmp.ne.s32.totalorder %s124, %s125
      %p134 = scmp.eq.s32.totalorder %s30, 0
      %p135 = por %p133, %p134
      %p136 = scmp.ne.s32.totalorder %s124, %s125
      %p137 = scmp.eq.s32.totalorder %s31, 1
      %p138 = por %p136, %p137
      %p140 = scmp.ne.s32.totalorder %s125, %s139
      %p141 = scmp.eq.s32.totalorder %s31, 0
      %p142 = por %p140, %p141
      %s144 = sadd.s32 %s143, 1
      %p147 = scmp.eq.s32.totalorder %s25, 1
      %p148 = scmp.ne.s32.totalorder %s143, %s145
      %p149 = scmp.eq.s32.totalorder %s25, 0
      %p150 = por %p148, %p149
      %p151 = scmp.ne.s32.totalorder %s143, %s145
      %p152 = scmp.eq.s32.totalorder %s30, 1
      %p153 = por %p151, %p152
      %p154 = scmp.ne.s32.totalorder %s145, %s146
      %p155 = scmp.eq.s32.totalorder %s30, 0
      %p156 = por %p154, %p155
      %p157 = scmp.ne.s32.totalorder %s145, %s146
      %p158 = scmp.eq.s32.totalorder %s31, 1
      %p159 = por %p157, %p158
      %p161 = scmp.ne.s32.totalorder %s146, %s160
      %p162 = scmp.eq.s32.totalorder %s31, 0
      %p163 = por %p161, %p162
      %s165 = sadd.s32 %s164, 1
      %p168 = scmp.eq.s32.totalorder %s25, 1
      %p169 = scmp.ne.s32.totalorder %s164, %s166
      %p170 = scmp.eq.s32.totalorder %s25, 0
      %p171 = por %p169, %p170
      %p172 = scmp.ne.s32.totalorder %s164, %s166
      %p173 = scmp.eq.s32.totalorder %s30, 1
      %p174 = por %p172, %p173
      %p175 = scmp.ne.s32.totalorder %s166, %s167
      %p176 = scmp.eq.s32.totalorder %s30, 0
      %p177 = por %p175, %p176
      %p178 = scmp.ne.s32.totalorder %s166, %s167
      %p179 = scmp.eq.s32.totalorder %s31, 1
      %p180 = por %p178, %p179
      %p182 = scmp.ne.s32.totalorder %s167, %s181
      %p183 = scmp.eq.s32.totalorder %s31, 0
      %p184 = por %p182, %p183
      %s186 = sadd.s32 %s185, 1
      %p189 = scmp.eq.s32.totalorder %s25, 1
      %p190 = scmp.ne.s32.totalorder %s185, %s187
      %p191 = scmp.eq.s32.totalorder %s25, 0
      %p192 = por %p190, %p191
      %p193 = scmp.ne.s32.totalorder %s185, %s187
      %p194 = scmp.eq.s32.totalorder %s30, 1
      %p195 = por %p193, %p194
      %p196 = scmp.ne.s32.totalorder %s187, %s188
      %p197 = scmp.eq.s32.totalorder %s30, 0
      %p198 = por %p196, %p197
      %p199 = scmp.ne.s32.totalorder %s187, %s188
      %p200 = scmp.eq.s32.totalorder %s31, 1
      %p201 = por %p199, %p200
      %p203 = scmp.ne.s32.totalorder %s188, %s202
      %p204 = scmp.eq.s32.totalorder %s31, 0
      %p205 = por %p203, %p204
      %s207 = sadd.s32 %s206, 1
      %p210 = scmp.eq.s32.totalorder %s25, 1
      %p211 = scmp.ne.s32.totalorder %s206, %s208
      %p212 = scmp.eq.s32.totalorder %s25, 0
      %p213 = por %p211, %p212
      %p214 = scmp.ne.s32.totalorder %s206, %s208
      %p215 = scmp.eq.s32.totalorder %s30, 1
      %p216 = por %p214, %p215
      %p217 = scmp.ne.s32.totalorder %s208, %s209
      %p218 = scmp.eq.s32.totalorder %s30, 0
      %p219 = por %p217, %p218
      %p220 = scmp.ne.s32.totalorder %s208, %s209
      %p221 = scmp.eq.s32.totalorder %s31, 1
      %p222 = por %p220, %p221
      %p224 = scmp.ne.s32.totalorder %s209, %s223
      %p225 = scmp.eq.s32.totalorder %s31, 0
      %p226 = por %p224, %p225
      %s228 = sadd.s32 %s227, 1
      %p231 = scmp.eq.s32.totalorder %s25, 1
      %p232 = scmp.ne.s32.totalorder %s227, %s229
      %p233 = scmp.eq.s32.totalorder %s25, 0
      %p234 = por %p232, %p233
      %p235 = scmp.ne.s32.totalorder %s227, %s229
      %p236 = scmp.eq.s32.totalorder %s30, 1
      %p237 = por %p235, %p236
      %p238 = scmp.ne.s32.totalorder %s229, %s230
      %p239 = scmp.eq.s32.totalorder %s30, 0
      %p240 = por %p238, %p239
      %p241 = scmp.ne.s32.totalorder %s229, %s230
      %p242 = scmp.eq.s32.totalorder %s31, 1
      %p243 = por %p241, %p242
      %p245 = scmp.ne.s32.totalorder %s230, %s244
      %p246 = scmp.eq.s32.totalorder %s31, 0
      %p247 = por %p245, %p246
      %s249 = sadd.s32 %s248, 1
      %p252 = scmp.eq.s32.totalorder %s25, 1
      %p253 = scmp.ne.s32.totalorder %s248, %s250
      %p254 = scmp.eq.s32.totalorder %s25, 0
      %p255 = por %p253, %p254
      %p256 = scmp.ne.s32.totalorder %s248, %s250
      %p257 = scmp.eq.s32.totalorder %s30, 1
      %p258 = por %p256, %p257
      %p259 = scmp.ne.s32.totalorder %s250, %s251
      %p260 = scmp.eq.s32.totalorder %s30, 0
      %p261 = por %p259, %p260
      %p262 = scmp.ne.s32.totalorder %s250, %s251
      %p263 = scmp.eq.s32.totalorder %s31, 1
      %p264 = por %p262, %p263
      %p266 = scmp.ne.s32.totalorder %s251, %s265
      %p267 = scmp.eq.s32.totalorder %s31, 0
      %p268 = por %p266, %p267
      %s270 = sadd.s32 %s269, 1
      %p273 = scmp.eq.s32.totalorder %s25, 1
      %p274 = scmp.ne.s32.totalorder %s269, %s271
      %p275 = scmp.eq.s32.totalorder %s25, 0
      %p276 = por %p274, %p275
      %p277 = scmp.ne.s32.totalorder %s269, %s271
      %p278 = scmp.eq.s32.totalorder %s30, 1
      %p279 = por %p277, %p278
      %p280 = scmp.ne.s32.totalorder %s271, %s272
      %p281 = scmp.eq.s32.totalorder %s30, 0
      %p282 = por %p280, %p281
      %p283 = scmp.ne.s32.totalorder %s271, %s272
      %p284 = scmp.eq.s32.totalorder %s31, 1
      %p285 = por %p283, %p284
      %p287 = scmp.ne.s32.totalorder %s272, %s286
      %p288 = scmp.eq.s32.totalorder %s31, 0
      %p289 = por %p287, %p288
      %s291 = sadd.s32 %s290, 1
      %p294 = scmp.eq.s32.totalorder %s25, 1
      %p295 = scmp.ne.s32.totalorder %s290, %s292
      %p296 = scmp.eq.s32.totalorder %s25, 0
      %p297 = por %p295, %p296
      %p298 = scmp.ne.s32.totalorder %s290, %s292
      %p299 = scmp.eq.s32.totalorder %s30, 1
      %p300 = por %p298, %p299
      %p301 = scmp.ne.s32.totalorder %s292, %s293
      %p302 = scmp.eq.s32.totalorder %s30, 0
      %p303 = por %p301, %p302
      %p304 = scmp.ne.s32.totalorder %s292, %s293
      %p305 = scmp.eq.s32.totalorder %s31, 1
      %p306 = por %p304, %p305
      %p308 = scmp.ne.s32.totalorder %s293, %s307
      %p309 = scmp.eq.s32.totalorder %s31, 0
      %p310 = por %p308, %p309
      %s312 = sadd.s32 %s311, 1
      %p315 = scmp.eq.s32.totalorder %s25, 1
      %p316 = scmp.ne.s32.totalorder %s311, %s313
      %p317 = scmp.eq.s32.totalorder %s25, 0
      %p318 = por %p316, %p317
      %p319 = scmp.ne.s32.totalorder %s311, %s313
      %p320 = scmp.eq.s32.totalorder %s30, 1
      %p321 = por %p319, %p320
      %p322 = scmp.ne.s32.totalorder %s313, %s314
      %p323 = scmp.eq.s32.totalorder %s30, 0
      %p324 = por %p322, %p323
      %p325 = scmp.ne.s32.totalorder %s313, %s314
      %p326 = scmp.eq.s32.totalorder %s31, 1
      %p327 = por %p325, %p326
      %p329 = scmp.ne.s32.totalorder %s314, %s328
      %p330 = scmp.eq.s32.totalorder %s31, 0
      %p331 = por %p329, %p330
      %s333 = sadd.s32 %s332, 1
      %p336 = scmp.eq.s32.totalorder %s25, 1
      %p337 = scmp.ne.s32.totalorder %s332, %s334
      %p338 = scmp.eq.s32.totalorder %s25, 0
      %p339 = por %p337, %p338
      %p340 = scmp.ne.s32.totalorder %s332, %s334
      %p341 = scmp.eq.s32.totalorder %s30, 1
      %p342 = por %p340, %p341
      %p343 = scmp.ne.s32.totalorder %s334, %s335
      %p344 = scmp.eq.s32.totalorder %s30, 0
      %p345 = por %p343, %p344
      %p346 = scmp.ne.s32.totalorder %s334, %s335
      %p347 = scmp.eq.s32.totalorder %s31, 1
      %p348 = por %p346, %p347
      %p350 = scmp.ne.s32.totalorder %s335, %s349
      %p351 = scmp.eq.s32.totalorder %s31, 0
      %p352 = por %p350, %p351
      %s354 = sadd.s32 %s353, 1
      %p357 = scmp.eq.s32.totalorder %s25, 1
      %p358 = scmp.ne.s32.totalorder %s353, %s355
      %p359 = scmp.eq.s32.totalorder %s25, 0
      %p360 = por %p358, %p359
      %p361 = scmp.ne.s32.totalorder %s353, %s355
      %p362 = scmp.eq.s32.totalorder %s30, 1
      %p363 = por %p361, %p362
      %p364 = scmp.ne.s32.totalorder %s355, %s356
      %p365 = scmp.eq.s32.totalorder %s30, 0
      %p366 = por %p364, %p365
      %p367 = scmp.ne.s32.totalorder %s355, %s356
      %p368 = scmp.eq.s32.totalorder %s31, 1
      %p369 = por %p367, %p368
      %p371 = scmp.ne.s32.totalorder %s356, %s370
      %p372 = scmp.eq.s32.totalorder %s31, 0
      %p373 = por %p371, %p372
      %s375 = sadd.s32 %s374, 1
      %p378 = scmp.eq.s32.totalorder %s25, 1
      %p379 = scmp.ne.s32.totalorder %s374, %s376
      %p380 = scmp.eq.s32.totalorder %s25, 0
      %p381 = por %p379, %p380
      %p382 = scmp.ne.s32.totalorder %s374, %s376
      %p383 = scmp.eq.s32.totalorder %s30, 1
      %p384 = por %p382, %p383
      %p385 = scmp.ne.s32.totalorder %s376, %s377
      %p386 = scmp.eq.s32.totalorder %s30, 0
      %p387 = por %p385, %p386
      %p388 = scmp.ne.s32.totalorder %s376, %s377
      %p389 = scmp.eq.s32.totalorder %s31, 1
      %p390 = por %p388, %p389
      %p392 = scmp.ne.s32.totalorder %s377, %s391
      %p393 = scmp.eq.s32.totalorder %s31, 0
      %p394 = por %p392, %p393
      %s396 = sadd.s32 %s395, 1
      %p399 = scmp.eq.s32.totalorder %s25, 1
      %p400 = scmp.ne.s32.totalorder %s395, %s397
      %p401 = scmp.eq.s32.totalorder %s25, 0
      %p402 = por %p400, %p401
      %p403 = scmp.ne.s32.totalorder %s395, %s397
      %p404 = scmp.eq.s32.totalorder %s30, 1
      %p405 = por %p403, %p404
      %p406 = scmp.ne.s32.totalorder %s397, %s398
      %p407 = scmp.eq.s32.totalorder %s30, 0
      %p408 = por %p406, %p407
      %p409 = scmp.ne.s32.totalorder %s397, %s398
      %p410 = scmp.eq.s32.totalorder %s31, 1
      %p411 = por %p409, %p410
      %p413 = scmp.ne.s32.totalorder %s398, %s412
      %p414 = scmp.eq.s32.totalorder %s31, 0
      %p415 = por %p413, %p414
      %s416 = ssub.s32 %s25, %s32
      %p417 = scmp.eq.s32.totalorder %s416, 0
      %s419 = sadd.s32 %s418, 1
      %s420 = scalar_select %p417, %s418, %s419
      %p423 = pneg %p417
      %p424 = scmp.eq.s32.totalorder %s25, 1
      %p425 = por %p423, %p424
      %p426 = scmp.ne.s32.totalorder %s418, %s421
      %p427 = scmp.eq.s32.totalorder %s25, 0
      %p428 = por %p426, %p427
      %p429 = scmp.ne.s32.totalorder %s418, %s421
      %p430 = scmp.eq.s32.totalorder %s30, 1
      %p431 = por %p429, %p430
      %p432 = scmp.ne.s32.totalorder %s421, %s422
      %p433 = scmp.eq.s32.totalorder %s30, 0
      %p434 = por %p432, %p433
      %p435 = scmp.ne.s32.totalorder %s421, %s422
      %p436 = scmp.eq.s32.totalorder %s31, 1
      %p437 = por %p435, %p436
      %p439 = scmp.ne.s32.totalorder %s422, %s438
      %p440 = scmp.eq.s32.totalorder %s31, 0
      %p441 = por %p439, %p440
      %p442 = scmp.le.s32.totalorder 1, %s25
      %p443 = scmp.lt.s32.totalorder %s25, 3
      %p444 = pnand %p442, %p443
      %p445 = pneg %p444
      // Predicated region
      $region9: #{tpu_custom_call.1} parent=5 // pred_check
        _
      $region10: #{tpu_custom_call.1} parent=5 // pred_check_branch
        %447 = sbr.rel (%p444) target = $region12
      $region11: #{tpu_custom_call.1} parent=5 // pred_region
        %s448 = ssub.s32 %s25, 1
        // Predicated region
        $region13: #{tpu_custom_call.1} parent=11 // pred_check
          %p449 = pneg %p72
        $region14: #{tpu_custom_call.1} parent=11 // pred_check_branch
          %451 = sbr.rel (%p449) target = $region16
        $region15: #{tpu_custom_call.1} parent=11 // pred_region
          _
        $region16: #{tpu_custom_call.1} parent=11 // pred_fallthru
          _
        // Predicated region
        $region17: #{tpu_custom_call.1} parent=11 // pred_check
          %p452 = pneg %p93
        $region18: #{tpu_custom_call.1} parent=11 // pred_check_branch
          %454 = sbr.rel (%p452) target = $region20
        $region19: #{tpu_custom_call.1} parent=11 // pred_region
          _
        $region20: #{tpu_custom_call.1} parent=11 // pred_fallthru
          _
        // Predicated region
        $region21: #{tpu_custom_call.1} parent=11 // pred_check
          %p455 = pneg %p114
        $region22: #{tpu_custom_call.1} parent=11 // pred_check_branch
          %457 = sbr.rel (%p455) target = $region24
        $region23: #{tpu_custom_call.1} parent=11 // pred_region
          _
        $region24: #{tpu_custom_call.1} parent=11 // pred_fallthru
          _
        // Predicated region
        $region25: #{tpu_custom_call.1} parent=11 // pred_check
          %p458 = pneg %p135
        $region26: #{tpu_custom_call.1} parent=11 // pred_check_branch
          %460 = sbr.rel (%p458) target = $region28
        $region27: #{tpu_custom_call.1} parent=11 // pred_region
          _
        $region28: #{tpu_custom_call.1} parent=11 // pred_fallthru
          _
        // Predicated region
        $region29: #{tpu_custom_call.1} parent=11 // pred_check
          %p461 = pneg %p156
        $region30: #{tpu_custom_call.1} parent=11 // pred_check_branch
          %463 = sbr.rel (%p461) target = $region32
        $region31: #{tpu_custom_call.1} parent=11 // pred_region
          _
        $region32: #{tpu_custom_call.1} parent=11 // pred_fallthru
          _
        // Predicated region
        $region33: #{tpu_custom_call.1} parent=11 // pred_check
          %p464 = pneg %p177
        $region34: #{tpu_custom_call.1} parent=11 // pred_check_branch
          %466 = sbr.rel (%p464) target = $region36
        $region35: #{tpu_custom_call.1} parent=11 // pred_region
          _
        $region36: #{tpu_custom_call.1} parent=11 // pred_fallthru
          _
        // Predicated region
        $region37: #{tpu_custom_call.1} parent=11 // pred_check
          %p467 = pneg %p198
        $region38: #{tpu_custom_call.1} parent=11 // pred_check_branch
          %469 = sbr.rel (%p467) target = $region40
        $region39: #{tpu_custom_call.1} parent=11 // pred_region
          _
        $region40: #{tpu_custom_call.1} parent=11 // pred_fallthru
          _
        // Predicated region
        $region41: #{tpu_custom_call.1} parent=11 // pred_check
          %p470 = pneg %p219
        $region42: #{tpu_custom_call.1} parent=11 // pred_check_branch
          %472 = sbr.rel (%p470) target = $region44
        $region43: #{tpu_custom_call.1} parent=11 // pred_region
          _
        $region44: #{tpu_custom_call.1} parent=11 // pred_fallthru
          _
        // Predicated region
        $region45: #{tpu_custom_call.1} parent=11 // pred_check
          %p473 = pneg %p240
        $region46: #{tpu_custom_call.1} parent=11 // pred_check_branch
          %475 = sbr.rel (%p473) target = $region48
        $region47: #{tpu_custom_call.1} parent=11 // pred_region
          _
        $region48: #{tpu_custom_call.1} parent=11 // pred_fallthru
          _
        // Predicated region
        $region49: #{tpu_custom_call.1} parent=11 // pred_check
          %p476 = pneg %p261
        $region50: #{tpu_custom_call.1} parent=11 // pred_check_branch
          %478 = sbr.rel (%p476) target = $region52
        $region51: #{tpu_custom_call.1} parent=11 // pred_region
          _
        $region52: #{tpu_custom_call.1} parent=11 // pred_fallthru
          _
        // Predicated region
        $region53: #{tpu_custom_call.1} parent=11 // pred_check
          %p479 = pneg %p282
        $region54: #{tpu_custom_call.1} parent=11 // pred_check_branch
          %481 = sbr.rel (%p479) target = $region56
        $region55: #{tpu_custom_call.1} parent=11 // pred_region
          _
        $region56: #{tpu_custom_call.1} parent=11 // pred_fallthru
          _
        // Predicated region
        $region57: #{tpu_custom_call.1} parent=11 // pred_check
          %p482 = pneg %p303
        $region58: #{tpu_custom_call.1} parent=11 // pred_check_branch
          %484 = sbr.rel (%p482) target = $region60
        $region59: #{tpu_custom_call.1} parent=11 // pred_region
          _
        $region60: #{tpu_custom_call.1} parent=11 // pred_fallthru
          _
        // Predicated region
        $region61: #{tpu_custom_call.1} parent=11 // pred_check
          %p485 = pneg %p324
        $region62: #{tpu_custom_call.1} parent=11 // pred_check_branch
          %487 = sbr.rel (%p485) target = $region64
        $region63: #{tpu_custom_call.1} parent=11 // pred_region
          _
        $region64: #{tpu_custom_call.1} parent=11 // pred_fallthru
          _
        // Predicated region
        $region65: #{tpu_custom_call.1} parent=11 // pred_check
          %p488 = pneg %p345
        $region66: #{tpu_custom_call.1} parent=11 // pred_check_branch
          %490 = sbr.rel (%p488) target = $region68
        $region67: #{tpu_custom_call.1} parent=11 // pred_region
          _
        $region68: #{tpu_custom_call.1} parent=11 // pred_fallthru
          _
        // Predicated region
        $region69: #{tpu_custom_call.1} parent=11 // pred_check
          %p491 = pneg %p366
        $region70: #{tpu_custom_call.1} parent=11 // pred_check_branch
          %493 = sbr.rel (%p491) target = $region72
        $region71: #{tpu_custom_call.1} parent=11 // pred_region
          _
        $region72: #{tpu_custom_call.1} parent=11 // pred_fallthru
          _
        // Predicated region
        $region73: #{tpu_custom_call.1} parent=11 // pred_check
          %p494 = pneg %p387
        $region74: #{tpu_custom_call.1} parent=11 // pred_check_branch
          %496 = sbr.rel (%p494) target = $region76
        $region75: #{tpu_custom_call.1} parent=11 // pred_region
          _
        $region76: #{tpu_custom_call.1} parent=11 // pred_fallthru
          _
        // Predicated region
        $region77: #{tpu_custom_call.1} parent=11 // pred_check
          %p497 = pneg %p408
        $region78: #{tpu_custom_call.1} parent=11 // pred_check_branch
          %499 = sbr.rel (%p497) target = $region80
        $region79: #{tpu_custom_call.1} parent=11 // pred_region
          %s501 = ssub.s32 8192, 8192
          %502 = vsyncadd [#allocation6], %s501
          %s503 = sshll.u32 [#allocation5], 4
          %s504 = int_to_ptr.vmem [resolvable:$true] %s503
          %509 = dma.hbm_to_vmem [thread:$0]  %s17, 8192, %s504, [#allocation6], 128, 128, 8
        $region80: #{tpu_custom_call.1} parent=11 // pred_fallthru
          _
      $region12: #{tpu_custom_call.1} parent=5 // pred_fallthru
        _
      %p510 = scmp.lt.s32.totalorder %s25, 2
      // Predicated region
      $region81: #{tpu_custom_call.1} parent=5 // pred_check
        %p511 = pneg %p510
      $region82: #{tpu_custom_call.1} parent=5 // pred_check_branch
        %513 = sbr.rel (%p511) target = $region84
      $region83: #{tpu_custom_call.1} parent=5 // pred_region
        // Predicated region
        $region85: #{tpu_custom_call.1} parent=83 // pred_check
          %p514 = pneg %p45
        $region86: #{tpu_custom_call.1} parent=83 // pred_check_branch
          %516 = sbr.rel (%p514) target = $region88
        $region87: #{tpu_custom_call.1} parent=83 // pred_region
          %p517 = scmp.lt.s32.totalorder %s25, 1
          %s518 = scalar_select %p517, %s25, 1
          %s519 = smul.addr %s518, 4
          %s520 = smul.addr %s519, 4
          %s521 = scalar_lea.vmem %s0, %s520
        $region88: #{tpu_custom_call.1} parent=83 // pred_fallthru
          _
      $region84: #{tpu_custom_call.1} parent=5 // pred_fallthru
        _
      %p522 = scmp.le.s32.totalorder 1, %s25
      %p523 = scmp.lt.s32.totalorder %s25, 3
      %p524 = pnand %p522, %p523
      %p525 = pneg %p524
      // Predicated region
      $region89: #{tpu_custom_call.1} parent=5 // pred_check
        _
      $region90: #{tpu_custom_call.1} parent=5 // pred_check_branch
        %527 = sbr.rel (%p524) target = $region92
      $region91: #{tpu_custom_call.1} parent=5 // pred_region
        %s528 = ssub.s32 %s25, 1
        // Predicated region
        $region93: #{tpu_custom_call.1} parent=91 // pred_check
          %p529 = pneg %p408
        $region94: #{tpu_custom_call.1} parent=91 // pred_check_branch
          %531 = sbr.rel (%p529) target = $region96
        $region95: #{tpu_custom_call.1} parent=91 // pred_region
          %532 = dma.done [#allocation6], 8192
        $region96: #{tpu_custom_call.1} parent=91 // pred_fallthru
          _
        %p533 = scmp.lt.s32.totalorder %s30, 1
        %s534 = scalar_select %p533, %s30, 1
        %s535 = smul.addr %s534, 4
        %s536 = smul.addr %s535, 4
        %s537 = scalar_lea.vmem %s0, %s536
        %p538 = pneg %p51
        %p539 = pneg %p48
        %p540 = pneg %p72
        %p541 = pneg %p69
        %p542 = pneg %p93
        %p543 = pneg %p90
        %p544 = pneg %p114
        %p545 = pneg %p111
        %p546 = pneg %p135
        %p547 = pneg %p132
        %p548 = pneg %p156
        %p549 = pneg %p153
        %p550 = pneg %p177
        %p551 = pneg %p174
        %p552 = pneg %p198
        %p553 = pneg %p195
        %p554 = pneg %p219
        %p555 = pneg %p216
        %p556 = pneg %p240
        %p557 = pneg %p237
        %p558 = pneg %p261
        %p559 = pneg %p258
        %p560 = pneg %p282
        %p561 = pneg %p279
        %p562 = pneg %p303
        %p563 = pneg %p300
        %p564 = pneg %p324
        %p565 = pneg %p321
        %p566 = pneg %p345
        %p567 = pneg %p342
        %p568 = pneg %p366
        %p569 = pneg %p363
        %p570 = pneg %p387
        %p571 = pneg %p384
        %p572 = pneg %p408
        %p573 = pneg %p405
        %p574 = pneg %p434
        %p575 = pneg %p431
        %p576 = scmp.lt.s32.totalorder %s30, 1
        %s577 = scalar_select %p576, %s30, 1
        %s578 = smul.addr %s577, 4
        %s579 = smul.addr %s578, 8
        %s580 = scalar_lea.vmem %s18, %s579
        %p581 = scmp.lt.s32.totalorder %s30, 1
        %s582 = scalar_select %p581, %s30, 1
        %s583 = smul.addr %s582, 4
        %s584 = smul.addr %s583, 4
        %s585 = scalar_lea.vmem %s0, %s584
        %p586 = scmp.lt.s32.totalorder %s30, 1
        %s587 = scalar_select %p586, %s30, 1
        %s588 = smul.addr %s587, 4
        %s589 = smul.addr %s588, 8
        %s590 = scalar_lea.vmem %s18, %s589
        %592 = vst [vmem:[#allocation2] sm:$0xff] 0
        %593 = vst [vmem:[#allocation2 + $0x8] sm:$0xff] 0
        %594 = vst [vmem:[#allocation2 + $0x10] sm:$0xff] 0
        %595 = vst [vmem:[#allocation2 + $0x18] sm:$0xff] 0
        %596 = vst [vmem:[#allocation2 + $0x20] sm:$0xff] 0
        %597 = vst [vmem:[#allocation2 + $0x28] sm:$0xff] 0
        %598 = vst [vmem:[#allocation2 + $0x30] sm:$0xff] 0
        %599 = vst [vmem:[#allocation2 + $0x38] sm:$0xff] 0
        %600 = vst [vmem:[#allocation2 + $0x40] sm:$0xff] 0
        %601 = vst [vmem:[#allocation2 + $0x48] sm:$0xff] 0
        %602 = vst [vmem:[#allocation2 + $0x50] sm:$0xff] 0
        %603 = vst [vmem:[#allocation2 + $0x58] sm:$0xff] 0
        %604 = vst [vmem:[#allocation3] sm:$0xff] 0
        %605 = vst [vmem:[#allocation3 + $0x8] sm:$0xff] 0
        %606 = vst [vmem:[#allocation3 + $0x10] sm:$0xff] 0
        %607 = vst [vmem:[#allocation3 + $0x18] sm:$0xff] 0
        %608 = vst [vmem:[#allocation3 + $0x20] sm:$0xff] 0
        %609 = vst [vmem:[#allocation3 + $0x28] sm:$0xff] 0
        %610 = vst [vmem:[#allocation3 + $0x30] sm:$0xff] 0
        %611 = vst [vmem:[#allocation3 + $0x38] sm:$0xff] 0
        %612 = vst [vmem:[#allocation3 + $0x40] sm:$0xff] 0
        %613 = vst [vmem:[#allocation3 + $0x48] sm:$0xff] 0
        %614 = vst [vmem:[#allocation3 + $0x50] sm:$0xff] 0
        %615 = vst [vmem:[#allocation3 + $0x58] sm:$0xff] 0
        %v616 = vld [vmem:[%s585] sm:$0xff]
        %v617 = vld [vmem:[%s585 + $0x8] sm:$0xff]
        %618 = vst [vmem:[#allocation2 + $0x4] sm:$0xff] %v616
        %619 = vst [vmem:[#allocation2 + $0xc] sm:$0xff] %v617
        %v620 = vld [vmem:[#allocation2] sm:$0xff]
        %v621 = vld [vmem:[#allocation2 + $0x8] sm:$0xff]
        %v622 = vld [vmem:[#allocation2 + $0x10] sm:$0xf]
        %626 = vrot.lane.b32.xlu0 %v620, 7
        %v627 = vpop.permute.xlu0 %626
        %628 = vrot.lane.b32.xlu0 %v621, 7
        %v629 = vpop.permute.xlu0 %628
        %630 = vrot.lane.b32.xlu0 %v622, 7
        %v631 = vpop.permute.xlu0 %630
        %v632 = vrot.slane %v627, 4
        %v633 = vrot.slane %v629, 4
        %v634 = vrot.slane %v631, 4
        %vm635 = vcmask 1043456
        %v636 = vsel %vm635, %v632, %v633
        %vm637 = vcmask 56320
        %v638 = vsel %vm637, %v627, %v636
        %v639 = vsel %vm635, %v633, %v634
        %v640 = vsel %vm637, %v629, %v639
        %643 = vst [vmem:[#allocation4] sm:$0xff] %v638
        %644 = vst [vmem:[#allocation4 + $0x8] sm:$0xff] %v640
        %v645 = vld [vmem:[#allocation2] sm:$0xff]
        %v646 = vld [vmem:[#allocation2 + $0x8] sm:$0xff]
        %v647 = vld [vmem:[#allocation2 + $0x10] sm:$0xf]
        %651 = vrot.lane.b32.xlu0 %v645, 6
        %v652 = vpop.permute.xlu0 %651
        %653 = vrot.lane.b32.xlu0 %v646, 6
        %v654 = vpop.permute.xlu0 %653
        %655 = vrot.lane.b32.xlu0 %v647, 6
        %v656 = vpop.permute.xlu0 %655
        %v657 = vrot.slane %v652, 4
        %v658 = vrot.slane %v654, 4
        %v659 = vrot.slane %v656, 4
        %v660 = vsel %vm635, %v657, %v658
        %vm661 = vcmask 48128
        %v662 = vsel %vm661, %v652, %v660
        %v663 = vsel %vm635, %v658, %v659
        %v664 = vsel %vm661, %v654, %v663
        %667 = vst [vmem:[#allocation4 + $0x10] sm:$0xff] %v662
        %668 = vst [vmem:[#allocation4 + $0x18] sm:$0xff] %v664
        %v669 = vld [vmem:[#allocation2] sm:$0xff]
        %v670 = vld [vmem:[#allocation2 + $0x8] sm:$0xff]
        %v671 = vld [vmem:[#allocation2 + $0x10] sm:$0xf]
        %675 = vrot.lane.b32.xlu0 %v669, 5
        %v676 = vpop.permute.xlu0 %675
        %677 = vrot.lane.b32.xlu0 %v670, 5
        %v678 = vpop.permute.xlu0 %677
        %679 = vrot.lane.b32.xlu0 %v671, 5
        %v680 = vpop.permute.xlu0 %679
        %v681 = vrot.slane %v676, 4
        %v682 = vrot.slane %v678, 4
        %v683 = vrot.slane %v680, 4
        %v684 = vsel %vm635, %v681, %v682
        %vm685 = vcmask 39936
        %v686 = vsel %vm685, %v676, %v684
        %v687 = vsel %vm635, %v682, %v683
        %v688 = vsel %vm685, %v678, %v687
        %691 = vst [vmem:[#allocation4 + $0x20] sm:$0xff] %v686
        %692 = vst [vmem:[#allocation4 + $0x28] sm:$0xff] %v688
        %v693 = vld [vmem:[#allocation2] sm:$0xff]
        %v694 = vld [vmem:[#allocation2 + $0x8] sm:$0xff]
        %v695 = vld [vmem:[#allocation2 + $0x10] sm:$0xf]
        %699 = vrot.lane.b32.xlu0 %v693, 4
        %v700 = vpop.permute.xlu0 %699
        %701 = vrot.lane.b32.xlu0 %v694, 4
        %v702 = vpop.permute.xlu0 %701
        %703 = vrot.lane.b32.xlu0 %v695, 4
        %v704 = vpop.permute.xlu0 %703
        %v705 = vrot.slane %v700, 4
        %v706 = vrot.slane %v702, 4
        %v707 = vrot.slane %v704, 4
        %v708 = vsel %vm635, %v705, %v706
        %vm709 = vcmask 31744
        %v710 = vsel %vm709, %v700, %v708
        %v711 = vsel %vm635, %v706, %v707
        %v712 = vsel %vm709, %v702, %v711
        %715 = vst [vmem:[#allocation4 + $0x30] sm:$0xff] %v710
        %716 = vst [vmem:[#allocation4 + $0x38] sm:$0xff] %v712
        %v717 = vld [vmem:[#allocation2] sm:$0xff]
        %v718 = vld [vmem:[#allocation2 + $0x8] sm:$0xff]
        %v719 = vld [vmem:[#allocation2 + $0x10] sm:$0xf]
        %723 = vrot.lane.b32.xlu0 %v717, 3
        %v724 = vpop.permute.xlu0 %723
        %725 = vrot.lane.b32.xlu0 %v718, 3
        %v726 = vpop.permute.xlu0 %725
        %727 = vrot.lane.b32.xlu0 %v719, 3
        %v728 = vpop.permute.xlu0 %727
        %v729 = vrot.slane %v724, 4
        %v730 = vrot.slane %v726, 4
        %v731 = vrot.slane %v728, 4
        %v732 = vsel %vm635, %v729, %v730
        %vm733 = vcmask 23552
        %v734 = vsel %vm733, %v724, %v732
        %v735 = vsel %vm635, %v730, %v731
        %v736 = vsel %vm733, %v726, %v735
        %739 = vst [vmem:[#allocation4 + $0x40] sm:$0xff] %v734
        %740 = vst [vmem:[#allocation4 + $0x48] sm:$0xff] %v736
        %v741 = vld [vmem:[#allocation2] sm:$0xff]
        %v742 = vld [vmem:[#allocation2 + $0x8] sm:$0xff]
        %v743 = vld [vmem:[#allocation2 + $0x10] sm:$0xf]
        %747 = vrot.lane.b32.xlu0 %v741, 2
        %v748 = vpop.permute.xlu0 %747
        %749 = vrot.lane.b32.xlu0 %v742, 2
        %v750 = vpop.permute.xlu0 %749
        %751 = vrot.lane.b32.xlu0 %v743, 2
        %v752 = vpop.permute.xlu0 %751
        %v753 = vrot.slane %v748, 4
        %v754 = vrot.slane %v750, 4
        %v755 = vrot.slane %v752, 4
        %v756 = vsel %vm635, %v753, %v754
        %vm757 = vcmask 15360
        %v758 = vsel %vm757, %v748, %v756
        %v759 = vsel %vm635, %v754, %v755
        %v760 = vsel %vm757, %v750, %v759
        %763 = vst [vmem:[#allocation4 + $0x50] sm:$0xff] %v758
        %764 = vst [vmem:[#allocation4 + $0x58] sm:$0xff] %v760
        %v765 = vld [vmem:[#allocation2] sm:$0xff]
        %v766 = vld [vmem:[#allocation2 + $0x8] sm:$0xff]
        %v767 = vld [vmem:[#allocation2 + $0x10] sm:$0xf]
        %771 = vrot.lane.b32.xlu0 %v765, 1
        %v772 = vpop.permute.xlu0 %771
        %773 = vrot.lane.b32.xlu0 %v766, 1
        %v774 = vpop.permute.xlu0 %773
        %775 = vrot.lane.b32.xlu0 %v767, 1
        %v776 = vpop.permute.xlu0 %775
        %v777 = vrot.slane %v772, 4
        %v778 = vrot.slane %v774, 4
        %v779 = vrot.slane %v776, 4
        %v780 = vsel %vm635, %v777, %v778
        %vm781 = vcmask 7168
        %v782 = vsel %vm781, %v772, %v780
        %v783 = vsel %vm635, %v778, %v779
        %v784 = vsel %vm781, %v774, %v783
        %787 = vst [vmem:[#allocation4 + $0x60] sm:$0xff] %v782
        %788 = vst [vmem:[#allocation4 + $0x68] sm:$0xff] %v784
        %v789 = vld [vmem:[#allocation2 + $0x4] sm:$0xff]
        %v790 = vld [vmem:[#allocation2 + $0xc] sm:$0xff]
        %791 = vst [vmem:[#allocation4 + $0x70] sm:$0xff] %v789
        %792 = vst [vmem:[#allocation4 + $0x78] sm:$0xff] %v790
        %v793 = vld [vmem:[#allocation2 + $0x4] sm:$0xff]
        %v794 = vld [vmem:[#allocation2 + $0xc] sm:$0xff]
        %v795 = vld [vmem:[#allocation2 + $0x14] sm:$0xf]
        %799 = vrot.lane.b32.xlu0 %v793, 127
        %v800 = vpop.permute.xlu0 %799
        %801 = vrot.lane.b32.xlu0 %v794, 127
        %v802 = vpop.permute.xlu0 %801
        %803 = vrot.lane.b32.xlu0 %v795, 127
        %v804 = vpop.permute.xlu0 %803
        %v805 = vrot.slane %v800, 4
        %v806 = vrot.slane %v802, 4
        %v807 = vrot.slane %v804, 4
        %v808 = vsel %vm635, %v805, %v806
        %vm809 = vcmask 1039360
        %v810 = vsel %vm809, %v800, %v808
        %v811 = vsel %vm635, %v806, %v807
        %v812 = vsel %vm809, %v802, %v811
        %815 = vst [vmem:[#allocation4 + $0x80] sm:$0xff] %v810
        %816 = vst [vmem:[#allocation4 + $0x88] sm:$0xff] %v812
        %v817 = vld [vmem:[#allocation2 + $0x4] sm:$0xff]
        %v818 = vld [vmem:[#allocation2 + $0xc] sm:$0xff]
        %v819 = vld [vmem:[#allocation2 + $0x14] sm:$0xf]
        %823 = vrot.lane.b32.xlu0 %v817, 126
        %v824 = vpop.permute.xlu0 %823
        %825 = vrot.lane.b32.xlu0 %v818, 126
        %v826 = vpop.permute.xlu0 %825
        %827 = vrot.lane.b32.xlu0 %v819, 126
        %v828 = vpop.permute.xlu0 %827
        %v829 = vrot.slane %v824, 4
        %v830 = vrot.slane %v826, 4
        %v831 = vrot.slane %v828, 4
        %v832 = vsel %vm635, %v829, %v830
        %vm833 = vcmask 1031168
        %v834 = vsel %vm833, %v824, %v832
        %v835 = vsel %vm635, %v830, %v831
        %v836 = vsel %vm833, %v826, %v835
        %839 = vst [vmem:[#allocation4 + $0x90] sm:$0xff] %v834
        %840 = vst [vmem:[#allocation4 + $0x98] sm:$0xff] %v836
        %v841 = vld [vmem:[#allocation2 + $0x4] sm:$0xff]
        %v842 = vld [vmem:[#allocation2 + $0xc] sm:$0xff]
        %v843 = vld [vmem:[#allocation2 + $0x14] sm:$0xf]
        %847 = vrot.lane.b32.xlu0 %v841, 125
        %v848 = vpop.permute.xlu0 %847
        %849 = vrot.lane.b32.xlu0 %v842, 125
        %v850 = vpop.permute.xlu0 %849
        %851 = vrot.lane.b32.xlu0 %v843, 125
        %v852 = vpop.permute.xlu0 %851
        %v853 = vrot.slane %v848, 4
        %v854 = vrot.slane %v850, 4
        %v855 = vrot.slane %v852, 4
        %v856 = vsel %vm635, %v853, %v854
        %vm857 = vcmask 1022976
        %v858 = vsel %vm857, %v848, %v856
        %v859 = vsel %vm635, %v854, %v855
        %v860 = vsel %vm857, %v850, %v859
        %863 = vst [vmem:[#allocation4 + $0xa0] sm:$0xff] %v858
        %864 = vst [vmem:[#allocation4 + $0xa8] sm:$0xff] %v860
        %v865 = vld [vmem:[#allocation2 + $0x4] sm:$0xff]
        %v866 = vld [vmem:[#allocation2 + $0xc] sm:$0xff]
        %v867 = vld [vmem:[#allocation2 + $0x14] sm:$0xf]
        %871 = vrot.lane.b32.xlu0 %v865, 124
        %v872 = vpop.permute.xlu0 %871
        %873 = vrot.lane.b32.xlu0 %v866, 124
        %v874 = vpop.permute.xlu0 %873
        %875 = vrot.lane.b32.xlu0 %v867, 124
        %v876 = vpop.permute.xlu0 %875
        %v877 = vrot.slane %v872, 4
        %v878 = vrot.slane %v874, 4
        %v879 = vrot.slane %v876, 4
        %v880 = vsel %vm635, %v877, %v878
        %vm881 = vcmask 1014784
        %v882 = vsel %vm881, %v872, %v880
        %v883 = vsel %vm635, %v878, %v879
        %v884 = vsel %vm881, %v874, %v883
        %887 = vst [vmem:[#allocation4 + $0xb0] sm:$0xff] %v882
        %888 = vst [vmem:[#allocation4 + $0xb8] sm:$0xff] %v884
        %v889 = vld [vmem:[#allocation2 + $0x4] sm:$0xff]
        %v890 = vld [vmem:[#allocation2 + $0xc] sm:$0xff]
        %v891 = vld [vmem:[#allocation2 + $0x14] sm:$0xf]
        %895 = vrot.lane.b32.xlu0 %v889, 123
        %v896 = vpop.permute.xlu0 %895
        %897 = vrot.lane.b32.xlu0 %v890, 123
        %v898 = vpop.permute.xlu0 %897
        %899 = vrot.lane.b32.xlu0 %v891, 123
        %v900 = vpop.permute.xlu0 %899
        %v901 = vrot.slane %v896, 4
        %v902 = vrot.slane %v898, 4
        %v903 = vrot.slane %v900, 4
        %v904 = vsel %vm635, %v901, %v902
        %vm905 = vcmask 1006592
        %v906 = vsel %vm905, %v896, %v904
        %v907 = vsel %vm635, %v902, %v903
        %v908 = vsel %vm905, %v898, %v907
        %911 = vst [vmem:[#allocation4 + $0xc0] sm:$0xff] %v906
        %912 = vst [vmem:[#allocation4 + $0xc8] sm:$0xff] %v908
        %v913 = vld [vmem:[#allocation2 + $0x4] sm:$0xff]
        %v914 = vld [vmem:[#allocation2 + $0xc] sm:$0xff]
        %v915 = vld [vmem:[#allocation2 + $0x14] sm:$0xf]
        %919 = vrot.lane.b32.xlu0 %v913, 122
        %v920 = vpop.permute.xlu0 %919
        %921 = vrot.lane.b32.xlu0 %v914, 122
        %v922 = vpop.permute.xlu0 %921
        %923 = vrot.lane.b32.xlu0 %v915, 122
        %v924 = vpop.permute.xlu0 %923
        %v925 = vrot.slane %v920, 4
        %v926 = vrot.slane %v922, 4
        %v927 = vrot.slane %v924, 4
        %v928 = vsel %vm635, %v925, %v926
        %vm929 = vcmask 998400
        %v930 = vsel %vm929, %v920, %v928
        %v931 = vsel %vm635, %v926, %v927
        %v932 = vsel %vm929, %v922, %v931
        %935 = vst [vmem:[#allocation4 + $0xd0] sm:$0xff] %v930
        %936 = vst [vmem:[#allocation4 + $0xd8] sm:$0xff] %v932
        %v937 = vld [vmem:[#allocation2 + $0x4] sm:$0xff]
        %v938 = vld [vmem:[#allocation2 + $0xc] sm:$0xff]
        %v939 = vld [vmem:[#allocation2 + $0x14] sm:$0xf]
        %943 = vrot.lane.b32.xlu0 %v937, 121
        %v944 = vpop.permute.xlu0 %943
        %945 = vrot.lane.b32.xlu0 %v938, 121
        %v946 = vpop.permute.xlu0 %945
        %947 = vrot.lane.b32.xlu0 %v939, 121
        %v948 = vpop.permute.xlu0 %947
        %v949 = vrot.slane %v944, 4
        %v950 = vrot.slane %v946, 4
        %v951 = vrot.slane %v948, 4
        %v952 = vsel %vm635, %v949, %v950
        %vm953 = vcmask 990208
        %v954 = vsel %vm953, %v944, %v952
        %v955 = vsel %vm635, %v950, %v951
        %v956 = vsel %vm953, %v946, %v955
        %959 = vst [vmem:[#allocation4 + $0xe0] sm:$0xff] %v954
        %960 = vst [vmem:[#allocation4 + $0xe8] sm:$0xff] %v956
        %v961 = vld [vmem:[%s1] sm:$0xf]
        %v962 = vld [vmem:[#allocation4] sm:$0xff]
        %v963 = vld [vmem:[#allocation4 + $0x8] sm:$0xff]
        %v964 = vld [vmem:[#allocation4 + $0x10] sm:$0xff]
        %v965 = vld [vmem:[#allocation4 + $0x18] sm:$0xff]
        %v966 = vld [vmem:[#allocation4 + $0x20] sm:$0xff]
        %v967 = vld [vmem:[#allocation4 + $0x28] sm:$0xff]
        %v968 = vld [vmem:[#allocation4 + $0x30] sm:$0xff]
        %v969 = vld [vmem:[#allocation4 + $0x38] sm:$0xff]
        %v970 = vld [vmem:[#allocation4 + $0x40] sm:$0xff]
        %v971 = vld [vmem:[#allocation4 + $0x48] sm:$0xff]
        %v972 = vld [vmem:[#allocation4 + $0x50] sm:$0xff]
        %v973 = vld [vmem:[#allocation4 + $0x58] sm:$0xff]
        %v974 = vld [vmem:[#allocation4 + $0x60] sm:$0xff]
        %v975 = vld [vmem:[#allocation4 + $0x68] sm:$0xff]
        %v976 = vld [vmem:[#allocation4 + $0x70] sm:$0xff]
        %v977 = vld [vmem:[#allocation4 + $0x78] sm:$0xff]
        %v978 = vld [vmem:[#allocation4 + $0x80] sm:$0xff]
        %v979 = vld [vmem:[#allocation4 + $0x88] sm:$0xff]
        %v980 = vld [vmem:[#allocation4 + $0x90] sm:$0xff]
        %v981 = vld [vmem:[#allocation4 + $0x98] sm:$0xff]
        %v982 = vld [vmem:[#allocation4 + $0xa0] sm:$0xff]
        %v983 = vld [vmem:[#allocation4 + $0xa8] sm:$0xff]
        %v984 = vld [vmem:[#allocation4 + $0xb0] sm:$0xff]
        %v985 = vld [vmem:[#allocation4 + $0xb8] sm:$0xff]
        %v986 = vld [vmem:[#allocation4 + $0xc0] sm:$0xff]
        %v987 = vld [vmem:[#allocation4 + $0xc8] sm:$0xff]
        %v988 = vld [vmem:[#allocation4 + $0xd0] sm:$0xff]
        %v989 = vld [vmem:[#allocation4 + $0xd8] sm:$0xff]
        %v990 = vld [vmem:[#allocation4 + $0xe0] sm:$0xff]
        %v991 = vld [vmem:[#allocation4 + $0xe8] sm:$0xff]
        %v1022 = vunpack.c.l.b16 %v962
        %v1023 = vunpack.c.h.b16 %v962
        %v1024 = vunpack.c.l.b16 %v963
        %v1025 = vunpack.c.h.b16 %v963
        %v1026 = vunpack.c.l.b16 %v964
        %v1027 = vunpack.c.h.b16 %v964
        %v1028 = vunpack.c.l.b16 %v965
        %v1029 = vunpack.c.h.b16 %v965
        %v1030 = vunpack.c.l.b16 %v966
        %v1031 = vunpack.c.h.b16 %v966
        %v1032 = vunpack.c.l.b16 %v967
        %v1033 = vunpack.c.h.b16 %v967
        %v1034 = vunpack.c.l.b16 %v968
        %v1035 = vunpack.c.h.b16 %v968
        %v1036 = vunpack.c.l.b16 %v969
        %v1037 = vunpack.c.h.b16 %v969
        %v1038 = vunpack.c.l.b16 %v970
        %v1039 = vunpack.c.h.b16 %v970
        %v1040 = vunpack.c.l.b16 %v971
        %v1041 = vunpack.c.h.b16 %v971
        %v1042 = vunpack.c.l.b16 %v972
        %v1043 = vunpack.c.h.b16 %v972
        %v1044 = vunpack.c.l.b16 %v973
        %v1045 = vunpack.c.h.b16 %v973
        %v1046 = vunpack.c.l.b16 %v974
        %v1047 = vunpack.c.h.b16 %v974
        %v1048 = vunpack.c.l.b16 %v975
        %v1049 = vunpack.c.h.b16 %v975
        %v1050 = vunpack.c.l.b16 %v976
        %v1051 = vunpack.c.h.b16 %v976
        %v1052 = vunpack.c.l.b16 %v977
        %v1053 = vunpack.c.h.b16 %v977
        %v1054 = vunpack.c.l.b16 %v978
        %v1055 = vunpack.c.h.b16 %v978
        %v1056 = vunpack.c.l.b16 %v979
        %v1057 = vunpack.c.h.b16 %v979
        %v1058 = vunpack.c.l.b16 %v980
        %v1059 = vunpack.c.h.b16 %v980
        %v1060 = vunpack.c.l.b16 %v981
        %v1061 = vunpack.c.h.b16 %v981
        %v1062 = vunpack.c.l.b16 %v982
        %v1063 = vunpack.c.h.b16 %v982
        %v1064 = vunpack.c.l.b16 %v983
        %v1065 = vunpack.c.h.b16 %v983
        %v1066 = vunpack.c.l.b16 %v984
        %v1067 = vunpack.c.h.b16 %v984
        %v1068 = vunpack.c.l.b16 %v985
        %v1069 = vunpack.c.h.b16 %v985
        %v1070 = vunpack.c.l.b16 %v986
        %v1071 = vunpack.c.h.b16 %v986
        %v1072 = vunpack.c.l.b16 %v987
        %v1073 = vunpack.c.h.b16 %v987
        %v1074 = vunpack.c.l.b16 %v988
        %v1075 = vunpack.c.h.b16 %v988
        %v1076 = vunpack.c.l.b16 %v989
        %v1077 = vunpack.c.h.b16 %v989
        %v1078 = vunpack.c.l.b16 %v990
        %v1079 = vunpack.c.h.b16 %v990
        %v1080 = vunpack.c.l.b16 %v991
        %v1081 = vunpack.c.h.b16 %v991
        %v1082 = vpack.c.b16 %v1026, %v1022
        %v1083 = vpack.c.b16 %v1027, %v1023
        %v1084 = vpack.c.b16 %v1028, %v1024
        %v1085 = vpack.c.b16 %v1029, %v1025
        %v1086 = vpack.c.b16 %v1034, %v1030
        %v1087 = vpack.c.b16 %v1035, %v1031
        %v1088 = vpack.c.b16 %v1036, %v1032
        %v1089 = vpack.c.b16 %v1037, %v1033
        %v1090 = vpack.c.b16 %v1042, %v1038
        %v1091 = vpack.c.b16 %v1043, %v1039
        %v1092 = vpack.c.b16 %v1044, %v1040
        %v1093 = vpack.c.b16 %v1045, %v1041
        %v1094 = vpack.c.b16 %v1050, %v1046
        %v1095 = vpack.c.b16 %v1051, %v1047
        %v1096 = vpack.c.b16 %v1052, %v1048
        %v1097 = vpack.c.b16 %v1053, %v1049
        %v1098 = vpack.c.b16 %v1058, %v1054
        %v1099 = vpack.c.b16 %v1059, %v1055
        %v1100 = vpack.c.b16 %v1060, %v1056
        %v1101 = vpack.c.b16 %v1061, %v1057
        %v1102 = vpack.c.b16 %v1066, %v1062
        %v1103 = vpack.c.b16 %v1067, %v1063
        %v1104 = vpack.c.b16 %v1068, %v1064
        %v1105 = vpack.c.b16 %v1069, %v1065
        %v1106 = vpack.c.b16 %v1074, %v1070
        %v1107 = vpack.c.b16 %v1075, %v1071
        %v1108 = vpack.c.b16 %v1076, %v1072
        %v1109 = vpack.c.b16 %v1077, %v1073
        %v1110 = vpack.c.b16 %v1078, %v1078
        %v1111 = vpack.c.b16 %v1079, %v1079
        %v1112 = vpack.c.b16 %v1080, %v1080
        %v1113 = vpack.c.b16 %v1081, %v1081
        %vm1142 = vcmask 982016
        %v1144 = vsel %vm1142, %v961, 0
        %vm1146 = vcmask 1043456
        %v1148 = vsel %vm1146, %v1110, 0
        %v1151 = vsel %vm1146, %v1111, 0
        %v1154 = vsel %vm1146, %v1112, 0
        %v1157 = vsel %vm1146, %v1113, 0
        %1159 = vmatprep.subr.bf16.mxu0 %v1151
        %1160 = vmatpush1.bf16.msra.mxu0 %v1148
        %1161 = vmatprep.subr.bf16.mxu0 %v1107
        %1162 = vmatpush1.bf16.msra.mxu0 %v1106
        %1163 = vmatprep.subr.bf16.mxu0 %v1103
        %1164 = vmatpush1.bf16.msra.mxu0 %v1102
        %1165 = vmatprep.subr.bf16.mxu0 %v1099
        %1166 = vmatpush1.bf16.msra.mxu0 %v1098
        %1167 = vmatprep.subr.bf16.mxu0 %v1095
        %1168 = vmatpush1.bf16.msra.mxu0 %v1094
        %1169 = vmatprep.subr.bf16.mxu0 %v1091
        %1170 = vmatpush1.bf16.msra.mxu0 %v1090
        %1171 = vmatprep.subr.bf16.mxu0 %v1087
        %1172 = vmatpush1.bf16.msra.mxu0 %v1086
        %1173 = vmatprep.subr.bf16.mxu0 %v1083
        %1174 = vmatpush1.bf16.msra.mxu0 %v1082
        %1175 = vmatprep.subr.bf16.mxu0 0
        %1176 = vmatpush2.bf16.msra.mxu0 0
        %1177 = vmatprep.subr.bf16.mxu0 0
        %1178 = vmatpush2.bf16.msra.mxu0 0
        %1179 = vmatprep.subr.bf16.mxu0 0
        %1180 = vmatpush2.bf16.msra.mxu0 0
        %1181 = vmatprep.subr.bf16.mxu0 0
        %1182 = vmatpush2.bf16.msra.mxu0 0
        %1183 = vmatprep.subr.bf16.mxu0 0
        %1184 = vmatpush2.bf16.msra.mxu0 0
        %1185 = vmatprep.subr.bf16.mxu0 0
        %1186 = vmatpush2.bf16.msra.mxu0 0
        %1187 = vmatprep.subr.bf16.mxu0 0
        %1188 = vmatpush2.bf16.msra.mxu0 0
        %1189 = vmatprep.subr.bf16.mxu0 0
        %1190 = vmatpush2.bf16.msra.mxu0 0
        %1191 = vmatprep.mubr.bf16.mxu0 0
        %1192 = vmatmul.mubr.bf16.gmra.mxu0 %v1144
        %v1193 = vpop.f32.mrf.mxu0
        %v1194 = vadd.f32 0.0, %v1193
        %v1195 = vpop.f32.mrf.mxu0
        %v1196 = vadd.f32 0.0, %v1195
        %v1197 = vpop.f32.mrf.mxu0
        %v1198 = vpop.f32.mrf.mxu0
        %1199 = vdwg.mxu0
        %1200 = vmatprep.subr.bf16.mxu0 %v1157
        %1201 = vmatpush1.bf16.msra.mxu0 %v1154
        %1202 = vmatprep.subr.bf16.mxu0 %v1109
        %1203 = vmatpush1.bf16.msra.mxu0 %v1108
        %1204 = vmatprep.subr.bf16.mxu0 %v1105
        %1205 = vmatpush1.bf16.msra.mxu0 %v1104
        %1206 = vmatprep.subr.bf16.mxu0 %v1101
        %1207 = vmatpush1.bf16.msra.mxu0 %v1100
        %1208 = vmatprep.subr.bf16.mxu0 %v1097
        %1209 = vmatpush1.bf16.msra.mxu0 %v1096
        %1210 = vmatprep.subr.bf16.mxu0 %v1093
        %1211 = vmatpush1.bf16.msra.mxu0 %v1092
        %1212 = vmatprep.subr.bf16.mxu0 %v1089
        %1213 = vmatpush1.bf16.msra.mxu0 %v1088
        %1214 = vmatprep.subr.bf16.mxu0 %v1085
        %1215 = vmatpush1.bf16.msra.mxu0 %v1084
        %1216 = vmatprep.subr.bf16.mxu0 0
        %1217 = vmatpush2.bf16.msra.mxu0 0
        %1218 = vmatprep.subr.bf16.mxu0 0
        %1219 = vmatpush2.bf16.msra.mxu0 0
        %1220 = vmatprep.subr.bf16.mxu0 0
        %1221 = vmatpush2.bf16.msra.mxu0 0
        %1222 = vmatprep.subr.bf16.mxu0 0
        %1223 = vmatpush2.bf16.msra.mxu0 0
        %1224 = vmatprep.subr.bf16.mxu0 0
        %1225 = vmatpush2.bf16.msra.mxu0 0
        %1226 = vmatprep.subr.bf16.mxu0 0
        %1227 = vmatpush2.bf16.msra.mxu0 0
        %1228 = vmatprep.subr.bf16.mxu0 0
        %1229 = vmatpush2.bf16.msra.mxu0 0
        %1230 = vmatprep.subr.bf16.mxu0 0
        %1231 = vmatpush2.bf16.msra.mxu0 0
        %1232 = vmatprep.mubr.bf16.mxu0 0
        %1233 = vmatmul.mubr.bf16.gmra.mxu0 %v1144
        %v1234 = vpop.f32.mrf.mxu0
        %v1235 = vadd.f32 0.0, %v1234
        %v1236 = vpop.f32.mrf.mxu0
        %v1237 = vadd.f32 0.0, %v1236
        %v1238 = vpop.f32.mrf.mxu0
        %v1239 = vpop.f32.mrf.mxu0
        %1240 = vdwg.mxu0
        %v1241 = vld [vmem:[%s9] sm:$0xff]
        %1243 = vset.pattern.permute.xlu0 0
        %1244 = vperm.xlu0 %1243, %v1241
        %v1245 = vpop.permute.xlu0 %1244
        %v1247 = vmul.f32 %v1194, %v1245
        %v1248 = vmul.f32 %v1196, %v1245
        %v1249 = vmul.f32 %v1235, %v1245
        %v1250 = vmul.f32 %v1237, %v1245
        %1251 = vset.pattern.permute.xlu0 1
        %1252 = vperm.xlu0 %1251, %v1241
        %v1253 = vpop.permute.xlu0 %1252
        %v1255 = vadd.f32 %v1247, %v1253
        %v1256 = vadd.f32 %v1248, %v1253
        %v1257 = vadd.f32 %v1249, %v1253
        %v1258 = vadd.f32 %v1250, %v1253
        %vm1259 = vcmp.gt.f32.partialorder %v1255, 0.0
        %vm1260 = vcmp.gt.f32.partialorder %v1256, 0.0
        %vm1261 = vcmp.gt.f32.partialorder %v1257, 0.0
        %vm1262 = vcmp.gt.f32.partialorder %v1258, 0.0
        %v1263 = vmul.f32 %v1255, 0.1
        %v1264 = vmul.f32 %v1256, 0.1
        %v1265 = vmul.f32 %v1257, 0.1
        %v1266 = vmul.f32 %v1258, 0.1
        %v1267 = vsel %vm1259, %v1255, %v1263
        %v1268 = vsel %vm1260, %v1256, %v1264
        %v1269 = vsel %vm1261, %v1257, %v1265
        %v1270 = vsel %vm1262, %v1258, %v1266
        %v1271 = vpack.c.bf16 %v1267, %v1267
        %v1272 = vpack.c.bf16 %v1268, %v1268
        %v1273 = vpack.c.bf16 %v1269, %v1269
        %v1274 = vpack.c.bf16 %v1270, %v1270
        %v1279 = vunpack.c.l.b16 %v1271
        %v1280 = vunpack.c.l.b16 %v1272
        %v1281 = vunpack.c.l.b16 %v1273
        %v1282 = vunpack.c.l.b16 %v1274
        %v1283 = vpack.c.b16 %v1280, %v1279
        %v1284 = vpack.c.b16 %v1282, %v1281
        %1287 = vst [vmem:[#allocation3 + $0x4] sm:$0xff] %v1283
        %1288 = vst [vmem:[#allocation3 + $0xc] sm:$0xff] %v1284
        %1289 = vst [vmem:[#allocation3 + $0x14] sm:$0xf] 0
        %v1290 = vld [vmem:[#allocation3] sm:$0xff]
        %v1291 = vld [vmem:[#allocation3 + $0x8] sm:$0xff]
        %v1292 = vld [vmem:[#allocation3 + $0x10] sm:$0xf]
        %1296 = vrot.lane.b32.xlu0 %v1290, 7
        %v1297 = vpop.permute.xlu0 %1296
        %1298 = vrot.lane.b32.xlu0 %v1291, 7
        %v1299 = vpop.permute.xlu0 %1298
        %1300 = vrot.lane.b32.xlu0 %v1292, 7
        %v1301 = vpop.permute.xlu0 %1300
        %v1302 = vrot.slane %v1297, 4
        %v1303 = vrot.slane %v1299, 4
        %v1304 = vrot.slane %v1301, 4
        %v1305 = vsel %vm635, %v1302, %v1303
        %v1306 = vsel %vm637, %v1297, %v1305
        %v1307 = vsel %vm635, %v1303, %v1304
        %v1308 = vsel %vm637, %v1299, %v1307
        %1311 = vst [vmem:[#allocation4] sm:$0xff] %v1306
        %1312 = vst [vmem:[#allocation4 + $0x8] sm:$0xff] %v1308
        %v1313 = vld [vmem:[#allocation3] sm:$0xff]
        %v1314 = vld [vmem:[#allocation3 + $0x8] sm:$0xff]
        %v1315 = vld [vmem:[#allocation3 + $0x10] sm:$0xf]
        %1319 = vrot.lane.b32.xlu0 %v1313, 6
        %v1320 = vpop.permute.xlu0 %1319
        %1321 = vrot.lane.b32.xlu0 %v1314, 6
        %v1322 = vpop.permute.xlu0 %1321
        %1323 = vrot.lane.b32.xlu0 %v1315, 6
        %v1324 = vpop.permute.xlu0 %1323
        %v1325 = vrot.slane %v1320, 4
        %v1326 = vrot.slane %v1322, 4
        %v1327 = vrot.slane %v1324, 4
        %v1328 = vsel %vm635, %v1325, %v1326
        %v1329 = vsel %vm661, %v1320, %v1328
        %v1330 = vsel %vm635, %v1326, %v1327
        %v1331 = vsel %vm661, %v1322, %v1330
        %1334 = vst [vmem:[#allocation4 + $0x10] sm:$0xff] %v1329
        %1335 = vst [vmem:[#allocation4 + $0x18] sm:$0xff] %v1331
        %v1336 = vld [vmem:[#allocation3] sm:$0xff]
        %v1337 = vld [vmem:[#allocation3 + $0x8] sm:$0xff]
        %v1338 = vld [vmem:[#allocation3 + $0x10] sm:$0xf]
        %1342 = vrot.lane.b32.xlu0 %v1336, 5
        %v1343 = vpop.permute.xlu0 %1342
        %1344 = vrot.lane.b32.xlu0 %v1337, 5
        %v1345 = vpop.permute.xlu0 %1344
        %1346 = vrot.lane.b32.xlu0 %v1338, 5
        %v1347 = vpop.permute.xlu0 %1346
        %v1348 = vrot.slane %v1343, 4
        %v1349 = vrot.slane %v1345, 4
        %v1350 = vrot.slane %v1347, 4
        %v1351 = vsel %vm635, %v1348, %v1349
        %v1352 = vsel %vm685, %v1343, %v1351
        %v1353 = vsel %vm635, %v1349, %v1350
        %v1354 = vsel %vm685, %v1345, %v1353
        %1357 = vst [vmem:[#allocation4 + $0x20] sm:$0xff] %v1352
        %1358 = vst [vmem:[#allocation4 + $0x28] sm:$0xff] %v1354
        %v1359 = vld [vmem:[#allocation3] sm:$0xff]
        %v1360 = vld [vmem:[#allocation3 + $0x8] sm:$0xff]
        %v1361 = vld [vmem:[#allocation3 + $0x10] sm:$0xf]
        %1365 = vrot.lane.b32.xlu0 %v1359, 4
        %v1366 = vpop.permute.xlu0 %1365
        %1367 = vrot.lane.b32.xlu0 %v1360, 4
        %v1368 = vpop.permute.xlu0 %1367
        %1369 = vrot.lane.b32.xlu0 %v1361, 4
        %v1370 = vpop.permute.xlu0 %1369
        %v1371 = vrot.slane %v1366, 4
        %v1372 = vrot.slane %v1368, 4
        %v1373 = vrot.slane %v1370, 4
        %v1374 = vsel %vm635, %v1371, %v1372
        %v1375 = vsel %vm709, %v1366, %v1374
        %v1376 = vsel %vm635, %v1372, %v1373
        %v1377 = vsel %vm709, %v1368, %v1376
        %1380 = vst [vmem:[#allocation4 + $0x30] sm:$0xff] %v1375
        %1381 = vst [vmem:[#allocation4 + $0x38] sm:$0xff] %v1377
        %v1382 = vld [vmem:[#allocation3] sm:$0xff]
        %v1383 = vld [vmem:[#allocation3 + $0x8] sm:$0xff]
        %v1384 = vld [vmem:[#allocation3 + $0x10] sm:$0xf]
        %1388 = vrot.lane.b32.xlu0 %v1382, 3
        %v1389 = vpop.permute.xlu0 %1388
        %1390 = vrot.lane.b32.xlu0 %v1383, 3
        %v1391 = vpop.permute.xlu0 %1390
        %1392 = vrot.lane.b32.xlu0 %v1384, 3
        %v1393 = vpop.permute.xlu0 %1392
        %v1394 = vrot.slane %v1389, 4
        %v1395 = vrot.slane %v1391, 4
        %v1396 = vrot.slane %v1393, 4
        %v1397 = vsel %vm635, %v1394, %v1395
        %v1398 = vsel %vm733, %v1389, %v1397
        %v1399 = vsel %vm635, %v1395, %v1396
        %v1400 = vsel %vm733, %v1391, %v1399
        %1403 = vst [vmem:[#allocation4 + $0x40] sm:$0xff] %v1398
        %1404 = vst [vmem:[#allocation4 + $0x48] sm:$0xff] %v1400
        %v1405 = vld [vmem:[#allocation3] sm:$0xff]
        %v1406 = vld [vmem:[#allocation3 + $0x8] sm:$0xff]
        %v1407 = vld [vmem:[#allocation3 + $0x10] sm:$0xf]
        %1411 = vrot.lane.b32.xlu0 %v1405, 2
        %v1412 = vpop.permute.xlu0 %1411
        %1413 = vrot.lane.b32.xlu0 %v1406, 2
        %v1414 = vpop.permute.xlu0 %1413
        %1415 = vrot.lane.b32.xlu0 %v1407, 2
        %v1416 = vpop.permute.xlu0 %1415
        %v1417 = vrot.slane %v1412, 4
        %v1418 = vrot.slane %v1414, 4
        %v1419 = vrot.slane %v1416, 4
        %v1420 = vsel %vm635, %v1417, %v1418
        %v1421 = vsel %vm757, %v1412, %v1420
        %v1422 = vsel %vm635, %v1418, %v1419
        %v1423 = vsel %vm757, %v1414, %v1422
        %1426 = vst [vmem:[#allocation4 + $0x50] sm:$0xff] %v1421
        %1427 = vst [vmem:[#allocation4 + $0x58] sm:$0xff] %v1423
        %v1428 = vld [vmem:[#allocation3] sm:$0xff]
        %v1429 = vld [vmem:[#allocation3 + $0x8] sm:$0xff]
        %v1430 = vld [vmem:[#allocation3 + $0x10] sm:$0xf]
        %1434 = vrot.lane.b32.xlu0 %v1428, 1
        %v1435 = vpop.permute.xlu0 %1434
        %1436 = vrot.lane.b32.xlu0 %v1429, 1
        %v1437 = vpop.permute.xlu0 %1436
        %1438 = vrot.lane.b32.xlu0 %v1430, 1
        %v1439 = vpop.permute.xlu0 %1438
        %v1440 = vrot.slane %v1435, 4
        %v1441 = vrot.slane %v1437, 4
        %v1442 = vrot.slane %v1439, 4
        %v1443 = vsel %vm635, %v1440, %v1441
        %v1444 = vsel %vm781, %v1435, %v1443
        %v1445 = vsel %vm635, %v1441, %v1442
        %v1446 = vsel %vm781, %v1437, %v1445
        %1449 = vst [vmem:[#allocation4 + $0x60] sm:$0xff] %v1444
        %1450 = vst [vmem:[#allocation4 + $0x68] sm:$0xff] %v1446
        %v1451 = vld [vmem:[#allocation3 + $0x4] sm:$0xff]
        %v1452 = vld [vmem:[#allocation3 + $0xc] sm:$0xff]
        %1453 = vst [vmem:[#allocation4 + $0x70] sm:$0xff] %v1451
        %1454 = vst [vmem:[#allocation4 + $0x78] sm:$0xff] %v1452
        %v1455 = vld [vmem:[#allocation3 + $0x4] sm:$0xff]
        %v1456 = vld [vmem:[#allocation3 + $0xc] sm:$0xff]
        %v1457 = vld [vmem:[#allocation3 + $0x14] sm:$0xf]
        %1461 = vrot.lane.b32.xlu0 %v1455, 127
        %v1462 = vpop.permute.xlu0 %1461
        %1463 = vrot.lane.b32.xlu0 %v1456, 127
        %v1464 = vpop.permute.xlu0 %1463
        %1465 = vrot.lane.b32.xlu0 %v1457, 127
        %v1466 = vpop.permute.xlu0 %1465
        %v1467 = vrot.slane %v1462, 4
        %v1468 = vrot.slane %v1464, 4
        %v1469 = vrot.slane %v1466, 4
        %v1470 = vsel %vm635, %v1467, %v1468
        %v1471 = vsel %vm809, %v1462, %v1470
        %v1472 = vsel %vm635, %v1468, %v1469
        %v1473 = vsel %vm809, %v1464, %v1472
        %1476 = vst [vmem:[#allocation4 + $0x80] sm:$0xff] %v1471
        %1477 = vst [vmem:[#allocation4 + $0x88] sm:$0xff] %v1473
        %v1478 = vld [vmem:[#allocation3 + $0x4] sm:$0xff]
        %v1479 = vld [vmem:[#allocation3 + $0xc] sm:$0xff]
        %v1480 = vld [vmem:[#allocation3 + $0x14] sm:$0xf]
        %1484 = vrot.lane.b32.xlu0 %v1478, 126
        %v1485 = vpop.permute.xlu0 %1484
        %1486 = vrot.lane.b32.xlu0 %v1479, 126
        %v1487 = vpop.permute.xlu0 %1486
        %1488 = vrot.lane.b32.xlu0 %v1480, 126
        %v1489 = vpop.permute.xlu0 %1488
        %v1490 = vrot.slane %v1485, 4
        %v1491 = vrot.slane %v1487, 4
        %v1492 = vrot.slane %v1489, 4
        %v1493 = vsel %vm635, %v1490, %v1491
        %v1494 = vsel %vm833, %v1485, %v1493
        %v1495 = vsel %vm635, %v1491, %v1492
        %v1496 = vsel %vm833, %v1487, %v1495
        %1499 = vst [vmem:[#allocation4 + $0x90] sm:$0xff] %v1494
        %1500 = vst [vmem:[#allocation4 + $0x98] sm:$0xff] %v1496
        %v1501 = vld [vmem:[#allocation3 + $0x4] sm:$0xff]
        %v1502 = vld [vmem:[#allocation3 + $0xc] sm:$0xff]
        %v1503 = vld [vmem:[#allocation3 + $0x14] sm:$0xf]
        %1507 = vrot.lane.b32.xlu0 %v1501, 125
        %v1508 = vpop.permute.xlu0 %1507
        %1509 = vrot.lane.b32.xlu0 %v1502, 125
        %v1510 = vpop.permute.xlu0 %1509
        %1511 = vrot.lane.b32.xlu0 %v1503, 125
        %v1512 = vpop.permute.xlu0 %1511
        %v1513 = vrot.slane %v1508, 4
        %v1514 = vrot.slane %v1510, 4
        %v1515 = vrot.slane %v1512, 4
        %v1516 = vsel %vm635, %v1513, %v1514
        %v1517 = vsel %vm857, %v1508, %v1516
        %v1518 = vsel %vm635, %v1514, %v1515
        %v1519 = vsel %vm857, %v1510, %v1518
        %1522 = vst [vmem:[#allocation4 + $0xa0] sm:$0xff] %v1517
        %1523 = vst [vmem:[#allocation4 + $0xa8] sm:$0xff] %v1519
        %v1524 = vld [vmem:[#allocation3 + $0x4] sm:$0xff]
        %v1525 = vld [vmem:[#allocation3 + $0xc] sm:$0xff]
        %v1526 = vld [vmem:[#allocation3 + $0x14] sm:$0xf]
        %1530 = vrot.lane.b32.xlu0 %v1524, 124
        %v1531 = vpop.permute.xlu0 %1530
        %1532 = vrot.lane.b32.xlu0 %v1525, 124
        %v1533 = vpop.permute.xlu0 %1532
        %1534 = vrot.lane.b32.xlu0 %v1526, 124
        %v1535 = vpop.permute.xlu0 %1534
        %v1536 = vrot.slane %v1531, 4
        %v1537 = vrot.slane %v1533, 4
        %v1538 = vrot.slane %v1535, 4
        %v1539 = vsel %vm635, %v1536, %v1537
        %v1540 = vsel %vm881, %v1531, %v1539
        %v1541 = vsel %vm635, %v1537, %v1538
        %v1542 = vsel %vm881, %v1533, %v1541
        %1545 = vst [vmem:[#allocation4 + $0xb0] sm:$0xff] %v1540
        %1546 = vst [vmem:[#allocation4 + $0xb8] sm:$0xff] %v1542
        %v1547 = vld [vmem:[#allocation3 + $0x4] sm:$0xff]
        %v1548 = vld [vmem:[#allocation3 + $0xc] sm:$0xff]
        %v1549 = vld [vmem:[#allocation3 + $0x14] sm:$0xf]
        %1553 = vrot.lane.b32.xlu0 %v1547, 123
        %v1554 = vpop.permute.xlu0 %1553
        %1555 = vrot.lane.b32.xlu0 %v1548, 123
        %v1556 = vpop.permute.xlu0 %1555
        %1557 = vrot.lane.b32.xlu0 %v1549, 123
        %v1558 = vpop.permute.xlu0 %1557
        %v1559 = vrot.slane %v1554, 4
        %v1560 = vrot.slane %v1556, 4
        %v1561 = vrot.slane %v1558, 4
        %v1562 = vsel %vm635, %v1559, %v1560
        %v1563 = vsel %vm905, %v1554, %v1562
        %v1564 = vsel %vm635, %v1560, %v1561
        %v1565 = vsel %vm905, %v1556, %v1564
        %1568 = vst [vmem:[#allocation4 + $0xc0] sm:$0xff] %v1563
        %1569 = vst [vmem:[#allocation4 + $0xc8] sm:$0xff] %v1565
        %v1570 = vld [vmem:[#allocation3 + $0x4] sm:$0xff]
        %v1571 = vld [vmem:[#allocation3 + $0xc] sm:$0xff]
        %v1572 = vld [vmem:[#allocation3 + $0x14] sm:$0xf]
        %1576 = vrot.lane.b32.xlu0 %v1570, 122
        %v1577 = vpop.permute.xlu0 %1576
        %1578 = vrot.lane.b32.xlu0 %v1571, 122
        %v1579 = vpop.permute.xlu0 %1578
        %1580 = vrot.lane.b32.xlu0 %v1572, 122
        %v1581 = vpop.permute.xlu0 %1580
        %v1582 = vrot.slane %v1577, 4
        %v1583 = vrot.slane %v1579, 4
        %v1584 = vrot.slane %v1581, 4
        %v1585 = vsel %vm635, %v1582, %v1583
        %v1586 = vsel %vm929, %v1577, %v1585
        %v1587 = vsel %vm635, %v1583, %v1584
        %v1588 = vsel %vm929, %v1579, %v1587
        %1591 = vst [vmem:[#allocation4 + $0xd0] sm:$0xff] %v1586
        %1592 = vst [vmem:[#allocation4 + $0xd8] sm:$0xff] %v1588
        %v1593 = vld [vmem:[#allocation3 + $0x4] sm:$0xff]
        %v1594 = vld [vmem:[#allocation3 + $0xc] sm:$0xff]
        %v1595 = vld [vmem:[#allocation3 + $0x14] sm:$0xf]
        %1599 = vrot.lane.b32.xlu0 %v1593, 121
        %v1600 = vpop.permute.xlu0 %1599
        %1601 = vrot.lane.b32.xlu0 %v1594, 121
        %v1602 = vpop.permute.xlu0 %1601
        %1603 = vrot.lane.b32.xlu0 %v1595, 121
        %v1604 = vpop.permute.xlu0 %1603
        %v1605 = vrot.slane %v1600, 4
        %v1606 = vrot.slane %v1602, 4
        %v1607 = vrot.slane %v1604, 4
        %v1608 = vsel %vm635, %v1605, %v1606
        %v1609 = vsel %vm953, %v1600, %v1608
        %v1610 = vsel %vm635, %v1606, %v1607
        %v1611 = vsel %vm953, %v1602, %v1610
        %1614 = vst [vmem:[#allocation4 + $0xe0] sm:$0xff] %v1609
        %1615 = vst [vmem:[#allocation4 + $0xe8] sm:$0xff] %v1611
        %v1616 = vld [vmem:[%s2] sm:$0xf]
        %v1617 = vld [vmem:[#allocation4] sm:$0xff]
        %v1618 = vld [vmem:[#allocation4 + $0x8] sm:$0xff]
        %v1619 = vld [vmem:[#allocation4 + $0x10] sm:$0xff]
        %v1620 = vld [vmem:[#allocation4 + $0x18] sm:$0xff]
        %v1621 = vld [vmem:[#allocation4 + $0x20] sm:$0xff]
        %v1622 = vld [vmem:[#allocation4 + $0x28] sm:$0xff]
        %v1623 = vld [vmem:[#allocation4 + $0x30] sm:$0xff]
        %v1624 = vld [vmem:[#allocation4 + $0x38] sm:$0xff]
        %v1625 = vld [vmem:[#allocation4 + $0x40] sm:$0xff]
        %v1626 = vld [vmem:[#allocation4 + $0x48] sm:$0xff]
        %v1627 = vld [vmem:[#allocation4 + $0x50] sm:$0xff]
        %v1628 = vld [vmem:[#allocation4 + $0x58] sm:$0xff]
        %v1629 = vld [vmem:[#allocation4 + $0x60] sm:$0xff]
        %v1630 = vld [vmem:[#allocation4 + $0x68] sm:$0xff]
        %v1631 = vld [vmem:[#allocation4 + $0x70] sm:$0xff]
        %v1632 = vld [vmem:[#allocation4 + $0x78] sm:$0xff]
        %v1633 = vld [vmem:[#allocation4 + $0x80] sm:$0xff]
        %v1634 = vld [vmem:[#allocation4 + $0x88] sm:$0xff]
        %v1635 = vld [vmem:[#allocation4 + $0x90] sm:$0xff]
        %v1636 = vld [vmem:[#allocation4 + $0x98] sm:$0xff]
        %v1637 = vld [vmem:[#allocation4 + $0xa0] sm:$0xff]
        %v1638 = vld [vmem:[#allocation4 + $0xa8] sm:$0xff]
        %v1639 = vld [vmem:[#allocation4 + $0xb0] sm:$0xff]
        %v1640 = vld [vmem:[#allocation4 + $0xb8] sm:$0xff]
        %v1641 = vld [vmem:[#allocation4 + $0xc0] sm:$0xff]
        %v1642 = vld [vmem:[#allocation4 + $0xc8] sm:$0xff]
        %v1643 = vld [vmem:[#allocation4 + $0xd0] sm:$0xff]
        %v1644 = vld [vmem:[#allocation4 + $0xd8] sm:$0xff]
        %v1645 = vld [vmem:[#allocation4 + $0xe0] sm:$0xff]
        %v1646 = vld [vmem:[#allocation4 + $0xe8] sm:$0xff]
        %v1677 = vunpack.c.l.b16 %v1617
        %v1678 = vunpack.c.h.b16 %v1617
        %v1679 = vunpack.c.l.b16 %v1618
        %v1680 = vunpack.c.h.b16 %v1618
        %v1681 = vunpack.c.l.b16 %v1619
        %v1682 = vunpack.c.h.b16 %v1619
        %v1683 = vunpack.c.l.b16 %v1620
        %v1684 = vunpack.c.h.b16 %v1620
        %v1685 = vunpack.c.l.b16 %v1621
        %v1686 = vunpack.c.h.b16 %v1621
        %v1687 = vunpack.c.l.b16 %v1622
        %v1688 = vunpack.c.h.b16 %v1622
        %v1689 = vunpack.c.l.b16 %v1623
        %v1690 = vunpack.c.h.b16 %v1623
        %v1691 = vunpack.c.l.b16 %v1624
        %v1692 = vunpack.c.h.b16 %v1624
        %v1693 = vunpack.c.l.b16 %v1625
        %v1694 = vunpack.c.h.b16 %v1625
        %v1695 = vunpack.c.l.b16 %v1626
        %v1696 = vunpack.c.h.b16 %v1626
        %v1697 = vunpack.c.l.b16 %v1627
        %v1698 = vunpack.c.h.b16 %v1627
        %v1699 = vunpack.c.l.b16 %v1628
        %v1700 = vunpack.c.h.b16 %v1628
        %v1701 = vunpack.c.l.b16 %v1629
        %v1702 = vunpack.c.h.b16 %v1629
        %v1703 = vunpack.c.l.b16 %v1630
        %v1704 = vunpack.c.h.b16 %v1630
        %v1705 = vunpack.c.l.b16 %v1631
        %v1706 = vunpack.c.h.b16 %v1631
        %v1707 = vunpack.c.l.b16 %v1632
        %v1708 = vunpack.c.h.b16 %v1632
        %v1709 = vunpack.c.l.b16 %v1633
        %v1710 = vunpack.c.h.b16 %v1633
        %v1711 = vunpack.c.l.b16 %v1634
        %v1712 = vunpack.c.h.b16 %v1634
        %v1713 = vunpack.c.l.b16 %v1635
        %v1714 = vunpack.c.h.b16 %v1635
        %v1715 = vunpack.c.l.b16 %v1636
        %v1716 = vunpack.c.h.b16 %v1636
        %v1717 = vunpack.c.l.b16 %v1637
        %v1718 = vunpack.c.h.b16 %v1637
        %v1719 = vunpack.c.l.b16 %v1638
        %v1720 = vunpack.c.h.b16 %v1638
        %v1721 = vunpack.c.l.b16 %v1639
        %v1722 = vunpack.c.h.b16 %v1639
        %v1723 = vunpack.c.l.b16 %v1640
        %v1724 = vunpack.c.h.b16 %v1640
        %v1725 = vunpack.c.l.b16 %v1641
        %v1726 = vunpack.c.h.b16 %v1641
        %v1727 = vunpack.c.l.b16 %v1642
        %v1728 = vunpack.c.h.b16 %v1642
        %v1729 = vunpack.c.l.b16 %v1643
        %v1730 = vunpack.c.h.b16 %v1643
        %v1731 = vunpack.c.l.b16 %v1644
        %v1732 = vunpack.c.h.b16 %v1644
        %v1733 = vunpack.c.l.b16 %v1645
        %v1734 = vunpack.c.h.b16 %v1645
        %v1735 = vunpack.c.l.b16 %v1646
        %v1736 = vunpack.c.h.b16 %v1646
        %v1737 = vpack.c.b16 %v1681, %v1677
        %v1738 = vpack.c.b16 %v1682, %v1678
        %v1739 = vpack.c.b16 %v1683, %v1679
        %v1740 = vpack.c.b16 %v1684, %v1680
        %v1741 = vpack.c.b16 %v1689, %v1685
        %v1742 = vpack.c.b16 %v1690, %v1686
        %v1743 = vpack.c.b16 %v1691, %v1687
        %v1744 = vpack.c.b16 %v1692, %v1688
        %v1745 = vpack.c.b16 %v1697, %v1693
        %v1746 = vpack.c.b16 %v1698, %v1694
        %v1747 = vpack.c.b16 %v1699, %v1695
        %v1748 = vpack.c.b16 %v1700, %v1696
        %v1749 = vpack.c.b16 %v1705, %v1701
        %v1750 = vpack.c.b16 %v1706, %v1702
        %v1751 = vpack.c.b16 %v1707, %v1703
        %v1752 = vpack.c.b16 %v1708, %v1704
        %v1753 = vpack.c.b16 %v1713, %v1709
        %v1754 = vpack.c.b16 %v1714, %v1710
        %v1755 = vpack.c.b16 %v1715, %v1711
        %v1756 = vpack.c.b16 %v1716, %v1712
        %v1757 = vpack.c.b16 %v1721, %v1717
        %v1758 = vpack.c.b16 %v1722, %v1718
        %v1759 = vpack.c.b16 %v1723, %v1719
        %v1760 = vpack.c.b16 %v1724, %v1720
        %v1761 = vpack.c.b16 %v1729, %v1725
        %v1762 = vpack.c.b16 %v1730, %v1726
        %v1763 = vpack.c.b16 %v1731, %v1727
        %v1764 = vpack.c.b16 %v1732, %v1728
        %v1765 = vpack.c.b16 %v1733, %v1733
        %v1766 = vpack.c.b16 %v1734, %v1734
        %v1767 = vpack.c.b16 %v1735, %v1735
        %v1768 = vpack.c.b16 %v1736, %v1736
        %v1798 = vsel %vm1142, %v1616, 0
        %v1801 = vsel %vm1146, %v1765, 0
        %v1804 = vsel %vm1146, %v1766, 0
        %v1807 = vsel %vm1146, %v1767, 0
        %v1810 = vsel %vm1146, %v1768, 0
        %1812 = vmatprep.subr.bf16.mxu0 %v1804
        %1813 = vmatpush1.bf16.msra.mxu0 %v1801
        %1814 = vmatprep.subr.bf16.mxu0 %v1762
        %1815 = vmatpush1.bf16.msra.mxu0 %v1761
        %1816 = vmatprep.subr.bf16.mxu0 %v1758
        %1817 = vmatpush1.bf16.msra.mxu0 %v1757
        %1818 = vmatprep.subr.bf16.mxu0 %v1754
        %1819 = vmatpush1.bf16.msra.mxu0 %v1753
        %1820 = vmatprep.subr.bf16.mxu0 %v1750
        %1821 = vmatpush1.bf16.msra.mxu0 %v1749
        %1822 = vmatprep.subr.bf16.mxu0 %v1746
        %1823 = vmatpush1.bf16.msra.mxu0 %v1745
        %1824 = vmatprep.subr.bf16.mxu0 %v1742
        %1825 = vmatpush1.bf16.msra.mxu0 %v1741
        %1826 = vmatprep.subr.bf16.mxu0 %v1738
        %1827 = vmatpush1.bf16.msra.mxu0 %v1737
        %1828 = vmatprep.subr.bf16.mxu0 0
        %1829 = vmatpush2.bf16.msra.mxu0 0
        %1830 = vmatprep.subr.bf16.mxu0 0
        %1831 = vmatpush2.bf16.msra.mxu0 0
        %1832 = vmatprep.subr.bf16.mxu0 0
        %1833 = vmatpush2.bf16.msra.mxu0 0
        %1834 = vmatprep.subr.bf16.mxu0 0
        %1835 = vmatpush2.bf16.msra.mxu0 0
        %1836 = vmatprep.subr.bf16.mxu0 0
        %1837 = vmatpush2.bf16.msra.mxu0 0
        %1838 = vmatprep.subr.bf16.mxu0 0
        %1839 = vmatpush2.bf16.msra.mxu0 0
        %1840 = vmatprep.subr.bf16.mxu0 0
        %1841 = vmatpush2.bf16.msra.mxu0 0
        %1842 = vmatprep.subr.bf16.mxu0 0
        %1843 = vmatpush2.bf16.msra.mxu0 0
        %1844 = vmatprep.mubr.bf16.mxu0 0
        %1845 = vmatmul.mubr.bf16.gmra.mxu0 %v1798
        %v1846 = vpop.f32.mrf.mxu0
        %v1847 = vadd.f32 0.0, %v1846
        %v1848 = vpop.f32.mrf.mxu0
        %v1849 = vadd.f32 0.0, %v1848
        %v1850 = vpop.f32.mrf.mxu0
        %v1851 = vpop.f32.mrf.mxu0
        %1852 = vdwg.mxu0
        %1853 = vmatprep.subr.bf16.mxu0 %v1810
        %1854 = vmatpush1.bf16.msra.mxu0 %v1807
        %1855 = vmatprep.subr.bf16.mxu0 %v1764
        %1856 = vmatpush1.bf16.msra.mxu0 %v1763
        %1857 = vmatprep.subr.bf16.mxu0 %v1760
        %1858 = vmatpush1.bf16.msra.mxu0 %v1759
        %1859 = vmatprep.subr.bf16.mxu0 %v1756
        %1860 = vmatpush1.bf16.msra.mxu0 %v1755
        %1861 = vmatprep.subr.bf16.mxu0 %v1752
        %1862 = vmatpush1.bf16.msra.mxu0 %v1751
        %1863 = vmatprep.subr.bf16.mxu0 %v1748
        %1864 = vmatpush1.bf16.msra.mxu0 %v1747
        %1865 = vmatprep.subr.bf16.mxu0 %v1744
        %1866 = vmatpush1.bf16.msra.mxu0 %v1743
        %1867 = vmatprep.subr.bf16.mxu0 %v1740
        %1868 = vmatpush1.bf16.msra.mxu0 %v1739
        %1869 = vmatprep.subr.bf16.mxu0 0
        %1870 = vmatpush2.bf16.msra.mxu0 0
        %1871 = vmatprep.subr.bf16.mxu0 0
        %1872 = vmatpush2.bf16.msra.mxu0 0
        %1873 = vmatprep.subr.bf16.mxu0 0
        %1874 = vmatpush2.bf16.msra.mxu0 0
        %1875 = vmatprep.subr.bf16.mxu0 0
        %1876 = vmatpush2.bf16.msra.mxu0 0
        %1877 = vmatprep.subr.bf16.mxu0 0
        %1878 = vmatpush2.bf16.msra.mxu0 0
        %1879 = vmatprep.subr.bf16.mxu0 0
        %1880 = vmatpush2.bf16.msra.mxu0 0
        %1881 = vmatprep.subr.bf16.mxu0 0
        %1882 = vmatpush2.bf16.msra.mxu0 0
        %1883 = vmatprep.subr.bf16.mxu0 0
        %1884 = vmatpush2.bf16.msra.mxu0 0
        %1885 = vmatprep.mubr.bf16.mxu0 0
        %1886 = vmatmul.mubr.bf16.gmra.mxu0 %v1798
        %v1887 = vpop.f32.mrf.mxu0
        %v1888 = vadd.f32 0.0, %v1887
        %v1889 = vpop.f32.mrf.mxu0
        %v1890 = vadd.f32 0.0, %v1889
        %v1891 = vpop.f32.mrf.mxu0
        %v1892 = vpop.f32.mrf.mxu0
        %1893 = vdwg.mxu0
        %v1894 = vld [vmem:[%s10] sm:$0xff]
        %1896 = vset.pattern.permute.xlu0 0
        %1897 = vperm.xlu0 %1896, %v1894
        %v1898 = vpop.permute.xlu0 %1897
        %v1900 = vmul.f32 %v1847, %v1898
        %v1901 = vmul.f32 %v1849, %v1898
        %v1902 = vmul.f32 %v1888, %v1898
        %v1903 = vmul.f32 %v1890, %v1898
        %1904 = vset.pattern.permute.xlu0 1
        %1905 = vperm.xlu0 %1904, %v1894
        %v1906 = vpop.permute.xlu0 %1905
        %v1908 = vadd.f32 %v1900, %v1906
        %v1909 = vadd.f32 %v1901, %v1906
        %v1910 = vadd.f32 %v1902, %v1906
        %v1911 = vadd.f32 %v1903, %v1906
        %vm1912 = vcmp.gt.f32.partialorder %v1908, 0.0
        %vm1913 = vcmp.gt.f32.partialorder %v1909, 0.0
        %vm1914 = vcmp.gt.f32.partialorder %v1910, 0.0
        %vm1915 = vcmp.gt.f32.partialorder %v1911, 0.0
        %v1916 = vmul.f32 %v1908, 0.1
        %v1917 = vmul.f32 %v1909, 0.1
        %v1918 = vmul.f32 %v1910, 0.1
        %v1919 = vmul.f32 %v1911, 0.1
        %v1920 = vsel %vm1912, %v1908, %v1916
        %v1921 = vsel %vm1913, %v1909, %v1917
        %v1922 = vsel %vm1914, %v1910, %v1918
        %v1923 = vsel %vm1915, %v1911, %v1919
        %v1924 = vpack.c.bf16 %v1920, %v1920
        %v1925 = vpack.c.bf16 %v1921, %v1921
        %v1926 = vpack.c.bf16 %v1922, %v1922
        %v1927 = vpack.c.bf16 %v1923, %v1923
        %v1932 = vunpack.c.l.b16 %v1924
        %v1933 = vunpack.c.l.b16 %v1925
        %v1934 = vunpack.c.l.b16 %v1926
        %v1935 = vunpack.c.l.b16 %v1927
        %v1936 = vpack.c.b16 %v1933, %v1932
        %v1937 = vpack.c.b16 %v1935, %v1934
        %1940 = vst [vmem:[#allocation2 + $0x4] sm:$0xff] %v1936
        %1941 = vst [vmem:[#allocation2 + $0xc] sm:$0xff] %v1937
        %1942 = vst [vmem:[#allocation2 + $0x14] sm:$0xf] 0
        %v1943 = vld [vmem:[#allocation2] sm:$0xff]
        %v1944 = vld [vmem:[#allocation2 + $0x8] sm:$0xff]
        %v1945 = vld [vmem:[#allocation2 + $0x10] sm:$0xf]
        %1949 = vrot.lane.b32.xlu0 %v1943, 7
        %v1950 = vpop.permute.xlu0 %1949
        %1951 = vrot.lane.b32.xlu0 %v1944, 7
        %v1952 = vpop.permute.xlu0 %1951
        %1953 = vrot.lane.b32.xlu0 %v1945, 7
        %v1954 = vpop.permute.xlu0 %1953
        %v1955 = vrot.slane %v1950, 4
        %v1956 = vrot.slane %v1952, 4
        %v1957 = vrot.slane %v1954, 4
        %v1958 = vsel %vm635, %v1955, %v1956
        %v1959 = vsel %vm637, %v1950, %v1958
        %v1960 = vsel %vm635, %v1956, %v1957
        %v1961 = vsel %vm637, %v1952, %v1960
        %1964 = vst [vmem:[#allocation4] sm:$0xff] %v1959
        %1965 = vst [vmem:[#allocation4 + $0x8] sm:$0xff] %v1961
        %v1966 = vld [vmem:[#allocation2] sm:$0xff]
        %v1967 = vld [vmem:[#allocation2 + $0x8] sm:$0xff]
        %v1968 = vld [vmem:[#allocation2 + $0x10] sm:$0xf]
        %1972 = vrot.lane.b32.xlu0 %v1966, 6
        %v1973 = vpop.permute.xlu0 %1972
        %1974 = vrot.lane.b32.xlu0 %v1967, 6
        %v1975 = vpop.permute.xlu0 %1974
        %1976 = vrot.lane.b32.xlu0 %v1968, 6
        %v1977 = vpop.permute.xlu0 %1976
        %v1978 = vrot.slane %v1973, 4
        %v1979 = vrot.slane %v1975, 4
        %v1980 = vrot.slane %v1977, 4
        %v1981 = vsel %vm635, %v1978, %v1979
        %v1982 = vsel %vm661, %v1973, %v1981
        %v1983 = vsel %vm635, %v1979, %v1980
        %v1984 = vsel %vm661, %v1975, %v1983
        %1987 = vst [vmem:[#allocation4 + $0x10] sm:$0xff] %v1982
        %1988 = vst [vmem:[#allocation4 + $0x18] sm:$0xff] %v1984
        %v1989 = vld [vmem:[#allocation2] sm:$0xff]
        %v1990 = vld [vmem:[#allocation2 + $0x8] sm:$0xff]
        %v1991 = vld [vmem:[#allocation2 + $0x10] sm:$0xf]
        %1995 = vrot.lane.b32.xlu0 %v1989, 5
        %v1996 = vpop.permute.xlu0 %1995
        %1997 = vrot.lane.b32.xlu0 %v1990, 5
        %v1998 = vpop.permute.xlu0 %1997
        %1999 = vrot.lane.b32.xlu0 %v1991, 5
        %v2000 = vpop.permute.xlu0 %1999
        %v2001 = vrot.slane %v1996, 4
        %v2002 = vrot.slane %v1998, 4
        %v2003 = vrot.slane %v2000, 4
        %v2004 = vsel %vm635, %v2001, %v2002
        %v2005 = vsel %vm685, %v1996, %v2004
        %v2006 = vsel %vm635, %v2002, %v2003
        %v2007 = vsel %vm685, %v1998, %v2006
        %2010 = vst [vmem:[#allocation4 + $0x20] sm:$0xff] %v2005
        %2011 = vst [vmem:[#allocation4 + $0x28] sm:$0xff] %v2007
        %v2012 = vld [vmem:[#allocation2] sm:$0xff]
        %v2013 = vld [vmem:[#allocation2 + $0x8] sm:$0xff]
        %v2014 = vld [vmem:[#allocation2 + $0x10] sm:$0xf]
        %2018 = vrot.lane.b32.xlu0 %v2012, 4
        %v2019 = vpop.permute.xlu0 %2018
        %2020 = vrot.lane.b32.xlu0 %v2013, 4
        %v2021 = vpop.permute.xlu0 %2020
        %2022 = vrot.lane.b32.xlu0 %v2014, 4
        %v2023 = vpop.permute.xlu0 %2022
        %v2024 = vrot.slane %v2019, 4
        %v2025 = vrot.slane %v2021, 4
        %v2026 = vrot.slane %v2023, 4
        %v2027 = vsel %vm635, %v2024, %v2025
        %v2028 = vsel %vm709, %v2019, %v2027
        %v2029 = vsel %vm635, %v2025, %v2026
        %v2030 = vsel %vm709, %v2021, %v2029
        %2033 = vst [vmem:[#allocation4 + $0x30] sm:$0xff] %v2028
        %2034 = vst [vmem:[#allocation4 + $0x38] sm:$0xff] %v2030
        %v2035 = vld [vmem:[#allocation2] sm:$0xff]
        %v2036 = vld [vmem:[#allocation2 + $0x8] sm:$0xff]
        %v2037 = vld [vmem:[#allocation2 + $0x10] sm:$0xf]
        %2041 = vrot.lane.b32.xlu0 %v2035, 3
        %v2042 = vpop.permute.xlu0 %2041
        %2043 = vrot.lane.b32.xlu0 %v2036, 3
        %v2044 = vpop.permute.xlu0 %2043
        %2045 = vrot.lane.b32.xlu0 %v2037, 3
        %v2046 = vpop.permute.xlu0 %2045
        %v2047 = vrot.slane %v2042, 4
        %v2048 = vrot.slane %v2044, 4
        %v2049 = vrot.slane %v2046, 4
        %v2050 = vsel %vm635, %v2047, %v2048
        %v2051 = vsel %vm733, %v2042, %v2050
        %v2052 = vsel %vm635, %v2048, %v2049
        %v2053 = vsel %vm733, %v2044, %v2052
        %2056 = vst [vmem:[#allocation4 + $0x40] sm:$0xff] %v2051
        %2057 = vst [vmem:[#allocation4 + $0x48] sm:$0xff] %v2053
        %v2058 = vld [vmem:[#allocation2] sm:$0xff]
        %v2059 = vld [vmem:[#allocation2 + $0x8] sm:$0xff]
        %v2060 = vld [vmem:[#allocation2 + $0x10] sm:$0xf]
        %2064 = vrot.lane.b32.xlu0 %v2058, 2
        %v2065 = vpop.permute.xlu0 %2064
        %2066 = vrot.lane.b32.xlu0 %v2059, 2
        %v2067 = vpop.permute.xlu0 %2066
        %2068 = vrot.lane.b32.xlu0 %v2060, 2
        %v2069 = vpop.permute.xlu0 %2068
        %v2070 = vrot.slane %v2065, 4
        %v2071 = vrot.slane %v2067, 4
        %v2072 = vrot.slane %v2069, 4
        %v2073 = vsel %vm635, %v2070, %v2071
        %v2074 = vsel %vm757, %v2065, %v2073
        %v2075 = vsel %vm635, %v2071, %v2072
        %v2076 = vsel %vm757, %v2067, %v2075
        %2079 = vst [vmem:[#allocation4 + $0x50] sm:$0xff] %v2074
        %2080 = vst [vmem:[#allocation4 + $0x58] sm:$0xff] %v2076
        %v2081 = vld [vmem:[#allocation2] sm:$0xff]
        %v2082 = vld [vmem:[#allocation2 + $0x8] sm:$0xff]
        %v2083 = vld [vmem:[#allocation2 + $0x10] sm:$0xf]
        %2087 = vrot.lane.b32.xlu0 %v2081, 1
        %v2088 = vpop.permute.xlu0 %2087
        %2089 = vrot.lane.b32.xlu0 %v2082, 1
        %v2090 = vpop.permute.xlu0 %2089
        %2091 = vrot.lane.b32.xlu0 %v2083, 1
        %v2092 = vpop.permute.xlu0 %2091
        %v2093 = vrot.slane %v2088, 4
        %v2094 = vrot.slane %v2090, 4
        %v2095 = vrot.slane %v2092, 4
        %v2096 = vsel %vm635, %v2093, %v2094
        %v2097 = vsel %vm781, %v2088, %v2096
        %v2098 = vsel %vm635, %v2094, %v2095
        %v2099 = vsel %vm781, %v2090, %v2098
        %2102 = vst [vmem:[#allocation4 + $0x60] sm:$0xff] %v2097
        %2103 = vst [vmem:[#allocation4 + $0x68] sm:$0xff] %v2099
        %v2104 = vld [vmem:[#allocation2 + $0x4] sm:$0xff]
        %v2105 = vld [vmem:[#allocation2 + $0xc] sm:$0xff]
        %2106 = vst [vmem:[#allocation4 + $0x70] sm:$0xff] %v2104
        %2107 = vst [vmem:[#allocation4 + $0x78] sm:$0xff] %v2105
        %v2108 = vld [vmem:[#allocation2 + $0x4] sm:$0xff]
        %v2109 = vld [vmem:[#allocation2 + $0xc] sm:$0xff]
        %v2110 = vld [vmem:[#allocation2 + $0x14] sm:$0xf]
        %2114 = vrot.lane.b32.xlu0 %v2108, 127
        %v2115 = vpop.permute.xlu0 %2114
        %2116 = vrot.lane.b32.xlu0 %v2109, 127
        %v2117 = vpop.permute.xlu0 %2116
        %2118 = vrot.lane.b32.xlu0 %v2110, 127
        %v2119 = vpop.permute.xlu0 %2118
        %v2120 = vrot.slane %v2115, 4
        %v2121 = vrot.slane %v2117, 4
        %v2122 = vrot.slane %v2119, 4
        %v2123 = vsel %vm635, %v2120, %v2121
        %v2124 = vsel %vm809, %v2115, %v2123
        %v2125 = vsel %vm635, %v2121, %v2122
        %v2126 = vsel %vm809, %v2117, %v2125
        %2129 = vst [vmem:[#allocation4 + $0x80] sm:$0xff] %v2124
        %2130 = vst [vmem:[#allocation4 + $0x88] sm:$0xff] %v2126
        %v2131 = vld [vmem:[#allocation2 + $0x4] sm:$0xff]
        %v2132 = vld [vmem:[#allocation2 + $0xc] sm:$0xff]
        %v2133 = vld [vmem:[#allocation2 + $0x14] sm:$0xf]
        %2137 = vrot.lane.b32.xlu0 %v2131, 126
        %v2138 = vpop.permute.xlu0 %2137
        %2139 = vrot.lane.b32.xlu0 %v2132, 126
        %v2140 = vpop.permute.xlu0 %2139
        %2141 = vrot.lane.b32.xlu0 %v2133, 126
        %v2142 = vpop.permute.xlu0 %2141
        %v2143 = vrot.slane %v2138, 4
        %v2144 = vrot.slane %v2140, 4
        %v2145 = vrot.slane %v2142, 4
        %v2146 = vsel %vm635, %v2143, %v2144
        %v2147 = vsel %vm833, %v2138, %v2146
        %v2148 = vsel %vm635, %v2144, %v2145
        %v2149 = vsel %vm833, %v2140, %v2148
        %2152 = vst [vmem:[#allocation4 + $0x90] sm:$0xff] %v2147
        %2153 = vst [vmem:[#allocation4 + $0x98] sm:$0xff] %v2149
        %v2154 = vld [vmem:[#allocation2 + $0x4] sm:$0xff]
        %v2155 = vld [vmem:[#allocation2 + $0xc] sm:$0xff]
        %v2156 = vld [vmem:[#allocation2 + $0x14] sm:$0xf]
        %2160 = vrot.lane.b32.xlu0 %v2154, 125
        %v2161 = vpop.permute.xlu0 %2160
        %2162 = vrot.lane.b32.xlu0 %v2155, 125
        %v2163 = vpop.permute.xlu0 %2162
        %2164 = vrot.lane.b32.xlu0 %v2156, 125
        %v2165 = vpop.permute.xlu0 %2164
        %v2166 = vrot.slane %v2161, 4
        %v2167 = vrot.slane %v2163, 4
        %v2168 = vrot.slane %v2165, 4
        %v2169 = vsel %vm635, %v2166, %v2167
        %v2170 = vsel %vm857, %v2161, %v2169
        %v2171 = vsel %vm635, %v2167, %v2168
        %v2172 = vsel %vm857, %v2163, %v2171
        %2175 = vst [vmem:[#allocation4 + $0xa0] sm:$0xff] %v2170
        %2176 = vst [vmem:[#allocation4 + $0xa8] sm:$0xff] %v2172
        %v2177 = vld [vmem:[#allocation2 + $0x4] sm:$0xff]
        %v2178 = vld [vmem:[#allocation2 + $0xc] sm:$0xff]
        %v2179 = vld [vmem:[#allocation2 + $0x14] sm:$0xf]
        %2183 = vrot.lane.b32.xlu0 %v2177, 124
        %v2184 = vpop.permute.xlu0 %2183
        %2185 = vrot.lane.b32.xlu0 %v2178, 124
        %v2186 = vpop.permute.xlu0 %2185
        %2187 = vrot.lane.b32.xlu0 %v2179, 124
        %v2188 = vpop.permute.xlu0 %2187
        %v2189 = vrot.slane %v2184, 4
        %v2190 = vrot.slane %v2186, 4
        %v2191 = vrot.slane %v2188, 4
        %v2192 = vsel %vm635, %v2189, %v2190
        %v2193 = vsel %vm881, %v2184, %v2192
        %v2194 = vsel %vm635, %v2190, %v2191
        %v2195 = vsel %vm881, %v2186, %v2194
        %2198 = vst [vmem:[#allocation4 + $0xb0] sm:$0xff] %v2193
        %2199 = vst [vmem:[#allocation4 + $0xb8] sm:$0xff] %v2195
        %v2200 = vld [vmem:[#allocation2 + $0x4] sm:$0xff]
        %v2201 = vld [vmem:[#allocation2 + $0xc] sm:$0xff]
        %v2202 = vld [vmem:[#allocation2 + $0x14] sm:$0xf]
        %2206 = vrot.lane.b32.xlu0 %v2200, 123
        %v2207 = vpop.permute.xlu0 %2206
        %2208 = vrot.lane.b32.xlu0 %v2201, 123
        %v2209 = vpop.permute.xlu0 %2208
        %2210 = vrot.lane.b32.xlu0 %v2202, 123
        %v2211 = vpop.permute.xlu0 %2210
        %v2212 = vrot.slane %v2207, 4
        %v2213 = vrot.slane %v2209, 4
        %v2214 = vrot.slane %v2211, 4
        %v2215 = vsel %vm635, %v2212, %v2213
        %v2216 = vsel %vm905, %v2207, %v2215
        %v2217 = vsel %vm635, %v2213, %v2214
        %v2218 = vsel %vm905, %v2209, %v2217
        %2221 = vst [vmem:[#allocation4 + $0xc0] sm:$0xff] %v2216
        %2222 = vst [vmem:[#allocation4 + $0xc8] sm:$0xff] %v2218
        %v2223 = vld [vmem:[#allocation2 + $0x4] sm:$0xff]
        %v2224 = vld [vmem:[#allocation2 + $0xc] sm:$0xff]
        %v2225 = vld [vmem:[#allocation2 + $0x14] sm:$0xf]
        %2229 = vrot.lane.b32.xlu0 %v2223, 122
        %v2230 = vpop.permute.xlu0 %2229
        %2231 = vrot.lane.b32.xlu0 %v2224, 122
        %v2232 = vpop.permute.xlu0 %2231
        %2233 = vrot.lane.b32.xlu0 %v2225, 122
        %v2234 = vpop.permute.xlu0 %2233
        %v2235 = vrot.slane %v2230, 4
        %v2236 = vrot.slane %v2232, 4
        %v2237 = vrot.slane %v2234, 4
        %v2238 = vsel %vm635, %v2235, %v2236
        %v2239 = vsel %vm929, %v2230, %v2238
        %v2240 = vsel %vm635, %v2236, %v2237
        %v2241 = vsel %vm929, %v2232, %v2240
        %2244 = vst [vmem:[#allocation4 + $0xd0] sm:$0xff] %v2239
        %2245 = vst [vmem:[#allocation4 + $0xd8] sm:$0xff] %v2241
        %v2246 = vld [vmem:[#allocation2 + $0x4] sm:$0xff]
        %v2247 = vld [vmem:[#allocation2 + $0xc] sm:$0xff]
        %v2248 = vld [vmem:[#allocation2 + $0x14] sm:$0xf]
        %2252 = vrot.lane.b32.xlu0 %v2246, 121
        %v2253 = vpop.permute.xlu0 %2252
        %2254 = vrot.lane.b32.xlu0 %v2247, 121
        %v2255 = vpop.permute.xlu0 %2254
        %2256 = vrot.lane.b32.xlu0 %v2248, 121
        %v2257 = vpop.permute.xlu0 %2256
        %v2258 = vrot.slane %v2253, 4
        %v2259 = vrot.slane %v2255, 4
        %v2260 = vrot.slane %v2257, 4
        %v2261 = vsel %vm635, %v2258, %v2259
        %v2262 = vsel %vm953, %v2253, %v2261
        %v2263 = vsel %vm635, %v2259, %v2260
        %v2264 = vsel %vm953, %v2255, %v2263
        %2267 = vst [vmem:[#allocation4 + $0xe0] sm:$0xff] %v2262
        %2268 = vst [vmem:[#allocation4 + $0xe8] sm:$0xff] %v2264
        %v2269 = vld [vmem:[%s3] sm:$0xf]
        %v2270 = vld [vmem:[#allocation4] sm:$0xff]
        %v2271 = vld [vmem:[#allocation4 + $0x8] sm:$0xff]
        %v2272 = vld [vmem:[#allocation4 + $0x10] sm:$0xff]
        %v2273 = vld [vmem:[#allocation4 + $0x18] sm:$0xff]
        %v2274 = vld [vmem:[#allocation4 + $0x20] sm:$0xff]
        %v2275 = vld [vmem:[#allocation4 + $0x28] sm:$0xff]
        %v2276 = vld [vmem:[#allocation4 + $0x30] sm:$0xff]
        %v2277 = vld [vmem:[#allocation4 + $0x38] sm:$0xff]
        %v2278 = vld [vmem:[#allocation4 + $0x40] sm:$0xff]
        %v2279 = vld [vmem:[#allocation4 + $0x48] sm:$0xff]
        %v2280 = vld [vmem:[#allocation4 + $0x50] sm:$0xff]
        %v2281 = vld [vmem:[#allocation4 + $0x58] sm:$0xff]
        %v2282 = vld [vmem:[#allocation4 + $0x60] sm:$0xff]
        %v2283 = vld [vmem:[#allocation4 + $0x68] sm:$0xff]
        %v2284 = vld [vmem:[#allocation4 + $0x70] sm:$0xff]
        %v2285 = vld [vmem:[#allocation4 + $0x78] sm:$0xff]
        %v2286 = vld [vmem:[#allocation4 + $0x80] sm:$0xff]
        %v2287 = vld [vmem:[#allocation4 + $0x88] sm:$0xff]
        %v2288 = vld [vmem:[#allocation4 + $0x90] sm:$0xff]
        %v2289 = vld [vmem:[#allocation4 + $0x98] sm:$0xff]
        %v2290 = vld [vmem:[#allocation4 + $0xa0] sm:$0xff]
        %v2291 = vld [vmem:[#allocation4 + $0xa8] sm:$0xff]
        %v2292 = vld [vmem:[#allocation4 + $0xb0] sm:$0xff]
        %v2293 = vld [vmem:[#allocation4 + $0xb8] sm:$0xff]
        %v2294 = vld [vmem:[#allocation4 + $0xc0] sm:$0xff]
        %v2295 = vld [vmem:[#allocation4 + $0xc8] sm:$0xff]
        %v2296 = vld [vmem:[#allocation4 + $0xd0] sm:$0xff]
        %v2297 = vld [vmem:[#allocation4 + $0xd8] sm:$0xff]
        %v2298 = vld [vmem:[#allocation4 + $0xe0] sm:$0xff]
        %v2299 = vld [vmem:[#allocation4 + $0xe8] sm:$0xff]
        %v2330 = vunpack.c.l.b16 %v2270
        %v2331 = vunpack.c.h.b16 %v2270
        %v2332 = vunpack.c.l.b16 %v2271
        %v2333 = vunpack.c.h.b16 %v2271
        %v2334 = vunpack.c.l.b16 %v2272
        %v2335 = vunpack.c.h.b16 %v2272
        %v2336 = vunpack.c.l.b16 %v2273
        %v2337 = vunpack.c.h.b16 %v2273
        %v2338 = vunpack.c.l.b16 %v2274
        %v2339 = vunpack.c.h.b16 %v2274
        %v2340 = vunpack.c.l.b16 %v2275
        %v2341 = vunpack.c.h.b16 %v2275
        %v2342 = vunpack.c.l.b16 %v2276
        %v2343 = vunpack.c.h.b16 %v2276
        %v2344 = vunpack.c.l.b16 %v2277
        %v2345 = vunpack.c.h.b16 %v2277
        %v2346 = vunpack.c.l.b16 %v2278
        %v2347 = vunpack.c.h.b16 %v2278
        %v2348 = vunpack.c.l.b16 %v2279
        %v2349 = vunpack.c.h.b16 %v2279
        %v2350 = vunpack.c.l.b16 %v2280
        %v2351 = vunpack.c.h.b16 %v2280
        %v2352 = vunpack.c.l.b16 %v2281
        %v2353 = vunpack.c.h.b16 %v2281
        %v2354 = vunpack.c.l.b16 %v2282
        %v2355 = vunpack.c.h.b16 %v2282
        %v2356 = vunpack.c.l.b16 %v2283
        %v2357 = vunpack.c.h.b16 %v2283
        %v2358 = vunpack.c.l.b16 %v2284
        %v2359 = vunpack.c.h.b16 %v2284
        %v2360 = vunpack.c.l.b16 %v2285
        %v2361 = vunpack.c.h.b16 %v2285
        %v2362 = vunpack.c.l.b16 %v2286
        %v2363 = vunpack.c.h.b16 %v2286
        %v2364 = vunpack.c.l.b16 %v2287
        %v2365 = vunpack.c.h.b16 %v2287
        %v2366 = vunpack.c.l.b16 %v2288
        %v2367 = vunpack.c.h.b16 %v2288
        %v2368 = vunpack.c.l.b16 %v2289
        %v2369 = vunpack.c.h.b16 %v2289
        %v2370 = vunpack.c.l.b16 %v2290
        %v2371 = vunpack.c.h.b16 %v2290
        %v2372 = vunpack.c.l.b16 %v2291
        %v2373 = vunpack.c.h.b16 %v2291
        %v2374 = vunpack.c.l.b16 %v2292
        %v2375 = vunpack.c.h.b16 %v2292
        %v2376 = vunpack.c.l.b16 %v2293
        %v2377 = vunpack.c.h.b16 %v2293
        %v2378 = vunpack.c.l.b16 %v2294
        %v2379 = vunpack.c.h.b16 %v2294
        %v2380 = vunpack.c.l.b16 %v2295
        %v2381 = vunpack.c.h.b16 %v2295
        %v2382 = vunpack.c.l.b16 %v2296
        %v2383 = vunpack.c.h.b16 %v2296
        %v2384 = vunpack.c.l.b16 %v2297
        %v2385 = vunpack.c.h.b16 %v2297
        %v2386 = vunpack.c.l.b16 %v2298
        %v2387 = vunpack.c.h.b16 %v2298
        %v2388 = vunpack.c.l.b16 %v2299
        %v2389 = vunpack.c.h.b16 %v2299
        %v2390 = vpack.c.b16 %v2334, %v2330
        %v2391 = vpack.c.b16 %v2335, %v2331
        %v2392 = vpack.c.b16 %v2336, %v2332
        %v2393 = vpack.c.b16 %v2337, %v2333
        %v2394 = vpack.c.b16 %v2342, %v2338
        %v2395 = vpack.c.b16 %v2343, %v2339
        %v2396 = vpack.c.b16 %v2344, %v2340
        %v2397 = vpack.c.b16 %v2345, %v2341
        %v2398 = vpack.c.b16 %v2350, %v2346
        %v2399 = vpack.c.b16 %v2351, %v2347
        %v2400 = vpack.c.b16 %v2352, %v2348
        %v2401 = vpack.c.b16 %v2353, %v2349
        %v2402 = vpack.c.b16 %v2358, %v2354
        %v2403 = vpack.c.b16 %v2359, %v2355
        %v2404 = vpack.c.b16 %v2360, %v2356
        %v2405 = vpack.c.b16 %v2361, %v2357
        %v2406 = vpack.c.b16 %v2366, %v2362
        %v2407 = vpack.c.b16 %v2367, %v2363
        %v2408 = vpack.c.b16 %v2368, %v2364
        %v2409 = vpack.c.b16 %v2369, %v2365
        %v2410 = vpack.c.b16 %v2374, %v2370
        %v2411 = vpack.c.b16 %v2375, %v2371
        %v2412 = vpack.c.b16 %v2376, %v2372
        %v2413 = vpack.c.b16 %v2377, %v2373
        %v2414 = vpack.c.b16 %v2382, %v2378
        %v2415 = vpack.c.b16 %v2383, %v2379
        %v2416 = vpack.c.b16 %v2384, %v2380
        %v2417 = vpack.c.b16 %v2385, %v2381
        %v2418 = vpack.c.b16 %v2386, %v2386
        %v2419 = vpack.c.b16 %v2387, %v2387
        %v2420 = vpack.c.b16 %v2388, %v2388
        %v2421 = vpack.c.b16 %v2389, %v2389
        %v2451 = vsel %vm1142, %v2269, 0
        %v2454 = vsel %vm1146, %v2418, 0
        %v2457 = vsel %vm1146, %v2419, 0
        %v2460 = vsel %vm1146, %v2420, 0
        %v2463 = vsel %vm1146, %v2421, 0
        %2465 = vmatprep.subr.bf16.mxu0 %v2457
        %2466 = vmatpush1.bf16.msra.mxu0 %v2454
        %2467 = vmatprep.subr.bf16.mxu0 %v2415
        %2468 = vmatpush1.bf16.msra.mxu0 %v2414
        %2469 = vmatprep.subr.bf16.mxu0 %v2411
        %2470 = vmatpush1.bf16.msra.mxu0 %v2410
        %2471 = vmatprep.subr.bf16.mxu0 %v2407
        %2472 = vmatpush1.bf16.msra.mxu0 %v2406
        %2473 = vmatprep.subr.bf16.mxu0 %v2403
        %2474 = vmatpush1.bf16.msra.mxu0 %v2402
        %2475 = vmatprep.subr.bf16.mxu0 %v2399
        %2476 = vmatpush1.bf16.msra.mxu0 %v2398
        %2477 = vmatprep.subr.bf16.mxu0 %v2395
        %2478 = vmatpush1.bf16.msra.mxu0 %v2394
        %2479 = vmatprep.subr.bf16.mxu0 %v2391
        %2480 = vmatpush1.bf16.msra.mxu0 %v2390
        %2481 = vmatprep.subr.bf16.mxu0 0
        %2482 = vmatpush2.bf16.msra.mxu0 0
        %2483 = vmatprep.subr.bf16.mxu0 0
        %2484 = vmatpush2.bf16.msra.mxu0 0
        %2485 = vmatprep.subr.bf16.mxu0 0
        %2486 = vmatpush2.bf16.msra.mxu0 0
        %2487 = vmatprep.subr.bf16.mxu0 0
        %2488 = vmatpush2.bf16.msra.mxu0 0
        %2489 = vmatprep.subr.bf16.mxu0 0
        %2490 = vmatpush2.bf16.msra.mxu0 0
        %2491 = vmatprep.subr.bf16.mxu0 0
        %2492 = vmatpush2.bf16.msra.mxu0 0
        %2493 = vmatprep.subr.bf16.mxu0 0
        %2494 = vmatpush2.bf16.msra.mxu0 0
        %2495 = vmatprep.subr.bf16.mxu0 0
        %2496 = vmatpush2.bf16.msra.mxu0 0
        %2497 = vmatprep.mubr.bf16.mxu0 0
        %2498 = vmatmul.mubr.bf16.gmra.mxu0 %v2451
        %v2499 = vpop.f32.mrf.mxu0
        %v2500 = vadd.f32 0.0, %v2499
        %v2501 = vpop.f32.mrf.mxu0
        %v2502 = vadd.f32 0.0, %v2501
        %v2503 = vpop.f32.mrf.mxu0
        %v2504 = vpop.f32.mrf.mxu0
        %2505 = vdwg.mxu0
        %2506 = vmatprep.subr.bf16.mxu0 %v2463
        %2507 = vmatpush1.bf16.msra.mxu0 %v2460
        %2508 = vmatprep.subr.bf16.mxu0 %v2417
        %2509 = vmatpush1.bf16.msra.mxu0 %v2416
        %2510 = vmatprep.subr.bf16.mxu0 %v2413
        %2511 = vmatpush1.bf16.msra.mxu0 %v2412
        %2512 = vmatprep.subr.bf16.mxu0 %v2409
        %2513 = vmatpush1.bf16.msra.mxu0 %v2408
        %2514 = vmatprep.subr.bf16.mxu0 %v2405
        %2515 = vmatpush1.bf16.msra.mxu0 %v2404
        %2516 = vmatprep.subr.bf16.mxu0 %v2401
        %2517 = vmatpush1.bf16.msra.mxu0 %v2400
        %2518 = vmatprep.subr.bf16.mxu0 %v2397
        %2519 = vmatpush1.bf16.msra.mxu0 %v2396
        %2520 = vmatprep.subr.bf16.mxu0 %v2393
        %2521 = vmatpush1.bf16.msra.mxu0 %v2392
        %2522 = vmatprep.subr.bf16.mxu0 0
        %2523 = vmatpush2.bf16.msra.mxu0 0
        %2524 = vmatprep.subr.bf16.mxu0 0
        %2525 = vmatpush2.bf16.msra.mxu0 0
        %2526 = vmatprep.subr.bf16.mxu0 0
        %2527 = vmatpush2.bf16.msra.mxu0 0
        %2528 = vmatprep.subr.bf16.mxu0 0
        %2529 = vmatpush2.bf16.msra.mxu0 0
        %2530 = vmatprep.subr.bf16.mxu0 0
        %2531 = vmatpush2.bf16.msra.mxu0 0
        %2532 = vmatprep.subr.bf16.mxu0 0
        %2533 = vmatpush2.bf16.msra.mxu0 0
        %2534 = vmatprep.subr.bf16.mxu0 0
        %2535 = vmatpush2.bf16.msra.mxu0 0
        %2536 = vmatprep.subr.bf16.mxu0 0
        %2537 = vmatpush2.bf16.msra.mxu0 0
        %2538 = vmatprep.mubr.bf16.mxu0 0
        %2539 = vmatmul.mubr.bf16.gmra.mxu0 %v2451
        %v2540 = vpop.f32.mrf.mxu0
        %v2541 = vadd.f32 0.0, %v2540
        %v2542 = vpop.f32.mrf.mxu0
        %v2543 = vadd.f32 0.0, %v2542
        %v2544 = vpop.f32.mrf.mxu0
        %v2545 = vpop.f32.mrf.mxu0
        %2546 = vdwg.mxu0
        %v2547 = vld [vmem:[%s11] sm:$0xff]
        %2549 = vset.pattern.permute.xlu0 0
        %2550 = vperm.xlu0 %2549, %v2547
        %v2551 = vpop.permute.xlu0 %2550
        %v2553 = vmul.f32 %v2500, %v2551
        %v2554 = vmul.f32 %v2502, %v2551
        %v2555 = vmul.f32 %v2541, %v2551
        %v2556 = vmul.f32 %v2543, %v2551
        %2557 = vset.pattern.permute.xlu0 1
        %2558 = vperm.xlu0 %2557, %v2547
        %v2559 = vpop.permute.xlu0 %2558
        %v2561 = vadd.f32 %v2553, %v2559
        %v2562 = vadd.f32 %v2554, %v2559
        %v2563 = vadd.f32 %v2555, %v2559
        %v2564 = vadd.f32 %v2556, %v2559
        %vm2565 = vcmp.gt.f32.partialorder %v2561, 0.0
        %vm2566 = vcmp.gt.f32.partialorder %v2562, 0.0
        %vm2567 = vcmp.gt.f32.partialorder %v2563, 0.0
        %vm2568 = vcmp.gt.f32.partialorder %v2564, 0.0
        %v2569 = vmul.f32 %v2561, 0.1
        %v2570 = vmul.f32 %v2562, 0.1
        %v2571 = vmul.f32 %v2563, 0.1
        %v2572 = vmul.f32 %v2564, 0.1
        %v2573 = vsel %vm2565, %v2561, %v2569
        %v2574 = vsel %vm2566, %v2562, %v2570
        %v2575 = vsel %vm2567, %v2563, %v2571
        %v2576 = vsel %vm2568, %v2564, %v2572
        %v2577 = vpack.c.bf16 %v2573, %v2573
        %v2578 = vpack.c.bf16 %v2574, %v2574
        %v2579 = vpack.c.bf16 %v2575, %v2575
        %v2580 = vpack.c.bf16 %v2576, %v2576
        %v2585 = vunpack.c.l.b16 %v2577
        %v2586 = vunpack.c.l.b16 %v2578
        %v2587 = vunpack.c.l.b16 %v2579
        %v2588 = vunpack.c.l.b16 %v2580
        %v2589 = vpack.c.b16 %v2586, %v2585
        %v2590 = vpack.c.b16 %v2588, %v2587
        %2593 = vst [vmem:[#allocation3 + $0x4] sm:$0xff] %v2589
        %2594 = vst [vmem:[#allocation3 + $0xc] sm:$0xff] %v2590
        %2595 = vst [vmem:[#allocation3 + $0x14] sm:$0xf] 0
        %v2596 = vld [vmem:[#allocation3] sm:$0xff]
        %v2597 = vld [vmem:[#allocation3 + $0x8] sm:$0xff]
        %v2598 = vld [vmem:[#allocation3 + $0x10] sm:$0xf]
        %2602 = vrot.lane.b32.xlu0 %v2596, 7
        %v2603 = vpop.permute.xlu0 %2602
        %2604 = vrot.lane.b32.xlu0 %v2597, 7
        %v2605 = vpop.permute.xlu0 %2604
        %2606 = vrot.lane.b32.xlu0 %v2598, 7
        %v2607 = vpop.permute.xlu0 %2606
        %v2608 = vrot.slane %v2603, 4
        %v2609 = vrot.slane %v2605, 4
        %v2610 = vrot.slane %v2607, 4
        %v2611 = vsel %vm635, %v2608, %v2609
        %v2612 = vsel %vm637, %v2603, %v2611
        %v2613 = vsel %vm635, %v2609, %v2610
        %v2614 = vsel %vm637, %v2605, %v2613
        %2617 = vst [vmem:[#allocation4] sm:$0xff] %v2612
        %2618 = vst [vmem:[#allocation4 + $0x8] sm:$0xff] %v2614
        %v2619 = vld [vmem:[#allocation3] sm:$0xff]
        %v2620 = vld [vmem:[#allocation3 + $0x8] sm:$0xff]
        %v2621 = vld [vmem:[#allocation3 + $0x10] sm:$0xf]
        %2625 = vrot.lane.b32.xlu0 %v2619, 6
        %v2626 = vpop.permute.xlu0 %2625
        %2627 = vrot.lane.b32.xlu0 %v2620, 6
        %v2628 = vpop.permute.xlu0 %2627
        %2629 = vrot.lane.b32.xlu0 %v2621, 6
        %v2630 = vpop.permute.xlu0 %2629
        %v2631 = vrot.slane %v2626, 4
        %v2632 = vrot.slane %v2628, 4
        %v2633 = vrot.slane %v2630, 4
        %v2634 = vsel %vm635, %v2631, %v2632
        %v2635 = vsel %vm661, %v2626, %v2634
        %v2636 = vsel %vm635, %v2632, %v2633
        %v2637 = vsel %vm661, %v2628, %v2636
        %2640 = vst [vmem:[#allocation4 + $0x10] sm:$0xff] %v2635
        %2641 = vst [vmem:[#allocation4 + $0x18] sm:$0xff] %v2637
        %v2642 = vld [vmem:[#allocation3] sm:$0xff]
        %v2643 = vld [vmem:[#allocation3 + $0x8] sm:$0xff]
        %v2644 = vld [vmem:[#allocation3 + $0x10] sm:$0xf]
        %2648 = vrot.lane.b32.xlu0 %v2642, 5
        %v2649 = vpop.permute.xlu0 %2648
        %2650 = vrot.lane.b32.xlu0 %v2643, 5
        %v2651 = vpop.permute.xlu0 %2650
        %2652 = vrot.lane.b32.xlu0 %v2644, 5
        %v2653 = vpop.permute.xlu0 %2652
        %v2654 = vrot.slane %v2649, 4
        %v2655 = vrot.slane %v2651, 4
        %v2656 = vrot.slane %v2653, 4
        %v2657 = vsel %vm635, %v2654, %v2655
        %v2658 = vsel %vm685, %v2649, %v2657
        %v2659 = vsel %vm635, %v2655, %v2656
        %v2660 = vsel %vm685, %v2651, %v2659
        %2663 = vst [vmem:[#allocation4 + $0x20] sm:$0xff] %v2658
        %2664 = vst [vmem:[#allocation4 + $0x28] sm:$0xff] %v2660
        %v2665 = vld [vmem:[#allocation3] sm:$0xff]
        %v2666 = vld [vmem:[#allocation3 + $0x8] sm:$0xff]
        %v2667 = vld [vmem:[#allocation3 + $0x10] sm:$0xf]
        %2671 = vrot.lane.b32.xlu0 %v2665, 4
        %v2672 = vpop.permute.xlu0 %2671
        %2673 = vrot.lane.b32.xlu0 %v2666, 4
        %v2674 = vpop.permute.xlu0 %2673
        %2675 = vrot.lane.b32.xlu0 %v2667, 4
        %v2676 = vpop.permute.xlu0 %2675
        %v2677 = vrot.slane %v2672, 4
        %v2678 = vrot.slane %v2674, 4
        %v2679 = vrot.slane %v2676, 4
        %v2680 = vsel %vm635, %v2677, %v2678
        %v2681 = vsel %vm709, %v2672, %v2680
        %v2682 = vsel %vm635, %v2678, %v2679
        %v2683 = vsel %vm709, %v2674, %v2682
        %2686 = vst [vmem:[#allocation4 + $0x30] sm:$0xff] %v2681
        %2687 = vst [vmem:[#allocation4 + $0x38] sm:$0xff] %v2683
        %v2688 = vld [vmem:[#allocation3] sm:$0xff]
        %v2689 = vld [vmem:[#allocation3 + $0x8] sm:$0xff]
        %v2690 = vld [vmem:[#allocation3 + $0x10] sm:$0xf]
        %2694 = vrot.lane.b32.xlu0 %v2688, 3
        %v2695 = vpop.permute.xlu0 %2694
        %2696 = vrot.lane.b32.xlu0 %v2689, 3
        %v2697 = vpop.permute.xlu0 %2696
        %2698 = vrot.lane.b32.xlu0 %v2690, 3
        %v2699 = vpop.permute.xlu0 %2698
        %v2700 = vrot.slane %v2695, 4
        %v2701 = vrot.slane %v2697, 4
        %v2702 = vrot.slane %v2699, 4
        %v2703 = vsel %vm635, %v2700, %v2701
        %v2704 = vsel %vm733, %v2695, %v2703
        %v2705 = vsel %vm635, %v2701, %v2702
        %v2706 = vsel %vm733, %v2697, %v2705
        %2709 = vst [vmem:[#allocation4 + $0x40] sm:$0xff] %v2704
        %2710 = vst [vmem:[#allocation4 + $0x48] sm:$0xff] %v2706
        %v2711 = vld [vmem:[#allocation3] sm:$0xff]
        %v2712 = vld [vmem:[#allocation3 + $0x8] sm:$0xff]
        %v2713 = vld [vmem:[#allocation3 + $0x10] sm:$0xf]
        %2717 = vrot.lane.b32.xlu0 %v2711, 2
        %v2718 = vpop.permute.xlu0 %2717
        %2719 = vrot.lane.b32.xlu0 %v2712, 2
        %v2720 = vpop.permute.xlu0 %2719
        %2721 = vrot.lane.b32.xlu0 %v2713, 2
        %v2722 = vpop.permute.xlu0 %2721
        %v2723 = vrot.slane %v2718, 4
        %v2724 = vrot.slane %v2720, 4
        %v2725 = vrot.slane %v2722, 4
        %v2726 = vsel %vm635, %v2723, %v2724
        %v2727 = vsel %vm757, %v2718, %v2726
        %v2728 = vsel %vm635, %v2724, %v2725
        %v2729 = vsel %vm757, %v2720, %v2728
        %2732 = vst [vmem:[#allocation4 + $0x50] sm:$0xff] %v2727
        %2733 = vst [vmem:[#allocation4 + $0x58] sm:$0xff] %v2729
        %v2734 = vld [vmem:[#allocation3] sm:$0xff]
        %v2735 = vld [vmem:[#allocation3 + $0x8] sm:$0xff]
        %v2736 = vld [vmem:[#allocation3 + $0x10] sm:$0xf]
        %2740 = vrot.lane.b32.xlu0 %v2734, 1
        %v2741 = vpop.permute.xlu0 %2740
        %2742 = vrot.lane.b32.xlu0 %v2735, 1
        %v2743 = vpop.permute.xlu0 %2742
        %2744 = vrot.lane.b32.xlu0 %v2736, 1
        %v2745 = vpop.permute.xlu0 %2744
        %v2746 = vrot.slane %v2741, 4
        %v2747 = vrot.slane %v2743, 4
        %v2748 = vrot.slane %v2745, 4
        %v2749 = vsel %vm635, %v2746, %v2747
        %v2750 = vsel %vm781, %v2741, %v2749
        %v2751 = vsel %vm635, %v2747, %v2748
        %v2752 = vsel %vm781, %v2743, %v2751
        %2755 = vst [vmem:[#allocation4 + $0x60] sm:$0xff] %v2750
        %2756 = vst [vmem:[#allocation4 + $0x68] sm:$0xff] %v2752
        %v2757 = vld [vmem:[#allocation3 + $0x4] sm:$0xff]
        %v2758 = vld [vmem:[#allocation3 + $0xc] sm:$0xff]
        %2759 = vst [vmem:[#allocation4 + $0x70] sm:$0xff] %v2757
        %2760 = vst [vmem:[#allocation4 + $0x78] sm:$0xff] %v2758
        %v2761 = vld [vmem:[#allocation3 + $0x4] sm:$0xff]
        %v2762 = vld [vmem:[#allocation3 + $0xc] sm:$0xff]
        %v2763 = vld [vmem:[#allocation3 + $0x14] sm:$0xf]
        %2767 = vrot.lane.b32.xlu0 %v2761, 127
        %v2768 = vpop.permute.xlu0 %2767
        %2769 = vrot.lane.b32.xlu0 %v2762, 127
        %v2770 = vpop.permute.xlu0 %2769
        %2771 = vrot.lane.b32.xlu0 %v2763, 127
        %v2772 = vpop.permute.xlu0 %2771
        %v2773 = vrot.slane %v2768, 4
        %v2774 = vrot.slane %v2770, 4
        %v2775 = vrot.slane %v2772, 4
        %v2776 = vsel %vm635, %v2773, %v2774
        %v2777 = vsel %vm809, %v2768, %v2776
        %v2778 = vsel %vm635, %v2774, %v2775
        %v2779 = vsel %vm809, %v2770, %v2778
        %2782 = vst [vmem:[#allocation4 + $0x80] sm:$0xff] %v2777
        %2783 = vst [vmem:[#allocation4 + $0x88] sm:$0xff] %v2779
        %v2784 = vld [vmem:[#allocation3 + $0x4] sm:$0xff]
        %v2785 = vld [vmem:[#allocation3 + $0xc] sm:$0xff]
        %v2786 = vld [vmem:[#allocation3 + $0x14] sm:$0xf]
        %2790 = vrot.lane.b32.xlu0 %v2784, 126
        %v2791 = vpop.permute.xlu0 %2790
        %2792 = vrot.lane.b32.xlu0 %v2785, 126
        %v2793 = vpop.permute.xlu0 %2792
        %2794 = vrot.lane.b32.xlu0 %v2786, 126
        %v2795 = vpop.permute.xlu0 %2794
        %v2796 = vrot.slane %v2791, 4
        %v2797 = vrot.slane %v2793, 4
        %v2798 = vrot.slane %v2795, 4
        %v2799 = vsel %vm635, %v2796, %v2797
        %v2800 = vsel %vm833, %v2791, %v2799
        %v2801 = vsel %vm635, %v2797, %v2798
        %v2802 = vsel %vm833, %v2793, %v2801
        %2805 = vst [vmem:[#allocation4 + $0x90] sm:$0xff] %v2800
        %2806 = vst [vmem:[#allocation4 + $0x98] sm:$0xff] %v2802
        %v2807 = vld [vmem:[#allocation3 + $0x4] sm:$0xff]
        %v2808 = vld [vmem:[#allocation3 + $0xc] sm:$0xff]
        %v2809 = vld [vmem:[#allocation3 + $0x14] sm:$0xf]
        %2813 = vrot.lane.b32.xlu0 %v2807, 125
        %v2814 = vpop.permute.xlu0 %2813
        %2815 = vrot.lane.b32.xlu0 %v2808, 125
        %v2816 = vpop.permute.xlu0 %2815
        %2817 = vrot.lane.b32.xlu0 %v2809, 125
        %v2818 = vpop.permute.xlu0 %2817
        %v2819 = vrot.slane %v2814, 4
        %v2820 = vrot.slane %v2816, 4
        %v2821 = vrot.slane %v2818, 4
        %v2822 = vsel %vm635, %v2819, %v2820
        %v2823 = vsel %vm857, %v2814, %v2822
        %v2824 = vsel %vm635, %v2820, %v2821
        %v2825 = vsel %vm857, %v2816, %v2824
        %2828 = vst [vmem:[#allocation4 + $0xa0] sm:$0xff] %v2823
        %2829 = vst [vmem:[#allocation4 + $0xa8] sm:$0xff] %v2825
        %v2830 = vld [vmem:[#allocation3 + $0x4] sm:$0xff]
        %v2831 = vld [vmem:[#allocation3 + $0xc] sm:$0xff]
        %v2832 = vld [vmem:[#allocation3 + $0x14] sm:$0xf]
        %2836 = vrot.lane.b32.xlu0 %v2830, 124
        %v2837 = vpop.permute.xlu0 %2836
        %2838 = vrot.lane.b32.xlu0 %v2831, 124
        %v2839 = vpop.permute.xlu0 %2838
        %2840 = vrot.lane.b32.xlu0 %v2832, 124
        %v2841 = vpop.permute.xlu0 %2840
        %v2842 = vrot.slane %v2837, 4
        %v2843 = vrot.slane %v2839, 4
        %v2844 = vrot.slane %v2841, 4
        %v2845 = vsel %vm635, %v2842, %v2843
        %v2846 = vsel %vm881, %v2837, %v2845
        %v2847 = vsel %vm635, %v2843, %v2844
        %v2848 = vsel %vm881, %v2839, %v2847
        %2851 = vst [vmem:[#allocation4 + $0xb0] sm:$0xff] %v2846
        %2852 = vst [vmem:[#allocation4 + $0xb8] sm:$0xff] %v2848
        %v2853 = vld [vmem:[#allocation3 + $0x4] sm:$0xff]
        %v2854 = vld [vmem:[#allocation3 + $0xc] sm:$0xff]
        %v2855 = vld [vmem:[#allocation3 + $0x14] sm:$0xf]
        %2859 = vrot.lane.b32.xlu0 %v2853, 123
        %v2860 = vpop.permute.xlu0 %2859
        %2861 = vrot.lane.b32.xlu0 %v2854, 123
        %v2862 = vpop.permute.xlu0 %2861
        %2863 = vrot.lane.b32.xlu0 %v2855, 123
        %v2864 = vpop.permute.xlu0 %2863
        %v2865 = vrot.slane %v2860, 4
        %v2866 = vrot.slane %v2862, 4
        %v2867 = vrot.slane %v2864, 4
        %v2868 = vsel %vm635, %v2865, %v2866
        %v2869 = vsel %vm905, %v2860, %v2868
        %v2870 = vsel %vm635, %v2866, %v2867
        %v2871 = vsel %vm905, %v2862, %v2870
        %2874 = vst [vmem:[#allocation4 + $0xc0] sm:$0xff] %v2869
        %2875 = vst [vmem:[#allocation4 + $0xc8] sm:$0xff] %v2871
        %v2876 = vld [vmem:[#allocation3 + $0x4] sm:$0xff]
        %v2877 = vld [vmem:[#allocation3 + $0xc] sm:$0xff]
        %v2878 = vld [vmem:[#allocation3 + $0x14] sm:$0xf]
        %2882 = vrot.lane.b32.xlu0 %v2876, 122
        %v2883 = vpop.permute.xlu0 %2882
        %2884 = vrot.lane.b32.xlu0 %v2877, 122
        %v2885 = vpop.permute.xlu0 %2884
        %2886 = vrot.lane.b32.xlu0 %v2878, 122
        %v2887 = vpop.permute.xlu0 %2886
        %v2888 = vrot.slane %v2883, 4
        %v2889 = vrot.slane %v2885, 4
        %v2890 = vrot.slane %v2887, 4
        %v2891 = vsel %vm635, %v2888, %v2889
        %v2892 = vsel %vm929, %v2883, %v2891
        %v2893 = vsel %vm635, %v2889, %v2890
        %v2894 = vsel %vm929, %v2885, %v2893
        %2897 = vst [vmem:[#allocation4 + $0xd0] sm:$0xff] %v2892
        %2898 = vst [vmem:[#allocation4 + $0xd8] sm:$0xff] %v2894
        %v2899 = vld [vmem:[#allocation3 + $0x4] sm:$0xff]
        %v2900 = vld [vmem:[#allocation3 + $0xc] sm:$0xff]
        %v2901 = vld [vmem:[#allocation3 + $0x14] sm:$0xf]
        %2905 = vrot.lane.b32.xlu0 %v2899, 121
        %v2906 = vpop.permute.xlu0 %2905
        %2907 = vrot.lane.b32.xlu0 %v2900, 121
        %v2908 = vpop.permute.xlu0 %2907
        %2909 = vrot.lane.b32.xlu0 %v2901, 121
        %v2910 = vpop.permute.xlu0 %2909
        %v2911 = vrot.slane %v2906, 4
        %v2912 = vrot.slane %v2908, 4
        %v2913 = vrot.slane %v2910, 4
        %v2914 = vsel %vm635, %v2911, %v2912
        %v2915 = vsel %vm953, %v2906, %v2914
        %v2916 = vsel %vm635, %v2912, %v2913
        %v2917 = vsel %vm953, %v2908, %v2916
        %2920 = vst [vmem:[#allocation4 + $0xe0] sm:$0xff] %v2915
        %2921 = vst [vmem:[#allocation4 + $0xe8] sm:$0xff] %v2917
        %v2922 = vld [vmem:[%s4] sm:$0xf]
        %v2923 = vld [vmem:[%s4 + $0x4] sm:$0xf]
        %v2924 = vld [vmem:[#allocation4] sm:$0xff]
        %v2925 = vld [vmem:[#allocation4 + $0x8] sm:$0xff]
        %v2926 = vld [vmem:[#allocation4 + $0x10] sm:$0xff]
        %v2927 = vld [vmem:[#allocation4 + $0x18] sm:$0xff]
        %v2928 = vld [vmem:[#allocation4 + $0x20] sm:$0xff]
        %v2929 = vld [vmem:[#allocation4 + $0x28] sm:$0xff]
        %v2930 = vld [vmem:[#allocation4 + $0x30] sm:$0xff]
        %v2931 = vld [vmem:[#allocation4 + $0x38] sm:$0xff]
        %v2932 = vld [vmem:[#allocation4 + $0x40] sm:$0xff]
        %v2933 = vld [vmem:[#allocation4 + $0x48] sm:$0xff]
        %v2934 = vld [vmem:[#allocation4 + $0x50] sm:$0xff]
        %v2935 = vld [vmem:[#allocation4 + $0x58] sm:$0xff]
        %v2936 = vld [vmem:[#allocation4 + $0x60] sm:$0xff]
        %v2937 = vld [vmem:[#allocation4 + $0x68] sm:$0xff]
        %v2938 = vld [vmem:[#allocation4 + $0x70] sm:$0xff]
        %v2939 = vld [vmem:[#allocation4 + $0x78] sm:$0xff]
        %v2940 = vld [vmem:[#allocation4 + $0x80] sm:$0xff]
        %v2941 = vld [vmem:[#allocation4 + $0x88] sm:$0xff]
        %v2942 = vld [vmem:[#allocation4 + $0x90] sm:$0xff]
        %v2943 = vld [vmem:[#allocation4 + $0x98] sm:$0xff]
        %v2944 = vld [vmem:[#allocation4 + $0xa0] sm:$0xff]
        %v2945 = vld [vmem:[#allocation4 + $0xa8] sm:$0xff]
        %v2946 = vld [vmem:[#allocation4 + $0xb0] sm:$0xff]
        %v2947 = vld [vmem:[#allocation4 + $0xb8] sm:$0xff]
        %v2948 = vld [vmem:[#allocation4 + $0xc0] sm:$0xff]
        %v2949 = vld [vmem:[#allocation4 + $0xc8] sm:$0xff]
        %v2950 = vld [vmem:[#allocation4 + $0xd0] sm:$0xff]
        %v2951 = vld [vmem:[#allocation4 + $0xd8] sm:$0xff]
        %v2952 = vld [vmem:[#allocation4 + $0xe0] sm:$0xff]
        %v2953 = vld [vmem:[#allocation4 + $0xe8] sm:$0xff]
        %v2956 = vunpack.c.l.b16 %v2922
        %v2957 = vunpack.c.l.b16 %v2923
        %v2958 = vpack.c.b16 %v2957, %v2956
        %v2989 = vunpack.c.l.b16 %v2924
        %v2990 = vunpack.c.h.b16 %v2924
        %v2991 = vunpack.c.l.b16 %v2925
        %v2992 = vunpack.c.h.b16 %v2925
        %v2993 = vunpack.c.l.b16 %v2926
        %v2994 = vunpack.c.h.b16 %v2926
        %v2995 = vunpack.c.l.b16 %v2927
        %v2996 = vunpack.c.h.b16 %v2927
        %v2997 = vunpack.c.l.b16 %v2928
        %v2998 = vunpack.c.h.b16 %v2928
        %v2999 = vunpack.c.l.b16 %v2929
        %v3000 = vunpack.c.h.b16 %v2929
        %v3001 = vunpack.c.l.b16 %v2930
        %v3002 = vunpack.c.h.b16 %v2930
        %v3003 = vunpack.c.l.b16 %v2931
        %v3004 = vunpack.c.h.b16 %v2931
        %v3005 = vunpack.c.l.b16 %v2932
        %v3006 = vunpack.c.h.b16 %v2932
        %v3007 = vunpack.c.l.b16 %v2933
        %v3008 = vunpack.c.h.b16 %v2933
        %v3009 = vunpack.c.l.b16 %v2934
        %v3010 = vunpack.c.h.b16 %v2934
        %v3011 = vunpack.c.l.b16 %v2935
        %v3012 = vunpack.c.h.b16 %v2935
        %v3013 = vunpack.c.l.b16 %v2936
        %v3014 = vunpack.c.h.b16 %v2936
        %v3015 = vunpack.c.l.b16 %v2937
        %v3016 = vunpack.c.h.b16 %v2937
        %v3017 = vunpack.c.l.b16 %v2938
        %v3018 = vunpack.c.h.b16 %v2938
        %v3019 = vunpack.c.l.b16 %v2939
        %v3020 = vunpack.c.h.b16 %v2939
        %v3021 = vunpack.c.l.b16 %v2940
        %v3022 = vunpack.c.h.b16 %v2940
        %v3023 = vunpack.c.l.b16 %v2941
        %v3024 = vunpack.c.h.b16 %v2941
        %v3025 = vunpack.c.l.b16 %v2942
        %v3026 = vunpack.c.h.b16 %v2942
        %v3027 = vunpack.c.l.b16 %v2943
        %v3028 = vunpack.c.h.b16 %v2943
        %v3029 = vunpack.c.l.b16 %v2944
        %v3030 = vunpack.c.h.b16 %v2944
        %v3031 = vunpack.c.l.b16 %v2945
        %v3032 = vunpack.c.h.b16 %v2945
        %v3033 = vunpack.c.l.b16 %v2946
        %v3034 = vunpack.c.h.b16 %v2946
        %v3035 = vunpack.c.l.b16 %v2947
        %v3036 = vunpack.c.h.b16 %v2947
        %v3037 = vunpack.c.l.b16 %v2948
        %v3038 = vunpack.c.h.b16 %v2948
        %v3039 = vunpack.c.l.b16 %v2949
        %v3040 = vunpack.c.h.b16 %v2949
        %v3041 = vunpack.c.l.b16 %v2950
        %v3042 = vunpack.c.h.b16 %v2950
        %v3043 = vunpack.c.l.b16 %v2951
        %v3044 = vunpack.c.h.b16 %v2951
        %v3045 = vunpack.c.l.b16 %v2952
        %v3046 = vunpack.c.h.b16 %v2952
        %v3047 = vunpack.c.l.b16 %v2953
        %v3048 = vunpack.c.h.b16 %v2953
        %v3049 = vpack.c.b16 %v2993, %v2989
        %v3050 = vpack.c.b16 %v2994, %v2990
        %v3051 = vpack.c.b16 %v2995, %v2991
        %v3052 = vpack.c.b16 %v2996, %v2992
        %v3053 = vpack.c.b16 %v3001, %v2997
        %v3054 = vpack.c.b16 %v3002, %v2998
        %v3055 = vpack.c.b16 %v3003, %v2999
        %v3056 = vpack.c.b16 %v3004, %v3000
        %v3057 = vpack.c.b16 %v3009, %v3005
        %v3058 = vpack.c.b16 %v3010, %v3006
        %v3059 = vpack.c.b16 %v3011, %v3007
        %v3060 = vpack.c.b16 %v3012, %v3008
        %v3061 = vpack.c.b16 %v3017, %v3013
        %v3062 = vpack.c.b16 %v3018, %v3014
        %v3063 = vpack.c.b16 %v3019, %v3015
        %v3064 = vpack.c.b16 %v3020, %v3016
        %v3065 = vpack.c.b16 %v3025, %v3021
        %v3066 = vpack.c.b16 %v3026, %v3022
        %v3067 = vpack.c.b16 %v3027, %v3023
        %v3068 = vpack.c.b16 %v3028, %v3024
        %v3069 = vpack.c.b16 %v3033, %v3029
        %v3070 = vpack.c.b16 %v3034, %v3030
        %v3071 = vpack.c.b16 %v3035, %v3031
        %v3072 = vpack.c.b16 %v3036, %v3032
        %v3073 = vpack.c.b16 %v3041, %v3037
        %v3074 = vpack.c.b16 %v3042, %v3038
        %v3075 = vpack.c.b16 %v3043, %v3039
        %v3076 = vpack.c.b16 %v3044, %v3040
        %v3077 = vpack.c.b16 %v3045, %v3045
        %v3078 = vpack.c.b16 %v3046, %v3046
        %v3079 = vpack.c.b16 %v3047, %v3047
        %v3080 = vpack.c.b16 %v3048, %v3048
        %v3110 = vsel %vm1142, %v2958, 0
        %v3113 = vsel %vm1146, %v3077, 0
        %v3116 = vsel %vm1146, %v3078, 0
        %v3119 = vsel %vm1146, %v3079, 0
        %v3122 = vsel %vm1146, %v3080, 0
        %3124 = vmatprep.subr.bf16.mxu0 %v3116
        %3125 = vmatpush1.bf16.msra.mxu0 %v3113
        %3126 = vmatprep.subr.bf16.mxu0 %v3074
        %3127 = vmatpush1.bf16.msra.mxu0 %v3073
        %3128 = vmatprep.subr.bf16.mxu0 %v3070
        %3129 = vmatpush1.bf16.msra.mxu0 %v3069
        %3130 = vmatprep.subr.bf16.mxu0 %v3066
        %3131 = vmatpush1.bf16.msra.mxu0 %v3065
        %3132 = vmatprep.subr.bf16.mxu0 %v3062
        %3133 = vmatpush1.bf16.msra.mxu0 %v3061
        %3134 = vmatprep.subr.bf16.mxu0 %v3058
        %3135 = vmatpush1.bf16.msra.mxu0 %v3057
        %3136 = vmatprep.subr.bf16.mxu0 %v3054
        %3137 = vmatpush1.bf16.msra.mxu0 %v3053
        %3138 = vmatprep.subr.bf16.mxu0 %v3050
        %3139 = vmatpush1.bf16.msra.mxu0 %v3049
        %3140 = vmatprep.subr.bf16.mxu0 0
        %3141 = vmatpush2.bf16.msra.mxu0 0
        %3142 = vmatprep.subr.bf16.mxu0 0
        %3143 = vmatpush2.bf16.msra.mxu0 0
        %3144 = vmatprep.subr.bf16.mxu0 0
        %3145 = vmatpush2.bf16.msra.mxu0 0
        %3146 = vmatprep.subr.bf16.mxu0 0
        %3147 = vmatpush2.bf16.msra.mxu0 0
        %3148 = vmatprep.subr.bf16.mxu0 0
        %3149 = vmatpush2.bf16.msra.mxu0 0
        %3150 = vmatprep.subr.bf16.mxu0 0
        %3151 = vmatpush2.bf16.msra.mxu0 0
        %3152 = vmatprep.subr.bf16.mxu0 0
        %3153 = vmatpush2.bf16.msra.mxu0 0
        %3154 = vmatprep.subr.bf16.mxu0 0
        %3155 = vmatpush2.bf16.msra.mxu0 0
        %3156 = vmatprep.mubr.bf16.mxu0 0
        %3157 = vmatmul.mubr.bf16.gmra.mxu0 %v3110
        %v3158 = vpop.f32.mrf.mxu0
        %v3159 = vadd.f32 0.0, %v3158
        %v3160 = vpop.f32.mrf.mxu0
        %v3161 = vadd.f32 0.0, %v3160
        %v3162 = vpop.f32.mrf.mxu0
        %v3163 = vadd.f32 0.0, %v3162
        %v3164 = vpop.f32.mrf.mxu0
        %v3165 = vadd.f32 0.0, %v3164
        %3166 = vdwg.mxu0
        %3167 = vmatprep.subr.bf16.mxu0 %v3122
        %3168 = vmatpush1.bf16.msra.mxu0 %v3119
        %3169 = vmatprep.subr.bf16.mxu0 %v3076
        %3170 = vmatpush1.bf16.msra.mxu0 %v3075
        %3171 = vmatprep.subr.bf16.mxu0 %v3072
        %3172 = vmatpush1.bf16.msra.mxu0 %v3071
        %3173 = vmatprep.subr.bf16.mxu0 %v3068
        %3174 = vmatpush1.bf16.msra.mxu0 %v3067
        %3175 = vmatprep.subr.bf16.mxu0 %v3064
        %3176 = vmatpush1.bf16.msra.mxu0 %v3063
        %3177 = vmatprep.subr.bf16.mxu0 %v3060
        %3178 = vmatpush1.bf16.msra.mxu0 %v3059
        %3179 = vmatprep.subr.bf16.mxu0 %v3056
        %3180 = vmatpush1.bf16.msra.mxu0 %v3055
        %3181 = vmatprep.subr.bf16.mxu0 %v3052
        %3182 = vmatpush1.bf16.msra.mxu0 %v3051
        %3183 = vmatprep.subr.bf16.mxu0 0
        %3184 = vmatpush2.bf16.msra.mxu0 0
        %3185 = vmatprep.subr.bf16.mxu0 0
        %3186 = vmatpush2.bf16.msra.mxu0 0
        %3187 = vmatprep.subr.bf16.mxu0 0
        %3188 = vmatpush2.bf16.msra.mxu0 0
        %3189 = vmatprep.subr.bf16.mxu0 0
        %3190 = vmatpush2.bf16.msra.mxu0 0
        %3191 = vmatprep.subr.bf16.mxu0 0
        %3192 = vmatpush2.bf16.msra.mxu0 0
        %3193 = vmatprep.subr.bf16.mxu0 0
        %3194 = vmatpush2.bf16.msra.mxu0 0
        %3195 = vmatprep.subr.bf16.mxu0 0
        %3196 = vmatpush2.bf16.msra.mxu0 0
        %3197 = vmatprep.subr.bf16.mxu0 0
        %3198 = vmatpush2.bf16.msra.mxu0 0
        %3199 = vmatprep.mubr.bf16.mxu0 0
        %3200 = vmatmul.mubr.bf16.gmra.mxu0 %v3110
        %v3201 = vpop.f32.mrf.mxu0
        %v3202 = vadd.f32 0.0, %v3201
        %v3203 = vpop.f32.mrf.mxu0
        %v3204 = vadd.f32 0.0, %v3203
        %v3205 = vpop.f32.mrf.mxu0
        %v3206 = vadd.f32 0.0, %v3205
        %v3207 = vpop.f32.mrf.mxu0
        %v3208 = vadd.f32 0.0, %v3207
        %3209 = vdwg.mxu0
        %v3210 = vld [vmem:[%s12] sm:$0xff]
        %v3211 = vld [vmem:[%s12 + $0x8] sm:$0xff]
        %3213 = vset.pattern.permute.xlu0 0
        %3214 = vperm.xlu0 %3213, %v3210
        %v3215 = vpop.permute.xlu0 %3214
        %3218 = vset.pattern.permute.xlu0 0
        %3219 = vperm.xlu0 %3218, %v3211
        %v3220 = vpop.permute.xlu0 %3219
        %v3222 = vmul.f32 %v3159, %v3215
        %v3223 = vmul.f32 %v3161, %v3215
        %v3224 = vmul.f32 %v3202, %v3215
        %v3225 = vmul.f32 %v3204, %v3215
        %v3226 = vmul.f32 %v3163, %v3220
        %v3227 = vmul.f32 %v3165, %v3220
        %v3228 = vmul.f32 %v3206, %v3220
        %v3229 = vmul.f32 %v3208, %v3220
        %3230 = vset.pattern.permute.xlu0 1
        %3231 = vperm.xlu0 %3230, %v3210
        %v3232 = vpop.permute.xlu0 %3231
        %3234 = vset.pattern.permute.xlu0 1
        %3235 = vperm.xlu0 %3234, %v3211
        %v3236 = vpop.permute.xlu0 %3235
        %v3238 = vadd.f32 %v3222, %v3232
        %v3239 = vadd.f32 %v3223, %v3232
        %v3240 = vadd.f32 %v3224, %v3232
        %v3241 = vadd.f32 %v3225, %v3232
        %v3242 = vadd.f32 %v3226, %v3236
        %v3243 = vadd.f32 %v3227, %v3236
        %v3244 = vadd.f32 %v3228, %v3236
        %v3245 = vadd.f32 %v3229, %v3236
        %vm3246 = vcmp.gt.f32.partialorder %v3238, 0.0
        %vm3247 = vcmp.gt.f32.partialorder %v3239, 0.0
        %vm3248 = vcmp.gt.f32.partialorder %v3240, 0.0
        %vm3249 = vcmp.gt.f32.partialorder %v3241, 0.0
        %vm3250 = vcmp.gt.f32.partialorder %v3242, 0.0
        %vm3251 = vcmp.gt.f32.partialorder %v3243, 0.0
        %vm3252 = vcmp.gt.f32.partialorder %v3244, 0.0
        %vm3253 = vcmp.gt.f32.partialorder %v3245, 0.0
        %v3254 = vmul.f32 %v3238, 0.1
        %v3255 = vmul.f32 %v3239, 0.1
        %v3256 = vmul.f32 %v3240, 0.1
        %v3257 = vmul.f32 %v3241, 0.1
        %v3258 = vmul.f32 %v3242, 0.1
        %v3259 = vmul.f32 %v3243, 0.1
        %v3260 = vmul.f32 %v3244, 0.1
        %v3261 = vmul.f32 %v3245, 0.1
        %v3262 = vsel %vm3246, %v3238, %v3254
        %v3263 = vsel %vm3247, %v3239, %v3255
        %v3264 = vsel %vm3248, %v3240, %v3256
        %v3265 = vsel %vm3249, %v3241, %v3257
        %v3266 = vsel %vm3250, %v3242, %v3258
        %v3267 = vsel %vm3251, %v3243, %v3259
        %v3268 = vsel %vm3252, %v3244, %v3260
        %v3269 = vsel %vm3253, %v3245, %v3261
        %v3270 = vpack.c.bf16 %v3266, %v3262
        %v3271 = vpack.c.bf16 %v3267, %v3263
        %v3272 = vpack.c.bf16 %v3268, %v3264
        %v3273 = vpack.c.bf16 %v3269, %v3265
        %v3274 = vld [vmem:[#allocation5] sm:$0xff]
        %v3275 = vld [vmem:[#allocation5 + $0x8] sm:$0xff]
        %v3276 = vld [vmem:[#allocation5 + $0x10] sm:$0xff]
        %v3277 = vld [vmem:[#allocation5 + $0x18] sm:$0xff]
        %v3278 = vld [vmem:[#allocation5 + $0x20] sm:$0xff]
        %v3279 = vld [vmem:[#allocation5 + $0x28] sm:$0xff]
        %v3280 = vld [vmem:[#allocation5 + $0x30] sm:$0xff]
        %v3281 = vld [vmem:[#allocation5 + $0x38] sm:$0xff]
        %v3282 = vld [vmem:[#allocation5 + $0x40] sm:$0xff]
        %v3283 = vld [vmem:[#allocation5 + $0x48] sm:$0xff]
        %v3284 = vld [vmem:[#allocation5 + $0x50] sm:$0xff]
        %v3285 = vld [vmem:[#allocation5 + $0x58] sm:$0xff]
        %v3286 = vld [vmem:[#allocation5 + $0x60] sm:$0xff]
        %v3287 = vld [vmem:[#allocation5 + $0x68] sm:$0xff]
        %v3288 = vld [vmem:[#allocation5 + $0x70] sm:$0xff]
        %v3289 = vld [vmem:[#allocation5 + $0x78] sm:$0xff]
        %v3290 = vld [vmem:[#allocation5 + $0x80] sm:$0xff]
        %v3291 = vld [vmem:[#allocation5 + $0x88] sm:$0xff]
        %v3292 = vld [vmem:[#allocation5 + $0x90] sm:$0xff]
        %v3293 = vld [vmem:[#allocation5 + $0x98] sm:$0xff]
        %v3294 = vld [vmem:[#allocation5 + $0xa0] sm:$0xff]
        %v3295 = vld [vmem:[#allocation5 + $0xa8] sm:$0xff]
        %v3296 = vld [vmem:[#allocation5 + $0xb0] sm:$0xff]
        %v3297 = vld [vmem:[#allocation5 + $0xb8] sm:$0xff]
        %v3298 = vld [vmem:[#allocation5 + $0xc0] sm:$0xff]
        %v3299 = vld [vmem:[#allocation5 + $0xc8] sm:$0xff]
        %v3300 = vld [vmem:[#allocation5 + $0xd0] sm:$0xff]
        %v3301 = vld [vmem:[#allocation5 + $0xd8] sm:$0xff]
        %v3302 = vld [vmem:[#allocation5 + $0xe0] sm:$0xff]
        %v3303 = vld [vmem:[#allocation5 + $0xe8] sm:$0xff]
        %v3304 = vld [vmem:[#allocation5 + $0xf0] sm:$0xff]
        %v3305 = vld [vmem:[#allocation5 + $0xf8] sm:$0xff]
        %v3306 = vld [vmem:[#allocation5 + $0x100] sm:$0xff]
        %v3307 = vld [vmem:[#allocation5 + $0x108] sm:$0xff]
        %v3308 = vld [vmem:[#allocation5 + $0x110] sm:$0xff]
        %v3309 = vld [vmem:[#allocation5 + $0x118] sm:$0xff]
        %v3310 = vld [vmem:[#allocation5 + $0x120] sm:$0xff]
        %v3311 = vld [vmem:[#allocation5 + $0x128] sm:$0xff]
        %v3312 = vld [vmem:[#allocation5 + $0x130] sm:$0xff]
        %v3313 = vld [vmem:[#allocation5 + $0x138] sm:$0xff]
        %v3314 = vld [vmem:[#allocation5 + $0x140] sm:$0xff]
        %v3315 = vld [vmem:[#allocation5 + $0x148] sm:$0xff]
        %v3316 = vld [vmem:[#allocation5 + $0x150] sm:$0xff]
        %v3317 = vld [vmem:[#allocation5 + $0x158] sm:$0xff]
        %v3318 = vld [vmem:[#allocation5 + $0x160] sm:$0xff]
        %v3319 = vld [vmem:[#allocation5 + $0x168] sm:$0xff]
        %v3320 = vld [vmem:[#allocation5 + $0x170] sm:$0xff]
        %v3321 = vld [vmem:[#allocation5 + $0x178] sm:$0xff]
        %v3322 = vld [vmem:[#allocation5 + $0x180] sm:$0xff]
        %v3323 = vld [vmem:[#allocation5 + $0x188] sm:$0xff]
        %v3324 = vld [vmem:[#allocation5 + $0x190] sm:$0xff]
        %v3325 = vld [vmem:[#allocation5 + $0x198] sm:$0xff]
        %v3326 = vld [vmem:[#allocation5 + $0x1a0] sm:$0xff]
        %v3327 = vld [vmem:[#allocation5 + $0x1a8] sm:$0xff]
        %v3328 = vld [vmem:[#allocation5 + $0x1b0] sm:$0xff]
        %v3329 = vld [vmem:[#allocation5 + $0x1b8] sm:$0xff]
        %v3330 = vld [vmem:[#allocation5 + $0x1c0] sm:$0xff]
        %v3331 = vld [vmem:[#allocation5 + $0x1c8] sm:$0xff]
        %v3332 = vld [vmem:[#allocation5 + $0x1d0] sm:$0xff]
        %v3333 = vld [vmem:[#allocation5 + $0x1d8] sm:$0xff]
        %v3334 = vld [vmem:[#allocation5 + $0x1e0] sm:$0xff]
        %v3335 = vld [vmem:[#allocation5 + $0x1e8] sm:$0xff]
        %v3336 = vld [vmem:[#allocation5 + $0x1f0] sm:$0xff]
        %v3337 = vld [vmem:[#allocation5 + $0x1f8] sm:$0xff]
        %v3402 = vunpack.c.l.b16 %v3274
        %v3403 = vunpack.c.h.b16 %v3274
        %v3404 = vunpack.c.l.b16 %v3275
        %v3405 = vunpack.c.h.b16 %v3275
        %v3406 = vunpack.c.l.b16 %v3276
        %v3407 = vunpack.c.h.b16 %v3276
        %v3408 = vunpack.c.l.b16 %v3277
        %v3409 = vunpack.c.h.b16 %v3277
        %v3410 = vunpack.c.l.b16 %v3278
        %v3411 = vunpack.c.h.b16 %v3278
        %v3412 = vunpack.c.l.b16 %v3279
        %v3413 = vunpack.c.h.b16 %v3279
        %v3414 = vunpack.c.l.b16 %v3280
        %v3415 = vunpack.c.h.b16 %v3280
        %v3416 = vunpack.c.l.b16 %v3281
        %v3417 = vunpack.c.h.b16 %v3281
        %v3418 = vunpack.c.l.b16 %v3282
        %v3419 = vunpack.c.h.b16 %v3282
        %v3420 = vunpack.c.l.b16 %v3283
        %v3421 = vunpack.c.h.b16 %v3283
        %v3422 = vunpack.c.l.b16 %v3284
        %v3423 = vunpack.c.h.b16 %v3284
        %v3424 = vunpack.c.l.b16 %v3285
        %v3425 = vunpack.c.h.b16 %v3285
        %v3426 = vunpack.c.l.b16 %v3286
        %v3427 = vunpack.c.h.b16 %v3286
        %v3428 = vunpack.c.l.b16 %v3287
        %v3429 = vunpack.c.h.b16 %v3287
        %v3430 = vunpack.c.l.b16 %v3288
        %v3431 = vunpack.c.h.b16 %v3288
        %v3432 = vunpack.c.l.b16 %v3289
        %v3433 = vunpack.c.h.b16 %v3289
        %v3434 = vunpack.c.l.b16 %v3290
        %v3435 = vunpack.c.h.b16 %v3290
        %v3436 = vunpack.c.l.b16 %v3291
        %v3437 = vunpack.c.h.b16 %v3291
        %v3438 = vunpack.c.l.b16 %v3292
        %v3439 = vunpack.c.h.b16 %v3292
        %v3440 = vunpack.c.l.b16 %v3293
        %v3441 = vunpack.c.h.b16 %v3293
        %v3442 = vunpack.c.l.b16 %v3294
        %v3443 = vunpack.c.h.b16 %v3294
        %v3444 = vunpack.c.l.b16 %v3295
        %v3445 = vunpack.c.h.b16 %v3295
        %v3446 = vunpack.c.l.b16 %v3296
        %v3447 = vunpack.c.h.b16 %v3296
        %v3448 = vunpack.c.l.b16 %v3297
        %v3449 = vunpack.c.h.b16 %v3297
        %v3450 = vunpack.c.l.b16 %v3298
        %v3451 = vunpack.c.h.b16 %v3298
        %v3452 = vunpack.c.l.b16 %v3299
        %v3453 = vunpack.c.h.b16 %v3299
        %v3454 = vunpack.c.l.b16 %v3300
        %v3455 = vunpack.c.h.b16 %v3300
        %v3456 = vunpack.c.l.b16 %v3301
        %v3457 = vunpack.c.h.b16 %v3301
        %v3458 = vunpack.c.l.b16 %v3302
        %v3459 = vunpack.c.h.b16 %v3302
        %v3460 = vunpack.c.l.b16 %v3303
        %v3461 = vunpack.c.h.b16 %v3303
        %v3462 = vunpack.c.l.b16 %v3304
        %v3463 = vunpack.c.h.b16 %v3304
        %v3464 = vunpack.c.l.b16 %v3305
        %v3465 = vunpack.c.h.b16 %v3305
        %v3466 = vunpack.c.l.b16 %v3306
        %v3467 = vunpack.c.h.b16 %v3306
        %v3468 = vunpack.c.l.b16 %v3307
        %v3469 = vunpack.c.h.b16 %v3307
        %v3470 = vunpack.c.l.b16 %v3308
        %v3471 = vunpack.c.h.b16 %v3308
        %v3472 = vunpack.c.l.b16 %v3309
        %v3473 = vunpack.c.h.b16 %v3309
        %v3474 = vunpack.c.l.b16 %v3310
        %v3475 = vunpack.c.h.b16 %v3310
        %v3476 = vunpack.c.l.b16 %v3311
        %v3477 = vunpack.c.h.b16 %v3311
        %v3478 = vunpack.c.l.b16 %v3312
        %v3479 = vunpack.c.h.b16 %v3312
        %v3480 = vunpack.c.l.b16 %v3313
        %v3481 = vunpack.c.h.b16 %v3313
        %v3482 = vunpack.c.l.b16 %v3314
        %v3483 = vunpack.c.h.b16 %v3314
        %v3484 = vunpack.c.l.b16 %v3315
        %v3485 = vunpack.c.h.b16 %v3315
        %v3486 = vunpack.c.l.b16 %v3316
        %v3487 = vunpack.c.h.b16 %v3316
        %v3488 = vunpack.c.l.b16 %v3317
        %v3489 = vunpack.c.h.b16 %v3317
        %v3490 = vunpack.c.l.b16 %v3318
        %v3491 = vunpack.c.h.b16 %v3318
        %v3492 = vunpack.c.l.b16 %v3319
        %v3493 = vunpack.c.h.b16 %v3319
        %v3494 = vunpack.c.l.b16 %v3320
        %v3495 = vunpack.c.h.b16 %v3320
        %v3496 = vunpack.c.l.b16 %v3321
        %v3497 = vunpack.c.h.b16 %v3321
        %v3498 = vunpack.c.l.b16 %v3322
        %v3499 = vunpack.c.h.b16 %v3322
        %v3500 = vunpack.c.l.b16 %v3323
        %v3501 = vunpack.c.h.b16 %v3323
        %v3502 = vunpack.c.l.b16 %v3324
        %v3503 = vunpack.c.h.b16 %v3324
        %v3504 = vunpack.c.l.b16 %v3325
        %v3505 = vunpack.c.h.b16 %v3325
        %v3506 = vunpack.c.l.b16 %v3326
        %v3507 = vunpack.c.h.b16 %v3326
        %v3508 = vunpack.c.l.b16 %v3327
        %v3509 = vunpack.c.h.b16 %v3327
        %v3510 = vunpack.c.l.b16 %v3328
        %v3511 = vunpack.c.h.b16 %v3328
        %v3512 = vunpack.c.l.b16 %v3329
        %v3513 = vunpack.c.h.b16 %v3329
        %v3514 = vunpack.c.l.b16 %v3330
        %v3515 = vunpack.c.h.b16 %v3330
        %v3516 = vunpack.c.l.b16 %v3331
        %v3517 = vunpack.c.h.b16 %v3331
        %v3518 = vunpack.c.l.b16 %v3332
        %v3519 = vunpack.c.h.b16 %v3332
        %v3520 = vunpack.c.l.b16 %v3333
        %v3521 = vunpack.c.h.b16 %v3333
        %v3522 = vunpack.c.l.b16 %v3334
        %v3523 = vunpack.c.h.b16 %v3334
        %v3524 = vunpack.c.l.b16 %v3335
        %v3525 = vunpack.c.h.b16 %v3335
        %v3526 = vunpack.c.l.b16 %v3336
        %v3527 = vunpack.c.h.b16 %v3336
        %v3528 = vunpack.c.l.b16 %v3337
        %v3529 = vunpack.c.h.b16 %v3337
        %v3530 = vpack.c.b16 %v3404, %v3402
        %v3531 = vpack.c.b16 %v3405, %v3403
        %v3532 = vpack.c.b16 %v3408, %v3406
        %v3533 = vpack.c.b16 %v3409, %v3407
        %v3534 = vpack.c.b16 %v3412, %v3410
        %v3535 = vpack.c.b16 %v3413, %v3411
        %v3536 = vpack.c.b16 %v3416, %v3414
        %v3537 = vpack.c.b16 %v3417, %v3415
        %v3538 = vpack.c.b16 %v3420, %v3418
        %v3539 = vpack.c.b16 %v3421, %v3419
        %v3540 = vpack.c.b16 %v3424, %v3422
        %v3541 = vpack.c.b16 %v3425, %v3423
        %v3542 = vpack.c.b16 %v3428, %v3426
        %v3543 = vpack.c.b16 %v3429, %v3427
        %v3544 = vpack.c.b16 %v3432, %v3430
        %v3545 = vpack.c.b16 %v3433, %v3431
        %v3546 = vpack.c.b16 %v3436, %v3434
        %v3547 = vpack.c.b16 %v3437, %v3435
        %v3548 = vpack.c.b16 %v3440, %v3438
        %v3549 = vpack.c.b16 %v3441, %v3439
        %v3550 = vpack.c.b16 %v3444, %v3442
        %v3551 = vpack.c.b16 %v3445, %v3443
        %v3552 = vpack.c.b16 %v3448, %v3446
        %v3553 = vpack.c.b16 %v3449, %v3447
        %v3554 = vpack.c.b16 %v3452, %v3450
        %v3555 = vpack.c.b16 %v3453, %v3451
        %v3556 = vpack.c.b16 %v3456, %v3454
        %v3557 = vpack.c.b16 %v3457, %v3455
        %v3558 = vpack.c.b16 %v3460, %v3458
        %v3559 = vpack.c.b16 %v3461, %v3459
        %v3560 = vpack.c.b16 %v3464, %v3462
        %v3561 = vpack.c.b16 %v3465, %v3463
        %v3562 = vpack.c.b16 %v3468, %v3466
        %v3563 = vpack.c.b16 %v3469, %v3467
        %v3564 = vpack.c.b16 %v3472, %v3470
        %v3565 = vpack.c.b16 %v3473, %v3471
        %v3566 = vpack.c.b16 %v3476, %v3474
        %v3567 = vpack.c.b16 %v3477, %v3475
        %v3568 = vpack.c.b16 %v3480, %v3478
        %v3569 = vpack.c.b16 %v3481, %v3479
        %v3570 = vpack.c.b16 %v3484, %v3482
        %v3571 = vpack.c.b16 %v3485, %v3483
        %v3572 = vpack.c.b16 %v3488, %v3486
        %v3573 = vpack.c.b16 %v3489, %v3487
        %v3574 = vpack.c.b16 %v3492, %v3490
        %v3575 = vpack.c.b16 %v3493, %v3491
        %v3576 = vpack.c.b16 %v3496, %v3494
        %v3577 = vpack.c.b16 %v3497, %v3495
        %v3578 = vpack.c.b16 %v3500, %v3498
        %v3579 = vpack.c.b16 %v3501, %v3499
        %v3580 = vpack.c.b16 %v3504, %v3502
        %v3581 = vpack.c.b16 %v3505, %v3503
        %v3582 = vpack.c.b16 %v3508, %v3506
        %v3583 = vpack.c.b16 %v3509, %v3507
        %v3584 = vpack.c.b16 %v3512, %v3510
        %v3585 = vpack.c.b16 %v3513, %v3511
        %v3586 = vpack.c.b16 %v3516, %v3514
        %v3587 = vpack.c.b16 %v3517, %v3515
        %v3588 = vpack.c.b16 %v3520, %v3518
        %v3589 = vpack.c.b16 %v3521, %v3519
        %v3590 = vpack.c.b16 %v3524, %v3522
        %v3591 = vpack.c.b16 %v3525, %v3523
        %v3592 = vpack.c.b16 %v3528, %v3526
        %v3593 = vpack.c.b16 %v3529, %v3527
        %3658 = vmatprep.subr.bf16.mxu0 %v3545
        %3659 = vmatpush1.bf16.msra.mxu0 %v3544
        %3660 = vmatprep.subr.bf16.mxu0 %v3543
        %3661 = vmatpush1.bf16.msra.mxu0 %v3542
        %3662 = vmatprep.subr.bf16.mxu0 %v3541
        %3663 = vmatpush1.bf16.msra.mxu0 %v3540
        %3664 = vmatprep.subr.bf16.mxu0 %v3539
        %3665 = vmatpush1.bf16.msra.mxu0 %v3538
        %3666 = vmatprep.subr.bf16.mxu0 %v3537
        %3667 = vmatpush1.bf16.msra.mxu0 %v3536
        %3668 = vmatprep.subr.bf16.mxu0 %v3535
        %3669 = vmatpush1.bf16.msra.mxu0 %v3534
        %3670 = vmatprep.subr.bf16.mxu0 %v3533
        %3671 = vmatpush1.bf16.msra.mxu0 %v3532
        %3672 = vmatprep.subr.bf16.mxu0 %v3531
        %3673 = vmatpush1.bf16.msra.mxu0 %v3530
        %3674 = vmatprep.subr.bf16.mxu0 %v3561
        %3675 = vmatpush2.bf16.msra.mxu0 %v3560
        %3676 = vmatprep.subr.bf16.mxu0 %v3559
        %3677 = vmatpush2.bf16.msra.mxu0 %v3558
        %3678 = vmatprep.subr.bf16.mxu0 %v3557
        %3679 = vmatpush2.bf16.msra.mxu0 %v3556
        %3680 = vmatprep.subr.bf16.mxu0 %v3555
        %3681 = vmatpush2.bf16.msra.mxu0 %v3554
        %3682 = vmatprep.subr.bf16.mxu0 %v3553
        %3683 = vmatpush2.bf16.msra.mxu0 %v3552
        %3684 = vmatprep.subr.bf16.mxu0 %v3551
        %3685 = vmatpush2.bf16.msra.mxu0 %v3550
        %3686 = vmatprep.subr.bf16.mxu0 %v3549
        %3687 = vmatpush2.bf16.msra.mxu0 %v3548
        %3688 = vmatprep.subr.bf16.mxu0 %v3547
        %3689 = vmatpush2.bf16.msra.mxu0 %v3546
        %3690 = vmatprep.mubr.bf16.mxu0 %v3271
        %3691 = vmatmul.mubr.bf16.gmra.mxu0 %v3270
        %v3692 = vpop.f32.mrf.mxu0
        %v3693 = vadd.f32 0.0, %v3692
        %v3694 = vpop.f32.mrf.mxu0
        %v3695 = vadd.f32 0.0, %v3694
        %v3696 = vpop.f32.mrf.mxu0
        %v3697 = vadd.f32 0.0, %v3696
        %v3698 = vpop.f32.mrf.mxu0
        %v3699 = vadd.f32 0.0, %v3698
        %3700 = vdwg.mxu0
        %3701 = vmatprep.subr.bf16.mxu0 %v3577
        %3702 = vmatpush1.bf16.msra.mxu0 %v3576
        %3703 = vmatprep.subr.bf16.mxu0 %v3575
        %3704 = vmatpush1.bf16.msra.mxu0 %v3574
        %3705 = vmatprep.subr.bf16.mxu0 %v3573
        %3706 = vmatpush1.bf16.msra.mxu0 %v3572
        %3707 = vmatprep.subr.bf16.mxu0 %v3571
        %3708 = vmatpush1.bf16.msra.mxu0 %v3570
        %3709 = vmatprep.subr.bf16.mxu0 %v3569
        %3710 = vmatpush1.bf16.msra.mxu0 %v3568
        %3711 = vmatprep.subr.bf16.mxu0 %v3567
        %3712 = vmatpush1.bf16.msra.mxu0 %v3566
        %3713 = vmatprep.subr.bf16.mxu0 %v3565
        %3714 = vmatpush1.bf16.msra.mxu0 %v3564
        %3715 = vmatprep.subr.bf16.mxu0 %v3563
        %3716 = vmatpush1.bf16.msra.mxu0 %v3562
        %3717 = vmatprep.subr.bf16.mxu0 %v3593
        %3718 = vmatpush2.bf16.msra.mxu0 %v3592
        %3719 = vmatprep.subr.bf16.mxu0 %v3591
        %3720 = vmatpush2.bf16.msra.mxu0 %v3590
        %3721 = vmatprep.subr.bf16.mxu0 %v3589
        %3722 = vmatpush2.bf16.msra.mxu0 %v3588
        %3723 = vmatprep.subr.bf16.mxu0 %v3587
        %3724 = vmatpush2.bf16.msra.mxu0 %v3586
        %3725 = vmatprep.subr.bf16.mxu0 %v3585
        %3726 = vmatpush2.bf16.msra.mxu0 %v3584
        %3727 = vmatprep.subr.bf16.mxu0 %v3583
        %3728 = vmatpush2.bf16.msra.mxu0 %v3582
        %3729 = vmatprep.subr.bf16.mxu0 %v3581
        %3730 = vmatpush2.bf16.msra.mxu0 %v3580
        %3731 = vmatprep.subr.bf16.mxu0 %v3579
        %3732 = vmatpush2.bf16.msra.mxu0 %v3578
        %3733 = vmatprep.mubr.bf16.mxu0 %v3273
        %3734 = vmatmul.mubr.bf16.gmra.mxu0 %v3272
        %v3735 = vpop.f32.mrf.mxu0
        %v3736 = vadd.f32 %v3693, %v3735
        %v3737 = vpop.f32.mrf.mxu0
        %v3738 = vadd.f32 %v3695, %v3737
        %v3739 = vpop.f32.mrf.mxu0
        %v3740 = vadd.f32 %v3697, %v3739
        %v3741 = vpop.f32.mrf.mxu0
        %v3742 = vadd.f32 %v3699, %v3741
        %3743 = vdwg.mxu0
        %v3744 = vpack.c.bf16 %v3740, %v3736
        %v3745 = vpack.c.bf16 %v3742, %v3738
        %v3748 = vunpack.c.l.b16 %v3744
        %v3749 = vunpack.c.l.b16 %v3745
        %v3750 = vunpack.c.h.b16 %v3744
        %v3751 = vunpack.c.h.b16 %v3745
        %v3752 = vpack.c.b16 %v3749, %v3748
        %v3753 = vpack.c.b16 %v3751, %v3750
        %3756 = vst [vmem:[#allocation2 + $0x4] sm:$0xff] %v3752
        %3757 = vst [vmem:[#allocation2 + $0x1c] sm:$0xff] %v3753
        %3758 = vst [vmem:[#allocation2 + $0xc] sm:$0xf] 0
        %3759 = vst [vmem:[#allocation2 + $0x24] sm:$0xf] 0
        %v3760 = vld [vmem:[#allocation2] sm:$0xff]
        %v3761 = vld [vmem:[#allocation2 + $0x8] sm:$0xf]
        %v3762 = vld [vmem:[#allocation2 + $0x18] sm:$0xff]
        %v3763 = vld [vmem:[#allocation2 + $0x20] sm:$0xf]
        %3768 = vrot.lane.b32.xlu0 %v3760, 7
        %v3769 = vpop.permute.xlu0 %3768
        %3770 = vrot.lane.b32.xlu0 %v3761, 7
        %v3771 = vpop.permute.xlu0 %3770
        %3772 = vrot.lane.b32.xlu0 %v3762, 7
        %v3773 = vpop.permute.xlu0 %3772
        %3774 = vrot.lane.b32.xlu0 %v3763, 7
        %v3775 = vpop.permute.xlu0 %3774
        %v3776 = vrot.slane %v3769, 4
        %v3777 = vrot.slane %v3771, 4
        %v3778 = vrot.slane %v3773, 4
        %v3779 = vrot.slane %v3775, 4
        %v3780 = vsel %vm635, %v3776, %v3777
        %v3781 = vsel %vm637, %v3769, %v3780
        %v3782 = vsel %vm635, %v3778, %v3779
        %v3783 = vsel %vm637, %v3773, %v3782
        %3786 = vst [vmem:[#allocation4] sm:$0xff] %v3781
        %3787 = vst [vmem:[#allocation4 + $0x10] sm:$0xff] %v3783
        %v3788 = vld [vmem:[#allocation2] sm:$0xff]
        %v3789 = vld [vmem:[#allocation2 + $0x8] sm:$0xf]
        %v3790 = vld [vmem:[#allocation2 + $0x18] sm:$0xff]
        %v3791 = vld [vmem:[#allocation2 + $0x20] sm:$0xf]
        %3796 = vrot.lane.b32.xlu0 %v3788, 6
        %v3797 = vpop.permute.xlu0 %3796
        %3798 = vrot.lane.b32.xlu0 %v3789, 6
        %v3799 = vpop.permute.xlu0 %3798
        %3800 = vrot.lane.b32.xlu0 %v3790, 6
        %v3801 = vpop.permute.xlu0 %3800
        %3802 = vrot.lane.b32.xlu0 %v3791, 6
        %v3803 = vpop.permute.xlu0 %3802
        %v3804 = vrot.slane %v3797, 4
        %v3805 = vrot.slane %v3799, 4
        %v3806 = vrot.slane %v3801, 4
        %v3807 = vrot.slane %v3803, 4
        %v3808 = vsel %vm635, %v3804, %v3805
        %v3809 = vsel %vm661, %v3797, %v3808
        %v3810 = vsel %vm635, %v3806, %v3807
        %v3811 = vsel %vm661, %v3801, %v3810
        %3814 = vst [vmem:[#allocation4 + $0x20] sm:$0xff] %v3809
        %3815 = vst [vmem:[#allocation4 + $0x30] sm:$0xff] %v3811
        %v3816 = vld [vmem:[#allocation2] sm:$0xff]
        %v3817 = vld [vmem:[#allocation2 + $0x8] sm:$0xf]
        %v3818 = vld [vmem:[#allocation2 + $0x18] sm:$0xff]
        %v3819 = vld [vmem:[#allocation2 + $0x20] sm:$0xf]
        %3824 = vrot.lane.b32.xlu0 %v3816, 5
        %v3825 = vpop.permute.xlu0 %3824
        %3826 = vrot.lane.b32.xlu0 %v3817, 5
        %v3827 = vpop.permute.xlu0 %3826
        %3828 = vrot.lane.b32.xlu0 %v3818, 5
        %v3829 = vpop.permute.xlu0 %3828
        %3830 = vrot.lane.b32.xlu0 %v3819, 5
        %v3831 = vpop.permute.xlu0 %3830
        %v3832 = vrot.slane %v3825, 4
        %v3833 = vrot.slane %v3827, 4
        %v3834 = vrot.slane %v3829, 4
        %v3835 = vrot.slane %v3831, 4
        %v3836 = vsel %vm635, %v3832, %v3833
        %v3837 = vsel %vm685, %v3825, %v3836
        %v3838 = vsel %vm635, %v3834, %v3835
        %v3839 = vsel %vm685, %v3829, %v3838
        %3842 = vst [vmem:[#allocation4 + $0x40] sm:$0xff] %v3837
        %3843 = vst [vmem:[#allocation4 + $0x50] sm:$0xff] %v3839
        %v3844 = vld [vmem:[#allocation2] sm:$0xff]
        %v3845 = vld [vmem:[#allocation2 + $0x8] sm:$0xf]
        %v3846 = vld [vmem:[#allocation2 + $0x18] sm:$0xff]
        %v3847 = vld [vmem:[#allocation2 + $0x20] sm:$0xf]
        %3852 = vrot.lane.b32.xlu0 %v3844, 4
        %v3853 = vpop.permute.xlu0 %3852
        %3854 = vrot.lane.b32.xlu0 %v3845, 4
        %v3855 = vpop.permute.xlu0 %3854
        %3856 = vrot.lane.b32.xlu0 %v3846, 4
        %v3857 = vpop.permute.xlu0 %3856
        %3858 = vrot.lane.b32.xlu0 %v3847, 4
        %v3859 = vpop.permute.xlu0 %3858
        %v3860 = vrot.slane %v3853, 4
        %v3861 = vrot.slane %v3855, 4
        %v3862 = vrot.slane %v3857, 4
        %v3863 = vrot.slane %v3859, 4
        %v3864 = vsel %vm635, %v3860, %v3861
        %v3865 = vsel %vm709, %v3853, %v3864
        %v3866 = vsel %vm635, %v3862, %v3863
        %v3867 = vsel %vm709, %v3857, %v3866
        %3870 = vst [vmem:[#allocation4 + $0x60] sm:$0xff] %v3865
        %3871 = vst [vmem:[#allocation4 + $0x70] sm:$0xff] %v3867
        %v3872 = vld [vmem:[#allocation2] sm:$0xff]
        %v3873 = vld [vmem:[#allocation2 + $0x8] sm:$0xf]
        %v3874 = vld [vmem:[#allocation2 + $0x18] sm:$0xff]
        %v3875 = vld [vmem:[#allocation2 + $0x20] sm:$0xf]
        %3880 = vrot.lane.b32.xlu0 %v3872, 3
        %v3881 = vpop.permute.xlu0 %3880
        %3882 = vrot.lane.b32.xlu0 %v3873, 3
        %v3883 = vpop.permute.xlu0 %3882
        %3884 = vrot.lane.b32.xlu0 %v3874, 3
        %v3885 = vpop.permute.xlu0 %3884
        %3886 = vrot.lane.b32.xlu0 %v3875, 3
        %v3887 = vpop.permute.xlu0 %3886
        %v3888 = vrot.slane %v3881, 4
        %v3889 = vrot.slane %v3883, 4
        %v3890 = vrot.slane %v3885, 4
        %v3891 = vrot.slane %v3887, 4
        %v3892 = vsel %vm635, %v3888, %v3889
        %v3893 = vsel %vm733, %v3881, %v3892
        %v3894 = vsel %vm635, %v3890, %v3891
        %v3895 = vsel %vm733, %v3885, %v3894
        %3898 = vst [vmem:[#allocation4 + $0x80] sm:$0xff] %v3893
        %3899 = vst [vmem:[#allocation4 + $0x90] sm:$0xff] %v3895
        %v3900 = vld [vmem:[#allocation2] sm:$0xff]
        %v3901 = vld [vmem:[#allocation2 + $0x8] sm:$0xf]
        %v3902 = vld [vmem:[#allocation2 + $0x18] sm:$0xff]
        %v3903 = vld [vmem:[#allocation2 + $0x20] sm:$0xf]
        %3908 = vrot.lane.b32.xlu0 %v3900, 2
        %v3909 = vpop.permute.xlu0 %3908
        %3910 = vrot.lane.b32.xlu0 %v3901, 2
        %v3911 = vpop.permute.xlu0 %3910
        %3912 = vrot.lane.b32.xlu0 %v3902, 2
        %v3913 = vpop.permute.xlu0 %3912
        %3914 = vrot.lane.b32.xlu0 %v3903, 2
        %v3915 = vpop.permute.xlu0 %3914
        %v3916 = vrot.slane %v3909, 4
        %v3917 = vrot.slane %v3911, 4
        %v3918 = vrot.slane %v3913, 4
        %v3919 = vrot.slane %v3915, 4
        %v3920 = vsel %vm635, %v3916, %v3917
        %v3921 = vsel %vm757, %v3909, %v3920
        %v3922 = vsel %vm635, %v3918, %v3919
        %v3923 = vsel %vm757, %v3913, %v3922
        %3926 = vst [vmem:[#allocation4 + $0xa0] sm:$0xff] %v3921
        %3927 = vst [vmem:[#allocation4 + $0xb0] sm:$0xff] %v3923
        %v3928 = vld [vmem:[#allocation2] sm:$0xff]
        %v3929 = vld [vmem:[#allocation2 + $0x8] sm:$0xf]
        %v3930 = vld [vmem:[#allocation2 + $0x18] sm:$0xff]
        %v3931 = vld [vmem:[#allocation2 + $0x20] sm:$0xf]
        %3936 = vrot.lane.b32.xlu0 %v3928, 1
        %v3937 = vpop.permute.xlu0 %3936
        %3938 = vrot.lane.b32.xlu0 %v3929, 1
        %v3939 = vpop.permute.xlu0 %3938
        %3940 = vrot.lane.b32.xlu0 %v3930, 1
        %v3941 = vpop.permute.xlu0 %3940
        %3942 = vrot.lane.b32.xlu0 %v3931, 1
        %v3943 = vpop.permute.xlu0 %3942
        %v3944 = vrot.slane %v3937, 4
        %v3945 = vrot.slane %v3939, 4
        %v3946 = vrot.slane %v3941, 4
        %v3947 = vrot.slane %v3943, 4
        %v3948 = vsel %vm635, %v3944, %v3945
        %v3949 = vsel %vm781, %v3937, %v3948
        %v3950 = vsel %vm635, %v3946, %v3947
        %v3951 = vsel %vm781, %v3941, %v3950
        %3954 = vst [vmem:[#allocation4 + $0xc0] sm:$0xff] %v3949
        %3955 = vst [vmem:[#allocation4 + $0xd0] sm:$0xff] %v3951
        %v3956 = vld [vmem:[#allocation2 + $0x4] sm:$0xff]
        %v3957 = vld [vmem:[#allocation2 + $0x1c] sm:$0xff]
        %3958 = vst [vmem:[#allocation4 + $0xe0] sm:$0xff] %v3956
        %3959 = vst [vmem:[#allocation4 + $0xf0] sm:$0xff] %v3957
        %v3960 = vld [vmem:[#allocation2 + $0x4] sm:$0xff]
        %v3961 = vld [vmem:[#allocation2 + $0xc] sm:$0xf]
        %v3962 = vld [vmem:[#allocation2 + $0x1c] sm:$0xff]
        %v3963 = vld [vmem:[#allocation2 + $0x24] sm:$0xf]
        %3968 = vrot.lane.b32.xlu0 %v3960, 127
        %v3969 = vpop.permute.xlu0 %3968
        %3970 = vrot.lane.b32.xlu0 %v3961, 127
        %v3971 = vpop.permute.xlu0 %3970
        %3972 = vrot.lane.b32.xlu0 %v3962, 127
        %v3973 = vpop.permute.xlu0 %3972
        %3974 = vrot.lane.b32.xlu0 %v3963, 127
        %v3975 = vpop.permute.xlu0 %3974
        %v3976 = vrot.slane %v3969, 4
        %v3977 = vrot.slane %v3971, 4
        %v3978 = vrot.slane %v3973, 4
        %v3979 = vrot.slane %v3975, 4
        %v3980 = vsel %vm635, %v3976, %v3977
        %v3981 = vsel %vm809, %v3969, %v3980
        %v3982 = vsel %vm635, %v3978, %v3979
        %v3983 = vsel %vm809, %v3973, %v3982
        %3986 = vst [vmem:[#allocation4 + $0x100] sm:$0xff] %v3981
        %3987 = vst [vmem:[#allocation4 + $0x110] sm:$0xff] %v3983
        %v3988 = vld [vmem:[#allocation2 + $0x4] sm:$0xff]
        %v3989 = vld [vmem:[#allocation2 + $0xc] sm:$0xf]
        %v3990 = vld [vmem:[#allocation2 + $0x1c] sm:$0xff]
        %v3991 = vld [vmem:[#allocation2 + $0x24] sm:$0xf]
        %3996 = vrot.lane.b32.xlu0 %v3988, 126
        %v3997 = vpop.permute.xlu0 %3996
        %3998 = vrot.lane.b32.xlu0 %v3989, 126
        %v3999 = vpop.permute.xlu0 %3998
        %4000 = vrot.lane.b32.xlu0 %v3990, 126
        %v4001 = vpop.permute.xlu0 %4000
        %4002 = vrot.lane.b32.xlu0 %v3991, 126
        %v4003 = vpop.permute.xlu0 %4002
        %v4004 = vrot.slane %v3997, 4
        %v4005 = vrot.slane %v3999, 4
        %v4006 = vrot.slane %v4001, 4
        %v4007 = vrot.slane %v4003, 4
        %v4008 = vsel %vm635, %v4004, %v4005
        %v4009 = vsel %vm833, %v3997, %v4008
        %v4010 = vsel %vm635, %v4006, %v4007
        %v4011 = vsel %vm833, %v4001, %v4010
        %4014 = vst [vmem:[#allocation4 + $0x120] sm:$0xff] %v4009
        %4015 = vst [vmem:[#allocation4 + $0x130] sm:$0xff] %v4011
        %v4016 = vld [vmem:[#allocation2 + $0x4] sm:$0xff]
        %v4017 = vld [vmem:[#allocation2 + $0xc] sm:$0xf]
        %v4018 = vld [vmem:[#allocation2 + $0x1c] sm:$0xff]
        %v4019 = vld [vmem:[#allocation2 + $0x24] sm:$0xf]
        %4024 = vrot.lane.b32.xlu0 %v4016, 125
        %v4025 = vpop.permute.xlu0 %4024
        %4026 = vrot.lane.b32.xlu0 %v4017, 125
        %v4027 = vpop.permute.xlu0 %4026
        %4028 = vrot.lane.b32.xlu0 %v4018, 125
        %v4029 = vpop.permute.xlu0 %4028
        %4030 = vrot.lane.b32.xlu0 %v4019, 125
        %v4031 = vpop.permute.xlu0 %4030
        %v4032 = vrot.slane %v4025, 4
        %v4033 = vrot.slane %v4027, 4
        %v4034 = vrot.slane %v4029, 4
        %v4035 = vrot.slane %v4031, 4
        %v4036 = vsel %vm635, %v4032, %v4033
        %v4037 = vsel %vm857, %v4025, %v4036
        %v4038 = vsel %vm635, %v4034, %v4035
        %v4039 = vsel %vm857, %v4029, %v4038
        %4042 = vst [vmem:[#allocation4 + $0x140] sm:$0xff] %v4037
        %4043 = vst [vmem:[#allocation4 + $0x150] sm:$0xff] %v4039
        %v4044 = vld [vmem:[#allocation2 + $0x4] sm:$0xff]
        %v4045 = vld [vmem:[#allocation2 + $0xc] sm:$0xf]
        %v4046 = vld [vmem:[#allocation2 + $0x1c] sm:$0xff]
        %v4047 = vld [vmem:[#allocation2 + $0x24] sm:$0xf]
        %4052 = vrot.lane.b32.xlu0 %v4044, 124
        %v4053 = vpop.permute.xlu0 %4052
        %4054 = vrot.lane.b32.xlu0 %v4045, 124
        %v4055 = vpop.permute.xlu0 %4054
        %4056 = vrot.lane.b32.xlu0 %v4046, 124
        %v4057 = vpop.permute.xlu0 %4056
        %4058 = vrot.lane.b32.xlu0 %v4047, 124
        %v4059 = vpop.permute.xlu0 %4058
        %v4060 = vrot.slane %v4053, 4
        %v4061 = vrot.slane %v4055, 4
        %v4062 = vrot.slane %v4057, 4
        %v4063 = vrot.slane %v4059, 4
        %v4064 = vsel %vm635, %v4060, %v4061
        %v4065 = vsel %vm881, %v4053, %v4064
        %v4066 = vsel %vm635, %v4062, %v4063
        %v4067 = vsel %vm881, %v4057, %v4066
        %4070 = vst [vmem:[#allocation4 + $0x160] sm:$0xff] %v4065
        %4071 = vst [vmem:[#allocation4 + $0x170] sm:$0xff] %v4067
        %v4072 = vld [vmem:[#allocation2 + $0x4] sm:$0xff]
        %v4073 = vld [vmem:[#allocation2 + $0xc] sm:$0xf]
        %v4074 = vld [vmem:[#allocation2 + $0x1c] sm:$0xff]
        %v4075 = vld [vmem:[#allocation2 + $0x24] sm:$0xf]
        %4080 = vrot.lane.b32.xlu0 %v4072, 123
        %v4081 = vpop.permute.xlu0 %4080
        %4082 = vrot.lane.b32.xlu0 %v4073, 123
        %v4083 = vpop.permute.xlu0 %4082
        %4084 = vrot.lane.b32.xlu0 %v4074, 123
        %v4085 = vpop.permute.xlu0 %4084
        %4086 = vrot.lane.b32.xlu0 %v4075, 123
        %v4087 = vpop.permute.xlu0 %4086
        %v4088 = vrot.slane %v4081, 4
        %v4089 = vrot.slane %v4083, 4
        %v4090 = vrot.slane %v4085, 4
        %v4091 = vrot.slane %v4087, 4
        %v4092 = vsel %vm635, %v4088, %v4089
        %v4093 = vsel %vm905, %v4081, %v4092
        %v4094 = vsel %vm635, %v4090, %v4091
        %v4095 = vsel %vm905, %v4085, %v4094
        %4098 = vst [vmem:[#allocation4 + $0x180] sm:$0xff] %v4093
        %4099 = vst [vmem:[#allocation4 + $0x190] sm:$0xff] %v4095
        %v4100 = vld [vmem:[#allocation2 + $0x4] sm:$0xff]
        %v4101 = vld [vmem:[#allocation2 + $0xc] sm:$0xf]
        %v4102 = vld [vmem:[#allocation2 + $0x1c] sm:$0xff]
        %v4103 = vld [vmem:[#allocation2 + $0x24] sm:$0xf]
        %4108 = vrot.lane.b32.xlu0 %v4100, 122
        %v4109 = vpop.permute.xlu0 %4108
        %4110 = vrot.lane.b32.xlu0 %v4101, 122
        %v4111 = vpop.permute.xlu0 %4110
        %4112 = vrot.lane.b32.xlu0 %v4102, 122
        %v4113 = vpop.permute.xlu0 %4112
        %4114 = vrot.lane.b32.xlu0 %v4103, 122
        %v4115 = vpop.permute.xlu0 %4114
        %v4116 = vrot.slane %v4109, 4
        %v4117 = vrot.slane %v4111, 4
        %v4118 = vrot.slane %v4113, 4
        %v4119 = vrot.slane %v4115, 4
        %v4120 = vsel %vm635, %v4116, %v4117
        %v4121 = vsel %vm929, %v4109, %v4120
        %v4122 = vsel %vm635, %v4118, %v4119
        %v4123 = vsel %vm929, %v4113, %v4122
        %4126 = vst [vmem:[#allocation4 + $0x1a0] sm:$0xff] %v4121
        %4127 = vst [vmem:[#allocation4 + $0x1b0] sm:$0xff] %v4123
        %v4128 = vld [vmem:[#allocation2 + $0x4] sm:$0xff]
        %v4129 = vld [vmem:[#allocation2 + $0xc] sm:$0xf]
        %v4130 = vld [vmem:[#allocation2 + $0x1c] sm:$0xff]
        %v4131 = vld [vmem:[#allocation2 + $0x24] sm:$0xf]
        %4136 = vrot.lane.b32.xlu0 %v4128, 121
        %v4137 = vpop.permute.xlu0 %4136
        %4138 = vrot.lane.b32.xlu0 %v4129, 121
        %v4139 = vpop.permute.xlu0 %4138
        %4140 = vrot.lane.b32.xlu0 %v4130, 121
        %v4141 = vpop.permute.xlu0 %4140
        %4142 = vrot.lane.b32.xlu0 %v4131, 121
        %v4143 = vpop.permute.xlu0 %4142
        %v4144 = vrot.slane %v4137, 4
        %v4145 = vrot.slane %v4139, 4
        %v4146 = vrot.slane %v4141, 4
        %v4147 = vrot.slane %v4143, 4
        %v4148 = vsel %vm635, %v4144, %v4145
        %v4149 = vsel %vm953, %v4137, %v4148
        %v4150 = vsel %vm635, %v4146, %v4147
        %v4151 = vsel %vm953, %v4141, %v4150
        %4154 = vst [vmem:[#allocation4 + $0x1c0] sm:$0xff] %v4149
        %4155 = vst [vmem:[#allocation4 + $0x1d0] sm:$0xff] %v4151
        %v4156 = vld [vmem:[%s5] sm:$0xff]
        %v4157 = vld [vmem:[%s5 + $0x8] sm:$0xff]
        %v4158 = vld [vmem:[#allocation4] sm:$0xff]
        %v4159 = vld [vmem:[#allocation4 + $0x10] sm:$0xff]
        %v4160 = vld [vmem:[#allocation4 + $0x20] sm:$0xff]
        %v4161 = vld [vmem:[#allocation4 + $0x30] sm:$0xff]
        %v4162 = vld [vmem:[#allocation4 + $0x40] sm:$0xff]
        %v4163 = vld [vmem:[#allocation4 + $0x50] sm:$0xff]
        %v4164 = vld [vmem:[#allocation4 + $0x60] sm:$0xff]
        %v4165 = vld [vmem:[#allocation4 + $0x70] sm:$0xff]
        %v4166 = vld [vmem:[#allocation4 + $0x80] sm:$0xff]
        %v4167 = vld [vmem:[#allocation4 + $0x90] sm:$0xff]
        %v4168 = vld [vmem:[#allocation4 + $0xa0] sm:$0xff]
        %v4169 = vld [vmem:[#allocation4 + $0xb0] sm:$0xff]
        %v4170 = vld [vmem:[#allocation4 + $0xc0] sm:$0xff]
        %v4171 = vld [vmem:[#allocation4 + $0xd0] sm:$0xff]
        %v4172 = vld [vmem:[#allocation4 + $0xe0] sm:$0xff]
        %v4173 = vld [vmem:[#allocation4 + $0xf0] sm:$0xff]
        %v4174 = vld [vmem:[#allocation4 + $0x100] sm:$0xff]
        %v4175 = vld [vmem:[#allocation4 + $0x110] sm:$0xff]
        %v4176 = vld [vmem:[#allocation4 + $0x120] sm:$0xff]
        %v4177 = vld [vmem:[#allocation4 + $0x130] sm:$0xff]
        %v4178 = vld [vmem:[#allocation4 + $0x140] sm:$0xff]
        %v4179 = vld [vmem:[#allocation4 + $0x150] sm:$0xff]
        %v4180 = vld [vmem:[#allocation4 + $0x160] sm:$0xff]
        %v4181 = vld [vmem:[#allocation4 + $0x170] sm:$0xff]
        %v4182 = vld [vmem:[#allocation4 + $0x180] sm:$0xff]
        %v4183 = vld [vmem:[#allocation4 + $0x190] sm:$0xff]
        %v4184 = vld [vmem:[#allocation4 + $0x1a0] sm:$0xff]
        %v4185 = vld [vmem:[#allocation4 + $0x1b0] sm:$0xff]
        %v4186 = vld [vmem:[#allocation4 + $0x1c0] sm:$0xff]
        %v4187 = vld [vmem:[#allocation4 + $0x1d0] sm:$0xff]
        %v4190 = vunpack.c.l.b16 %v4156
        %v4191 = vunpack.c.h.b16 %v4156
        %v4192 = vunpack.c.l.b16 %v4157
        %v4193 = vunpack.c.h.b16 %v4157
        %v4194 = vpack.c.b16 %v4192, %v4190
        %v4195 = vpack.c.b16 %v4193, %v4191
        %v4227 = vunpack.c.l.b16 %v4158
        %v4228 = vunpack.c.h.b16 %v4158
        %v4229 = vunpack.c.l.b16 %v4159
        %v4230 = vunpack.c.h.b16 %v4159
        %v4231 = vunpack.c.l.b16 %v4160
        %v4232 = vunpack.c.h.b16 %v4160
        %v4233 = vunpack.c.l.b16 %v4161
        %v4234 = vunpack.c.h.b16 %v4161
        %v4235 = vunpack.c.l.b16 %v4162
        %v4236 = vunpack.c.h.b16 %v4162
        %v4237 = vunpack.c.l.b16 %v4163
        %v4238 = vunpack.c.h.b16 %v4163
        %v4239 = vunpack.c.l.b16 %v4164
        %v4240 = vunpack.c.h.b16 %v4164
        %v4241 = vunpack.c.l.b16 %v4165
        %v4242 = vunpack.c.h.b16 %v4165
        %v4243 = vunpack.c.l.b16 %v4166
        %v4244 = vunpack.c.h.b16 %v4166
        %v4245 = vunpack.c.l.b16 %v4167
        %v4246 = vunpack.c.h.b16 %v4167
        %v4247 = vunpack.c.l.b16 %v4168
        %v4248 = vunpack.c.h.b16 %v4168
        %v4249 = vunpack.c.l.b16 %v4169
        %v4250 = vunpack.c.h.b16 %v4169
        %v4251 = vunpack.c.l.b16 %v4170
        %v4252 = vunpack.c.h.b16 %v4170
        %v4253 = vunpack.c.l.b16 %v4171
        %v4254 = vunpack.c.h.b16 %v4171
        %v4255 = vunpack.c.l.b16 %v4172
        %v4256 = vunpack.c.h.b16 %v4172
        %v4257 = vunpack.c.l.b16 %v4173
        %v4258 = vunpack.c.h.b16 %v4173
        %v4259 = vunpack.c.l.b16 %v4174
        %v4260 = vunpack.c.h.b16 %v4174
        %v4261 = vunpack.c.l.b16 %v4175
        %v4262 = vunpack.c.h.b16 %v4175
        %v4263 = vunpack.c.l.b16 %v4176
        %v4264 = vunpack.c.h.b16 %v4176
        %v4265 = vunpack.c.l.b16 %v4177
        %v4266 = vunpack.c.h.b16 %v4177
        %v4267 = vunpack.c.l.b16 %v4178
        %v4268 = vunpack.c.h.b16 %v4178
        %v4269 = vunpack.c.l.b16 %v4179
        %v4270 = vunpack.c.h.b16 %v4179
        %v4271 = vunpack.c.l.b16 %v4180
        %v4272 = vunpack.c.h.b16 %v4180
        %v4273 = vunpack.c.l.b16 %v4181
        %v4274 = vunpack.c.h.b16 %v4181
        %v4275 = vunpack.c.l.b16 %v4182
        %v4276 = vunpack.c.h.b16 %v4182
        %v4277 = vunpack.c.l.b16 %v4183
        %v4278 = vunpack.c.h.b16 %v4183
        %v4279 = vunpack.c.l.b16 %v4184
        %v4280 = vunpack.c.h.b16 %v4184
        %v4281 = vunpack.c.l.b16 %v4185
        %v4282 = vunpack.c.h.b16 %v4185
        %v4283 = vunpack.c.l.b16 %v4186
        %v4284 = vunpack.c.h.b16 %v4186
        %v4285 = vunpack.c.l.b16 %v4187
        %v4286 = vunpack.c.h.b16 %v4187
        %v4287 = vpack.c.b16 %v4229, %v4227
        %v4288 = vpack.c.b16 %v4230, %v4228
        %v4289 = vpack.c.b16 %v4233, %v4231
        %v4290 = vpack.c.b16 %v4234, %v4232
        %v4291 = vpack.c.b16 %v4237, %v4235
        %v4292 = vpack.c.b16 %v4238, %v4236
        %v4293 = vpack.c.b16 %v4241, %v4239
        %v4294 = vpack.c.b16 %v4242, %v4240
        %v4295 = vpack.c.b16 %v4245, %v4243
        %v4296 = vpack.c.b16 %v4246, %v4244
        %v4297 = vpack.c.b16 %v4249, %v4247
        %v4298 = vpack.c.b16 %v4250, %v4248
        %v4299 = vpack.c.b16 %v4253, %v4251
        %v4300 = vpack.c.b16 %v4254, %v4252
        %v4301 = vpack.c.b16 %v4257, %v4255
        %v4302 = vpack.c.b16 %v4258, %v4256
        %v4303 = vpack.c.b16 %v4261, %v4259
        %v4304 = vpack.c.b16 %v4262, %v4260
        %v4305 = vpack.c.b16 %v4265, %v4263
        %v4306 = vpack.c.b16 %v4266, %v4264
        %v4307 = vpack.c.b16 %v4269, %v4267
        %v4308 = vpack.c.b16 %v4270, %v4268
        %v4309 = vpack.c.b16 %v4273, %v4271
        %v4310 = vpack.c.b16 %v4274, %v4272
        %v4311 = vpack.c.b16 %v4277, %v4275
        %v4312 = vpack.c.b16 %v4278, %v4276
        %v4313 = vpack.c.b16 %v4281, %v4279
        %v4314 = vpack.c.b16 %v4282, %v4280
        %v4315 = vpack.c.b16 %v4285, %v4283
        %v4316 = vpack.c.b16 %v4286, %v4284
        %vm4347 = vcmask 916480
        %v4349 = vsel %vm4347, %v4195, 0
        %4351 = vmatprep.subr.bf16.mxu0 %v4302
        %4352 = vmatpush1.bf16.msra.mxu0 %v4301
        %4353 = vmatprep.subr.bf16.mxu0 %v4300
        %4354 = vmatpush1.bf16.msra.mxu0 %v4299
        %4355 = vmatprep.subr.bf16.mxu0 %v4298
        %4356 = vmatpush1.bf16.msra.mxu0 %v4297
        %4357 = vmatprep.subr.bf16.mxu0 %v4296
        %4358 = vmatpush1.bf16.msra.mxu0 %v4295
        %4359 = vmatprep.subr.bf16.mxu0 %v4294
        %4360 = vmatpush1.bf16.msra.mxu0 %v4293
        %4361 = vmatprep.subr.bf16.mxu0 %v4292
        %4362 = vmatpush1.bf16.msra.mxu0 %v4291
        %4363 = vmatprep.subr.bf16.mxu0 %v4290
        %4364 = vmatpush1.bf16.msra.mxu0 %v4289
        %4365 = vmatprep.subr.bf16.mxu0 %v4288
        %4366 = vmatpush1.bf16.msra.mxu0 %v4287
        %4367 = vmatprep.subr.bf16.mxu0 0
        %4368 = vmatpush2.bf16.msra.mxu0 0
        %4369 = vmatprep.subr.bf16.mxu0 %v4316
        %4370 = vmatpush2.bf16.msra.mxu0 %v4315
        %4371 = vmatprep.subr.bf16.mxu0 %v4314
        %4372 = vmatpush2.bf16.msra.mxu0 %v4313
        %4373 = vmatprep.subr.bf16.mxu0 %v4312
        %4374 = vmatpush2.bf16.msra.mxu0 %v4311
        %4375 = vmatprep.subr.bf16.mxu0 %v4310
        %4376 = vmatpush2.bf16.msra.mxu0 %v4309
        %4377 = vmatprep.subr.bf16.mxu0 %v4308
        %4378 = vmatpush2.bf16.msra.mxu0 %v4307
        %4379 = vmatprep.subr.bf16.mxu0 %v4306
        %4380 = vmatpush2.bf16.msra.mxu0 %v4305
        %4381 = vmatprep.subr.bf16.mxu0 %v4304
        %4382 = vmatpush2.bf16.msra.mxu0 %v4303
        %4383 = vmatprep.mubr.bf16.mxu0 %v4349
        %4384 = vmatmul.mubr.bf16.gmra.mxu0 %v4194
        %v4385 = vpop.f32.mrf.mxu0
        %v4386 = vadd.f32 0.0, %v4385
        %v4387 = vpop.f32.mrf.mxu0
        %v4388 = vadd.f32 0.0, %v4387
        %v4389 = vpop.f32.mrf.mxu0
        %v4390 = vadd.f32 0.0, %v4389
        %v4391 = vpop.f32.mrf.mxu0
        %v4392 = vadd.f32 0.0, %v4391
        %4393 = vdwg.mxu0
        %v4394 = vld [vmem:[%s13] sm:$0xff]
        %v4395 = vld [vmem:[%s13 + $0x8] sm:$0xff]
        %4397 = vset.pattern.permute.xlu0 0
        %4398 = vperm.xlu0 %4397, %v4394
        %v4399 = vpop.permute.xlu0 %4398
        %4402 = vset.pattern.permute.xlu0 0
        %4403 = vperm.xlu0 %4402, %v4395
        %v4404 = vpop.permute.xlu0 %4403
        %v4406 = vmul.f32 %v4386, %v4399
        %v4407 = vmul.f32 %v4388, %v4399
        %v4408 = vmul.f32 %v4390, %v4404
        %v4409 = vmul.f32 %v4392, %v4404
        %4410 = vset.pattern.permute.xlu0 1
        %4411 = vperm.xlu0 %4410, %v4394
        %v4412 = vpop.permute.xlu0 %4411
        %4414 = vset.pattern.permute.xlu0 1
        %4415 = vperm.xlu0 %4414, %v4395
        %v4416 = vpop.permute.xlu0 %4415
        %v4418 = vadd.f32 %v4406, %v4412
        %v4419 = vadd.f32 %v4407, %v4412
        %v4420 = vadd.f32 %v4408, %v4416
        %v4421 = vadd.f32 %v4409, %v4416
        %vm4422 = vcmp.gt.f32.partialorder %v4418, 0.0
        %vm4423 = vcmp.gt.f32.partialorder %v4419, 0.0
        %vm4424 = vcmp.gt.f32.partialorder %v4420, 0.0
        %vm4425 = vcmp.gt.f32.partialorder %v4421, 0.0
        %v4426 = vmul.f32 %v4418, 0.1
        %v4427 = vmul.f32 %v4419, 0.1
        %v4428 = vmul.f32 %v4420, 0.1
        %v4429 = vmul.f32 %v4421, 0.1
        %v4430 = vsel %vm4422, %v4418, %v4426
        %v4431 = vsel %vm4423, %v4419, %v4427
        %v4432 = vsel %vm4424, %v4420, %v4428
        %v4433 = vsel %vm4425, %v4421, %v4429
        %v4434 = vpack.c.bf16 %v4432, %v4430
        %v4435 = vpack.c.bf16 %v4433, %v4431
        %v4438 = vunpack.c.l.b16 %v4434
        %v4439 = vunpack.c.l.b16 %v4435
        %v4440 = vunpack.c.h.b16 %v4434
        %v4441 = vunpack.c.h.b16 %v4435
        %v4442 = vpack.c.b16 %v4439, %v4438
        %v4443 = vpack.c.b16 %v4441, %v4440
        %4446 = vst [vmem:[#allocation3 + $0x4] sm:$0xff] %v4442
        %4447 = vst [vmem:[#allocation3 + $0x1c] sm:$0xff] %v4443
        %4448 = vst [vmem:[#allocation3 + $0xc] sm:$0xf] 0
        %4449 = vst [vmem:[#allocation3 + $0x24] sm:$0xf] 0
        %v4450 = vld [vmem:[#allocation3] sm:$0xff]
        %v4451 = vld [vmem:[#allocation3 + $0x8] sm:$0xf]
        %v4452 = vld [vmem:[#allocation3 + $0x18] sm:$0xff]
        %v4453 = vld [vmem:[#allocation3 + $0x20] sm:$0xf]
        %4458 = vrot.lane.b32.xlu0 %v4450, 7
        %v4459 = vpop.permute.xlu0 %4458
        %4460 = vrot.lane.b32.xlu0 %v4451, 7
        %v4461 = vpop.permute.xlu0 %4460
        %4462 = vrot.lane.b32.xlu0 %v4452, 7
        %v4463 = vpop.permute.xlu0 %4462
        %4464 = vrot.lane.b32.xlu0 %v4453, 7
        %v4465 = vpop.permute.xlu0 %4464
        %v4466 = vrot.slane %v4459, 4
        %v4467 = vrot.slane %v4461, 4
        %v4468 = vrot.slane %v4463, 4
        %v4469 = vrot.slane %v4465, 4
        %v4470 = vsel %vm635, %v4466, %v4467
        %v4471 = vsel %vm637, %v4459, %v4470
        %v4472 = vsel %vm635, %v4468, %v4469
        %v4473 = vsel %vm637, %v4463, %v4472
        %4476 = vst [vmem:[#allocation4] sm:$0xff] %v4471
        %4477 = vst [vmem:[#allocation4 + $0x10] sm:$0xff] %v4473
        %v4478 = vld [vmem:[#allocation3] sm:$0xff]
        %v4479 = vld [vmem:[#allocation3 + $0x8] sm:$0xf]
        %v4480 = vld [vmem:[#allocation3 + $0x18] sm:$0xff]
        %v4481 = vld [vmem:[#allocation3 + $0x20] sm:$0xf]
        %4486 = vrot.lane.b32.xlu0 %v4478, 6
        %v4487 = vpop.permute.xlu0 %4486
        %4488 = vrot.lane.b32.xlu0 %v4479, 6
        %v4489 = vpop.permute.xlu0 %4488
        %4490 = vrot.lane.b32.xlu0 %v4480, 6
        %v4491 = vpop.permute.xlu0 %4490
        %4492 = vrot.lane.b32.xlu0 %v4481, 6
        %v4493 = vpop.permute.xlu0 %4492
        %v4494 = vrot.slane %v4487, 4
        %v4495 = vrot.slane %v4489, 4
        %v4496 = vrot.slane %v4491, 4
        %v4497 = vrot.slane %v4493, 4
        %v4498 = vsel %vm635, %v4494, %v4495
        %v4499 = vsel %vm661, %v4487, %v4498
        %v4500 = vsel %vm635, %v4496, %v4497
        %v4501 = vsel %vm661, %v4491, %v4500
        %4504 = vst [vmem:[#allocation4 + $0x20] sm:$0xff] %v4499
        %4505 = vst [vmem:[#allocation4 + $0x30] sm:$0xff] %v4501
        %v4506 = vld [vmem:[#allocation3] sm:$0xff]
        %v4507 = vld [vmem:[#allocation3 + $0x8] sm:$0xf]
        %v4508 = vld [vmem:[#allocation3 + $0x18] sm:$0xff]
        %v4509 = vld [vmem:[#allocation3 + $0x20] sm:$0xf]
        %4514 = vrot.lane.b32.xlu0 %v4506, 5
        %v4515 = vpop.permute.xlu0 %4514
        %4516 = vrot.lane.b32.xlu0 %v4507, 5
        %v4517 = vpop.permute.xlu0 %4516
        %4518 = vrot.lane.b32.xlu0 %v4508, 5
        %v4519 = vpop.permute.xlu0 %4518
        %4520 = vrot.lane.b32.xlu0 %v4509, 5
        %v4521 = vpop.permute.xlu0 %4520
        %v4522 = vrot.slane %v4515, 4
        %v4523 = vrot.slane %v4517, 4
        %v4524 = vrot.slane %v4519, 4
        %v4525 = vrot.slane %v4521, 4
        %v4526 = vsel %vm635, %v4522, %v4523
        %v4527 = vsel %vm685, %v4515, %v4526
        %v4528 = vsel %vm635, %v4524, %v4525
        %v4529 = vsel %vm685, %v4519, %v4528
        %4532 = vst [vmem:[#allocation4 + $0x40] sm:$0xff] %v4527
        %4533 = vst [vmem:[#allocation4 + $0x50] sm:$0xff] %v4529
        %v4534 = vld [vmem:[#allocation3] sm:$0xff]
        %v4535 = vld [vmem:[#allocation3 + $0x8] sm:$0xf]
        %v4536 = vld [vmem:[#allocation3 + $0x18] sm:$0xff]
        %v4537 = vld [vmem:[#allocation3 + $0x20] sm:$0xf]
        %4542 = vrot.lane.b32.xlu0 %v4534, 4
        %v4543 = vpop.permute.xlu0 %4542
        %4544 = vrot.lane.b32.xlu0 %v4535, 4
        %v4545 = vpop.permute.xlu0 %4544
        %4546 = vrot.lane.b32.xlu0 %v4536, 4
        %v4547 = vpop.permute.xlu0 %4546
        %4548 = vrot.lane.b32.xlu0 %v4537, 4
        %v4549 = vpop.permute.xlu0 %4548
        %v4550 = vrot.slane %v4543, 4
        %v4551 = vrot.slane %v4545, 4
        %v4552 = vrot.slane %v4547, 4
        %v4553 = vrot.slane %v4549, 4
        %v4554 = vsel %vm635, %v4550, %v4551
        %v4555 = vsel %vm709, %v4543, %v4554
        %v4556 = vsel %vm635, %v4552, %v4553
        %v4557 = vsel %vm709, %v4547, %v4556
        %4560 = vst [vmem:[#allocation4 + $0x60] sm:$0xff] %v4555
        %4561 = vst [vmem:[#allocation4 + $0x70] sm:$0xff] %v4557
        %v4562 = vld [vmem:[#allocation3] sm:$0xff]
        %v4563 = vld [vmem:[#allocation3 + $0x8] sm:$0xf]
        %v4564 = vld [vmem:[#allocation3 + $0x18] sm:$0xff]
        %v4565 = vld [vmem:[#allocation3 + $0x20] sm:$0xf]
        %4570 = vrot.lane.b32.xlu0 %v4562, 3
        %v4571 = vpop.permute.xlu0 %4570
        %4572 = vrot.lane.b32.xlu0 %v4563, 3
        %v4573 = vpop.permute.xlu0 %4572
        %4574 = vrot.lane.b32.xlu0 %v4564, 3
        %v4575 = vpop.permute.xlu0 %4574
        %4576 = vrot.lane.b32.xlu0 %v4565, 3
        %v4577 = vpop.permute.xlu0 %4576
        %v4578 = vrot.slane %v4571, 4
        %v4579 = vrot.slane %v4573, 4
        %v4580 = vrot.slane %v4575, 4
        %v4581 = vrot.slane %v4577, 4
        %v4582 = vsel %vm635, %v4578, %v4579
        %v4583 = vsel %vm733, %v4571, %v4582
        %v4584 = vsel %vm635, %v4580, %v4581
        %v4585 = vsel %vm733, %v4575, %v4584
        %4588 = vst [vmem:[#allocation4 + $0x80] sm:$0xff] %v4583
        %4589 = vst [vmem:[#allocation4 + $0x90] sm:$0xff] %v4585
        %v4590 = vld [vmem:[#allocation3] sm:$0xff]
        %v4591 = vld [vmem:[#allocation3 + $0x8] sm:$0xf]
        %v4592 = vld [vmem:[#allocation3 + $0x18] sm:$0xff]
        %v4593 = vld [vmem:[#allocation3 + $0x20] sm:$0xf]
        %4598 = vrot.lane.b32.xlu0 %v4590, 2
        %v4599 = vpop.permute.xlu0 %4598
        %4600 = vrot.lane.b32.xlu0 %v4591, 2
        %v4601 = vpop.permute.xlu0 %4600
        %4602 = vrot.lane.b32.xlu0 %v4592, 2
        %v4603 = vpop.permute.xlu0 %4602
        %4604 = vrot.lane.b32.xlu0 %v4593, 2
        %v4605 = vpop.permute.xlu0 %4604
        %v4606 = vrot.slane %v4599, 4
        %v4607 = vrot.slane %v4601, 4
        %v4608 = vrot.slane %v4603, 4
        %v4609 = vrot.slane %v4605, 4
        %v4610 = vsel %vm635, %v4606, %v4607
        %v4611 = vsel %vm757, %v4599, %v4610
        %v4612 = vsel %vm635, %v4608, %v4609
        %v4613 = vsel %vm757, %v4603, %v4612
        %4616 = vst [vmem:[#allocation4 + $0xa0] sm:$0xff] %v4611
        %4617 = vst [vmem:[#allocation4 + $0xb0] sm:$0xff] %v4613
        %v4618 = vld [vmem:[#allocation3] sm:$0xff]
        %v4619 = vld [vmem:[#allocation3 + $0x8] sm:$0xf]
        %v4620 = vld [vmem:[#allocation3 + $0x18] sm:$0xff]
        %v4621 = vld [vmem:[#allocation3 + $0x20] sm:$0xf]
        %4626 = vrot.lane.b32.xlu0 %v4618, 1
        %v4627 = vpop.permute.xlu0 %4626
        %4628 = vrot.lane.b32.xlu0 %v4619, 1
        %v4629 = vpop.permute.xlu0 %4628
        %4630 = vrot.lane.b32.xlu0 %v4620, 1
        %v4631 = vpop.permute.xlu0 %4630
        %4632 = vrot.lane.b32.xlu0 %v4621, 1
        %v4633 = vpop.permute.xlu0 %4632
        %v4634 = vrot.slane %v4627, 4
        %v4635 = vrot.slane %v4629, 4
        %v4636 = vrot.slane %v4631, 4
        %v4637 = vrot.slane %v4633, 4
        %v4638 = vsel %vm635, %v4634, %v4635
        %v4639 = vsel %vm781, %v4627, %v4638
        %v4640 = vsel %vm635, %v4636, %v4637
        %v4641 = vsel %vm781, %v4631, %v4640
        %4644 = vst [vmem:[#allocation4 + $0xc0] sm:$0xff] %v4639
        %4645 = vst [vmem:[#allocation4 + $0xd0] sm:$0xff] %v4641
        %v4646 = vld [vmem:[#allocation3 + $0x4] sm:$0xff]
        %v4647 = vld [vmem:[#allocation3 + $0x1c] sm:$0xff]
        %4648 = vst [vmem:[#allocation4 + $0xe0] sm:$0xff] %v4646
        %4649 = vst [vmem:[#allocation4 + $0xf0] sm:$0xff] %v4647
        %v4650 = vld [vmem:[#allocation3 + $0x4] sm:$0xff]
        %v4651 = vld [vmem:[#allocation3 + $0xc] sm:$0xf]
        %v4652 = vld [vmem:[#allocation3 + $0x1c] sm:$0xff]
        %v4653 = vld [vmem:[#allocation3 + $0x24] sm:$0xf]
        %4658 = vrot.lane.b32.xlu0 %v4650, 127
        %v4659 = vpop.permute.xlu0 %4658
        %4660 = vrot.lane.b32.xlu0 %v4651, 127
        %v4661 = vpop.permute.xlu0 %4660
        %4662 = vrot.lane.b32.xlu0 %v4652, 127
        %v4663 = vpop.permute.xlu0 %4662
        %4664 = vrot.lane.b32.xlu0 %v4653, 127
        %v4665 = vpop.permute.xlu0 %4664
        %v4666 = vrot.slane %v4659, 4
        %v4667 = vrot.slane %v4661, 4
        %v4668 = vrot.slane %v4663, 4
        %v4669 = vrot.slane %v4665, 4
        %v4670 = vsel %vm635, %v4666, %v4667
        %v4671 = vsel %vm809, %v4659, %v4670
        %v4672 = vsel %vm635, %v4668, %v4669
        %v4673 = vsel %vm809, %v4663, %v4672
        %4676 = vst [vmem:[#allocation4 + $0x100] sm:$0xff] %v4671
        %4677 = vst [vmem:[#allocation4 + $0x110] sm:$0xff] %v4673
        %v4678 = vld [vmem:[#allocation3 + $0x4] sm:$0xff]
        %v4679 = vld [vmem:[#allocation3 + $0xc] sm:$0xf]
        %v4680 = vld [vmem:[#allocation3 + $0x1c] sm:$0xff]
        %v4681 = vld [vmem:[#allocation3 + $0x24] sm:$0xf]
        %4686 = vrot.lane.b32.xlu0 %v4678, 126
        %v4687 = vpop.permute.xlu0 %4686
        %4688 = vrot.lane.b32.xlu0 %v4679, 126
        %v4689 = vpop.permute.xlu0 %4688
        %4690 = vrot.lane.b32.xlu0 %v4680, 126
        %v4691 = vpop.permute.xlu0 %4690
        %4692 = vrot.lane.b32.xlu0 %v4681, 126
        %v4693 = vpop.permute.xlu0 %4692
        %v4694 = vrot.slane %v4687, 4
        %v4695 = vrot.slane %v4689, 4
        %v4696 = vrot.slane %v4691, 4
        %v4697 = vrot.slane %v4693, 4
        %v4698 = vsel %vm635, %v4694, %v4695
        %v4699 = vsel %vm833, %v4687, %v4698
        %v4700 = vsel %vm635, %v4696, %v4697
        %v4701 = vsel %vm833, %v4691, %v4700
        %4704 = vst [vmem:[#allocation4 + $0x120] sm:$0xff] %v4699
        %4705 = vst [vmem:[#allocation4 + $0x130] sm:$0xff] %v4701
        %v4706 = vld [vmem:[#allocation3 + $0x4] sm:$0xff]
        %v4707 = vld [vmem:[#allocation3 + $0xc] sm:$0xf]
        %v4708 = vld [vmem:[#allocation3 + $0x1c] sm:$0xff]
        %v4709 = vld [vmem:[#allocation3 + $0x24] sm:$0xf]
        %4714 = vrot.lane.b32.xlu0 %v4706, 125
        %v4715 = vpop.permute.xlu0 %4714
        %4716 = vrot.lane.b32.xlu0 %v4707, 125
        %v4717 = vpop.permute.xlu0 %4716
        %4718 = vrot.lane.b32.xlu0 %v4708, 125
        %v4719 = vpop.permute.xlu0 %4718
        %4720 = vrot.lane.b32.xlu0 %v4709, 125
        %v4721 = vpop.permute.xlu0 %4720
        %v4722 = vrot.slane %v4715, 4
        %v4723 = vrot.slane %v4717, 4
        %v4724 = vrot.slane %v4719, 4
        %v4725 = vrot.slane %v4721, 4
        %v4726 = vsel %vm635, %v4722, %v4723
        %v4727 = vsel %vm857, %v4715, %v4726
        %v4728 = vsel %vm635, %v4724, %v4725
        %v4729 = vsel %vm857, %v4719, %v4728
        %4732 = vst [vmem:[#allocation4 + $0x140] sm:$0xff] %v4727
        %4733 = vst [vmem:[#allocation4 + $0x150] sm:$0xff] %v4729
        %v4734 = vld [vmem:[#allocation3 + $0x4] sm:$0xff]
        %v4735 = vld [vmem:[#allocation3 + $0xc] sm:$0xf]
        %v4736 = vld [vmem:[#allocation3 + $0x1c] sm:$0xff]
        %v4737 = vld [vmem:[#allocation3 + $0x24] sm:$0xf]
        %4742 = vrot.lane.b32.xlu0 %v4734, 124
        %v4743 = vpop.permute.xlu0 %4742
        %4744 = vrot.lane.b32.xlu0 %v4735, 124
        %v4745 = vpop.permute.xlu0 %4744
        %4746 = vrot.lane.b32.xlu0 %v4736, 124
        %v4747 = vpop.permute.xlu0 %4746
        %4748 = vrot.lane.b32.xlu0 %v4737, 124
        %v4749 = vpop.permute.xlu0 %4748
        %v4750 = vrot.slane %v4743, 4
        %v4751 = vrot.slane %v4745, 4
        %v4752 = vrot.slane %v4747, 4
        %v4753 = vrot.slane %v4749, 4
        %v4754 = vsel %vm635, %v4750, %v4751
        %v4755 = vsel %vm881, %v4743, %v4754
        %v4756 = vsel %vm635, %v4752, %v4753
        %v4757 = vsel %vm881, %v4747, %v4756
        %4760 = vst [vmem:[#allocation4 + $0x160] sm:$0xff] %v4755
        %4761 = vst [vmem:[#allocation4 + $0x170] sm:$0xff] %v4757
        %v4762 = vld [vmem:[#allocation3 + $0x4] sm:$0xff]
        %v4763 = vld [vmem:[#allocation3 + $0xc] sm:$0xf]
        %v4764 = vld [vmem:[#allocation3 + $0x1c] sm:$0xff]
        %v4765 = vld [vmem:[#allocation3 + $0x24] sm:$0xf]
        %4770 = vrot.lane.b32.xlu0 %v4762, 123
        %v4771 = vpop.permute.xlu0 %4770
        %4772 = vrot.lane.b32.xlu0 %v4763, 123
        %v4773 = vpop.permute.xlu0 %4772
        %4774 = vrot.lane.b32.xlu0 %v4764, 123
        %v4775 = vpop.permute.xlu0 %4774
        %4776 = vrot.lane.b32.xlu0 %v4765, 123
        %v4777 = vpop.permute.xlu0 %4776
        %v4778 = vrot.slane %v4771, 4
        %v4779 = vrot.slane %v4773, 4
        %v4780 = vrot.slane %v4775, 4
        %v4781 = vrot.slane %v4777, 4
        %v4782 = vsel %vm635, %v4778, %v4779
        %v4783 = vsel %vm905, %v4771, %v4782
        %v4784 = vsel %vm635, %v4780, %v4781
        %v4785 = vsel %vm905, %v4775, %v4784
        %4788 = vst [vmem:[#allocation4 + $0x180] sm:$0xff] %v4783
        %4789 = vst [vmem:[#allocation4 + $0x190] sm:$0xff] %v4785
        %v4790 = vld [vmem:[#allocation3 + $0x4] sm:$0xff]
        %v4791 = vld [vmem:[#allocation3 + $0xc] sm:$0xf]
        %v4792 = vld [vmem:[#allocation3 + $0x1c] sm:$0xff]
        %v4793 = vld [vmem:[#allocation3 + $0x24] sm:$0xf]
        %4798 = vrot.lane.b32.xlu0 %v4790, 122
        %v4799 = vpop.permute.xlu0 %4798
        %4800 = vrot.lane.b32.xlu0 %v4791, 122
        %v4801 = vpop.permute.xlu0 %4800
        %4802 = vrot.lane.b32.xlu0 %v4792, 122
        %v4803 = vpop.permute.xlu0 %4802
        %4804 = vrot.lane.b32.xlu0 %v4793, 122
        %v4805 = vpop.permute.xlu0 %4804
        %v4806 = vrot.slane %v4799, 4
        %v4807 = vrot.slane %v4801, 4
        %v4808 = vrot.slane %v4803, 4
        %v4809 = vrot.slane %v4805, 4
        %v4810 = vsel %vm635, %v4806, %v4807
        %v4811 = vsel %vm929, %v4799, %v4810
        %v4812 = vsel %vm635, %v4808, %v4809
        %v4813 = vsel %vm929, %v4803, %v4812
        %4816 = vst [vmem:[#allocation4 + $0x1a0] sm:$0xff] %v4811
        %4817 = vst [vmem:[#allocation4 + $0x1b0] sm:$0xff] %v4813
        %v4818 = vld [vmem:[#allocation3 + $0x4] sm:$0xff]
        %v4819 = vld [vmem:[#allocation3 + $0xc] sm:$0xf]
        %v4820 = vld [vmem:[#allocation3 + $0x1c] sm:$0xff]
        %v4821 = vld [vmem:[#allocation3 + $0x24] sm:$0xf]
        %4826 = vrot.lane.b32.xlu0 %v4818, 121
        %v4827 = vpop.permute.xlu0 %4826
        %4828 = vrot.lane.b32.xlu0 %v4819, 121
        %v4829 = vpop.permute.xlu0 %4828
        %4830 = vrot.lane.b32.xlu0 %v4820, 121
        %v4831 = vpop.permute.xlu0 %4830
        %4832 = vrot.lane.b32.xlu0 %v4821, 121
        %v4833 = vpop.permute.xlu0 %4832
        %v4834 = vrot.slane %v4827, 4
        %v4835 = vrot.slane %v4829, 4
        %v4836 = vrot.slane %v4831, 4
        %v4837 = vrot.slane %v4833, 4
        %v4838 = vsel %vm635, %v4834, %v4835
        %v4839 = vsel %vm953, %v4827, %v4838
        %v4840 = vsel %vm635, %v4836, %v4837
        %v4841 = vsel %vm953, %v4831, %v4840
        %4844 = vst [vmem:[#allocation4 + $0x1c0] sm:$0xff] %v4839
        %4845 = vst [vmem:[#allocation4 + $0x1d0] sm:$0xff] %v4841
        %v4846 = vld [vmem:[%s6] sm:$0xff]
        %v4847 = vld [vmem:[%s6 + $0x8] sm:$0xff]
        %v4848 = vld [vmem:[#allocation4] sm:$0xff]
        %v4849 = vld [vmem:[#allocation4 + $0x10] sm:$0xff]
        %v4850 = vld [vmem:[#allocation4 + $0x20] sm:$0xff]
        %v4851 = vld [vmem:[#allocation4 + $0x30] sm:$0xff]
        %v4852 = vld [vmem:[#allocation4 + $0x40] sm:$0xff]
        %v4853 = vld [vmem:[#allocation4 + $0x50] sm:$0xff]
        %v4854 = vld [vmem:[#allocation4 + $0x60] sm:$0xff]
        %v4855 = vld [vmem:[#allocation4 + $0x70] sm:$0xff]
        %v4856 = vld [vmem:[#allocation4 + $0x80] sm:$0xff]
        %v4857 = vld [vmem:[#allocation4 + $0x90] sm:$0xff]
        %v4858 = vld [vmem:[#allocation4 + $0xa0] sm:$0xff]
        %v4859 = vld [vmem:[#allocation4 + $0xb0] sm:$0xff]
        %v4860 = vld [vmem:[#allocation4 + $0xc0] sm:$0xff]
        %v4861 = vld [vmem:[#allocation4 + $0xd0] sm:$0xff]
        %v4862 = vld [vmem:[#allocation4 + $0xe0] sm:$0xff]
        %v4863 = vld [vmem:[#allocation4 + $0xf0] sm:$0xff]
        %v4864 = vld [vmem:[#allocation4 + $0x100] sm:$0xff]
        %v4865 = vld [vmem:[#allocation4 + $0x110] sm:$0xff]
        %v4866 = vld [vmem:[#allocation4 + $0x120] sm:$0xff]
        %v4867 = vld [vmem:[#allocation4 + $0x130] sm:$0xff]
        %v4868 = vld [vmem:[#allocation4 + $0x140] sm:$0xff]
        %v4869 = vld [vmem:[#allocation4 + $0x150] sm:$0xff]
        %v4870 = vld [vmem:[#allocation4 + $0x160] sm:$0xff]
        %v4871 = vld [vmem:[#allocation4 + $0x170] sm:$0xff]
        %v4872 = vld [vmem:[#allocation4 + $0x180] sm:$0xff]
        %v4873 = vld [vmem:[#allocation4 + $0x190] sm:$0xff]
        %v4874 = vld [vmem:[#allocation4 + $0x1a0] sm:$0xff]
        %v4875 = vld [vmem:[#allocation4 + $0x1b0] sm:$0xff]
        %v4876 = vld [vmem:[#allocation4 + $0x1c0] sm:$0xff]
        %v4877 = vld [vmem:[#allocation4 + $0x1d0] sm:$0xff]
        %v4880 = vunpack.c.l.b16 %v4846
        %v4881 = vunpack.c.h.b16 %v4846
        %v4882 = vunpack.c.l.b16 %v4847
        %v4883 = vunpack.c.h.b16 %v4847
        %v4884 = vpack.c.b16 %v4882, %v4880
        %v4885 = vpack.c.b16 %v4883, %v4881
        %v4917 = vunpack.c.l.b16 %v4848
        %v4918 = vunpack.c.h.b16 %v4848
        %v4919 = vunpack.c.l.b16 %v4849
        %v4920 = vunpack.c.h.b16 %v4849
        %v4921 = vunpack.c.l.b16 %v4850
        %v4922 = vunpack.c.h.b16 %v4850
        %v4923 = vunpack.c.l.b16 %v4851
        %v4924 = vunpack.c.h.b16 %v4851
        %v4925 = vunpack.c.l.b16 %v4852
        %v4926 = vunpack.c.h.b16 %v4852
        %v4927 = vunpack.c.l.b16 %v4853
        %v4928 = vunpack.c.h.b16 %v4853
        %v4929 = vunpack.c.l.b16 %v4854
        %v4930 = vunpack.c.h.b16 %v4854
        %v4931 = vunpack.c.l.b16 %v4855
        %v4932 = vunpack.c.h.b16 %v4855
        %v4933 = vunpack.c.l.b16 %v4856
        %v4934 = vunpack.c.h.b16 %v4856
        %v4935 = vunpack.c.l.b16 %v4857
        %v4936 = vunpack.c.h.b16 %v4857
        %v4937 = vunpack.c.l.b16 %v4858
        %v4938 = vunpack.c.h.b16 %v4858
        %v4939 = vunpack.c.l.b16 %v4859
        %v4940 = vunpack.c.h.b16 %v4859
        %v4941 = vunpack.c.l.b16 %v4860
        %v4942 = vunpack.c.h.b16 %v4860
        %v4943 = vunpack.c.l.b16 %v4861
        %v4944 = vunpack.c.h.b16 %v4861
        %v4945 = vunpack.c.l.b16 %v4862
        %v4946 = vunpack.c.h.b16 %v4862
        %v4947 = vunpack.c.l.b16 %v4863
        %v4948 = vunpack.c.h.b16 %v4863
        %v4949 = vunpack.c.l.b16 %v4864
        %v4950 = vunpack.c.h.b16 %v4864
        %v4951 = vunpack.c.l.b16 %v4865
        %v4952 = vunpack.c.h.b16 %v4865
        %v4953 = vunpack.c.l.b16 %v4866
        %v4954 = vunpack.c.h.b16 %v4866
        %v4955 = vunpack.c.l.b16 %v4867
        %v4956 = vunpack.c.h.b16 %v4867
        %v4957 = vunpack.c.l.b16 %v4868
        %v4958 = vunpack.c.h.b16 %v4868
        %v4959 = vunpack.c.l.b16 %v4869
        %v4960 = vunpack.c.h.b16 %v4869
        %v4961 = vunpack.c.l.b16 %v4870
        %v4962 = vunpack.c.h.b16 %v4870
        %v4963 = vunpack.c.l.b16 %v4871
        %v4964 = vunpack.c.h.b16 %v4871
        %v4965 = vunpack.c.l.b16 %v4872
        %v4966 = vunpack.c.h.b16 %v4872
        %v4967 = vunpack.c.l.b16 %v4873
        %v4968 = vunpack.c.h.b16 %v4873
        %v4969 = vunpack.c.l.b16 %v4874
        %v4970 = vunpack.c.h.b16 %v4874
        %v4971 = vunpack.c.l.b16 %v4875
        %v4972 = vunpack.c.h.b16 %v4875
        %v4973 = vunpack.c.l.b16 %v4876
        %v4974 = vunpack.c.h.b16 %v4876
        %v4975 = vunpack.c.l.b16 %v4877
        %v4976 = vunpack.c.h.b16 %v4877
        %v4977 = vpack.c.b16 %v4919, %v4917
        %v4978 = vpack.c.b16 %v4920, %v4918
        %v4979 = vpack.c.b16 %v4923, %v4921
        %v4980 = vpack.c.b16 %v4924, %v4922
        %v4981 = vpack.c.b16 %v4927, %v4925
        %v4982 = vpack.c.b16 %v4928, %v4926
        %v4983 = vpack.c.b16 %v4931, %v4929
        %v4984 = vpack.c.b16 %v4932, %v4930
        %v4985 = vpack.c.b16 %v4935, %v4933
        %v4986 = vpack.c.b16 %v4936, %v4934
        %v4987 = vpack.c.b16 %v4939, %v4937
        %v4988 = vpack.c.b16 %v4940, %v4938
        %v4989 = vpack.c.b16 %v4943, %v4941
        %v4990 = vpack.c.b16 %v4944, %v4942
        %v4991 = vpack.c.b16 %v4947, %v4945
        %v4992 = vpack.c.b16 %v4948, %v4946
        %v4993 = vpack.c.b16 %v4951, %v4949
        %v4994 = vpack.c.b16 %v4952, %v4950
        %v4995 = vpack.c.b16 %v4955, %v4953
        %v4996 = vpack.c.b16 %v4956, %v4954
        %v4997 = vpack.c.b16 %v4959, %v4957
        %v4998 = vpack.c.b16 %v4960, %v4958
        %v4999 = vpack.c.b16 %v4963, %v4961
        %v5000 = vpack.c.b16 %v4964, %v4962
        %v5001 = vpack.c.b16 %v4967, %v4965
        %v5002 = vpack.c.b16 %v4968, %v4966
        %v5003 = vpack.c.b16 %v4971, %v4969
        %v5004 = vpack.c.b16 %v4972, %v4970
        %v5005 = vpack.c.b16 %v4975, %v4973
        %v5006 = vpack.c.b16 %v4976, %v4974
        %v5038 = vsel %vm4347, %v4885, 0
        %5040 = vmatprep.subr.bf16.mxu0 %v4992
        %5041 = vmatpush1.bf16.msra.mxu0 %v4991
        %5042 = vmatprep.subr.bf16.mxu0 %v4990
        %5043 = vmatpush1.bf16.msra.mxu0 %v4989
        %5044 = vmatprep.subr.bf16.mxu0 %v4988
        %5045 = vmatpush1.bf16.msra.mxu0 %v4987
        %5046 = vmatprep.subr.bf16.mxu0 %v4986
        %5047 = vmatpush1.bf16.msra.mxu0 %v4985
        %5048 = vmatprep.subr.bf16.mxu0 %v4984
        %5049 = vmatpush1.bf16.msra.mxu0 %v4983
        %5050 = vmatprep.subr.bf16.mxu0 %v4982
        %5051 = vmatpush1.bf16.msra.mxu0 %v4981
        %5052 = vmatprep.subr.bf16.mxu0 %v4980
        %5053 = vmatpush1.bf16.msra.mxu0 %v4979
        %5054 = vmatprep.subr.bf16.mxu0 %v4978
        %5055 = vmatpush1.bf16.msra.mxu0 %v4977
        %5056 = vmatprep.subr.bf16.mxu0 0
        %5057 = vmatpush2.bf16.msra.mxu0 0
        %5058 = vmatprep.subr.bf16.mxu0 %v5006
        %5059 = vmatpush2.bf16.msra.mxu0 %v5005
        %5060 = vmatprep.subr.bf16.mxu0 %v5004
        %5061 = vmatpush2.bf16.msra.mxu0 %v5003
        %5062 = vmatprep.subr.bf16.mxu0 %v5002
        %5063 = vmatpush2.bf16.msra.mxu0 %v5001
        %5064 = vmatprep.subr.bf16.mxu0 %v5000
        %5065 = vmatpush2.bf16.msra.mxu0 %v4999
        %5066 = vmatprep.subr.bf16.mxu0 %v4998
        %5067 = vmatpush2.bf16.msra.mxu0 %v4997
        %5068 = vmatprep.subr.bf16.mxu0 %v4996
        %5069 = vmatpush2.bf16.msra.mxu0 %v4995
        %5070 = vmatprep.subr.bf16.mxu0 %v4994
        %5071 = vmatpush2.bf16.msra.mxu0 %v4993
        %5072 = vmatprep.mubr.bf16.mxu0 %v5038
        %5073 = vmatmul.mubr.bf16.gmra.mxu0 %v4884
        %v5074 = vpop.f32.mrf.mxu0
        %v5075 = vadd.f32 0.0, %v5074
        %v5076 = vpop.f32.mrf.mxu0
        %v5077 = vadd.f32 0.0, %v5076
        %v5078 = vpop.f32.mrf.mxu0
        %v5079 = vadd.f32 0.0, %v5078
        %v5080 = vpop.f32.mrf.mxu0
        %v5081 = vadd.f32 0.0, %v5080
        %5082 = vdwg.mxu0
        %v5083 = vld [vmem:[%s14] sm:$0xff]
        %v5084 = vld [vmem:[%s14 + $0x8] sm:$0xff]
        %5086 = vset.pattern.permute.xlu0 0
        %5087 = vperm.xlu0 %5086, %v5083
        %v5088 = vpop.permute.xlu0 %5087
        %5091 = vset.pattern.permute.xlu0 0
        %5092 = vperm.xlu0 %5091, %v5084
        %v5093 = vpop.permute.xlu0 %5092
        %v5095 = vmul.f32 %v5075, %v5088
        %v5096 = vmul.f32 %v5077, %v5088
        %v5097 = vmul.f32 %v5079, %v5093
        %v5098 = vmul.f32 %v5081, %v5093
        %5099 = vset.pattern.permute.xlu0 1
        %5100 = vperm.xlu0 %5099, %v5083
        %v5101 = vpop.permute.xlu0 %5100
        %5103 = vset.pattern.permute.xlu0 1
        %5104 = vperm.xlu0 %5103, %v5084
        %v5105 = vpop.permute.xlu0 %5104
        %v5107 = vadd.f32 %v5095, %v5101
        %v5108 = vadd.f32 %v5096, %v5101
        %v5109 = vadd.f32 %v5097, %v5105
        %v5110 = vadd.f32 %v5098, %v5105
        %vm5111 = vcmp.gt.f32.partialorder %v5107, 0.0
        %vm5112 = vcmp.gt.f32.partialorder %v5108, 0.0
        %vm5113 = vcmp.gt.f32.partialorder %v5109, 0.0
        %vm5114 = vcmp.gt.f32.partialorder %v5110, 0.0
        %v5115 = vmul.f32 %v5107, 0.1
        %v5116 = vmul.f32 %v5108, 0.1
        %v5117 = vmul.f32 %v5109, 0.1
        %v5118 = vmul.f32 %v5110, 0.1
        %v5119 = vsel %vm5111, %v5107, %v5115
        %v5120 = vsel %vm5112, %v5108, %v5116
        %v5121 = vsel %vm5113, %v5109, %v5117
        %v5122 = vsel %vm5114, %v5110, %v5118
        %v5123 = vpack.c.bf16 %v5121, %v5119
        %v5124 = vpack.c.bf16 %v5122, %v5120
        %v5127 = vunpack.c.l.b16 %v5123
        %v5128 = vunpack.c.l.b16 %v5124
        %v5129 = vunpack.c.h.b16 %v5123
        %v5130 = vunpack.c.h.b16 %v5124
        %v5131 = vpack.c.b16 %v5128, %v5127
        %v5132 = vpack.c.b16 %v5130, %v5129
        %5135 = vst [vmem:[#allocation2 + $0x4] sm:$0xff] %v5131
        %5136 = vst [vmem:[#allocation2 + $0x1c] sm:$0xff] %v5132
        %5137 = vst [vmem:[#allocation2 + $0xc] sm:$0xf] 0
        %5138 = vst [vmem:[#allocation2 + $0x24] sm:$0xf] 0
        %v5139 = vld [vmem:[#allocation2] sm:$0xff]
        %v5140 = vld [vmem:[#allocation2 + $0x8] sm:$0xf]
        %v5141 = vld [vmem:[#allocation2 + $0x18] sm:$0xff]
        %v5142 = vld [vmem:[#allocation2 + $0x20] sm:$0xf]
        %5147 = vrot.lane.b32.xlu0 %v5139, 7
        %v5148 = vpop.permute.xlu0 %5147
        %5149 = vrot.lane.b32.xlu0 %v5140, 7
        %v5150 = vpop.permute.xlu0 %5149
        %5151 = vrot.lane.b32.xlu0 %v5141, 7
        %v5152 = vpop.permute.xlu0 %5151
        %5153 = vrot.lane.b32.xlu0 %v5142, 7
        %v5154 = vpop.permute.xlu0 %5153
        %v5155 = vrot.slane %v5148, 4
        %v5156 = vrot.slane %v5150, 4
        %v5157 = vrot.slane %v5152, 4
        %v5158 = vrot.slane %v5154, 4
        %v5159 = vsel %vm635, %v5155, %v5156
        %v5160 = vsel %vm637, %v5148, %v5159
        %v5161 = vsel %vm635, %v5157, %v5158
        %v5162 = vsel %vm637, %v5152, %v5161
        %5165 = vst [vmem:[#allocation4] sm:$0xff] %v5160
        %5166 = vst [vmem:[#allocation4 + $0x10] sm:$0xff] %v5162
        %v5167 = vld [vmem:[#allocation2] sm:$0xff]
        %v5168 = vld [vmem:[#allocation2 + $0x8] sm:$0xf]
        %v5169 = vld [vmem:[#allocation2 + $0x18] sm:$0xff]
        %v5170 = vld [vmem:[#allocation2 + $0x20] sm:$0xf]
        %5175 = vrot.lane.b32.xlu0 %v5167, 6
        %v5176 = vpop.permute.xlu0 %5175
        %5177 = vrot.lane.b32.xlu0 %v5168, 6
        %v5178 = vpop.permute.xlu0 %5177
        %5179 = vrot.lane.b32.xlu0 %v5169, 6
        %v5180 = vpop.permute.xlu0 %5179
        %5181 = vrot.lane.b32.xlu0 %v5170, 6
        %v5182 = vpop.permute.xlu0 %5181
        %v5183 = vrot.slane %v5176, 4
        %v5184 = vrot.slane %v5178, 4
        %v5185 = vrot.slane %v5180, 4
        %v5186 = vrot.slane %v5182, 4
        %v5187 = vsel %vm635, %v5183, %v5184
        %v5188 = vsel %vm661, %v5176, %v5187
        %v5189 = vsel %vm635, %v5185, %v5186
        %v5190 = vsel %vm661, %v5180, %v5189
        %5193 = vst [vmem:[#allocation4 + $0x20] sm:$0xff] %v5188
        %5194 = vst [vmem:[#allocation4 + $0x30] sm:$0xff] %v5190
        %v5195 = vld [vmem:[#allocation2] sm:$0xff]
        %v5196 = vld [vmem:[#allocation2 + $0x8] sm:$0xf]
        %v5197 = vld [vmem:[#allocation2 + $0x18] sm:$0xff]
        %v5198 = vld [vmem:[#allocation2 + $0x20] sm:$0xf]
        %5203 = vrot.lane.b32.xlu0 %v5195, 5
        %v5204 = vpop.permute.xlu0 %5203
        %5205 = vrot.lane.b32.xlu0 %v5196, 5
        %v5206 = vpop.permute.xlu0 %5205
        %5207 = vrot.lane.b32.xlu0 %v5197, 5
        %v5208 = vpop.permute.xlu0 %5207
        %5209 = vrot.lane.b32.xlu0 %v5198, 5
        %v5210 = vpop.permute.xlu0 %5209
        %v5211 = vrot.slane %v5204, 4
        %v5212 = vrot.slane %v5206, 4
        %v5213 = vrot.slane %v5208, 4
        %v5214 = vrot.slane %v5210, 4
        %v5215 = vsel %vm635, %v5211, %v5212
        %v5216 = vsel %vm685, %v5204, %v5215
        %v5217 = vsel %vm635, %v5213, %v5214
        %v5218 = vsel %vm685, %v5208, %v5217
        %5221 = vst [vmem:[#allocation4 + $0x40] sm:$0xff] %v5216
        %5222 = vst [vmem:[#allocation4 + $0x50] sm:$0xff] %v5218
        %v5223 = vld [vmem:[#allocation2] sm:$0xff]
        %v5224 = vld [vmem:[#allocation2 + $0x8] sm:$0xf]
        %v5225 = vld [vmem:[#allocation2 + $0x18] sm:$0xff]
        %v5226 = vld [vmem:[#allocation2 + $0x20] sm:$0xf]
        %5231 = vrot.lane.b32.xlu0 %v5223, 4
        %v5232 = vpop.permute.xlu0 %5231
        %5233 = vrot.lane.b32.xlu0 %v5224, 4
        %v5234 = vpop.permute.xlu0 %5233
        %5235 = vrot.lane.b32.xlu0 %v5225, 4
        %v5236 = vpop.permute.xlu0 %5235
        %5237 = vrot.lane.b32.xlu0 %v5226, 4
        %v5238 = vpop.permute.xlu0 %5237
        %v5239 = vrot.slane %v5232, 4
        %v5240 = vrot.slane %v5234, 4
        %v5241 = vrot.slane %v5236, 4
        %v5242 = vrot.slane %v5238, 4
        %v5243 = vsel %vm635, %v5239, %v5240
        %v5244 = vsel %vm709, %v5232, %v5243
        %v5245 = vsel %vm635, %v5241, %v5242
        %v5246 = vsel %vm709, %v5236, %v5245
        %5249 = vst [vmem:[#allocation4 + $0x60] sm:$0xff] %v5244
        %5250 = vst [vmem:[#allocation4 + $0x70] sm:$0xff] %v5246
        %v5251 = vld [vmem:[#allocation2] sm:$0xff]
        %v5252 = vld [vmem:[#allocation2 + $0x8] sm:$0xf]
        %v5253 = vld [vmem:[#allocation2 + $0x18] sm:$0xff]
        %v5254 = vld [vmem:[#allocation2 + $0x20] sm:$0xf]
        %5259 = vrot.lane.b32.xlu0 %v5251, 3
        %v5260 = vpop.permute.xlu0 %5259
        %5261 = vrot.lane.b32.xlu0 %v5252, 3
        %v5262 = vpop.permute.xlu0 %5261
        %5263 = vrot.lane.b32.xlu0 %v5253, 3
        %v5264 = vpop.permute.xlu0 %5263
        %5265 = vrot.lane.b32.xlu0 %v5254, 3
        %v5266 = vpop.permute.xlu0 %5265
        %v5267 = vrot.slane %v5260, 4
        %v5268 = vrot.slane %v5262, 4
        %v5269 = vrot.slane %v5264, 4
        %v5270 = vrot.slane %v5266, 4
        %v5271 = vsel %vm635, %v5267, %v5268
        %v5272 = vsel %vm733, %v5260, %v5271
        %v5273 = vsel %vm635, %v5269, %v5270
        %v5274 = vsel %vm733, %v5264, %v5273
        %5277 = vst [vmem:[#allocation4 + $0x80] sm:$0xff] %v5272
        %5278 = vst [vmem:[#allocation4 + $0x90] sm:$0xff] %v5274
        %v5279 = vld [vmem:[#allocation2] sm:$0xff]
        %v5280 = vld [vmem:[#allocation2 + $0x8] sm:$0xf]
        %v5281 = vld [vmem:[#allocation2 + $0x18] sm:$0xff]
        %v5282 = vld [vmem:[#allocation2 + $0x20] sm:$0xf]
        %5287 = vrot.lane.b32.xlu0 %v5279, 2
        %v5288 = vpop.permute.xlu0 %5287
        %5289 = vrot.lane.b32.xlu0 %v5280, 2
        %v5290 = vpop.permute.xlu0 %5289
        %5291 = vrot.lane.b32.xlu0 %v5281, 2
        %v5292 = vpop.permute.xlu0 %5291
        %5293 = vrot.lane.b32.xlu0 %v5282, 2
        %v5294 = vpop.permute.xlu0 %5293
        %v5295 = vrot.slane %v5288, 4
        %v5296 = vrot.slane %v5290, 4
        %v5297 = vrot.slane %v5292, 4
        %v5298 = vrot.slane %v5294, 4
        %v5299 = vsel %vm635, %v5295, %v5296
        %v5300 = vsel %vm757, %v5288, %v5299
        %v5301 = vsel %vm635, %v5297, %v5298
        %v5302 = vsel %vm757, %v5292, %v5301
        %5305 = vst [vmem:[#allocation4 + $0xa0] sm:$0xff] %v5300
        %5306 = vst [vmem:[#allocation4 + $0xb0] sm:$0xff] %v5302
        %v5307 = vld [vmem:[#allocation2] sm:$0xff]
        %v5308 = vld [vmem:[#allocation2 + $0x8] sm:$0xf]
        %v5309 = vld [vmem:[#allocation2 + $0x18] sm:$0xff]
        %v5310 = vld [vmem:[#allocation2 + $0x20] sm:$0xf]
        %5315 = vrot.lane.b32.xlu0 %v5307, 1
        %v5316 = vpop.permute.xlu0 %5315
        %5317 = vrot.lane.b32.xlu0 %v5308, 1
        %v5318 = vpop.permute.xlu0 %5317
        %5319 = vrot.lane.b32.xlu0 %v5309, 1
        %v5320 = vpop.permute.xlu0 %5319
        %5321 = vrot.lane.b32.xlu0 %v5310, 1
        %v5322 = vpop.permute.xlu0 %5321
        %v5323 = vrot.slane %v5316, 4
        %v5324 = vrot.slane %v5318, 4
        %v5325 = vrot.slane %v5320, 4
        %v5326 = vrot.slane %v5322, 4
        %v5327 = vsel %vm635, %v5323, %v5324
        %v5328 = vsel %vm781, %v5316, %v5327
        %v5329 = vsel %vm635, %v5325, %v5326
        %v5330 = vsel %vm781, %v5320, %v5329
        %5333 = vst [vmem:[#allocation4 + $0xc0] sm:$0xff] %v5328
        %5334 = vst [vmem:[#allocation4 + $0xd0] sm:$0xff] %v5330
        %v5335 = vld [vmem:[#allocation2 + $0x4] sm:$0xff]
        %v5336 = vld [vmem:[#allocation2 + $0x1c] sm:$0xff]
        %5337 = vst [vmem:[#allocation4 + $0xe0] sm:$0xff] %v5335
        %5338 = vst [vmem:[#allocation4 + $0xf0] sm:$0xff] %v5336
        %v5339 = vld [vmem:[#allocation2 + $0x4] sm:$0xff]
        %v5340 = vld [vmem:[#allocation2 + $0xc] sm:$0xf]
        %v5341 = vld [vmem:[#allocation2 + $0x1c] sm:$0xff]
        %v5342 = vld [vmem:[#allocation2 + $0x24] sm:$0xf]
        %5347 = vrot.lane.b32.xlu0 %v5339, 127
        %v5348 = vpop.permute.xlu0 %5347
        %5349 = vrot.lane.b32.xlu0 %v5340, 127
        %v5350 = vpop.permute.xlu0 %5349
        %5351 = vrot.lane.b32.xlu0 %v5341, 127
        %v5352 = vpop.permute.xlu0 %5351
        %5353 = vrot.lane.b32.xlu0 %v5342, 127
        %v5354 = vpop.permute.xlu0 %5353
        %v5355 = vrot.slane %v5348, 4
        %v5356 = vrot.slane %v5350, 4
        %v5357 = vrot.slane %v5352, 4
        %v5358 = vrot.slane %v5354, 4
        %v5359 = vsel %vm635, %v5355, %v5356
        %v5360 = vsel %vm809, %v5348, %v5359
        %v5361 = vsel %vm635, %v5357, %v5358
        %v5362 = vsel %vm809, %v5352, %v5361
        %5365 = vst [vmem:[#allocation4 + $0x100] sm:$0xff] %v5360
        %5366 = vst [vmem:[#allocation4 + $0x110] sm:$0xff] %v5362
        %v5367 = vld [vmem:[#allocation2 + $0x4] sm:$0xff]
        %v5368 = vld [vmem:[#allocation2 + $0xc] sm:$0xf]
        %v5369 = vld [vmem:[#allocation2 + $0x1c] sm:$0xff]
        %v5370 = vld [vmem:[#allocation2 + $0x24] sm:$0xf]
        %5375 = vrot.lane.b32.xlu0 %v5367, 126
        %v5376 = vpop.permute.xlu0 %5375
        %5377 = vrot.lane.b32.xlu0 %v5368, 126
        %v5378 = vpop.permute.xlu0 %5377
        %5379 = vrot.lane.b32.xlu0 %v5369, 126
        %v5380 = vpop.permute.xlu0 %5379
        %5381 = vrot.lane.b32.xlu0 %v5370, 126
        %v5382 = vpop.permute.xlu0 %5381
        %v5383 = vrot.slane %v5376, 4
        %v5384 = vrot.slane %v5378, 4
        %v5385 = vrot.slane %v5380, 4
        %v5386 = vrot.slane %v5382, 4
        %v5387 = vsel %vm635, %v5383, %v5384
        %v5388 = vsel %vm833, %v5376, %v5387
        %v5389 = vsel %vm635, %v5385, %v5386
        %v5390 = vsel %vm833, %v5380, %v5389
        %5393 = vst [vmem:[#allocation4 + $0x120] sm:$0xff] %v5388
        %5394 = vst [vmem:[#allocation4 + $0x130] sm:$0xff] %v5390
        %v5395 = vld [vmem:[#allocation2 + $0x4] sm:$0xff]
        %v5396 = vld [vmem:[#allocation2 + $0xc] sm:$0xf]
        %v5397 = vld [vmem:[#allocation2 + $0x1c] sm:$0xff]
        %v5398 = vld [vmem:[#allocation2 + $0x24] sm:$0xf]
        %5403 = vrot.lane.b32.xlu0 %v5395, 125
        %v5404 = vpop.permute.xlu0 %5403
        %5405 = vrot.lane.b32.xlu0 %v5396, 125
        %v5406 = vpop.permute.xlu0 %5405
        %5407 = vrot.lane.b32.xlu0 %v5397, 125
        %v5408 = vpop.permute.xlu0 %5407
        %5409 = vrot.lane.b32.xlu0 %v5398, 125
        %v5410 = vpop.permute.xlu0 %5409
        %v5411 = vrot.slane %v5404, 4
        %v5412 = vrot.slane %v5406, 4
        %v5413 = vrot.slane %v5408, 4
        %v5414 = vrot.slane %v5410, 4
        %v5415 = vsel %vm635, %v5411, %v5412
        %v5416 = vsel %vm857, %v5404, %v5415
        %v5417 = vsel %vm635, %v5413, %v5414
        %v5418 = vsel %vm857, %v5408, %v5417
        %5421 = vst [vmem:[#allocation4 + $0x140] sm:$0xff] %v5416
        %5422 = vst [vmem:[#allocation4 + $0x150] sm:$0xff] %v5418
        %v5423 = vld [vmem:[#allocation2 + $0x4] sm:$0xff]
        %v5424 = vld [vmem:[#allocation2 + $0xc] sm:$0xf]
        %v5425 = vld [vmem:[#allocation2 + $0x1c] sm:$0xff]
        %v5426 = vld [vmem:[#allocation2 + $0x24] sm:$0xf]
        %5431 = vrot.lane.b32.xlu0 %v5423, 124
        %v5432 = vpop.permute.xlu0 %5431
        %5433 = vrot.lane.b32.xlu0 %v5424, 124
        %v5434 = vpop.permute.xlu0 %5433
        %5435 = vrot.lane.b32.xlu0 %v5425, 124
        %v5436 = vpop.permute.xlu0 %5435
        %5437 = vrot.lane.b32.xlu0 %v5426, 124
        %v5438 = vpop.permute.xlu0 %5437
        %v5439 = vrot.slane %v5432, 4
        %v5440 = vrot.slane %v5434, 4
        %v5441 = vrot.slane %v5436, 4
        %v5442 = vrot.slane %v5438, 4
        %v5443 = vsel %vm635, %v5439, %v5440
        %v5444 = vsel %vm881, %v5432, %v5443
        %v5445 = vsel %vm635, %v5441, %v5442
        %v5446 = vsel %vm881, %v5436, %v5445
        %5449 = vst [vmem:[#allocation4 + $0x160] sm:$0xff] %v5444
        %5450 = vst [vmem:[#allocation4 + $0x170] sm:$0xff] %v5446
        %v5451 = vld [vmem:[#allocation2 + $0x4] sm:$0xff]
        %v5452 = vld [vmem:[#allocation2 + $0xc] sm:$0xf]
        %v5453 = vld [vmem:[#allocation2 + $0x1c] sm:$0xff]
        %v5454 = vld [vmem:[#allocation2 + $0x24] sm:$0xf]
        %5459 = vrot.lane.b32.xlu0 %v5451, 123
        %v5460 = vpop.permute.xlu0 %5459
        %5461 = vrot.lane.b32.xlu0 %v5452, 123
        %v5462 = vpop.permute.xlu0 %5461
        %5463 = vrot.lane.b32.xlu0 %v5453, 123
        %v5464 = vpop.permute.xlu0 %5463
        %5465 = vrot.lane.b32.xlu0 %v5454, 123
        %v5466 = vpop.permute.xlu0 %5465
        %v5467 = vrot.slane %v5460, 4
        %v5468 = vrot.slane %v5462, 4
        %v5469 = vrot.slane %v5464, 4
        %v5470 = vrot.slane %v5466, 4
        %v5471 = vsel %vm635, %v5467, %v5468
        %v5472 = vsel %vm905, %v5460, %v5471
        %v5473 = vsel %vm635, %v5469, %v5470
        %v5474 = vsel %vm905, %v5464, %v5473
        %5477 = vst [vmem:[#allocation4 + $0x180] sm:$0xff] %v5472
        %5478 = vst [vmem:[#allocation4 + $0x190] sm:$0xff] %v5474
        %v5479 = vld [vmem:[#allocation2 + $0x4] sm:$0xff]
        %v5480 = vld [vmem:[#allocation2 + $0xc] sm:$0xf]
        %v5481 = vld [vmem:[#allocation2 + $0x1c] sm:$0xff]
        %v5482 = vld [vmem:[#allocation2 + $0x24] sm:$0xf]
        %5487 = vrot.lane.b32.xlu0 %v5479, 122
        %v5488 = vpop.permute.xlu0 %5487
        %5489 = vrot.lane.b32.xlu0 %v5480, 122
        %v5490 = vpop.permute.xlu0 %5489
        %5491 = vrot.lane.b32.xlu0 %v5481, 122
        %v5492 = vpop.permute.xlu0 %5491
        %5493 = vrot.lane.b32.xlu0 %v5482, 122
        %v5494 = vpop.permute.xlu0 %5493
        %v5495 = vrot.slane %v5488, 4
        %v5496 = vrot.slane %v5490, 4
        %v5497 = vrot.slane %v5492, 4
        %v5498 = vrot.slane %v5494, 4
        %v5499 = vsel %vm635, %v5495, %v5496
        %v5500 = vsel %vm929, %v5488, %v5499
        %v5501 = vsel %vm635, %v5497, %v5498
        %v5502 = vsel %vm929, %v5492, %v5501
        %5505 = vst [vmem:[#allocation4 + $0x1a0] sm:$0xff] %v5500
        %5506 = vst [vmem:[#allocation4 + $0x1b0] sm:$0xff] %v5502
        %v5507 = vld [vmem:[#allocation2 + $0x4] sm:$0xff]
        %v5508 = vld [vmem:[#allocation2 + $0xc] sm:$0xf]
        %v5509 = vld [vmem:[#allocation2 + $0x1c] sm:$0xff]
        %v5510 = vld [vmem:[#allocation2 + $0x24] sm:$0xf]
        %5515 = vrot.lane.b32.xlu0 %v5507, 121
        %v5516 = vpop.permute.xlu0 %5515
        %5517 = vrot.lane.b32.xlu0 %v5508, 121
        %v5518 = vpop.permute.xlu0 %5517
        %5519 = vrot.lane.b32.xlu0 %v5509, 121
        %v5520 = vpop.permute.xlu0 %5519
        %5521 = vrot.lane.b32.xlu0 %v5510, 121
        %v5522 = vpop.permute.xlu0 %5521
        %v5523 = vrot.slane %v5516, 4
        %v5524 = vrot.slane %v5518, 4
        %v5525 = vrot.slane %v5520, 4
        %v5526 = vrot.slane %v5522, 4
        %v5527 = vsel %vm635, %v5523, %v5524
        %v5528 = vsel %vm953, %v5516, %v5527
        %v5529 = vsel %vm635, %v5525, %v5526
        %v5530 = vsel %vm953, %v5520, %v5529
        %5533 = vst [vmem:[#allocation4 + $0x1c0] sm:$0xff] %v5528
        %5534 = vst [vmem:[#allocation4 + $0x1d0] sm:$0xff] %v5530
        %v5535 = vld [vmem:[%s7] sm:$0xff]
        %v5536 = vld [vmem:[%s7 + $0x8] sm:$0xff]
        %v5537 = vld [vmem:[#allocation4] sm:$0xff]
        %v5538 = vld [vmem:[#allocation4 + $0x10] sm:$0xff]
        %v5539 = vld [vmem:[#allocation4 + $0x20] sm:$0xff]
        %v5540 = vld [vmem:[#allocation4 + $0x30] sm:$0xff]
        %v5541 = vld [vmem:[#allocation4 + $0x40] sm:$0xff]
        %v5542 = vld [vmem:[#allocation4 + $0x50] sm:$0xff]
        %v5543 = vld [vmem:[#allocation4 + $0x60] sm:$0xff]
        %v5544 = vld [vmem:[#allocation4 + $0x70] sm:$0xff]
        %v5545 = vld [vmem:[#allocation4 + $0x80] sm:$0xff]
        %v5546 = vld [vmem:[#allocation4 + $0x90] sm:$0xff]
        %v5547 = vld [vmem:[#allocation4 + $0xa0] sm:$0xff]
        %v5548 = vld [vmem:[#allocation4 + $0xb0] sm:$0xff]
        %v5549 = vld [vmem:[#allocation4 + $0xc0] sm:$0xff]
        %v5550 = vld [vmem:[#allocation4 + $0xd0] sm:$0xff]
        %v5551 = vld [vmem:[#allocation4 + $0xe0] sm:$0xff]
        %v5552 = vld [vmem:[#allocation4 + $0xf0] sm:$0xff]
        %v5553 = vld [vmem:[#allocation4 + $0x100] sm:$0xff]
        %v5554 = vld [vmem:[#allocation4 + $0x110] sm:$0xff]
        %v5555 = vld [vmem:[#allocation4 + $0x120] sm:$0xff]
        %v5556 = vld [vmem:[#allocation4 + $0x130] sm:$0xff]
        %v5557 = vld [vmem:[#allocation4 + $0x140] sm:$0xff]
        %v5558 = vld [vmem:[#allocation4 + $0x150] sm:$0xff]
        %v5559 = vld [vmem:[#allocation4 + $0x160] sm:$0xff]
        %v5560 = vld [vmem:[#allocation4 + $0x170] sm:$0xff]
        %v5561 = vld [vmem:[#allocation4 + $0x180] sm:$0xff]
        %v5562 = vld [vmem:[#allocation4 + $0x190] sm:$0xff]
        %v5563 = vld [vmem:[#allocation4 + $0x1a0] sm:$0xff]
        %v5564 = vld [vmem:[#allocation4 + $0x1b0] sm:$0xff]
        %v5565 = vld [vmem:[#allocation4 + $0x1c0] sm:$0xff]
        %v5566 = vld [vmem:[#allocation4 + $0x1d0] sm:$0xff]
        %v5569 = vunpack.c.l.b16 %v5535
        %v5570 = vunpack.c.h.b16 %v5535
        %v5571 = vunpack.c.l.b16 %v5536
        %v5572 = vunpack.c.h.b16 %v5536
        %v5573 = vpack.c.b16 %v5571, %v5569
        %v5574 = vpack.c.b16 %v5572, %v5570
        %v5606 = vunpack.c.l.b16 %v5537
        %v5607 = vunpack.c.h.b16 %v5537
        %v5608 = vunpack.c.l.b16 %v5538
        %v5609 = vunpack.c.h.b16 %v5538
        %v5610 = vunpack.c.l.b16 %v5539
        %v5611 = vunpack.c.h.b16 %v5539
        %v5612 = vunpack.c.l.b16 %v5540
        %v5613 = vunpack.c.h.b16 %v5540
        %v5614 = vunpack.c.l.b16 %v5541
        %v5615 = vunpack.c.h.b16 %v5541
        %v5616 = vunpack.c.l.b16 %v5542
        %v5617 = vunpack.c.h.b16 %v5542
        %v5618 = vunpack.c.l.b16 %v5543
        %v5619 = vunpack.c.h.b16 %v5543
        %v5620 = vunpack.c.l.b16 %v5544
        %v5621 = vunpack.c.h.b16 %v5544
        %v5622 = vunpack.c.l.b16 %v5545
        %v5623 = vunpack.c.h.b16 %v5545
        %v5624 = vunpack.c.l.b16 %v5546
        %v5625 = vunpack.c.h.b16 %v5546
        %v5626 = vunpack.c.l.b16 %v5547
        %v5627 = vunpack.c.h.b16 %v5547
        %v5628 = vunpack.c.l.b16 %v5548
        %v5629 = vunpack.c.h.b16 %v5548
        %v5630 = vunpack.c.l.b16 %v5549
        %v5631 = vunpack.c.h.b16 %v5549
        %v5632 = vunpack.c.l.b16 %v5550
        %v5633 = vunpack.c.h.b16 %v5550
        %v5634 = vunpack.c.l.b16 %v5551
        %v5635 = vunpack.c.h.b16 %v5551
        %v5636 = vunpack.c.l.b16 %v5552
        %v5637 = vunpack.c.h.b16 %v5552
        %v5638 = vunpack.c.l.b16 %v5553
        %v5639 = vunpack.c.h.b16 %v5553
        %v5640 = vunpack.c.l.b16 %v5554
        %v5641 = vunpack.c.h.b16 %v5554
        %v5642 = vunpack.c.l.b16 %v5555
        %v5643 = vunpack.c.h.b16 %v5555
        %v5644 = vunpack.c.l.b16 %v5556
        %v5645 = vunpack.c.h.b16 %v5556
        %v5646 = vunpack.c.l.b16 %v5557
        %v5647 = vunpack.c.h.b16 %v5557
        %v5648 = vunpack.c.l.b16 %v5558
        %v5649 = vunpack.c.h.b16 %v5558
        %v5650 = vunpack.c.l.b16 %v5559
        %v5651 = vunpack.c.h.b16 %v5559
        %v5652 = vunpack.c.l.b16 %v5560
        %v5653 = vunpack.c.h.b16 %v5560
        %v5654 = vunpack.c.l.b16 %v5561
        %v5655 = vunpack.c.h.b16 %v5561
        %v5656 = vunpack.c.l.b16 %v5562
        %v5657 = vunpack.c.h.b16 %v5562
        %v5658 = vunpack.c.l.b16 %v5563
        %v5659 = vunpack.c.h.b16 %v5563
        %v5660 = vunpack.c.l.b16 %v5564
        %v5661 = vunpack.c.h.b16 %v5564
        %v5662 = vunpack.c.l.b16 %v5565
        %v5663 = vunpack.c.h.b16 %v5565
        %v5664 = vunpack.c.l.b16 %v5566
        %v5665 = vunpack.c.h.b16 %v5566
        %v5666 = vpack.c.b16 %v5608, %v5606
        %v5667 = vpack.c.b16 %v5609, %v5607
        %v5668 = vpack.c.b16 %v5612, %v5610
        %v5669 = vpack.c.b16 %v5613, %v5611
        %v5670 = vpack.c.b16 %v5616, %v5614
        %v5671 = vpack.c.b16 %v5617, %v5615
        %v5672 = vpack.c.b16 %v5620, %v5618
        %v5673 = vpack.c.b16 %v5621, %v5619
        %v5674 = vpack.c.b16 %v5624, %v5622
        %v5675 = vpack.c.b16 %v5625, %v5623
        %v5676 = vpack.c.b16 %v5628, %v5626
        %v5677 = vpack.c.b16 %v5629, %v5627
        %v5678 = vpack.c.b16 %v5632, %v5630
        %v5679 = vpack.c.b16 %v5633, %v5631
        %v5680 = vpack.c.b16 %v5636, %v5634
        %v5681 = vpack.c.b16 %v5637, %v5635
        %v5682 = vpack.c.b16 %v5640, %v5638
        %v5683 = vpack.c.b16 %v5641, %v5639
        %v5684 = vpack.c.b16 %v5644, %v5642
        %v5685 = vpack.c.b16 %v5645, %v5643
        %v5686 = vpack.c.b16 %v5648, %v5646
        %v5687 = vpack.c.b16 %v5649, %v5647
        %v5688 = vpack.c.b16 %v5652, %v5650
        %v5689 = vpack.c.b16 %v5653, %v5651
        %v5690 = vpack.c.b16 %v5656, %v5654
        %v5691 = vpack.c.b16 %v5657, %v5655
        %v5692 = vpack.c.b16 %v5660, %v5658
        %v5693 = vpack.c.b16 %v5661, %v5659
        %v5694 = vpack.c.b16 %v5664, %v5662
        %v5695 = vpack.c.b16 %v5665, %v5663
        %v5727 = vsel %vm4347, %v5574, 0
        %5729 = vmatprep.subr.bf16.mxu0 %v5681
        %5730 = vmatpush1.bf16.msra.mxu0 %v5680
        %5731 = vmatprep.subr.bf16.mxu0 %v5679
        %5732 = vmatpush1.bf16.msra.mxu0 %v5678
        %5733 = vmatprep.subr.bf16.mxu0 %v5677
        %5734 = vmatpush1.bf16.msra.mxu0 %v5676
        %5735 = vmatprep.subr.bf16.mxu0 %v5675
        %5736 = vmatpush1.bf16.msra.mxu0 %v5674
        %5737 = vmatprep.subr.bf16.mxu0 %v5673
        %5738 = vmatpush1.bf16.msra.mxu0 %v5672
        %5739 = vmatprep.subr.bf16.mxu0 %v5671
        %5740 = vmatpush1.bf16.msra.mxu0 %v5670
        %5741 = vmatprep.subr.bf16.mxu0 %v5669
        %5742 = vmatpush1.bf16.msra.mxu0 %v5668
        %5743 = vmatprep.subr.bf16.mxu0 %v5667
        %5744 = vmatpush1.bf16.msra.mxu0 %v5666
        %5745 = vmatprep.subr.bf16.mxu0 0
        %5746 = vmatpush2.bf16.msra.mxu0 0
        %5747 = vmatprep.subr.bf16.mxu0 %v5695
        %5748 = vmatpush2.bf16.msra.mxu0 %v5694
        %5749 = vmatprep.subr.bf16.mxu0 %v5693
        %5750 = vmatpush2.bf16.msra.mxu0 %v5692
        %5751 = vmatprep.subr.bf16.mxu0 %v5691
        %5752 = vmatpush2.bf16.msra.mxu0 %v5690
        %5753 = vmatprep.subr.bf16.mxu0 %v5689
        %5754 = vmatpush2.bf16.msra.mxu0 %v5688
        %5755 = vmatprep.subr.bf16.mxu0 %v5687
        %5756 = vmatpush2.bf16.msra.mxu0 %v5686
        %5757 = vmatprep.subr.bf16.mxu0 %v5685
        %5758 = vmatpush2.bf16.msra.mxu0 %v5684
        %5759 = vmatprep.subr.bf16.mxu0 %v5683
        %5760 = vmatpush2.bf16.msra.mxu0 %v5682
        %5761 = vmatprep.mubr.bf16.mxu0 %v5727
        %5762 = vmatmul.mubr.bf16.gmra.mxu0 %v5573
        %v5763 = vpop.f32.mrf.mxu0
        %v5764 = vadd.f32 0.0, %v5763
        %v5765 = vpop.f32.mrf.mxu0
        %v5766 = vadd.f32 0.0, %v5765
        %v5767 = vpop.f32.mrf.mxu0
        %v5768 = vadd.f32 0.0, %v5767
        %v5769 = vpop.f32.mrf.mxu0
        %v5770 = vadd.f32 0.0, %v5769
        %5771 = vdwg.mxu0
        %v5772 = vld [vmem:[%s15] sm:$0xff]
        %v5773 = vld [vmem:[%s15 + $0x8] sm:$0xff]
        %5775 = vset.pattern.permute.xlu0 0
        %5776 = vperm.xlu0 %5775, %v5772
        %v5777 = vpop.permute.xlu0 %5776
        %5780 = vset.pattern.permute.xlu0 0
        %5781 = vperm.xlu0 %5780, %v5773
        %v5782 = vpop.permute.xlu0 %5781
        %v5784 = vmul.f32 %v5764, %v5777
        %v5785 = vmul.f32 %v5766, %v5777
        %v5786 = vmul.f32 %v5768, %v5782
        %v5787 = vmul.f32 %v5770, %v5782
        %5788 = vset.pattern.permute.xlu0 1
        %5789 = vperm.xlu0 %5788, %v5772
        %v5790 = vpop.permute.xlu0 %5789
        %5792 = vset.pattern.permute.xlu0 1
        %5793 = vperm.xlu0 %5792, %v5773
        %v5794 = vpop.permute.xlu0 %5793
        %v5796 = vadd.f32 %v5784, %v5790
        %v5797 = vadd.f32 %v5785, %v5790
        %v5798 = vadd.f32 %v5786, %v5794
        %v5799 = vadd.f32 %v5787, %v5794
        %vm5800 = vcmp.gt.f32.partialorder %v5796, 0.0
        %vm5801 = vcmp.gt.f32.partialorder %v5797, 0.0
        %vm5802 = vcmp.gt.f32.partialorder %v5798, 0.0
        %vm5803 = vcmp.gt.f32.partialorder %v5799, 0.0
        %v5804 = vmul.f32 %v5796, 0.1
        %v5805 = vmul.f32 %v5797, 0.1
        %v5806 = vmul.f32 %v5798, 0.1
        %v5807 = vmul.f32 %v5799, 0.1
        %v5808 = vsel %vm5800, %v5796, %v5804
        %v5809 = vsel %vm5801, %v5797, %v5805
        %v5810 = vsel %vm5802, %v5798, %v5806
        %v5811 = vsel %vm5803, %v5799, %v5807
        %v5812 = vpack.c.bf16 %v5810, %v5808
        %v5813 = vpack.c.bf16 %v5811, %v5809
        %v5816 = vunpack.c.l.b16 %v5812
        %v5817 = vunpack.c.l.b16 %v5813
        %v5818 = vunpack.c.h.b16 %v5812
        %v5819 = vunpack.c.h.b16 %v5813
        %v5820 = vpack.c.b16 %v5817, %v5816
        %v5821 = vpack.c.b16 %v5819, %v5818
        %5824 = vst [vmem:[#allocation3 + $0x4] sm:$0xff] %v5820
        %5825 = vst [vmem:[#allocation3 + $0x1c] sm:$0xff] %v5821
        %5826 = vst [vmem:[#allocation3 + $0xc] sm:$0xf] 0
        %5827 = vst [vmem:[#allocation3 + $0x24] sm:$0xf] 0
        %v5828 = vld [vmem:[#allocation3] sm:$0xff]
        %v5829 = vld [vmem:[#allocation3 + $0x8] sm:$0xf]
        %v5830 = vld [vmem:[#allocation3 + $0x18] sm:$0xff]
        %v5831 = vld [vmem:[#allocation3 + $0x20] sm:$0xf]
        %5836 = vrot.lane.b32.xlu0 %v5828, 7
        %v5837 = vpop.permute.xlu0 %5836
        %5838 = vrot.lane.b32.xlu0 %v5829, 7
        %v5839 = vpop.permute.xlu0 %5838
        %5840 = vrot.lane.b32.xlu0 %v5830, 7
        %v5841 = vpop.permute.xlu0 %5840
        %5842 = vrot.lane.b32.xlu0 %v5831, 7
        %v5843 = vpop.permute.xlu0 %5842
        %v5844 = vrot.slane %v5837, 4
        %v5845 = vrot.slane %v5839, 4
        %v5846 = vrot.slane %v5841, 4
        %v5847 = vrot.slane %v5843, 4
        %v5848 = vsel %vm635, %v5844, %v5845
        %v5849 = vsel %vm637, %v5837, %v5848
        %v5850 = vsel %vm635, %v5846, %v5847
        %v5851 = vsel %vm637, %v5841, %v5850
        %5854 = vst [vmem:[#allocation4] sm:$0xff] %v5849
        %5855 = vst [vmem:[#allocation4 + $0x10] sm:$0xff] %v5851
        %v5856 = vld [vmem:[#allocation3] sm:$0xff]
        %v5857 = vld [vmem:[#allocation3 + $0x8] sm:$0xf]
        %v5858 = vld [vmem:[#allocation3 + $0x18] sm:$0xff]
        %v5859 = vld [vmem:[#allocation3 + $0x20] sm:$0xf]
        %5864 = vrot.lane.b32.xlu0 %v5856, 6
        %v5865 = vpop.permute.xlu0 %5864
        %5866 = vrot.lane.b32.xlu0 %v5857, 6
        %v5867 = vpop.permute.xlu0 %5866
        %5868 = vrot.lane.b32.xlu0 %v5858, 6
        %v5869 = vpop.permute.xlu0 %5868
        %5870 = vrot.lane.b32.xlu0 %v5859, 6
        %v5871 = vpop.permute.xlu0 %5870
        %v5872 = vrot.slane %v5865, 4
        %v5873 = vrot.slane %v5867, 4
        %v5874 = vrot.slane %v5869, 4
        %v5875 = vrot.slane %v5871, 4
        %v5876 = vsel %vm635, %v5872, %v5873
        %v5877 = vsel %vm661, %v5865, %v5876
        %v5878 = vsel %vm635, %v5874, %v5875
        %v5879 = vsel %vm661, %v5869, %v5878
        %5882 = vst [vmem:[#allocation4 + $0x20] sm:$0xff] %v5877
        %5883 = vst [vmem:[#allocation4 + $0x30] sm:$0xff] %v5879
        %v5884 = vld [vmem:[#allocation3] sm:$0xff]
        %v5885 = vld [vmem:[#allocation3 + $0x8] sm:$0xf]
        %v5886 = vld [vmem:[#allocation3 + $0x18] sm:$0xff]
        %v5887 = vld [vmem:[#allocation3 + $0x20] sm:$0xf]
        %5892 = vrot.lane.b32.xlu0 %v5884, 5
        %v5893 = vpop.permute.xlu0 %5892
        %5894 = vrot.lane.b32.xlu0 %v5885, 5
        %v5895 = vpop.permute.xlu0 %5894
        %5896 = vrot.lane.b32.xlu0 %v5886, 5
        %v5897 = vpop.permute.xlu0 %5896
        %5898 = vrot.lane.b32.xlu0 %v5887, 5
        %v5899 = vpop.permute.xlu0 %5898
        %v5900 = vrot.slane %v5893, 4
        %v5901 = vrot.slane %v5895, 4
        %v5902 = vrot.slane %v5897, 4
        %v5903 = vrot.slane %v5899, 4
        %v5904 = vsel %vm635, %v5900, %v5901
        %v5905 = vsel %vm685, %v5893, %v5904
        %v5906 = vsel %vm635, %v5902, %v5903
        %v5907 = vsel %vm685, %v5897, %v5906
        %5910 = vst [vmem:[#allocation4 + $0x40] sm:$0xff] %v5905
        %5911 = vst [vmem:[#allocation4 + $0x50] sm:$0xff] %v5907
        %v5912 = vld [vmem:[#allocation3] sm:$0xff]
        %v5913 = vld [vmem:[#allocation3 + $0x8] sm:$0xf]
        %v5914 = vld [vmem:[#allocation3 + $0x18] sm:$0xff]
        %v5915 = vld [vmem:[#allocation3 + $0x20] sm:$0xf]
        %5920 = vrot.lane.b32.xlu0 %v5912, 4
        %v5921 = vpop.permute.xlu0 %5920
        %5922 = vrot.lane.b32.xlu0 %v5913, 4
        %v5923 = vpop.permute.xlu0 %5922
        %5924 = vrot.lane.b32.xlu0 %v5914, 4
        %v5925 = vpop.permute.xlu0 %5924
        %5926 = vrot.lane.b32.xlu0 %v5915, 4
        %v5927 = vpop.permute.xlu0 %5926
        %v5928 = vrot.slane %v5921, 4
        %v5929 = vrot.slane %v5923, 4
        %v5930 = vrot.slane %v5925, 4
        %v5931 = vrot.slane %v5927, 4
        %v5932 = vsel %vm635, %v5928, %v5929
        %v5933 = vsel %vm709, %v5921, %v5932
        %v5934 = vsel %vm635, %v5930, %v5931
        %v5935 = vsel %vm709, %v5925, %v5934
        %5938 = vst [vmem:[#allocation4 + $0x60] sm:$0xff] %v5933
        %5939 = vst [vmem:[#allocation4 + $0x70] sm:$0xff] %v5935
        %v5940 = vld [vmem:[#allocation3] sm:$0xff]
        %v5941 = vld [vmem:[#allocation3 + $0x8] sm:$0xf]
        %v5942 = vld [vmem:[#allocation3 + $0x18] sm:$0xff]
        %v5943 = vld [vmem:[#allocation3 + $0x20] sm:$0xf]
        %5948 = vrot.lane.b32.xlu0 %v5940, 3
        %v5949 = vpop.permute.xlu0 %5948
        %5950 = vrot.lane.b32.xlu0 %v5941, 3
        %v5951 = vpop.permute.xlu0 %5950
        %5952 = vrot.lane.b32.xlu0 %v5942, 3
        %v5953 = vpop.permute.xlu0 %5952
        %5954 = vrot.lane.b32.xlu0 %v5943, 3
        %v5955 = vpop.permute.xlu0 %5954
        %v5956 = vrot.slane %v5949, 4
        %v5957 = vrot.slane %v5951, 4
        %v5958 = vrot.slane %v5953, 4
        %v5959 = vrot.slane %v5955, 4
        %v5960 = vsel %vm635, %v5956, %v5957
        %v5961 = vsel %vm733, %v5949, %v5960
        %v5962 = vsel %vm635, %v5958, %v5959
        %v5963 = vsel %vm733, %v5953, %v5962
        %5966 = vst [vmem:[#allocation4 + $0x80] sm:$0xff] %v5961
        %5967 = vst [vmem:[#allocation4 + $0x90] sm:$0xff] %v5963
        %v5968 = vld [vmem:[#allocation3] sm:$0xff]
        %v5969 = vld [vmem:[#allocation3 + $0x8] sm:$0xf]
        %v5970 = vld [vmem:[#allocation3 + $0x18] sm:$0xff]
        %v5971 = vld [vmem:[#allocation3 + $0x20] sm:$0xf]
        %5976 = vrot.lane.b32.xlu0 %v5968, 2
        %v5977 = vpop.permute.xlu0 %5976
        %5978 = vrot.lane.b32.xlu0 %v5969, 2
        %v5979 = vpop.permute.xlu0 %5978
        %5980 = vrot.lane.b32.xlu0 %v5970, 2
        %v5981 = vpop.permute.xlu0 %5980
        %5982 = vrot.lane.b32.xlu0 %v5971, 2
        %v5983 = vpop.permute.xlu0 %5982
        %v5984 = vrot.slane %v5977, 4
        %v5985 = vrot.slane %v5979, 4
        %v5986 = vrot.slane %v5981, 4
        %v5987 = vrot.slane %v5983, 4
        %v5988 = vsel %vm635, %v5984, %v5985
        %v5989 = vsel %vm757, %v5977, %v5988
        %v5990 = vsel %vm635, %v5986, %v5987
        %v5991 = vsel %vm757, %v5981, %v5990
        %5994 = vst [vmem:[#allocation4 + $0xa0] sm:$0xff] %v5989
        %5995 = vst [vmem:[#allocation4 + $0xb0] sm:$0xff] %v5991
        %v5996 = vld [vmem:[#allocation3] sm:$0xff]
        %v5997 = vld [vmem:[#allocation3 + $0x8] sm:$0xf]
        %v5998 = vld [vmem:[#allocation3 + $0x18] sm:$0xff]
        %v5999 = vld [vmem:[#allocation3 + $0x20] sm:$0xf]
        %6004 = vrot.lane.b32.xlu0 %v5996, 1
        %v6005 = vpop.permute.xlu0 %6004
        %6006 = vrot.lane.b32.xlu0 %v5997, 1
        %v6007 = vpop.permute.xlu0 %6006
        %6008 = vrot.lane.b32.xlu0 %v5998, 1
        %v6009 = vpop.permute.xlu0 %6008
        %6010 = vrot.lane.b32.xlu0 %v5999, 1
        %v6011 = vpop.permute.xlu0 %6010
        %v6012 = vrot.slane %v6005, 4
        %v6013 = vrot.slane %v6007, 4
        %v6014 = vrot.slane %v6009, 4
        %v6015 = vrot.slane %v6011, 4
        %v6016 = vsel %vm635, %v6012, %v6013
        %v6017 = vsel %vm781, %v6005, %v6016
        %v6018 = vsel %vm635, %v6014, %v6015
        %v6019 = vsel %vm781, %v6009, %v6018
        %6022 = vst [vmem:[#allocation4 + $0xc0] sm:$0xff] %v6017
        %6023 = vst [vmem:[#allocation4 + $0xd0] sm:$0xff] %v6019
        %v6024 = vld [vmem:[#allocation3 + $0x4] sm:$0xff]
        %v6025 = vld [vmem:[#allocation3 + $0x1c] sm:$0xff]
        %6026 = vst [vmem:[#allocation4 + $0xe0] sm:$0xff] %v6024
        %6027 = vst [vmem:[#allocation4 + $0xf0] sm:$0xff] %v6025
        %v6028 = vld [vmem:[#allocation3 + $0x4] sm:$0xff]
        %v6029 = vld [vmem:[#allocation3 + $0xc] sm:$0xf]
        %v6030 = vld [vmem:[#allocation3 + $0x1c] sm:$0xff]
        %v6031 = vld [vmem:[#allocation3 + $0x24] sm:$0xf]
        %6036 = vrot.lane.b32.xlu0 %v6028, 127
        %v6037 = vpop.permute.xlu0 %6036
        %6038 = vrot.lane.b32.xlu0 %v6029, 127
        %v6039 = vpop.permute.xlu0 %6038
        %6040 = vrot.lane.b32.xlu0 %v6030, 127
        %v6041 = vpop.permute.xlu0 %6040
        %6042 = vrot.lane.b32.xlu0 %v6031, 127
        %v6043 = vpop.permute.xlu0 %6042
        %v6044 = vrot.slane %v6037, 4
        %v6045 = vrot.slane %v6039, 4
        %v6046 = vrot.slane %v6041, 4
        %v6047 = vrot.slane %v6043, 4
        %v6048 = vsel %vm635, %v6044, %v6045
        %v6049 = vsel %vm809, %v6037, %v6048
        %v6050 = vsel %vm635, %v6046, %v6047
        %v6051 = vsel %vm809, %v6041, %v6050
        %6054 = vst [vmem:[#allocation4 + $0x100] sm:$0xff] %v6049
        %6055 = vst [vmem:[#allocation4 + $0x110] sm:$0xff] %v6051
        %v6056 = vld [vmem:[#allocation3 + $0x4] sm:$0xff]
        %v6057 = vld [vmem:[#allocation3 + $0xc] sm:$0xf]
        %v6058 = vld [vmem:[#allocation3 + $0x1c] sm:$0xff]
        %v6059 = vld [vmem:[#allocation3 + $0x24] sm:$0xf]
        %6064 = vrot.lane.b32.xlu0 %v6056, 126
        %v6065 = vpop.permute.xlu0 %6064
        %6066 = vrot.lane.b32.xlu0 %v6057, 126
        %v6067 = vpop.permute.xlu0 %6066
        %6068 = vrot.lane.b32.xlu0 %v6058, 126
        %v6069 = vpop.permute.xlu0 %6068
        %6070 = vrot.lane.b32.xlu0 %v6059, 126
        %v6071 = vpop.permute.xlu0 %6070
        %v6072 = vrot.slane %v6065, 4
        %v6073 = vrot.slane %v6067, 4
        %v6074 = vrot.slane %v6069, 4
        %v6075 = vrot.slane %v6071, 4
        %v6076 = vsel %vm635, %v6072, %v6073
        %v6077 = vsel %vm833, %v6065, %v6076
        %v6078 = vsel %vm635, %v6074, %v6075
        %v6079 = vsel %vm833, %v6069, %v6078
        %6082 = vst [vmem:[#allocation4 + $0x120] sm:$0xff] %v6077
        %6083 = vst [vmem:[#allocation4 + $0x130] sm:$0xff] %v6079
        %v6084 = vld [vmem:[#allocation3 + $0x4] sm:$0xff]
        %v6085 = vld [vmem:[#allocation3 + $0xc] sm:$0xf]
        %v6086 = vld [vmem:[#allocation3 + $0x1c] sm:$0xff]
        %v6087 = vld [vmem:[#allocation3 + $0x24] sm:$0xf]
        %6092 = vrot.lane.b32.xlu0 %v6084, 125
        %v6093 = vpop.permute.xlu0 %6092
        %6094 = vrot.lane.b32.xlu0 %v6085, 125
        %v6095 = vpop.permute.xlu0 %6094
        %6096 = vrot.lane.b32.xlu0 %v6086, 125
        %v6097 = vpop.permute.xlu0 %6096
        %6098 = vrot.lane.b32.xlu0 %v6087, 125
        %v6099 = vpop.permute.xlu0 %6098
        %v6100 = vrot.slane %v6093, 4
        %v6101 = vrot.slane %v6095, 4
        %v6102 = vrot.slane %v6097, 4
        %v6103 = vrot.slane %v6099, 4
        %v6104 = vsel %vm635, %v6100, %v6101
        %v6105 = vsel %vm857, %v6093, %v6104
        %v6106 = vsel %vm635, %v6102, %v6103
        %v6107 = vsel %vm857, %v6097, %v6106
        %6110 = vst [vmem:[#allocation4 + $0x140] sm:$0xff] %v6105
        %6111 = vst [vmem:[#allocation4 + $0x150] sm:$0xff] %v6107
        %v6112 = vld [vmem:[#allocation3 + $0x4] sm:$0xff]
        %v6113 = vld [vmem:[#allocation3 + $0xc] sm:$0xf]
        %v6114 = vld [vmem:[#allocation3 + $0x1c] sm:$0xff]
        %v6115 = vld [vmem:[#allocation3 + $0x24] sm:$0xf]
        %6120 = vrot.lane.b32.xlu0 %v6112, 124
        %v6121 = vpop.permute.xlu0 %6120
        %6122 = vrot.lane.b32.xlu0 %v6113, 124
        %v6123 = vpop.permute.xlu0 %6122
        %6124 = vrot.lane.b32.xlu0 %v6114, 124
        %v6125 = vpop.permute.xlu0 %6124
        %6126 = vrot.lane.b32.xlu0 %v6115, 124
        %v6127 = vpop.permute.xlu0 %6126
        %v6128 = vrot.slane %v6121, 4
        %v6129 = vrot.slane %v6123, 4
        %v6130 = vrot.slane %v6125, 4
        %v6131 = vrot.slane %v6127, 4
        %v6132 = vsel %vm635, %v6128, %v6129
        %v6133 = vsel %vm881, %v6121, %v6132
        %v6134 = vsel %vm635, %v6130, %v6131
        %v6135 = vsel %vm881, %v6125, %v6134
        %6138 = vst [vmem:[#allocation4 + $0x160] sm:$0xff] %v6133
        %6139 = vst [vmem:[#allocation4 + $0x170] sm:$0xff] %v6135
        %v6140 = vld [vmem:[#allocation3 + $0x4] sm:$0xff]
        %v6141 = vld [vmem:[#allocation3 + $0xc] sm:$0xf]
        %v6142 = vld [vmem:[#allocation3 + $0x1c] sm:$0xff]
        %v6143 = vld [vmem:[#allocation3 + $0x24] sm:$0xf]
        %6148 = vrot.lane.b32.xlu0 %v6140, 123
        %v6149 = vpop.permute.xlu0 %6148
        %6150 = vrot.lane.b32.xlu0 %v6141, 123
        %v6151 = vpop.permute.xlu0 %6150
        %6152 = vrot.lane.b32.xlu0 %v6142, 123
        %v6153 = vpop.permute.xlu0 %6152
        %6154 = vrot.lane.b32.xlu0 %v6143, 123
        %v6155 = vpop.permute.xlu0 %6154
        %v6156 = vrot.slane %v6149, 4
        %v6157 = vrot.slane %v6151, 4
        %v6158 = vrot.slane %v6153, 4
        %v6159 = vrot.slane %v6155, 4
        %v6160 = vsel %vm635, %v6156, %v6157
        %v6161 = vsel %vm905, %v6149, %v6160
        %v6162 = vsel %vm635, %v6158, %v6159
        %v6163 = vsel %vm905, %v6153, %v6162
        %6166 = vst [vmem:[#allocation4 + $0x180] sm:$0xff] %v6161
        %6167 = vst [vmem:[#allocation4 + $0x190] sm:$0xff] %v6163
        %v6168 = vld [vmem:[#allocation3 + $0x4] sm:$0xff]
        %v6169 = vld [vmem:[#allocation3 + $0xc] sm:$0xf]
        %v6170 = vld [vmem:[#allocation3 + $0x1c] sm:$0xff]
        %v6171 = vld [vmem:[#allocation3 + $0x24] sm:$0xf]
        %6176 = vrot.lane.b32.xlu0 %v6168, 122
        %v6177 = vpop.permute.xlu0 %6176
        %6178 = vrot.lane.b32.xlu0 %v6169, 122
        %v6179 = vpop.permute.xlu0 %6178
        %6180 = vrot.lane.b32.xlu0 %v6170, 122
        %v6181 = vpop.permute.xlu0 %6180
        %6182 = vrot.lane.b32.xlu0 %v6171, 122
        %v6183 = vpop.permute.xlu0 %6182
        %v6184 = vrot.slane %v6177, 4
        %v6185 = vrot.slane %v6179, 4
        %v6186 = vrot.slane %v6181, 4
        %v6187 = vrot.slane %v6183, 4
        %v6188 = vsel %vm635, %v6184, %v6185
        %v6189 = vsel %vm929, %v6177, %v6188
        %v6190 = vsel %vm635, %v6186, %v6187
        %v6191 = vsel %vm929, %v6181, %v6190
        %6194 = vst [vmem:[#allocation4 + $0x1a0] sm:$0xff] %v6189
        %6195 = vst [vmem:[#allocation4 + $0x1b0] sm:$0xff] %v6191
        %v6196 = vld [vmem:[#allocation3 + $0x4] sm:$0xff]
        %v6197 = vld [vmem:[#allocation3 + $0xc] sm:$0xf]
        %v6198 = vld [vmem:[#allocation3 + $0x1c] sm:$0xff]
        %v6199 = vld [vmem:[#allocation3 + $0x24] sm:$0xf]
        %6204 = vrot.lane.b32.xlu0 %v6196, 121
        %v6205 = vpop.permute.xlu0 %6204
        %6206 = vrot.lane.b32.xlu0 %v6197, 121
        %v6207 = vpop.permute.xlu0 %6206
        %6208 = vrot.lane.b32.xlu0 %v6198, 121
        %v6209 = vpop.permute.xlu0 %6208
        %6210 = vrot.lane.b32.xlu0 %v6199, 121
        %v6211 = vpop.permute.xlu0 %6210
        %v6212 = vrot.slane %v6205, 4
        %v6213 = vrot.slane %v6207, 4
        %v6214 = vrot.slane %v6209, 4
        %v6215 = vrot.slane %v6211, 4
        %v6216 = vsel %vm635, %v6212, %v6213
        %v6217 = vsel %vm953, %v6205, %v6216
        %v6218 = vsel %vm635, %v6214, %v6215
        %v6219 = vsel %vm953, %v6209, %v6218
        %6222 = vst [vmem:[#allocation4 + $0x1c0] sm:$0xff] %v6217
        %6223 = vst [vmem:[#allocation4 + $0x1d0] sm:$0xff] %v6219
        %v6224 = vld [vmem:[%s8] sm:$0xff]
        %v6225 = vld [vmem:[%s8 + $0x8] sm:$0xff]
        %v6226 = vld [vmem:[%s8 + $0x10] sm:$0xff]
        %v6227 = vld [vmem:[%s8 + $0x18] sm:$0xff]
        %v6228 = vld [vmem:[#allocation4] sm:$0xff]
        %v6229 = vld [vmem:[#allocation4 + $0x10] sm:$0xff]
        %v6230 = vld [vmem:[#allocation4 + $0x20] sm:$0xff]
        %v6231 = vld [vmem:[#allocation4 + $0x30] sm:$0xff]
        %v6232 = vld [vmem:[#allocation4 + $0x40] sm:$0xff]
        %v6233 = vld [vmem:[#allocation4 + $0x50] sm:$0xff]
        %v6234 = vld [vmem:[#allocation4 + $0x60] sm:$0xff]
        %v6235 = vld [vmem:[#allocation4 + $0x70] sm:$0xff]
        %v6236 = vld [vmem:[#allocation4 + $0x80] sm:$0xff]
        %v6237 = vld [vmem:[#allocation4 + $0x90] sm:$0xff]
        %v6238 = vld [vmem:[#allocation4 + $0xa0] sm:$0xff]
        %v6239 = vld [vmem:[#allocation4 + $0xb0] sm:$0xff]
        %v6240 = vld [vmem:[#allocation4 + $0xc0] sm:$0xff]
        %v6241 = vld [vmem:[#allocation4 + $0xd0] sm:$0xff]
        %v6242 = vld [vmem:[#allocation4 + $0xe0] sm:$0xff]
        %v6243 = vld [vmem:[#allocation4 + $0xf0] sm:$0xff]
        %v6244 = vld [vmem:[#allocation4 + $0x100] sm:$0xff]
        %v6245 = vld [vmem:[#allocation4 + $0x110] sm:$0xff]
        %v6246 = vld [vmem:[#allocation4 + $0x120] sm:$0xff]
        %v6247 = vld [vmem:[#allocation4 + $0x130] sm:$0xff]
        %v6248 = vld [vmem:[#allocation4 + $0x140] sm:$0xff]
        %v6249 = vld [vmem:[#allocation4 + $0x150] sm:$0xff]
        %v6250 = vld [vmem:[#allocation4 + $0x160] sm:$0xff]
        %v6251 = vld [vmem:[#allocation4 + $0x170] sm:$0xff]
        %v6252 = vld [vmem:[#allocation4 + $0x180] sm:$0xff]
        %v6253 = vld [vmem:[#allocation4 + $0x190] sm:$0xff]
        %v6254 = vld [vmem:[#allocation4 + $0x1a0] sm:$0xff]
        %v6255 = vld [vmem:[#allocation4 + $0x1b0] sm:$0xff]
        %v6256 = vld [vmem:[#allocation4 + $0x1c0] sm:$0xff]
        %v6257 = vld [vmem:[#allocation4 + $0x1d0] sm:$0xff]
        %v6262 = vunpack.c.l.b16 %v6224
        %v6263 = vunpack.c.h.b16 %v6224
        %v6264 = vunpack.c.l.b16 %v6225
        %v6265 = vunpack.c.h.b16 %v6225
        %v6266 = vunpack.c.l.b16 %v6226
        %v6267 = vunpack.c.h.b16 %v6226
        %v6268 = vunpack.c.l.b16 %v6227
        %v6269 = vunpack.c.h.b16 %v6227
        %v6270 = vpack.c.b16 %v6264, %v6262
        %v6271 = vpack.c.b16 %v6265, %v6263
        %v6272 = vpack.c.b16 %v6268, %v6266
        %v6273 = vpack.c.b16 %v6269, %v6267
        %v6306 = vunpack.c.l.b16 %v6228
        %v6307 = vunpack.c.h.b16 %v6228
        %v6308 = vunpack.c.l.b16 %v6229
        %v6309 = vunpack.c.h.b16 %v6229
        %v6310 = vunpack.c.l.b16 %v6230
        %v6311 = vunpack.c.h.b16 %v6230
        %v6312 = vunpack.c.l.b16 %v6231
        %v6313 = vunpack.c.h.b16 %v6231
        %v6314 = vunpack.c.l.b16 %v6232
        %v6315 = vunpack.c.h.b16 %v6232
        %v6316 = vunpack.c.l.b16 %v6233
        %v6317 = vunpack.c.h.b16 %v6233
        %v6318 = vunpack.c.l.b16 %v6234
        %v6319 = vunpack.c.h.b16 %v6234
        %v6320 = vunpack.c.l.b16 %v6235
        %v6321 = vunpack.c.h.b16 %v6235
        %v6322 = vunpack.c.l.b16 %v6236
        %v6323 = vunpack.c.h.b16 %v6236
        %v6324 = vunpack.c.l.b16 %v6237
        %v6325 = vunpack.c.h.b16 %v6237
        %v6326 = vunpack.c.l.b16 %v6238
        %v6327 = vunpack.c.h.b16 %v6238
        %v6328 = vunpack.c.l.b16 %v6239
        %v6329 = vunpack.c.h.b16 %v6239
        %v6330 = vunpack.c.l.b16 %v6240
        %v6331 = vunpack.c.h.b16 %v6240
        %v6332 = vunpack.c.l.b16 %v6241
        %v6333 = vunpack.c.h.b16 %v6241
        %v6334 = vunpack.c.l.b16 %v6242
        %v6335 = vunpack.c.h.b16 %v6242
        %v6336 = vunpack.c.l.b16 %v6243
        %v6337 = vunpack.c.h.b16 %v6243
        %v6338 = vunpack.c.l.b16 %v6244
        %v6339 = vunpack.c.h.b16 %v6244
        %v6340 = vunpack.c.l.b16 %v6245
        %v6341 = vunpack.c.h.b16 %v6245
        %v6342 = vunpack.c.l.b16 %v6246
        %v6343 = vunpack.c.h.b16 %v6246
        %v6344 = vunpack.c.l.b16 %v6247
        %v6345 = vunpack.c.h.b16 %v6247
        %v6346 = vunpack.c.l.b16 %v6248
        %v6347 = vunpack.c.h.b16 %v6248
        %v6348 = vunpack.c.l.b16 %v6249
        %v6349 = vunpack.c.h.b16 %v6249
        %v6350 = vunpack.c.l.b16 %v6250
        %v6351 = vunpack.c.h.b16 %v6250
        %v6352 = vunpack.c.l.b16 %v6251
        %v6353 = vunpack.c.h.b16 %v6251
        %v6354 = vunpack.c.l.b16 %v6252
        %v6355 = vunpack.c.h.b16 %v6252
        %v6356 = vunpack.c.l.b16 %v6253
        %v6357 = vunpack.c.h.b16 %v6253
        %v6358 = vunpack.c.l.b16 %v6254
        %v6359 = vunpack.c.h.b16 %v6254
        %v6360 = vunpack.c.l.b16 %v6255
        %v6361 = vunpack.c.h.b16 %v6255
        %v6362 = vunpack.c.l.b16 %v6256
        %v6363 = vunpack.c.h.b16 %v6256
        %v6364 = vunpack.c.l.b16 %v6257
        %v6365 = vunpack.c.h.b16 %v6257
        %v6366 = vpack.c.b16 %v6308, %v6306
        %v6367 = vpack.c.b16 %v6309, %v6307
        %v6368 = vpack.c.b16 %v6312, %v6310
        %v6369 = vpack.c.b16 %v6313, %v6311
        %v6370 = vpack.c.b16 %v6316, %v6314
        %v6371 = vpack.c.b16 %v6317, %v6315
        %v6372 = vpack.c.b16 %v6320, %v6318
        %v6373 = vpack.c.b16 %v6321, %v6319
        %v6374 = vpack.c.b16 %v6324, %v6322
        %v6375 = vpack.c.b16 %v6325, %v6323
        %v6376 = vpack.c.b16 %v6328, %v6326
        %v6377 = vpack.c.b16 %v6329, %v6327
        %v6378 = vpack.c.b16 %v6332, %v6330
        %v6379 = vpack.c.b16 %v6333, %v6331
        %v6380 = vpack.c.b16 %v6336, %v6334
        %v6381 = vpack.c.b16 %v6337, %v6335
        %v6382 = vpack.c.b16 %v6340, %v6338
        %v6383 = vpack.c.b16 %v6341, %v6339
        %v6384 = vpack.c.b16 %v6344, %v6342
        %v6385 = vpack.c.b16 %v6345, %v6343
        %v6386 = vpack.c.b16 %v6348, %v6346
        %v6387 = vpack.c.b16 %v6349, %v6347
        %v6388 = vpack.c.b16 %v6352, %v6350
        %v6389 = vpack.c.b16 %v6353, %v6351
        %v6390 = vpack.c.b16 %v6356, %v6354
        %v6391 = vpack.c.b16 %v6357, %v6355
        %v6392 = vpack.c.b16 %v6360, %v6358
        %v6393 = vpack.c.b16 %v6361, %v6359
        %v6394 = vpack.c.b16 %v6364, %v6362
        %v6395 = vpack.c.b16 %v6365, %v6363
        %v6427 = vsel %vm4347, %v6271, 0
        %v6430 = vsel %vm4347, %v6273, 0
        %6432 = vmatprep.subr.bf16.mxu0 %v6381
        %6433 = vmatpush1.bf16.msra.mxu0 %v6380
        %6434 = vmatprep.subr.bf16.mxu0 %v6379
        %6435 = vmatpush1.bf16.msra.mxu0 %v6378
        %6436 = vmatprep.subr.bf16.mxu0 %v6377
        %6437 = vmatpush1.bf16.msra.mxu0 %v6376
        %6438 = vmatprep.subr.bf16.mxu0 %v6375
        %6439 = vmatpush1.bf16.msra.mxu0 %v6374
        %6440 = vmatprep.subr.bf16.mxu0 %v6373
        %6441 = vmatpush1.bf16.msra.mxu0 %v6372
        %6442 = vmatprep.subr.bf16.mxu0 %v6371
        %6443 = vmatpush1.bf16.msra.mxu0 %v6370
        %6444 = vmatprep.subr.bf16.mxu0 %v6369
        %6445 = vmatpush1.bf16.msra.mxu0 %v6368
        %6446 = vmatprep.subr.bf16.mxu0 %v6367
        %6447 = vmatpush1.bf16.msra.mxu0 %v6366
        %6448 = vmatprep.subr.bf16.mxu0 0
        %6449 = vmatpush2.bf16.msra.mxu0 0
        %6450 = vmatprep.subr.bf16.mxu0 %v6395
        %6451 = vmatpush2.bf16.msra.mxu0 %v6394
        %6452 = vmatprep.subr.bf16.mxu0 %v6393
        %6453 = vmatpush2.bf16.msra.mxu0 %v6392
        %6454 = vmatprep.subr.bf16.mxu0 %v6391
        %6455 = vmatpush2.bf16.msra.mxu0 %v6390
        %6456 = vmatprep.subr.bf16.mxu0 %v6389
        %6457 = vmatpush2.bf16.msra.mxu0 %v6388
        %6458 = vmatprep.subr.bf16.mxu0 %v6387
        %6459 = vmatpush2.bf16.msra.mxu0 %v6386
        %6460 = vmatprep.subr.bf16.mxu0 %v6385
        %6461 = vmatpush2.bf16.msra.mxu0 %v6384
        %6462 = vmatprep.subr.bf16.mxu0 %v6383
        %6463 = vmatpush2.bf16.msra.mxu0 %v6382
        %6464 = vmatprep.mubr.bf16.mxu0 %v6427
        %6465 = vmatmul.mubr.bf16.gmra.mxu0 %v6270
        %v6466 = vpop.f32.mrf.mxu0
        %v6467 = vadd.f32 0.0, %v6466
        %v6468 = vpop.f32.mrf.mxu0
        %v6469 = vadd.f32 0.0, %v6468
        %v6470 = vpop.f32.mrf.mxu0
        %v6471 = vadd.f32 0.0, %v6470
        %v6472 = vpop.f32.mrf.mxu0
        %v6473 = vadd.f32 0.0, %v6472
        %6474 = vmatprep.mubr.bf16.mxu0 %v6430
        %6475 = vmatmul.mubr.bf16.gmra.mxu0 %v6272
        %v6476 = vpop.f32.mrf.mxu0
        %v6477 = vadd.f32 0.0, %v6476
        %v6478 = vpop.f32.mrf.mxu0
        %v6479 = vadd.f32 0.0, %v6478
        %v6480 = vpop.f32.mrf.mxu0
        %v6481 = vadd.f32 0.0, %v6480
        %v6482 = vpop.f32.mrf.mxu0
        %v6483 = vadd.f32 0.0, %v6482
        %6484 = vdwg.mxu0
        %v6485 = vld [vmem:[%s16] sm:$0xff]
        %v6486 = vld [vmem:[%s16 + $0x8] sm:$0xff]
        %v6487 = vld [vmem:[%s16 + $0x10] sm:$0xff]
        %v6488 = vld [vmem:[%s16 + $0x18] sm:$0xff]
        %6490 = vset.pattern.permute.xlu0 0
        %6491 = vperm.xlu0 %6490, %v6485
        %v6492 = vpop.permute.xlu0 %6491
        %6495 = vset.pattern.permute.xlu0 0
        %6496 = vperm.xlu0 %6495, %v6486
        %v6497 = vpop.permute.xlu0 %6496
        %6500 = vset.pattern.permute.xlu0 0
        %6501 = vperm.xlu0 %6500, %v6487
        %v6502 = vpop.permute.xlu0 %6501
        %6505 = vset.pattern.permute.xlu0 0
        %6506 = vperm.xlu0 %6505, %v6488
        %v6507 = vpop.permute.xlu0 %6506
        %v6509 = vmul.f32 %v6467, %v6492
        %v6510 = vmul.f32 %v6469, %v6492
        %v6511 = vmul.f32 %v6471, %v6497
        %v6512 = vmul.f32 %v6473, %v6497
        %v6513 = vmul.f32 %v6477, %v6502
        %v6514 = vmul.f32 %v6479, %v6502
        %v6515 = vmul.f32 %v6481, %v6507
        %v6516 = vmul.f32 %v6483, %v6507
        %6517 = vset.pattern.permute.xlu0 1
        %6518 = vperm.xlu0 %6517, %v6485
        %v6519 = vpop.permute.xlu0 %6518
        %6521 = vset.pattern.permute.xlu0 1
        %6522 = vperm.xlu0 %6521, %v6486
        %v6523 = vpop.permute.xlu0 %6522
        %6525 = vset.pattern.permute.xlu0 1
        %6526 = vperm.xlu0 %6525, %v6487
        %v6527 = vpop.permute.xlu0 %6526
        %6529 = vset.pattern.permute.xlu0 1
        %6530 = vperm.xlu0 %6529, %v6488
        %v6531 = vpop.permute.xlu0 %6530
        %v6533 = vadd.f32 %v6509, %v6519
        %v6534 = vadd.f32 %v6510, %v6519
        %v6535 = vadd.f32 %v6511, %v6523
        %v6536 = vadd.f32 %v6512, %v6523
        %v6537 = vadd.f32 %v6513, %v6527
        %v6538 = vadd.f32 %v6514, %v6527
        %v6539 = vadd.f32 %v6515, %v6531
        %v6540 = vadd.f32 %v6516, %v6531
        %vm6541 = vcmp.gt.f32.partialorder %v6533, 0.0
        %vm6542 = vcmp.gt.f32.partialorder %v6534, 0.0
        %vm6543 = vcmp.gt.f32.partialorder %v6535, 0.0
        %vm6544 = vcmp.gt.f32.partialorder %v6536, 0.0
        %vm6545 = vcmp.gt.f32.partialorder %v6537, 0.0
        %vm6546 = vcmp.gt.f32.partialorder %v6538, 0.0
        %vm6547 = vcmp.gt.f32.partialorder %v6539, 0.0
        %vm6548 = vcmp.gt.f32.partialorder %v6540, 0.0
        %v6549 = vmul.f32 %v6533, 0.1
        %v6550 = vmul.f32 %v6534, 0.1
        %v6551 = vmul.f32 %v6535, 0.1
        %v6552 = vmul.f32 %v6536, 0.1
        %v6553 = vmul.f32 %v6537, 0.1
        %v6554 = vmul.f32 %v6538, 0.1
        %v6555 = vmul.f32 %v6539, 0.1
        %v6556 = vmul.f32 %v6540, 0.1
        %v6557 = vsel %vm6541, %v6533, %v6549
        %v6558 = vsel %vm6542, %v6534, %v6550
        %v6559 = vsel %vm6543, %v6535, %v6551
        %v6560 = vsel %vm6544, %v6536, %v6552
        %v6561 = vsel %vm6545, %v6537, %v6553
        %v6562 = vsel %vm6546, %v6538, %v6554
        %v6563 = vsel %vm6547, %v6539, %v6555
        %v6564 = vsel %vm6548, %v6540, %v6556
        %v6565 = vpack.c.bf16 %v6559, %v6557
        %v6566 = vpack.c.bf16 %v6560, %v6558
        %v6567 = vpack.c.bf16 %v6563, %v6561
        %v6568 = vpack.c.bf16 %v6564, %v6562
        %v6569 = vld [vmem:[#allocation5] sm:$0xf]
        %v6570 = vld [vmem:[#allocation5 + $0x8] sm:$0xf]
        %v6571 = vld [vmem:[#allocation5 + $0x10] sm:$0xf]
        %v6572 = vld [vmem:[#allocation5 + $0x18] sm:$0xf]
        %v6573 = vld [vmem:[#allocation5 + $0x20] sm:$0xf]
        %v6574 = vld [vmem:[#allocation5 + $0x28] sm:$0xf]
        %v6575 = vld [vmem:[#allocation5 + $0x30] sm:$0xf]
        %v6576 = vld [vmem:[#allocation5 + $0x38] sm:$0xf]
        %v6577 = vld [vmem:[#allocation5 + $0x40] sm:$0xf]
        %v6578 = vld [vmem:[#allocation5 + $0x48] sm:$0xf]
        %v6579 = vld [vmem:[#allocation5 + $0x50] sm:$0xf]
        %v6580 = vld [vmem:[#allocation5 + $0x58] sm:$0xf]
        %v6581 = vld [vmem:[#allocation5 + $0x60] sm:$0xf]
        %v6582 = vld [vmem:[#allocation5 + $0x68] sm:$0xf]
        %v6583 = vld [vmem:[#allocation5 + $0x70] sm:$0xf]
        %v6584 = vld [vmem:[#allocation5 + $0x78] sm:$0xf]
        %v6585 = vld [vmem:[#allocation5 + $0x80] sm:$0xf]
        %v6586 = vld [vmem:[#allocation5 + $0x88] sm:$0xf]
        %v6587 = vld [vmem:[#allocation5 + $0x90] sm:$0xf]
        %v6588 = vld [vmem:[#allocation5 + $0x98] sm:$0xf]
        %v6589 = vld [vmem:[#allocation5 + $0xa0] sm:$0xf]
        %v6590 = vld [vmem:[#allocation5 + $0xa8] sm:$0xf]
        %v6591 = vld [vmem:[#allocation5 + $0xb0] sm:$0xf]
        %v6592 = vld [vmem:[#allocation5 + $0xb8] sm:$0xf]
        %v6593 = vld [vmem:[#allocation5 + $0xc0] sm:$0xf]
        %v6594 = vld [vmem:[#allocation5 + $0xc8] sm:$0xf]
        %v6595 = vld [vmem:[#allocation5 + $0xd0] sm:$0xf]
        %v6596 = vld [vmem:[#allocation5 + $0xd8] sm:$0xf]
        %v6597 = vld [vmem:[#allocation5 + $0xe0] sm:$0xf]
        %v6598 = vld [vmem:[#allocation5 + $0xe8] sm:$0xf]
        %v6599 = vld [vmem:[#allocation5 + $0xf0] sm:$0xf]
        %v6600 = vld [vmem:[#allocation5 + $0xf8] sm:$0xf]
        %v6633 = vunpack.c.l.b16 %v6569
        %v6634 = vunpack.c.l.b16 %v6570
        %v6635 = vunpack.c.l.b16 %v6571
        %v6636 = vunpack.c.l.b16 %v6572
        %v6637 = vunpack.c.l.b16 %v6573
        %v6638 = vunpack.c.l.b16 %v6574
        %v6639 = vunpack.c.l.b16 %v6575
        %v6640 = vunpack.c.l.b16 %v6576
        %v6641 = vunpack.c.l.b16 %v6577
        %v6642 = vunpack.c.l.b16 %v6578
        %v6643 = vunpack.c.l.b16 %v6579
        %v6644 = vunpack.c.l.b16 %v6580
        %v6645 = vunpack.c.l.b16 %v6581
        %v6646 = vunpack.c.l.b16 %v6582
        %v6647 = vunpack.c.l.b16 %v6583
        %v6648 = vunpack.c.l.b16 %v6584
        %v6649 = vunpack.c.l.b16 %v6585
        %v6650 = vunpack.c.l.b16 %v6586
        %v6651 = vunpack.c.l.b16 %v6587
        %v6652 = vunpack.c.l.b16 %v6588
        %v6653 = vunpack.c.l.b16 %v6589
        %v6654 = vunpack.c.l.b16 %v6590
        %v6655 = vunpack.c.l.b16 %v6591
        %v6656 = vunpack.c.l.b16 %v6592
        %v6657 = vunpack.c.l.b16 %v6593
        %v6658 = vunpack.c.l.b16 %v6594
        %v6659 = vunpack.c.l.b16 %v6595
        %v6660 = vunpack.c.l.b16 %v6596
        %v6661 = vunpack.c.l.b16 %v6597
        %v6662 = vunpack.c.l.b16 %v6598
        %v6663 = vunpack.c.l.b16 %v6599
        %v6664 = vunpack.c.l.b16 %v6600
        %v6665 = vpack.c.b16 %v6634, %v6633
        %v6666 = vpack.c.b16 %v6636, %v6635
        %v6667 = vpack.c.b16 %v6638, %v6637
        %v6668 = vpack.c.b16 %v6640, %v6639
        %v6669 = vpack.c.b16 %v6642, %v6641
        %v6670 = vpack.c.b16 %v6644, %v6643
        %v6671 = vpack.c.b16 %v6646, %v6645
        %v6672 = vpack.c.b16 %v6648, %v6647
        %v6673 = vpack.c.b16 %v6650, %v6649
        %v6674 = vpack.c.b16 %v6652, %v6651
        %v6675 = vpack.c.b16 %v6654, %v6653
        %v6676 = vpack.c.b16 %v6656, %v6655
        %v6677 = vpack.c.b16 %v6658, %v6657
        %v6678 = vpack.c.b16 %v6660, %v6659
        %v6679 = vpack.c.b16 %v6662, %v6661
        %v6680 = vpack.c.b16 %v6664, %v6663
        %6697 = vmatprep.subr.bf16.mxu0 0
        %6698 = vmatpush1.bf16.msra.mxu0 %v6672
        %6699 = vmatprep.subr.bf16.mxu0 0
        %6700 = vmatpush1.bf16.msra.mxu0 %v6671
        %6701 = vmatprep.subr.bf16.mxu0 0
        %6702 = vmatpush1.bf16.msra.mxu0 %v6670
        %6703 = vmatprep.subr.bf16.mxu0 0
        %6704 = vmatpush1.bf16.msra.mxu0 %v6669
        %6705 = vmatprep.subr.bf16.mxu0 0
        %6706 = vmatpush1.bf16.msra.mxu0 %v6668
        %6707 = vmatprep.subr.bf16.mxu0 0
        %6708 = vmatpush1.bf16.msra.mxu0 %v6667
        %6709 = vmatprep.subr.bf16.mxu0 0
        %6710 = vmatpush1.bf16.msra.mxu0 %v6666
        %6711 = vmatprep.subr.bf16.mxu0 0
        %6712 = vmatpush1.bf16.msra.mxu0 %v6665
        %6713 = vmatprep.subr.bf16.mxu0 0
        %6714 = vmatpush2.bf16.msra.mxu0 %v6680
        %6715 = vmatprep.subr.bf16.mxu0 0
        %6716 = vmatpush2.bf16.msra.mxu0 %v6679
        %6717 = vmatprep.subr.bf16.mxu0 0
        %6718 = vmatpush2.bf16.msra.mxu0 %v6678
        %6719 = vmatprep.subr.bf16.mxu0 0
        %6720 = vmatpush2.bf16.msra.mxu0 %v6677
        %6721 = vmatprep.subr.bf16.mxu0 0
        %6722 = vmatpush2.bf16.msra.mxu0 %v6676
        %6723 = vmatprep.subr.bf16.mxu0 0
        %6724 = vmatpush2.bf16.msra.mxu0 %v6675
        %6725 = vmatprep.subr.bf16.mxu0 0
        %6726 = vmatpush2.bf16.msra.mxu0 %v6674
        %6727 = vmatprep.subr.bf16.mxu0 0
        %6728 = vmatpush2.bf16.msra.mxu0 %v6673
        %6729 = vmatprep.mubr.bf16.mxu0 %v6566
        %6730 = vmatmul.mubr.bf16.gmra.mxu0 %v6565
        %v6731 = vpop.f32.mrf.mxu0
        %v6732 = vadd.f32 0.0, %v6731
        %v6733 = vpop.f32.mrf.mxu0
        %v6734 = vpop.f32.mrf.mxu0
        %v6735 = vadd.f32 0.0, %v6734
        %v6736 = vpop.f32.mrf.mxu0
        %6737 = vmatprep.mubr.bf16.mxu0 %v6568
        %6738 = vmatmul.mubr.bf16.gmra.mxu0 %v6567
        %v6739 = vpop.f32.mrf.mxu0
        %v6740 = vadd.f32 0.0, %v6739
        %v6741 = vpop.f32.mrf.mxu0
        %v6742 = vpop.f32.mrf.mxu0
        %v6743 = vadd.f32 0.0, %v6742
        %v6744 = vpop.f32.mrf.mxu0
        %6745 = vdwg.mxu0
        %v6746 = vpack.c.bf16 %v6735, %v6732
        %v6747 = vpack.c.bf16 %v6743, %v6740
        %v6748 = vunpack.c.l.bf16 %v6746
        %v6749 = vunpack.c.h.bf16 %v6746
        %v6750 = vunpack.c.l.bf16 %v6747
        %v6751 = vunpack.c.h.bf16 %v6747
        %6752 = vadd.xlane.f32.xlu0 %v6748
        %v6753 = vpop.xlane.xlu0 %6752
        %6754 = vadd.xlane.f32.xlu0 %v6749
        %v6755 = vpop.xlane.xlu0 %6754
        %6756 = vadd.xlane.f32.xlu0 %v6750
        %v6757 = vpop.xlane.xlu0 %6756
        %6758 = vadd.xlane.f32.xlu0 %v6751
        %v6759 = vpop.xlane.xlu0 %6758
        %v6760 = vmul.f32 %v6753, 0.0078125
        %v6761 = vmul.f32 %v6755, 0.0078125
        %v6762 = vmul.f32 %v6757, 0.0078125
        %v6763 = vmul.f32 %v6759, 0.0078125
        %vm6764 = vcmask 7168
        %6765 = vst.msk [vmem:[%s590] sm:$0xff] %vm6764, %v6760
        %6766 = vst.msk [vmem:[%s590 + $0x8] sm:$0xff] %vm6764, %v6761
        %6767 = vst.msk [vmem:[%s590 + $0x10] sm:$0xff] %vm6764, %v6762
        %6768 = vst.msk [vmem:[%s590 + $0x18] sm:$0xff] %vm6764, %v6763
        %p6769 = scmp.lt.s32.totalorder %s30, 1
        %s6770 = scalar_select %p6769, %s30, 1
        %s6771 = smul.addr %s6770, 4
        %s6772 = smul.addr %s6771, 8
        %s6773 = scalar_lea.vmem %s18, %s6772
        // Predicated region
        $region97: #{tpu_custom_call.1} parent=91 // pred_check
          %p6774 = pneg %p431
        $region98: #{tpu_custom_call.1} parent=91 // pred_check_branch
          %6776 = sbr.rel (%p6774) target = $region100
        $region99: #{tpu_custom_call.1} parent=91 // pred_region
          _
        $region100: #{tpu_custom_call.1} parent=91 // pred_fallthru
          _
      $region92: #{tpu_custom_call.1} parent=5 // pred_fallthru
        _
      %p6777 = scmp.le.s32.totalorder 2, %s25
      // Predicated region
      $region101: #{tpu_custom_call.1} parent=5 // pred_check
        %p6778 = pneg %p6777
      $region102: #{tpu_custom_call.1} parent=5 // pred_check_branch
        %6780 = sbr.rel (%p6778) target = $region104
      $region103: #{tpu_custom_call.1} parent=5 // pred_region
        %s6781 = ssub.s32 %s25, 2
        // Predicated region
        $region105: #{tpu_custom_call.1} parent=103 // pred_check
          %p6782 = pneg %p437
        $region106: #{tpu_custom_call.1} parent=103 // pred_check_branch
          %6784 = sbr.rel (%p6782) target = $region108
        $region107: #{tpu_custom_call.1} parent=103 // pred_region
          %p6785 = scmp.lt.s32.totalorder %s31, 1
          %s6786 = scalar_select %p6785, %s31, 1
          %s6787 = smul.addr %s6786, 4
          %s6788 = smul.addr %s6787, 8
          %s6789 = scalar_lea.vmem %s18, %s6788
        $region108: #{tpu_custom_call.1} parent=103 // pred_fallthru
          _
      $region104: #{tpu_custom_call.1} parent=5 // pred_fallthru
        _
    $region6: #{tpu_custom_call.1} parent=1 // loop_footer
      %s29 = sadd.s32 1, %s25
    $region7: #{tpu_custom_call.1} parent=1 // loop_footer_branch
      %24 = sbr.rel target = $region3
    $region8: #{tpu_custom_call.1} parent=1 // loop_exit
      _
    %6790 = vsyncpa [#allocation6], 1
    %s6791 = scalar_lea.sflag [#allocation6], 1
    %6792 = vsyncpa %s6791, 1

</llo_original>
